<compile_context>
chip_gen: v7x
topology: tpu7x:2x2x1
jax: 0.10.0
libtpu: 0.0.40
codegen_flags: <defaults>
</compile_context>

<pallas_src>
import jax
import jax.numpy as jnp
from jax import lax
from jax.experimental import pallas as pl
from jax.experimental.pallas import tpu as pltpu


def _make_gru_kernel(num_layers, t_chunk, bb, hp, time_unroll):
    L, TC, BB, HP = num_layers, t_chunk, bb, hp

    def kernel(x_ref, h0_ref, *rest):
        layer_refs = rest[:4 * L]
        w_fc_ref = rest[4 * L]
        b_fc_ref = rest[4 * L + 1]
        out_ref = rest[4 * L + 2]
        h_state = rest[4 * L + 3]   # VMEM (L, BB, HP)  f32, carried across chunks
        layer_io = rest[4 * L + 4]  # VMEM (TC, BB, HP) bf16, this chunk's layer outputs
        gi_buf = rest[4 * L + 5]    # VMEM (TC, BB, 3*HP) f32, hoisted input projection

        c = pl.program_id(1)        # time-chunk index (sequential axis, last in grid)

        @pl.when(c == 0)
        def _init():
            h_state[...] = h0_ref[...]

        for l in range(L):
            w_ih = layer_refs[4 * l + 0][...]     # bf16 (in_l, 3*HP)
            w_hh = layer_refs[4 * l + 1][...]     # bf16 (HP,   3*HP)
            b_gi = layer_refs[4 * l + 2][...]     # f32  (1, 3*HP): b_ih + b_hh[r,z]
            b_gh_n = layer_refs[4 * l + 3][...]   # f32  (1, HP):   b_hh[n] only

            if l == 0:
                inp2d = x_ref[...].reshape(TC * BB, -1).astype(jnp.bfloat16)
            else:
                inp2d = layer_io[...].reshape(TC * BB, HP)   # already bf16

            # Hoisted input projection for the whole time chunk: one MXU call.
            gi = jnp.dot(inp2d, w_ih, preferred_element_type=jnp.float32) + b_gi
            gi_buf[...] = gi.reshape(TC, BB, 3 * HP)

            # Hoist the n-gate bias broadcast out of the serial time loop.
            b_n = jnp.broadcast_to(b_gh_n, (BB, HP))

            def step(t, h):
                gh = jnp.dot(h.astype(jnp.bfloat16), w_hh,
                             preferred_element_type=jnp.float32)
                gi_t = gi_buf[t]                  # (BB, 3*HP) f32, one step's slice
                r = jax.nn.sigmoid(gi_t[:, 0:HP] + gh[:, 0:HP])
                z = jax.nn.sigmoid(gi_t[:, HP:2 * HP] + gh[:, HP:2 * HP])
                n = jnp.tanh(gi_t[:, 2 * HP:3 * HP]
                             + r * (gh[:, 2 * HP:3 * HP] + b_n))
                h_new = n + z * (h - n)
                if l < L - 1:
                    layer_io[t] = h_new.astype(jnp.bfloat16)  # feed next layer (bf16)
                return h_new

            h = lax.fori_loop(0, TC, step, h_state[l], unroll=time_unroll)
            h_state[l] = h

        @pl.when(c == pl.num_programs(1) - 1)
        def _final():
            pred = jnp.dot(h_state[L - 1].astype(jnp.bfloat16), w_fc_ref[...],
                           preferred_element_type=jnp.float32) + b_fc_ref[...]
            out_ref[...] = pred.astype(out_ref.dtype)

    return kernel


def _round_up(x, m):
    return (x + m - 1) // m * m


def _pad_gate_cols(w, h, hp):
    """w: (in, 3h) -> (in, 3hp); each gate padded with zeros to hp lanes."""
    parts = []
    for g in range(3):
        blk = w[:, g * h:(g + 1) * h]
        parts.append(jnp.pad(blk, ((0, 0), (0, hp - h))))
    return jnp.concatenate(parts, axis=1)


def _pad_gate_bias(b, h, hp):
    """b: (3h,) -> (1, 3hp); each gate padded with zeros to hp lanes."""
    parts = []
    for g in range(3):
        parts.append(jnp.pad(b[g * h:(g + 1) * h], (0, hp - h)))
    return jnp.concatenate(parts).reshape(1, 3 * hp)


def gru_forward_pallas(x_bti, h0, layer_params, w_fc, b_fc, *, t_chunk=None):
    """x_bti: (B, T, I) batch-first input. Returns (B, output_size)."""
    B, T, I = x_bti.shape
    L, _, H = h0.shape
    O = w_fc.shape[1]

    HP = _round_up(H, 128)              # hidden / per-gate width (lane tiles)
    OP = _round_up(O, 128)              # lane-dense output slab

    # -------- batch block: as large as possible; >= 2 blocks when B > 8 so
    # the "parallel" axis can feed v7x's second TensorCore.
    if B <= 8:
        BB = 8
    else:
        BB = min(256, _round_up(pl.cdiv(B, 2), 8))
    Bp = _round_up(B, BB)
    NB = Bp // BB

    # -------- time chunk: single chunk when the per-chunk buffers fit VMEM.
    def chunk_bytes(tc):
        x_buf = 2 * tc * BB * I * 4          # streamed input (double-buffered) f32
        io_buf = tc * BB * HP * 2            # bf16 layer_io scratch
        g_buf = tc * BB * 3 * HP * 4         # f32 gi scratch
        return x_buf + io_buf + g_buf

    chunk_budget = 24 * 1024 * 1024
    if t_chunk is None:
        TC = T
        if chunk_bytes(TC) > chunk_budget:
            TC = 1
            for d in range(T, 0, -1):
                if T % d == 0 and chunk_bytes(d) <= chunk_budget:
                    TC = d
                    break
    else:
        TC = t_chunk if T % t_chunk == 0 else T
    NC = T // TC
    time_unroll = True if TC <= 8 else 8

    # ---------------- pad / reshape operands (wrapper-side, one-time) --------
    x_tbi = jnp.transpose(x_bti, (1, 0, 2))                     # (T, B, I)
    x_pad = jnp.pad(x_tbi, ((0, 0), (0, Bp - B), (0, 0)))       # (T, Bp, I) f32

    h0_pad = jnp.pad(h0, ((0, 0), (0, Bp - B), (0, HP - H)))    # (L, Bp, HP) f32

    flat_params = []
    for l, (w_ih, w_hh, b_ih, b_hh) in enumerate(layer_params):
        in_dim = w_ih.shape[0]
        in_pad = in_dim if l == 0 else HP
        w_ih_p = _pad_gate_cols(jnp.pad(w_ih, ((0, in_pad - in_dim), (0, 0))),
                                H, HP).astype(jnp.bfloat16)
        w_hh_p = _pad_gate_cols(jnp.pad(w_hh, ((0, HP - H), (0, 0))),
                                H, HP).astype(jnp.bfloat16)
        # Fold biases: r/z gates get b_ih + b_hh in the precomputed gi; only
        # the n-gate b_hh stays per-step (it is multiplied by r).
        b_hh_rz = b_hh.at[2 * H:].set(0.0)
        b_gi = _pad_gate_bias(b_ih + b_hh_rz, H, HP)             # f32 (1, 3HP)
        b_gh_n = jnp.pad(b_hh[2 * H:3 * H], (0, HP - H)).reshape(1, HP)  # f32 (1, HP)
        flat_params += [w_ih_p, w_hh_p, b_gi, b_gh_n]

    w_fc_p = jnp.pad(w_fc, ((0, HP - H), (0, OP - O))).astype(jnp.bfloat16)
    b_fc_p = jnp.pad(b_fc, (0, OP - O)).reshape(1, OP)           # f32

    args = [x_pad, h0_pad] + flat_params + [w_fc_p, b_fc_p]

    # ---------------- VMEM budget (generation-aware) -------------------------
    def nbytes(a):
        return int(a.size) * a.dtype.itemsize

    weight_bytes = sum(nbytes(a) for a in flat_params) + nbytes(w_fc_p) + nbytes(b_fc_p)
    est_bytes = (2 * weight_bytes                      # worst case: double-buffered
                 + 2 * L * BB * HP * 4                 # h0 block
                 + 2 * TC * BB * I * 4                 # streamed x chunk
                 + 2 * BB * OP * 4                     # output block
                 + L * BB * HP * 4                     # h_state scratch
                 + TC * BB * HP * 2                    # layer_io scratch (bf16)
                 + TC * BB * 3 * HP * 4)               # gi scratch (f32)

    vmem_cap = 64 * 1024 * 1024                        # v7x-safe fallback
    try:
        vmem_cap = getattr(pltpu.get_tpu_info(), "vmem_capacity_bytes", vmem_cap)
    except Exception:
        pass
    vmem_limit = min(max(int(est_bytes * 1.5) + (2 << 20), 16 << 20),
                     int(vmem_cap * 0.9))

    # ---------------- grid / specs -------------------------------------------
    kernel = _make_gru_kernel(L, TC, BB, HP, time_unroll)

    def build_and_run(single_buffer):
        pm = dict(pipeline_mode=pl.Buffered(1)) if single_buffer else {}

        def const_spec(a):
            nd = a.ndim
            return pl.BlockSpec(a.shape, lambda b, c, _nd=nd: (0,) * _nd, **pm)

        in_specs = [
            pl.BlockSpec((TC, BB, I), lambda b, c: (c, b, 0)),       # x: streamed
            pl.BlockSpec((L, BB, HP), lambda b, c: (0, b, 0), **pm), # h0
        ] + [const_spec(a) for a in flat_params] + [
            const_spec(w_fc_p), const_spec(b_fc_p),
        ]
        out_spec = pl.BlockSpec((BB, OP), lambda b, c: (b, 0))       # resident over time

        return pl.pallas_call(
            kernel,
            out_shape=jax.ShapeDtypeStruct((Bp, OP), jnp.float32),
            grid_spec=pltpu.PrefetchScalarGridSpec(
                num_scalar_prefetch=0,
                grid=(NB, NC),                       # (batch blocks, time chunks)
                in_specs=in_specs,
                out_specs=out_spec,
                scratch_shapes=[
                    pltpu.VMEM((L, BB, HP), jnp.float32),      # carried hidden state
                    pltpu.VMEM((TC, BB, HP), jnp.bfloat16),    # per-chunk layer outputs
                    pltpu.VMEM((TC, BB, 3 * HP), jnp.float32), # hoisted gi
                ]),
            compiler_params=pltpu.CompilerParams(
                dimension_semantics=("parallel", "arbitrary"),
                vmem_limit_bytes=vmem_limit),
        )(*args)

    try:
        out = build_and_run(True)          # single-buffered constant weights
    except Exception:
        out = build_and_run(False)         # fallback: default buffering
    return out[:B, :O]


def gru_forward_reference(x_bti, h0, layer_params, w_fc, b_fc,
                          matmul_dtype=jnp.float32):
    """Pure-JAX reference mirroring torch nn.GRU(batch_first=True) + Linear + [:, -1, :].
    matmul_dtype=bfloat16 mirrors the kernel's bf16 MXU operands (f32 accumulate)."""
    B, T, I = x_bti.shape
    L, _, H = h0.shape

    def mm(a, b):
        return jnp.dot(a.astype(matmul_dtype), b.astype(matmul_dtype),
                       preferred_element_type=jnp.float32)

    hs = [h0[l] for l in range(L)]
    for t in range(T):
        inp = x_bti[:, t, :]
        for l in range(L):
            w_ih, w_hh, b_ih, b_hh = layer_params[l]
            gi = mm(inp, w_ih) + b_ih
            gh = mm(hs[l], w_hh) + b_hh
            r = jax.nn.sigmoid(gi[:, :H] + gh[:, :H])
            z = jax.nn.sigmoid(gi[:, H:2 * H] + gh[:, H:2 * H])
            n = jnp.tanh(gi[:, 2 * H:] + r * gh[:, 2 * H:])
            hs[l] = (1.0 - z) * n + z * hs[l]
            inp = hs[l]
    return mm(hs[-1], w_fc) + b_fc


if __name__ == "__main__":
    # Module hyper-params (small, consistent with the forward pass)
    input_size, hidden_size, num_layers, output_size = 4, 32, 2, 3
    batch_size, seq_len = 2, 8

    key = jax.random.PRNGKey(0)
    k_x, k_h0, k_fc_w, k_fc_b, *k_layers = jax.random.split(key, 4 + num_layers)

    # Input sequence (batch_first) and the h_0 from forward()
    x = jax.random.normal(k_x, (batch_size, seq_len, input_size), dtype=jnp.float32)
    h0 = jax.random.normal(k_h0, (num_layers, batch_size, hidden_size), dtype=jnp.float32)

    # Deterministic parameter init (PyTorch-style uniform(-1/sqrt(H), 1/sqrt(H)))
    bound = 1.0 / jnp.sqrt(jnp.float32(hidden_size))
    layer_params = []
    for l in range(num_layers):
        in_dim = input_size if l == 0 else hidden_size
        kw_ih, kw_hh, kb_ih, kb_hh = jax.random.split(k_layers[l], 4)
        w_ih = jax.random.uniform(kw_ih, (in_dim, 3 * hidden_size), jnp.float32, -bound, bound)
        w_hh = jax.random.uniform(kw_hh, (hidden_size, 3 * hidden_size), jnp.float32, -bound, bound)
        b_ih = jax.random.uniform(kb_ih, (3 * hidden_size,), jnp.float32, -bound, bound)
        b_hh = jax.random.uniform(kb_hh, (3 * hidden_size,), jnp.float32, -bound, bound)
        layer_params.append((w_ih, w_hh, b_ih, b_hh))

    fc_bound = 1.0 / jnp.sqrt(jnp.float32(hidden_size))
    w_fc = jax.random.uniform(k_fc_w, (hidden_size, output_size), jnp.float32, -fc_bound, fc_bound)
    b_fc = jax.random.uniform(k_fc_b, (output_size,), jnp.float32, -fc_bound, fc_bound)

    pred = gru_forward_pallas(x, h0, layer_params, w_fc, b_fc)
    pred = jax.block_until_ready(pred)

    ref_bf16 = jax.block_until_ready(
        gru_forward_reference(x, h0, layer_params, w_fc, b_fc, matmul_dtype=jnp.bfloat16))
    ref_f32 = jax.block_until_ready(
        gru_forward_reference(x, h0, layer_params, w_fc, b_fc, matmul_dtype=jnp.float32))

    assert pred.shape == (batch_size, output_size)
    # Tight check vs a reference with the same bf16-operand / f32-accumulate matmuls.
    assert jnp.allclose(pred, ref_bf16, rtol=5e-3, atol=5e-3), (pred, ref_bf16)
    # Looser sanity check vs the full-f32 (PyTorch-equivalent) reference.
    assert jnp.allclose(pred, ref_f32, rtol=5e-2, atol=5e-2), (pred, ref_f32)

    print("KERNEL_OK")
</pallas_src>

<mosaic_0001>
module attributes {stable_mosaic.version = 11 : i64} {
  func.func @kernel(%arg0: i32, %arg1: i32, %arg2: memref<8x8x4xf32, #tpu.memory_space<vmem>>, %arg3: memref<2x8x128xf32, #tpu.memory_space<vmem>>, %arg4: memref<4x384xbf16, #tpu.memory_space<vmem>>, %arg5: memref<128x384xbf16, #tpu.memory_space<vmem>>, %arg6: memref<1x384xf32, #tpu.memory_space<vmem>>, %arg7: memref<1x128xf32, #tpu.memory_space<vmem>>, %arg8: memref<128x384xbf16, #tpu.memory_space<vmem>>, %arg9: memref<128x384xbf16, #tpu.memory_space<vmem>>, %arg10: memref<1x384xf32, #tpu.memory_space<vmem>>, %arg11: memref<1x128xf32, #tpu.memory_space<vmem>>, %arg12: memref<128x128xbf16, #tpu.memory_space<vmem>>, %arg13: memref<1x128xf32, #tpu.memory_space<vmem>>, %arg14: memref<8x128xf32, #tpu.memory_space<vmem>>, %arg15: memref<2x8x128xf32, #tpu.memory_space<vmem>>, %arg16: memref<8x8x128xbf16, #tpu.memory_space<vmem>>, %arg17: memref<8x8x384xf32, #tpu.memory_space<vmem>>) attributes {dimension_semantics = [#tpu.dimension_semantics<parallel>, #tpu.dimension_semantics<arbitrary>], iteration_bounds = array<i64: 1, 1>, scalar_prefetch = 0 : i64, scratch_operands = 3 : i64, tpu.core_type = #tpu.core_type<tc>, window_params = [{transform_indices = @transform_0, window_bounds = array<i64: 8, 8, 4>}, {pipeline_mode = #tpu.pipeline_mode<synchronous>, transform_indices = @transform_1, window_bounds = array<i64: 2, 8, 128>}, {pipeline_mode = #tpu.pipeline_mode<synchronous>, transform_indices = @transform_2, window_bounds = array<i64: 4, 384>}, {pipeline_mode = #tpu.pipeline_mode<synchronous>, transform_indices = @transform_3, window_bounds = array<i64: 128, 384>}, {pipeline_mode = #tpu.pipeline_mode<synchronous>, transform_indices = @transform_4, window_bounds = array<i64: 1, 384>}, {pipeline_mode = #tpu.pipeline_mode<synchronous>, transform_indices = @transform_5, window_bounds = array<i64: 1, 128>}, {pipeline_mode = #tpu.pipeline_mode<synchronous>, transform_indices = @transform_6, window_bounds = array<i64: 128, 384>}, {pipeline_mode = #tpu.pipeline_mode<synchronous>, transform_indices = @transform_7, window_bounds = array<i64: 128, 384>}, {pipeline_mode = #tpu.pipeline_mode<synchronous>, transform_indices = @transform_8, window_bounds = array<i64: 1, 384>}, {pipeline_mode = #tpu.pipeline_mode<synchronous>, transform_indices = @transform_9, window_bounds = array<i64: 1, 128>}, {pipeline_mode = #tpu.pipeline_mode<synchronous>, transform_indices = @transform_10, window_bounds = array<i64: 128, 128>}, {pipeline_mode = #tpu.pipeline_mode<synchronous>, transform_indices = @transform_11, window_bounds = array<i64: 1, 128>}, {transform_indices = @transform_12, window_bounds = array<i64: 8, 128>}]} {
    %c0_i32 = arith.constant 0 : i32
    %0 = arith.cmpi eq, %arg1, %c0_i32 : i32
    %1 = arith.extui %0 : i1 to i32
    %c0_i32_0 = arith.constant 0 : i32
    %2 = arith.cmpi ne, %1, %c0_i32_0 : i32
    scf.if %2 {
      %c0_148 = arith.constant 0 : index
      %c0_149 = arith.constant 0 : index
      %c0_150 = arith.constant 0 : index
      %563 = vector.load %arg3[%c0_148, %c0_149, %c0_150] : memref<2x8x128xf32, #tpu.memory_space<vmem>>, vector<2x8x128xf32>
      %c0_151 = arith.constant 0 : index
      %c0_152 = arith.constant 0 : index
      %c0_153 = arith.constant 0 : index
      %564 = vector.load %arg15[%c0_151, %c0_152, %c0_153] : memref<2x8x128xf32, #tpu.memory_space<vmem>>, vector<2x8x128xf32>
      tpu.vector_store %arg15[%c0_151, %c0_152, %c0_153], %563 {strides = array<i32>} : memref<2x8x128xf32, #tpu.memory_space<vmem>>, vector<2x8x128xf32>,
    } else {
    }
    %c0 = arith.constant 0 : index
    %c0_1 = arith.constant 0 : index
    %3 = vector.load %arg4[%c0, %c0_1] : memref<4x384xbf16, #tpu.memory_space<vmem>>, vector<4x384xbf16>
    %c0_2 = arith.constant 0 : index
    %c0_3 = arith.constant 0 : index
    %4 = vector.load %arg5[%c0_2, %c0_3] : memref<128x384xbf16, #tpu.memory_space<vmem>>, vector<128x384xbf16>
    %c0_4 = arith.constant 0 : index
    %c0_5 = arith.constant 0 : index
    %5 = vector.load %arg6[%c0_4, %c0_5] : memref<1x384xf32, #tpu.memory_space<vmem>>, vector<1x384xf32>
    %c0_6 = arith.constant 0 : index
    %c0_7 = arith.constant 0 : index
    %6 = vector.load %arg7[%c0_6, %c0_7] : memref<1x128xf32, #tpu.memory_space<vmem>>, vector<1x128xf32>
    %c0_8 = arith.constant 0 : index
    %c0_9 = arith.constant 0 : index
    %c0_10 = arith.constant 0 : index
    %7 = vector.load %arg2[%c0_8, %c0_9, %c0_10] : memref<8x8x4xf32, #tpu.memory_space<vmem>>, vector<8x8x4xf32>
    %8 = vector.shape_cast %7 : vector<8x8x4xf32> to vector<64x4xf32>
    %9 = arith.truncf %8 : vector<64x4xf32> to vector<64x4xbf16>
    %cst = arith.constant dense<0.000000e+00> : vector<64x384xf32>
    %10 = tpu.matmul %9, %3, %cst {dimension_numbers = #tpu.dot_dimension_numbers<[1], [0], [0], [1], [0, 0, 1, 1], [], []>} : vector<64x4xbf16>, vector<4x384xbf16>, vector<64x384xf32> -> vector<64x384xf32>
    %11 = vector.broadcast %5 : vector<1x384xf32> to vector<64x384xf32>
    %12 = arith.addf %10, %11 : vector<64x384xf32>
    %13 = vector.shape_cast %12 : vector<64x384xf32> to vector<8x8x384xf32>
    %c0_11 = arith.constant 0 : index
    %c0_12 = arith.constant 0 : index
    %c0_13 = arith.constant 0 : index
    %14 = vector.load %arg17[%c0_11, %c0_12, %c0_13] : memref<8x8x384xf32, #tpu.memory_space<vmem>>, vector<8x8x384xf32>
    tpu.vector_store %arg17[%c0_11, %c0_12, %c0_13], %13 {strides = array<i32>} : memref<8x8x384xf32, #tpu.memory_space<vmem>>, vector<8x8x384xf32>,
    %15 = vector.shape_cast %6 : vector<1x128xf32> to vector<1x128xf32>
    %16 = vector.broadcast %15 : vector<1x128xf32> to vector<8x128xf32>
    %c0_14 = arith.constant 0 : index
    %c0_15 = arith.constant 0 : index
    %c0_16 = arith.constant 0 : index
    %17 = vector.load %arg15[%c0_14, %c0_15, %c0_16] : memref<2x8x128xf32, #tpu.memory_space<vmem>>, vector<1x8x128xf32>
    %18 = vector.shape_cast %17 : vector<1x8x128xf32> to vector<8x128xf32>
    %c0_i32_17 = arith.constant 0 : i32
    %19 = arith.truncf %18 : vector<8x128xf32> to vector<8x128xbf16>
    %cst_18 = arith.constant dense<0.000000e+00> : vector<8x384xf32>
    %20 = tpu.matmul %19, %4, %cst_18 {dimension_numbers = #tpu.dot_dimension_numbers<[1], [0], [0], [1], [0, 0, 1, 1], [], []>} : vector<8x128xbf16>, vector<128x384xbf16>, vector<8x384xf32> -> vector<8x384xf32>
    %21 = arith.index_cast %c0_i32_17 : i32 to index
    %c0_19 = arith.constant 0 : index
    %c0_20 = arith.constant 0 : index
    %22 = vector.load %arg17[%21, %c0_19, %c0_20] : memref<8x8x384xf32, #tpu.memory_space<vmem>>, vector<1x8x384xf32>
    %23 = vector.shape_cast %22 : vector<1x8x384xf32> to vector<8x384xf32>
    %24 = vector.extract_strided_slice %23 {offsets = [0, 0], sizes = [8, 128], strides = [1, 1]} : vector<8x384xf32> to vector<8x128xf32>
    %25 = vector.extract_strided_slice %20 {offsets = [0, 0], sizes = [8, 128], strides = [1, 1]} : vector<8x384xf32> to vector<8x128xf32>
    %26 = arith.addf %24, %25 : vector<8x128xf32>
    %27 = arith.negf %26 : vector<8x128xf32>
    %28 = math.exp %27 : vector<8x128xf32>
    %cst_21 = arith.constant 1.000000e+00 : f32
    %29 = vector.broadcast %cst_21 : f32 to vector<8x128xf32>
    %30 = arith.addf %29, %28 : vector<8x128xf32>
    %31 = arith.divf %29, %30 : vector<8x128xf32>
    %32 = vector.extract_strided_slice %23 {offsets = [0, 128], sizes = [8, 128], strides = [1, 1]} : vector<8x384xf32> to vector<8x128xf32>
    %33 = vector.extract_strided_slice %20 {offsets = [0, 128], sizes = [8, 128], strides = [1, 1]} : vector<8x384xf32> to vector<8x128xf32>
    %34 = arith.addf %32, %33 : vector<8x128xf32>
    %35 = arith.negf %34 : vector<8x128xf32>
    %36 = math.exp %35 : vector<8x128xf32>
    %cst_22 = arith.constant 1.000000e+00 : f32
    %37 = vector.broadcast %cst_22 : f32 to vector<8x128xf32>
    %38 = arith.addf %37, %36 : vector<8x128xf32>
    %39 = arith.divf %37, %38 : vector<8x128xf32>
    %40 = vector.extract_strided_slice %23 {offsets = [0, 256], sizes = [8, 128], strides = [1, 1]} : vector<8x384xf32> to vector<8x128xf32>
    %41 = vector.extract_strided_slice %20 {offsets = [0, 256], sizes = [8, 128], strides = [1, 1]} : vector<8x384xf32> to vector<8x128xf32>
    %42 = arith.addf %41, %16 : vector<8x128xf32>
    %43 = arith.mulf %31, %42 : vector<8x128xf32>
    %44 = arith.addf %40, %43 : vector<8x128xf32>
    %45 = math.tanh %44 : vector<8x128xf32>
    %46 = arith.subf %18, %45 : vector<8x128xf32>
    %47 = arith.mulf %39, %46 : vector<8x128xf32>
    %48 = arith.addf %45, %47 : vector<8x128xf32>
    %49 = arith.truncf %48 : vector<8x128xf32> to vector<8x128xbf16>
    %50 = arith.index_cast %c0_i32_17 : i32 to index
    %c0_23 = arith.constant 0 : index
    %c0_24 = arith.constant 0 : index
    %51 = vector.load %arg16[%50, %c0_23, %c0_24] : memref<8x8x128xbf16, #tpu.memory_space<vmem>>, vector<1x8x128xbf16>
    %52 = vector.shape_cast %51 : vector<1x8x128xbf16> to vector<8x128xbf16>
    %53 = vector.shape_cast %49 : vector<8x128xbf16> to vector<1x8x128xbf16>
    tpu.vector_store %arg16[%50, %c0_23, %c0_24], %53 {strides = array<i32>} : memref<8x8x128xbf16, #tpu.memory_space<vmem>>, vector<1x8x128xbf16>,
    %c1_i32 = arith.constant 1 : i32
    %54 = arith.truncf %48 : vector<8x128xf32> to vector<8x128xbf16>
    %cst_25 = arith.constant dense<0.000000e+00> : vector<8x384xf32>
    %55 = tpu.matmul %54, %4, %cst_25 {dimension_numbers = #tpu.dot_dimension_numbers<[1], [0], [0], [1], [0, 0, 1, 1], [], []>} : vector<8x128xbf16>, vector<128x384xbf16>, vector<8x384xf32> -> vector<8x384xf32>
    %56 = arith.index_cast %c1_i32 : i32 to index
    %c0_26 = arith.constant 0 : index
    %c0_27 = arith.constant 0 : index
    %57 = vector.load %arg17[%56, %c0_26, %c0_27] : memref<8x8x384xf32, #tpu.memory_space<vmem>>, vector<1x8x384xf32>
    %58 = vector.shape_cast %57 : vector<1x8x384xf32> to vector<8x384xf32>
    %59 = vector.extract_strided_slice %58 {offsets = [0, 0], sizes = [8, 128], strides = [1, 1]} : vector<8x384xf32> to vector<8x128xf32>
    %60 = vector.extract_strided_slice %55 {offsets = [0, 0], sizes = [8, 128], strides = [1, 1]} : vector<8x384xf32> to vector<8x128xf32>
    %61 = arith.addf %59, %60 : vector<8x128xf32>
    %62 = arith.negf %61 : vector<8x128xf32>
    %63 = math.exp %62 : vector<8x128xf32>
    %cst_28 = arith.constant 1.000000e+00 : f32
    %64 = vector.broadcast %cst_28 : f32 to vector<8x128xf32>
    %65 = arith.addf %64, %63 : vector<8x128xf32>
    %66 = arith.divf %64, %65 : vector<8x128xf32>
    %67 = vector.extract_strided_slice %58 {offsets = [0, 128], sizes = [8, 128], strides = [1, 1]} : vector<8x384xf32> to vector<8x128xf32>
    %68 = vector.extract_strided_slice %55 {offsets = [0, 128], sizes = [8, 128], strides = [1, 1]} : vector<8x384xf32> to vector<8x128xf32>
    %69 = arith.addf %67, %68 : vector<8x128xf32>
    %70 = arith.negf %69 : vector<8x128xf32>
    %71 = math.exp %70 : vector<8x128xf32>
    %cst_29 = arith.constant 1.000000e+00 : f32
    %72 = vector.broadcast %cst_29 : f32 to vector<8x128xf32>
    %73 = arith.addf %72, %71 : vector<8x128xf32>
    %74 = arith.divf %72, %73 : vector<8x128xf32>
    %75 = vector.extract_strided_slice %58 {offsets = [0, 256], sizes = [8, 128], strides = [1, 1]} : vector<8x384xf32> to vector<8x128xf32>
    %76 = vector.extract_strided_slice %55 {offsets = [0, 256], sizes = [8, 128], strides = [1, 1]} : vector<8x384xf32> to vector<8x128xf32>
    %77 = arith.addf %76, %16 : vector<8x128xf32>
    %78 = arith.mulf %66, %77 : vector<8x128xf32>
    %79 = arith.addf %75, %78 : vector<8x128xf32>
    %80 = math.tanh %79 : vector<8x128xf32>
    %81 = arith.subf %48, %80 : vector<8x128xf32>
    %82 = arith.mulf %74, %81 : vector<8x128xf32>
    %83 = arith.addf %80, %82 : vector<8x128xf32>
    %84 = arith.truncf %83 : vector<8x128xf32> to vector<8x128xbf16>
    %85 = arith.index_cast %c1_i32 : i32 to index
    %c0_30 = arith.constant 0 : index
    %c0_31 = arith.constant 0 : index
    %86 = vector.load %arg16[%85, %c0_30, %c0_31] : memref<8x8x128xbf16, #tpu.memory_space<vmem>>, vector<1x8x128xbf16>
    %87 = vector.shape_cast %86 : vector<1x8x128xbf16> to vector<8x128xbf16>
    %88 = vector.shape_cast %84 : vector<8x128xbf16> to vector<1x8x128xbf16>
    tpu.vector_store %arg16[%85, %c0_30, %c0_31], %88 {strides = array<i32>} : memref<8x8x128xbf16, #tpu.memory_space<vmem>>, vector<1x8x128xbf16>,
    %c2_i32 = arith.constant 2 : i32
    %89 = arith.truncf %83 : vector<8x128xf32> to vector<8x128xbf16>
    %cst_32 = arith.constant dense<0.000000e+00> : vector<8x384xf32>
    %90 = tpu.matmul %89, %4, %cst_32 {dimension_numbers = #tpu.dot_dimension_numbers<[1], [0], [0], [1], [0, 0, 1, 1], [], []>} : vector<8x128xbf16>, vector<128x384xbf16>, vector<8x384xf32> -> vector<8x384xf32>
    %91 = arith.index_cast %c2_i32 : i32 to index
    %c0_33 = arith.constant 0 : index
    %c0_34 = arith.constant 0 : index
    %92 = vector.load %arg17[%91, %c0_33, %c0_34] : memref<8x8x384xf32, #tpu.memory_space<vmem>>, vector<1x8x384xf32>
    %93 = vector.shape_cast %92 : vector<1x8x384xf32> to vector<8x384xf32>
    %94 = vector.extract_strided_slice %93 {offsets = [0, 0], sizes = [8, 128], strides = [1, 1]} : vector<8x384xf32> to vector<8x128xf32>
    %95 = vector.extract_strided_slice %90 {offsets = [0, 0], sizes = [8, 128], strides = [1, 1]} : vector<8x384xf32> to vector<8x128xf32>
    %96 = arith.addf %94, %95 : vector<8x128xf32>
    %97 = arith.negf %96 : vector<8x128xf32>
    %98 = math.exp %97 : vector<8x128xf32>
    %cst_35 = arith.constant 1.000000e+00 : f32
    %99 = vector.broadcast %cst_35 : f32 to vector<8x128xf32>
    %100 = arith.addf %99, %98 : vector<8x128xf32>
    %101 = arith.divf %99, %100 : vector<8x128xf32>
    %102 = vector.extract_strided_slice %93 {offsets = [0, 128], sizes = [8, 128], strides = [1, 1]} : vector<8x384xf32> to vector<8x128xf32>
    %103 = vector.extract_strided_slice %90 {offsets = [0, 128], sizes = [8, 128], strides = [1, 1]} : vector<8x384xf32> to vector<8x128xf32>
    %104 = arith.addf %102, %103 : vector<8x128xf32>
    %105 = arith.negf %104 : vector<8x128xf32>
    %106 = math.exp %105 : vector<8x128xf32>
    %cst_36 = arith.constant 1.000000e+00 : f32
    %107 = vector.broadcast %cst_36 : f32 to vector<8x128xf32>
    %108 = arith.addf %107, %106 : vector<8x128xf32>
    %109 = arith.divf %107, %108 : vector<8x128xf32>
    %110 = vector.extract_strided_slice %93 {offsets = [0, 256], sizes = [8, 128], strides = [1, 1]} : vector<8x384xf32> to vector<8x128xf32>
    %111 = vector.extract_strided_slice %90 {offsets = [0, 256], sizes = [8, 128], strides = [1, 1]} : vector<8x384xf32> to vector<8x128xf32>
    %112 = arith.addf %111, %16 : vector<8x128xf32>
    %113 = arith.mulf %101, %112 : vector<8x128xf32>
    %114 = arith.addf %110, %113 : vector<8x128xf32>
    %115 = math.tanh %114 : vector<8x128xf32>
    %116 = arith.subf %83, %115 : vector<8x128xf32>
    %117 = arith.mulf %109, %116 : vector<8x128xf32>
    %118 = arith.addf %115, %117 : vector<8x128xf32>
    %119 = arith.truncf %118 : vector<8x128xf32> to vector<8x128xbf16>
    %120 = arith.index_cast %c2_i32 : i32 to index
    %c0_37 = arith.constant 0 : index
    %c0_38 = arith.constant 0 : index
    %121 = vector.load %arg16[%120, %c0_37, %c0_38] : memref<8x8x128xbf16, #tpu.memory_space<vmem>>, vector<1x8x128xbf16>
    %122 = vector.shape_cast %121 : vector<1x8x128xbf16> to vector<8x128xbf16>
    %123 = vector.shape_cast %119 : vector<8x128xbf16> to vector<1x8x128xbf16>
    tpu.vector_store %arg16[%120, %c0_37, %c0_38], %123 {strides = array<i32>} : memref<8x8x128xbf16, #tpu.memory_space<vmem>>, vector<1x8x128xbf16>,
    %c3_i32 = arith.constant 3 : i32
    %124 = arith.truncf %118 : vector<8x128xf32> to vector<8x128xbf16>
    %cst_39 = arith.constant dense<0.000000e+00> : vector<8x384xf32>
    %125 = tpu.matmul %124, %4, %cst_39 {dimension_numbers = #tpu.dot_dimension_numbers<[1], [0], [0], [1], [0, 0, 1, 1], [], []>} : vector<8x128xbf16>, vector<128x384xbf16>, vector<8x384xf32> -> vector<8x384xf32>
    %126 = arith.index_cast %c3_i32 : i32 to index
    %c0_40 = arith.constant 0 : index
    %c0_41 = arith.constant 0 : index
    %127 = vector.load %arg17[%126, %c0_40, %c0_41] : memref<8x8x384xf32, #tpu.memory_space<vmem>>, vector<1x8x384xf32>
    %128 = vector.shape_cast %127 : vector<1x8x384xf32> to vector<8x384xf32>
    %129 = vector.extract_strided_slice %128 {offsets = [0, 0], sizes = [8, 128], strides = [1, 1]} : vector<8x384xf32> to vector<8x128xf32>
    %130 = vector.extract_strided_slice %125 {offsets = [0, 0], sizes = [8, 128], strides = [1, 1]} : vector<8x384xf32> to vector<8x128xf32>
    %131 = arith.addf %129, %130 : vector<8x128xf32>
    %132 = arith.negf %131 : vector<8x128xf32>
    %133 = math.exp %132 : vector<8x128xf32>
    %cst_42 = arith.constant 1.000000e+00 : f32
    %134 = vector.broadcast %cst_42 : f32 to vector<8x128xf32>
    %135 = arith.addf %134, %133 : vector<8x128xf32>
    %136 = arith.divf %134, %135 : vector<8x128xf32>
    %137 = vector.extract_strided_slice %128 {offsets = [0, 128], sizes = [8, 128], strides = [1, 1]} : vector<8x384xf32> to vector<8x128xf32>
    %138 = vector.extract_strided_slice %125 {offsets = [0, 128], sizes = [8, 128], strides = [1, 1]} : vector<8x384xf32> to vector<8x128xf32>
    %139 = arith.addf %137, %138 : vector<8x128xf32>
    %140 = arith.negf %139 : vector<8x128xf32>
    %141 = math.exp %140 : vector<8x128xf32>
    %cst_43 = arith.constant 1.000000e+00 : f32
    %142 = vector.broadcast %cst_43 : f32 to vector<8x128xf32>
    %143 = arith.addf %142, %141 : vector<8x128xf32>
    %144 = arith.divf %142, %143 : vector<8x128xf32>
    %145 = vector.extract_strided_slice %128 {offsets = [0, 256], sizes = [8, 128], strides = [1, 1]} : vector<8x384xf32> to vector<8x128xf32>
    %146 = vector.extract_strided_slice %125 {offsets = [0, 256], sizes = [8, 128], strides = [1, 1]} : vector<8x384xf32> to vector<8x128xf32>
    %147 = arith.addf %146, %16 : vector<8x128xf32>
    %148 = arith.mulf %136, %147 : vector<8x128xf32>
    %149 = arith.addf %145, %148 : vector<8x128xf32>
    %150 = math.tanh %149 : vector<8x128xf32>
    %151 = arith.subf %118, %150 : vector<8x128xf32>
    %152 = arith.mulf %144, %151 : vector<8x128xf32>
    %153 = arith.addf %150, %152 : vector<8x128xf32>
    %154 = arith.truncf %153 : vector<8x128xf32> to vector<8x128xbf16>
    %155 = arith.index_cast %c3_i32 : i32 to index
    %c0_44 = arith.constant 0 : index
    %c0_45 = arith.constant 0 : index
    %156 = vector.load %arg16[%155, %c0_44, %c0_45] : memref<8x8x128xbf16, #tpu.memory_space<vmem>>, vector<1x8x128xbf16>
    %157 = vector.shape_cast %156 : vector<1x8x128xbf16> to vector<8x128xbf16>
    %158 = vector.shape_cast %154 : vector<8x128xbf16> to vector<1x8x128xbf16>
    tpu.vector_store %arg16[%155, %c0_44, %c0_45], %158 {strides = array<i32>} : memref<8x8x128xbf16, #tpu.memory_space<vmem>>, vector<1x8x128xbf16>,
    %c4_i32 = arith.constant 4 : i32
    %159 = arith.truncf %153 : vector<8x128xf32> to vector<8x128xbf16>
    %cst_46 = arith.constant dense<0.000000e+00> : vector<8x384xf32>
    %160 = tpu.matmul %159, %4, %cst_46 {dimension_numbers = #tpu.dot_dimension_numbers<[1], [0], [0], [1], [0, 0, 1, 1], [], []>} : vector<8x128xbf16>, vector<128x384xbf16>, vector<8x384xf32> -> vector<8x384xf32>
    %161 = arith.index_cast %c4_i32 : i32 to index
    %c0_47 = arith.constant 0 : index
    %c0_48 = arith.constant 0 : index
    %162 = vector.load %arg17[%161, %c0_47, %c0_48] : memref<8x8x384xf32, #tpu.memory_space<vmem>>, vector<1x8x384xf32>
    %163 = vector.shape_cast %162 : vector<1x8x384xf32> to vector<8x384xf32>
    %164 = vector.extract_strided_slice %163 {offsets = [0, 0], sizes = [8, 128], strides = [1, 1]} : vector<8x384xf32> to vector<8x128xf32>
    %165 = vector.extract_strided_slice %160 {offsets = [0, 0], sizes = [8, 128], strides = [1, 1]} : vector<8x384xf32> to vector<8x128xf32>
    %166 = arith.addf %164, %165 : vector<8x128xf32>
    %167 = arith.negf %166 : vector<8x128xf32>
    %168 = math.exp %167 : vector<8x128xf32>
    %cst_49 = arith.constant 1.000000e+00 : f32
    %169 = vector.broadcast %cst_49 : f32 to vector<8x128xf32>
    %170 = arith.addf %169, %168 : vector<8x128xf32>
    %171 = arith.divf %169, %170 : vector<8x128xf32>
    %172 = vector.extract_strided_slice %163 {offsets = [0, 128], sizes = [8, 128], strides = [1, 1]} : vector<8x384xf32> to vector<8x128xf32>
    %173 = vector.extract_strided_slice %160 {offsets = [0, 128], sizes = [8, 128], strides = [1, 1]} : vector<8x384xf32> to vector<8x128xf32>
    %174 = arith.addf %172, %173 : vector<8x128xf32>
    %175 = arith.negf %174 : vector<8x128xf32>
    %176 = math.exp %175 : vector<8x128xf32>
    %cst_50 = arith.constant 1.000000e+00 : f32
    %177 = vector.broadcast %cst_50 : f32 to vector<8x128xf32>
    %178 = arith.addf %177, %176 : vector<8x128xf32>
    %179 = arith.divf %177, %178 : vector<8x128xf32>
    %180 = vector.extract_strided_slice %163 {offsets = [0, 256], sizes = [8, 128], strides = [1, 1]} : vector<8x384xf32> to vector<8x128xf32>
    %181 = vector.extract_strided_slice %160 {offsets = [0, 256], sizes = [8, 128], strides = [1, 1]} : vector<8x384xf32> to vector<8x128xf32>
    %182 = arith.addf %181, %16 : vector<8x128xf32>
    %183 = arith.mulf %171, %182 : vector<8x128xf32>
    %184 = arith.addf %180, %183 : vector<8x128xf32>
    %185 = math.tanh %184 : vector<8x128xf32>
    %186 = arith.subf %153, %185 : vector<8x128xf32>
    %187 = arith.mulf %179, %186 : vector<8x128xf32>
    %188 = arith.addf %185, %187 : vector<8x128xf32>
    %189 = arith.truncf %188 : vector<8x128xf32> to vector<8x128xbf16>
    %190 = arith.index_cast %c4_i32 : i32 to index
    %c0_51 = arith.constant 0 : index
    %c0_52 = arith.constant 0 : index
    %191 = vector.load %arg16[%190, %c0_51, %c0_52] : memref<8x8x128xbf16, #tpu.memory_space<vmem>>, vector<1x8x128xbf16>
    %192 = vector.shape_cast %191 : vector<1x8x128xbf16> to vector<8x128xbf16>
    %193 = vector.shape_cast %189 : vector<8x128xbf16> to vector<1x8x128xbf16>
    tpu.vector_store %arg16[%190, %c0_51, %c0_52], %193 {strides = array<i32>} : memref<8x8x128xbf16, #tpu.memory_space<vmem>>, vector<1x8x128xbf16>,
    %c5_i32 = arith.constant 5 : i32
    %194 = arith.truncf %188 : vector<8x128xf32> to vector<8x128xbf16>
    %cst_53 = arith.constant dense<0.000000e+00> : vector<8x384xf32>
    %195 = tpu.matmul %194, %4, %cst_53 {dimension_numbers = #tpu.dot_dimension_numbers<[1], [0], [0], [1], [0, 0, 1, 1], [], []>} : vector<8x128xbf16>, vector<128x384xbf16>, vector<8x384xf32> -> vector<8x384xf32>
    %196 = arith.index_cast %c5_i32 : i32 to index
    %c0_54 = arith.constant 0 : index
    %c0_55 = arith.constant 0 : index
    %197 = vector.load %arg17[%196, %c0_54, %c0_55] : memref<8x8x384xf32, #tpu.memory_space<vmem>>, vector<1x8x384xf32>
    %198 = vector.shape_cast %197 : vector<1x8x384xf32> to vector<8x384xf32>
    %199 = vector.extract_strided_slice %198 {offsets = [0, 0], sizes = [8, 128], strides = [1, 1]} : vector<8x384xf32> to vector<8x128xf32>
    %200 = vector.extract_strided_slice %195 {offsets = [0, 0], sizes = [8, 128], strides = [1, 1]} : vector<8x384xf32> to vector<8x128xf32>
    %201 = arith.addf %199, %200 : vector<8x128xf32>
    %202 = arith.negf %201 : vector<8x128xf32>
    %203 = math.exp %202 : vector<8x128xf32>
    %cst_56 = arith.constant 1.000000e+00 : f32
    %204 = vector.broadcast %cst_56 : f32 to vector<8x128xf32>
    %205 = arith.addf %204, %203 : vector<8x128xf32>
    %206 = arith.divf %204, %205 : vector<8x128xf32>
    %207 = vector.extract_strided_slice %198 {offsets = [0, 128], sizes = [8, 128], strides = [1, 1]} : vector<8x384xf32> to vector<8x128xf32>
    %208 = vector.extract_strided_slice %195 {offsets = [0, 128], sizes = [8, 128], strides = [1, 1]} : vector<8x384xf32> to vector<8x128xf32>
    %209 = arith.addf %207, %208 : vector<8x128xf32>
    %210 = arith.negf %209 : vector<8x128xf32>
    %211 = math.exp %210 : vector<8x128xf32>
    %cst_57 = arith.constant 1.000000e+00 : f32
    %212 = vector.broadcast %cst_57 : f32 to vector<8x128xf32>
    %213 = arith.addf %212, %211 : vector<8x128xf32>
    %214 = arith.divf %212, %213 : vector<8x128xf32>
    %215 = vector.extract_strided_slice %198 {offsets = [0, 256], sizes = [8, 128], strides = [1, 1]} : vector<8x384xf32> to vector<8x128xf32>
    %216 = vector.extract_strided_slice %195 {offsets = [0, 256], sizes = [8, 128], strides = [1, 1]} : vector<8x384xf32> to vector<8x128xf32>
    %217 = arith.addf %216, %16 : vector<8x128xf32>
    %218 = arith.mulf %206, %217 : vector<8x128xf32>
    %219 = arith.addf %215, %218 : vector<8x128xf32>
    %220 = math.tanh %219 : vector<8x128xf32>
    %221 = arith.subf %188, %220 : vector<8x128xf32>
    %222 = arith.mulf %214, %221 : vector<8x128xf32>
    %223 = arith.addf %220, %222 : vector<8x128xf32>
    %224 = arith.truncf %223 : vector<8x128xf32> to vector<8x128xbf16>
    %225 = arith.index_cast %c5_i32 : i32 to index
    %c0_58 = arith.constant 0 : index
    %c0_59 = arith.constant 0 : index
    %226 = vector.load %arg16[%225, %c0_58, %c0_59] : memref<8x8x128xbf16, #tpu.memory_space<vmem>>, vector<1x8x128xbf16>
    %227 = vector.shape_cast %226 : vector<1x8x128xbf16> to vector<8x128xbf16>
    %228 = vector.shape_cast %224 : vector<8x128xbf16> to vector<1x8x128xbf16>
    tpu.vector_store %arg16[%225, %c0_58, %c0_59], %228 {strides = array<i32>} : memref<8x8x128xbf16, #tpu.memory_space<vmem>>, vector<1x8x128xbf16>,
    %c6_i32 = arith.constant 6 : i32
    %229 = arith.truncf %223 : vector<8x128xf32> to vector<8x128xbf16>
    %cst_60 = arith.constant dense<0.000000e+00> : vector<8x384xf32>
    %230 = tpu.matmul %229, %4, %cst_60 {dimension_numbers = #tpu.dot_dimension_numbers<[1], [0], [0], [1], [0, 0, 1, 1], [], []>} : vector<8x128xbf16>, vector<128x384xbf16>, vector<8x384xf32> -> vector<8x384xf32>
    %231 = arith.index_cast %c6_i32 : i32 to index
    %c0_61 = arith.constant 0 : index
    %c0_62 = arith.constant 0 : index
    %232 = vector.load %arg17[%231, %c0_61, %c0_62] : memref<8x8x384xf32, #tpu.memory_space<vmem>>, vector<1x8x384xf32>
    %233 = vector.shape_cast %232 : vector<1x8x384xf32> to vector<8x384xf32>
    %234 = vector.extract_strided_slice %233 {offsets = [0, 0], sizes = [8, 128], strides = [1, 1]} : vector<8x384xf32> to vector<8x128xf32>
    %235 = vector.extract_strided_slice %230 {offsets = [0, 0], sizes = [8, 128], strides = [1, 1]} : vector<8x384xf32> to vector<8x128xf32>
    %236 = arith.addf %234, %235 : vector<8x128xf32>
    %237 = arith.negf %236 : vector<8x128xf32>
    %238 = math.exp %237 : vector<8x128xf32>
    %cst_63 = arith.constant 1.000000e+00 : f32
    %239 = vector.broadcast %cst_63 : f32 to vector<8x128xf32>
    %240 = arith.addf %239, %238 : vector<8x128xf32>
    %241 = arith.divf %239, %240 : vector<8x128xf32>
    %242 = vector.extract_strided_slice %233 {offsets = [0, 128], sizes = [8, 128], strides = [1, 1]} : vector<8x384xf32> to vector<8x128xf32>
    %243 = vector.extract_strided_slice %230 {offsets = [0, 128], sizes = [8, 128], strides = [1, 1]} : vector<8x384xf32> to vector<8x128xf32>
    %244 = arith.addf %242, %243 : vector<8x128xf32>
    %245 = arith.negf %244 : vector<8x128xf32>
    %246 = math.exp %245 : vector<8x128xf32>
    %cst_64 = arith.constant 1.000000e+00 : f32
    %247 = vector.broadcast %cst_64 : f32 to vector<8x128xf32>
    %248 = arith.addf %247, %246 : vector<8x128xf32>
    %249 = arith.divf %247, %248 : vector<8x128xf32>
    %250 = vector.extract_strided_slice %233 {offsets = [0, 256], sizes = [8, 128], strides = [1, 1]} : vector<8x384xf32> to vector<8x128xf32>
    %251 = vector.extract_strided_slice %230 {offsets = [0, 256], sizes = [8, 128], strides = [1, 1]} : vector<8x384xf32> to vector<8x128xf32>
    %252 = arith.addf %251, %16 : vector<8x128xf32>
    %253 = arith.mulf %241, %252 : vector<8x128xf32>
    %254 = arith.addf %250, %253 : vector<8x128xf32>
    %255 = math.tanh %254 : vector<8x128xf32>
    %256 = arith.subf %223, %255 : vector<8x128xf32>
    %257 = arith.mulf %249, %256 : vector<8x128xf32>
    %258 = arith.addf %255, %257 : vector<8x128xf32>
    %259 = arith.truncf %258 : vector<8x128xf32> to vector<8x128xbf16>
    %260 = arith.index_cast %c6_i32 : i32 to index
    %c0_65 = arith.constant 0 : index
    %c0_66 = arith.constant 0 : index
    %261 = vector.load %arg16[%260, %c0_65, %c0_66] : memref<8x8x128xbf16, #tpu.memory_space<vmem>>, vector<1x8x128xbf16>
    %262 = vector.shape_cast %261 : vector<1x8x128xbf16> to vector<8x128xbf16>
    %263 = vector.shape_cast %259 : vector<8x128xbf16> to vector<1x8x128xbf16>
    tpu.vector_store %arg16[%260, %c0_65, %c0_66], %263 {strides = array<i32>} : memref<8x8x128xbf16, #tpu.memory_space<vmem>>, vector<1x8x128xbf16>,
    %c7_i32 = arith.constant 7 : i32
    %264 = arith.truncf %258 : vector<8x128xf32> to vector<8x128xbf16>
    %cst_67 = arith.constant dense<0.000000e+00> : vector<8x384xf32>
    %265 = tpu.matmul %264, %4, %cst_67 {dimension_numbers = #tpu.dot_dimension_numbers<[1], [0], [0], [1], [0, 0, 1, 1], [], []>} : vector<8x128xbf16>, vector<128x384xbf16>, vector<8x384xf32> -> vector<8x384xf32>
    %266 = arith.index_cast %c7_i32 : i32 to index
    %c0_68 = arith.constant 0 : index
    %c0_69 = arith.constant 0 : index
    %267 = vector.load %arg17[%266, %c0_68, %c0_69] : memref<8x8x384xf32, #tpu.memory_space<vmem>>, vector<1x8x384xf32>
    %268 = vector.shape_cast %267 : vector<1x8x384xf32> to vector<8x384xf32>
    %269 = vector.extract_strided_slice %268 {offsets = [0, 0], sizes = [8, 128], strides = [1, 1]} : vector<8x384xf32> to vector<8x128xf32>
    %270 = vector.extract_strided_slice %265 {offsets = [0, 0], sizes = [8, 128], strides = [1, 1]} : vector<8x384xf32> to vector<8x128xf32>
    %271 = arith.addf %269, %270 : vector<8x128xf32>
    %272 = arith.negf %271 : vector<8x128xf32>
    %273 = math.exp %272 : vector<8x128xf32>
    %cst_70 = arith.constant 1.000000e+00 : f32
    %274 = vector.broadcast %cst_70 : f32 to vector<8x128xf32>
    %275 = arith.addf %274, %273 : vector<8x128xf32>
    %276 = arith.divf %274, %275 : vector<8x128xf32>
    %277 = vector.extract_strided_slice %268 {offsets = [0, 128], sizes = [8, 128], strides = [1, 1]} : vector<8x384xf32> to vector<8x128xf32>
    %278 = vector.extract_strided_slice %265 {offsets = [0, 128], sizes = [8, 128], strides = [1, 1]} : vector<8x384xf32> to vector<8x128xf32>
    %279 = arith.addf %277, %278 : vector<8x128xf32>
    %280 = arith.negf %279 : vector<8x128xf32>
    %281 = math.exp %280 : vector<8x128xf32>
    %cst_71 = arith.constant 1.000000e+00 : f32
    %282 = vector.broadcast %cst_71 : f32 to vector<8x128xf32>
    %283 = arith.addf %282, %281 : vector<8x128xf32>
    %284 = arith.divf %282, %283 : vector<8x128xf32>
    %285 = vector.extract_strided_slice %268 {offsets = [0, 256], sizes = [8, 128], strides = [1, 1]} : vector<8x384xf32> to vector<8x128xf32>
    %286 = vector.extract_strided_slice %265 {offsets = [0, 256], sizes = [8, 128], strides = [1, 1]} : vector<8x384xf32> to vector<8x128xf32>
    %287 = arith.addf %286, %16 : vector<8x128xf32>
    %288 = arith.mulf %276, %287 : vector<8x128xf32>
    %289 = arith.addf %285, %288 : vector<8x128xf32>
    %290 = math.tanh %289 : vector<8x128xf32>
    %291 = arith.subf %258, %290 : vector<8x128xf32>
    %292 = arith.mulf %284, %291 : vector<8x128xf32>
    %293 = arith.addf %290, %292 : vector<8x128xf32>
    %294 = arith.truncf %293 : vector<8x128xf32> to vector<8x128xbf16>
    %295 = arith.index_cast %c7_i32 : i32 to index
    %c0_72 = arith.constant 0 : index
    %c0_73 = arith.constant 0 : index
    %296 = vector.load %arg16[%295, %c0_72, %c0_73] : memref<8x8x128xbf16, #tpu.memory_space<vmem>>, vector<1x8x128xbf16>
    %297 = vector.shape_cast %296 : vector<1x8x128xbf16> to vector<8x128xbf16>
    %298 = vector.shape_cast %294 : vector<8x128xbf16> to vector<1x8x128xbf16>
    tpu.vector_store %arg16[%295, %c0_72, %c0_73], %298 {strides = array<i32>} : memref<8x8x128xbf16, #tpu.memory_space<vmem>>, vector<1x8x128xbf16>,
    %c8_i32 = arith.constant 8 : i32
    %c0_74 = arith.constant 0 : index
    %c0_75 = arith.constant 0 : index
    %c0_76 = arith.constant 0 : index
    %299 = vector.load %arg15[%c0_74, %c0_75, %c0_76] : memref<2x8x128xf32, #tpu.memory_space<vmem>>, vector<1x8x128xf32>
    %300 = vector.shape_cast %299 : vector<1x8x128xf32> to vector<8x128xf32>
    %301 = vector.shape_cast %293 : vector<8x128xf32> to vector<1x8x128xf32>
    tpu.vector_store %arg15[%c0_74, %c0_75, %c0_76], %301 {strides = array<i32>} : memref<2x8x128xf32, #tpu.memory_space<vmem>>, vector<1x8x128xf32>,
    %c0_77 = arith.constant 0 : index
    %c0_78 = arith.constant 0 : index
    %302 = vector.load %arg8[%c0_77, %c0_78] : memref<128x384xbf16, #tpu.memory_space<vmem>>, vector<128x384xbf16>
    %c0_79 = arith.constant 0 : index
    %c0_80 = arith.constant 0 : index
    %303 = vector.load %arg9[%c0_79, %c0_80] : memref<128x384xbf16, #tpu.memory_space<vmem>>, vector<128x384xbf16>
    %c0_81 = arith.constant 0 : index
    %c0_82 = arith.constant 0 : index
    %304 = vector.load %arg10[%c0_81, %c0_82] : memref<1x384xf32, #tpu.memory_space<vmem>>, vector<1x384xf32>
    %c0_83 = arith.constant 0 : index
    %c0_84 = arith.constant 0 : index
    %305 = vector.load %arg11[%c0_83, %c0_84] : memref<1x128xf32, #tpu.memory_space<vmem>>, vector<1x128xf32>
    %c0_85 = arith.constant 0 : index
    %c0_86 = arith.constant 0 : index
    %c0_87 = arith.constant 0 : index
    %306 = vector.load %arg16[%c0_85, %c0_86, %c0_87] : memref<8x8x128xbf16, #tpu.memory_space<vmem>>, vector<8x8x128xbf16>
    %307 = vector.shape_cast %306 : vector<8x8x128xbf16> to vector<64x128xbf16>
    %cst_88 = arith.constant dense<0.000000e+00> : vector<64x384xf32>
    %308 = tpu.matmul %307, %302, %cst_88 {dimension_numbers = #tpu.dot_dimension_numbers<[1], [0], [0], [1], [0, 0, 1, 1], [], []>} : vector<64x128xbf16>, vector<128x384xbf16>, vector<64x384xf32> -> vector<64x384xf32>
    %309 = vector.broadcast %304 : vector<1x384xf32> to vector<64x384xf32>
    %310 = arith.addf %308, %309 : vector<64x384xf32>
    %311 = vector.shape_cast %310 : vector<64x384xf32> to vector<8x8x384xf32>
    %c0_89 = arith.constant 0 : index
    %c0_90 = arith.constant 0 : index
    %c0_91 = arith.constant 0 : index
    %312 = vector.load %arg17[%c0_89, %c0_90, %c0_91] : memref<8x8x384xf32, #tpu.memory_space<vmem>>, vector<8x8x384xf32>
    tpu.vector_store %arg17[%c0_89, %c0_90, %c0_91], %311 {strides = array<i32>} : memref<8x8x384xf32, #tpu.memory_space<vmem>>, vector<8x8x384xf32>,
    %313 = vector.shape_cast %305 : vector<1x128xf32> to vector<1x128xf32>
    %314 = vector.broadcast %313 : vector<1x128xf32> to vector<8x128xf32>
    %c1 = arith.constant 1 : index
    %c0_92 = arith.constant 0 : index
    %c0_93 = arith.constant 0 : index
    %315 = vector.load %arg15[%c1, %c0_92, %c0_93] : memref<2x8x128xf32, #tpu.memory_space<vmem>>, vector<1x8x128xf32>
    %316 = vector.shape_cast %315 : vector<1x8x128xf32> to vector<8x128xf32>
    %c0_i32_94 = arith.constant 0 : i32
    %317 = arith.truncf %316 : vector<8x128xf32> to vector<8x128xbf16>
    %cst_95 = arith.constant dense<0.000000e+00> : vector<8x384xf32>
    %318 = tpu.matmul %317, %303, %cst_95 {dimension_numbers = #tpu.dot_dimension_numbers<[1], [0], [0], [1], [0, 0, 1, 1], [], []>} : vector<8x128xbf16>, vector<128x384xbf16>, vector<8x384xf32> -> vector<8x384xf32>
    %319 = arith.index_cast %c0_i32_94 : i32 to index
    %c0_96 = arith.constant 0 : index
    %c0_97 = arith.constant 0 : index
    %320 = vector.load %arg17[%319, %c0_96, %c0_97] : memref<8x8x384xf32, #tpu.memory_space<vmem>>, vector<1x8x384xf32>
    %321 = vector.shape_cast %320 : vector<1x8x384xf32> to vector<8x384xf32>
    %322 = vector.extract_strided_slice %321 {offsets = [0, 0], sizes = [8, 128], strides = [1, 1]} : vector<8x384xf32> to vector<8x128xf32>
    %323 = vector.extract_strided_slice %318 {offsets = [0, 0], sizes = [8, 128], strides = [1, 1]} : vector<8x384xf32> to vector<8x128xf32>
    %324 = arith.addf %322, %323 : vector<8x128xf32>
    %325 = arith.negf %324 : vector<8x128xf32>
    %326 = math.exp %325 : vector<8x128xf32>
    %cst_98 = arith.constant 1.000000e+00 : f32
    %327 = vector.broadcast %cst_98 : f32 to vector<8x128xf32>
    %328 = arith.addf %327, %326 : vector<8x128xf32>
    %329 = arith.divf %327, %328 : vector<8x128xf32>
    %330 = vector.extract_strided_slice %321 {offsets = [0, 128], sizes = [8, 128], strides = [1, 1]} : vector<8x384xf32> to vector<8x128xf32>
    %331 = vector.extract_strided_slice %318 {offsets = [0, 128], sizes = [8, 128], strides = [1, 1]} : vector<8x384xf32> to vector<8x128xf32>
    %332 = arith.addf %330, %331 : vector<8x128xf32>
    %333 = arith.negf %332 : vector<8x128xf32>
    %334 = math.exp %333 : vector<8x128xf32>
    %cst_99 = arith.constant 1.000000e+00 : f32
    %335 = vector.broadcast %cst_99 : f32 to vector<8x128xf32>
    %336 = arith.addf %335, %334 : vector<8x128xf32>
    %337 = arith.divf %335, %336 : vector<8x128xf32>
    %338 = vector.extract_strided_slice %321 {offsets = [0, 256], sizes = [8, 128], strides = [1, 1]} : vector<8x384xf32> to vector<8x128xf32>
    %339 = vector.extract_strided_slice %318 {offsets = [0, 256], sizes = [8, 128], strides = [1, 1]} : vector<8x384xf32> to vector<8x128xf32>
    %340 = arith.addf %339, %314 : vector<8x128xf32>
    %341 = arith.mulf %329, %340 : vector<8x128xf32>
    %342 = arith.addf %338, %341 : vector<8x128xf32>
    %343 = math.tanh %342 : vector<8x128xf32>
    %344 = arith.subf %316, %343 : vector<8x128xf32>
    %345 = arith.mulf %337, %344 : vector<8x128xf32>
    %346 = arith.addf %343, %345 : vector<8x128xf32>
    %c1_i32_100 = arith.constant 1 : i32
    %347 = arith.truncf %346 : vector<8x128xf32> to vector<8x128xbf16>
    %cst_101 = arith.constant dense<0.000000e+00> : vector<8x384xf32>
    %348 = tpu.matmul %347, %303, %cst_101 {dimension_numbers = #tpu.dot_dimension_numbers<[1], [0], [0], [1], [0, 0, 1, 1], [], []>} : vector<8x128xbf16>, vector<128x384xbf16>, vector<8x384xf32> -> vector<8x384xf32>
    %349 = arith.index_cast %c1_i32_100 : i32 to index
    %c0_102 = arith.constant 0 : index
    %c0_103 = arith.constant 0 : index
    %350 = vector.load %arg17[%349, %c0_102, %c0_103] : memref<8x8x384xf32, #tpu.memory_space<vmem>>, vector<1x8x384xf32>
    %351 = vector.shape_cast %350 : vector<1x8x384xf32> to vector<8x384xf32>
    %352 = vector.extract_strided_slice %351 {offsets = [0, 0], sizes = [8, 128], strides = [1, 1]} : vector<8x384xf32> to vector<8x128xf32>
    %353 = vector.extract_strided_slice %348 {offsets = [0, 0], sizes = [8, 128], strides = [1, 1]} : vector<8x384xf32> to vector<8x128xf32>
    %354 = arith.addf %352, %353 : vector<8x128xf32>
    %355 = arith.negf %354 : vector<8x128xf32>
    %356 = math.exp %355 : vector<8x128xf32>
    %cst_104 = arith.constant 1.000000e+00 : f32
    %357 = vector.broadcast %cst_104 : f32 to vector<8x128xf32>
    %358 = arith.addf %357, %356 : vector<8x128xf32>
    %359 = arith.divf %357, %358 : vector<8x128xf32>
    %360 = vector.extract_strided_slice %351 {offsets = [0, 128], sizes = [8, 128], strides = [1, 1]} : vector<8x384xf32> to vector<8x128xf32>
    %361 = vector.extract_strided_slice %348 {offsets = [0, 128], sizes = [8, 128], strides = [1, 1]} : vector<8x384xf32> to vector<8x128xf32>
    %362 = arith.addf %360, %361 : vector<8x128xf32>
    %363 = arith.negf %362 : vector<8x128xf32>
    %364 = math.exp %363 : vector<8x128xf32>
    %cst_105 = arith.constant 1.000000e+00 : f32
    %365 = vector.broadcast %cst_105 : f32 to vector<8x128xf32>
    %366 = arith.addf %365, %364 : vector<8x128xf32>
    %367 = arith.divf %365, %366 : vector<8x128xf32>
    %368 = vector.extract_strided_slice %351 {offsets = [0, 256], sizes = [8, 128], strides = [1, 1]} : vector<8x384xf32> to vector<8x128xf32>
    %369 = vector.extract_strided_slice %348 {offsets = [0, 256], sizes = [8, 128], strides = [1, 1]} : vector<8x384xf32> to vector<8x128xf32>
    %370 = arith.addf %369, %314 : vector<8x128xf32>
    %371 = arith.mulf %359, %370 : vector<8x128xf32>
    %372 = arith.addf %368, %371 : vector<8x128xf32>
    %373 = math.tanh %372 : vector<8x128xf32>
    %374 = arith.subf %346, %373 : vector<8x128xf32>
    %375 = arith.mulf %367, %374 : vector<8x128xf32>
    %376 = arith.addf %373, %375 : vector<8x128xf32>
    %c2_i32_106 = arith.constant 2 : i32
    %377 = arith.truncf %376 : vector<8x128xf32> to vector<8x128xbf16>
    %cst_107 = arith.constant dense<0.000000e+00> : vector<8x384xf32>
    %378 = tpu.matmul %377, %303, %cst_107 {dimension_numbers = #tpu.dot_dimension_numbers<[1], [0], [0], [1], [0, 0, 1, 1], [], []>} : vector<8x128xbf16>, vector<128x384xbf16>, vector<8x384xf32> -> vector<8x384xf32>
    %379 = arith.index_cast %c2_i32_106 : i32 to index
    %c0_108 = arith.constant 0 : index
    %c0_109 = arith.constant 0 : index
    %380 = vector.load %arg17[%379, %c0_108, %c0_109] : memref<8x8x384xf32, #tpu.memory_space<vmem>>, vector<1x8x384xf32>
    %381 = vector.shape_cast %380 : vector<1x8x384xf32> to vector<8x384xf32>
    %382 = vector.extract_strided_slice %381 {offsets = [0, 0], sizes = [8, 128], strides = [1, 1]} : vector<8x384xf32> to vector<8x128xf32>
    %383 = vector.extract_strided_slice %378 {offsets = [0, 0], sizes = [8, 128], strides = [1, 1]} : vector<8x384xf32> to vector<8x128xf32>
    %384 = arith.addf %382, %383 : vector<8x128xf32>
    %385 = arith.negf %384 : vector<8x128xf32>
    %386 = math.exp %385 : vector<8x128xf32>
    %cst_110 = arith.constant 1.000000e+00 : f32
    %387 = vector.broadcast %cst_110 : f32 to vector<8x128xf32>
    %388 = arith.addf %387, %386 : vector<8x128xf32>
    %389 = arith.divf %387, %388 : vector<8x128xf32>
    %390 = vector.extract_strided_slice %381 {offsets = [0, 128], sizes = [8, 128], strides = [1, 1]} : vector<8x384xf32> to vector<8x128xf32>
    %391 = vector.extract_strided_slice %378 {offsets = [0, 128], sizes = [8, 128], strides = [1, 1]} : vector<8x384xf32> to vector<8x128xf32>
    %392 = arith.addf %390, %391 : vector<8x128xf32>
    %393 = arith.negf %392 : vector<8x128xf32>
    %394 = math.exp %393 : vector<8x128xf32>
    %cst_111 = arith.constant 1.000000e+00 : f32
    %395 = vector.broadcast %cst_111 : f32 to vector<8x128xf32>
    %396 = arith.addf %395, %394 : vector<8x128xf32>
    %397 = arith.divf %395, %396 : vector<8x128xf32>
    %398 = vector.extract_strided_slice %381 {offsets = [0, 256], sizes = [8, 128], strides = [1, 1]} : vector<8x384xf32> to vector<8x128xf32>
    %399 = vector.extract_strided_slice %378 {offsets = [0, 256], sizes = [8, 128], strides = [1, 1]} : vector<8x384xf32> to vector<8x128xf32>
    %400 = arith.addf %399, %314 : vector<8x128xf32>
    %401 = arith.mulf %389, %400 : vector<8x128xf32>
    %402 = arith.addf %398, %401 : vector<8x128xf32>
    %403 = math.tanh %402 : vector<8x128xf32>
    %404 = arith.subf %376, %403 : vector<8x128xf32>
    %405 = arith.mulf %397, %404 : vector<8x128xf32>
    %406 = arith.addf %403, %405 : vector<8x128xf32>
    %c3_i32_112 = arith.constant 3 : i32
    %407 = arith.truncf %406 : vector<8x128xf32> to vector<8x128xbf16>
    %cst_113 = arith.constant dense<0.000000e+00> : vector<8x384xf32>
    %408 = tpu.matmul %407, %303, %cst_113 {dimension_numbers = #tpu.dot_dimension_numbers<[1], [0], [0], [1], [0, 0, 1, 1], [], []>} : vector<8x128xbf16>, vector<128x384xbf16>, vector<8x384xf32> -> vector<8x384xf32>
    %409 = arith.index_cast %c3_i32_112 : i32 to index
    %c0_114 = arith.constant 0 : index
    %c0_115 = arith.constant 0 : index
    %410 = vector.load %arg17[%409, %c0_114, %c0_115] : memref<8x8x384xf32, #tpu.memory_space<vmem>>, vector<1x8x384xf32>
    %411 = vector.shape_cast %410 : vector<1x8x384xf32> to vector<8x384xf32>
    %412 = vector.extract_strided_slice %411 {offsets = [0, 0], sizes = [8, 128], strides = [1, 1]} : vector<8x384xf32> to vector<8x128xf32>
    %413 = vector.extract_strided_slice %408 {offsets = [0, 0], sizes = [8, 128], strides = [1, 1]} : vector<8x384xf32> to vector<8x128xf32>
    %414 = arith.addf %412, %413 : vector<8x128xf32>
    %415 = arith.negf %414 : vector<8x128xf32>
    %416 = math.exp %415 : vector<8x128xf32>
    %cst_116 = arith.constant 1.000000e+00 : f32
    %417 = vector.broadcast %cst_116 : f32 to vector<8x128xf32>
    %418 = arith.addf %417, %416 : vector<8x128xf32>
    %419 = arith.divf %417, %418 : vector<8x128xf32>
    %420 = vector.extract_strided_slice %411 {offsets = [0, 128], sizes = [8, 128], strides = [1, 1]} : vector<8x384xf32> to vector<8x128xf32>
    %421 = vector.extract_strided_slice %408 {offsets = [0, 128], sizes = [8, 128], strides = [1, 1]} : vector<8x384xf32> to vector<8x128xf32>
    %422 = arith.addf %420, %421 : vector<8x128xf32>
    %423 = arith.negf %422 : vector<8x128xf32>
    %424 = math.exp %423 : vector<8x128xf32>
    %cst_117 = arith.constant 1.000000e+00 : f32
    %425 = vector.broadcast %cst_117 : f32 to vector<8x128xf32>
    %426 = arith.addf %425, %424 : vector<8x128xf32>
    %427 = arith.divf %425, %426 : vector<8x128xf32>
    %428 = vector.extract_strided_slice %411 {offsets = [0, 256], sizes = [8, 128], strides = [1, 1]} : vector<8x384xf32> to vector<8x128xf32>
    %429 = vector.extract_strided_slice %408 {offsets = [0, 256], sizes = [8, 128], strides = [1, 1]} : vector<8x384xf32> to vector<8x128xf32>
    %430 = arith.addf %429, %314 : vector<8x128xf32>
    %431 = arith.mulf %419, %430 : vector<8x128xf32>
    %432 = arith.addf %428, %431 : vector<8x128xf32>
    %433 = math.tanh %432 : vector<8x128xf32>
    %434 = arith.subf %406, %433 : vector<8x128xf32>
    %435 = arith.mulf %427, %434 : vector<8x128xf32>
    %436 = arith.addf %433, %435 : vector<8x128xf32>
    %c4_i32_118 = arith.constant 4 : i32
    %437 = arith.truncf %436 : vector<8x128xf32> to vector<8x128xbf16>
    %cst_119 = arith.constant dense<0.000000e+00> : vector<8x384xf32>
    %438 = tpu.matmul %437, %303, %cst_119 {dimension_numbers = #tpu.dot_dimension_numbers<[1], [0], [0], [1], [0, 0, 1, 1], [], []>} : vector<8x128xbf16>, vector<128x384xbf16>, vector<8x384xf32> -> vector<8x384xf32>
    %439 = arith.index_cast %c4_i32_118 : i32 to index
    %c0_120 = arith.constant 0 : index
    %c0_121 = arith.constant 0 : index
    %440 = vector.load %arg17[%439, %c0_120, %c0_121] : memref<8x8x384xf32, #tpu.memory_space<vmem>>, vector<1x8x384xf32>
    %441 = vector.shape_cast %440 : vector<1x8x384xf32> to vector<8x384xf32>
    %442 = vector.extract_strided_slice %441 {offsets = [0, 0], sizes = [8, 128], strides = [1, 1]} : vector<8x384xf32> to vector<8x128xf32>
    %443 = vector.extract_strided_slice %438 {offsets = [0, 0], sizes = [8, 128], strides = [1, 1]} : vector<8x384xf32> to vector<8x128xf32>
    %444 = arith.addf %442, %443 : vector<8x128xf32>
    %445 = arith.negf %444 : vector<8x128xf32>
    %446 = math.exp %445 : vector<8x128xf32>
    %cst_122 = arith.constant 1.000000e+00 : f32
    %447 = vector.broadcast %cst_122 : f32 to vector<8x128xf32>
    %448 = arith.addf %447, %446 : vector<8x128xf32>
    %449 = arith.divf %447, %448 : vector<8x128xf32>
    %450 = vector.extract_strided_slice %441 {offsets = [0, 128], sizes = [8, 128], strides = [1, 1]} : vector<8x384xf32> to vector<8x128xf32>
    %451 = vector.extract_strided_slice %438 {offsets = [0, 128], sizes = [8, 128], strides = [1, 1]} : vector<8x384xf32> to vector<8x128xf32>
    %452 = arith.addf %450, %451 : vector<8x128xf32>
    %453 = arith.negf %452 : vector<8x128xf32>
    %454 = math.exp %453 : vector<8x128xf32>
    %cst_123 = arith.constant 1.000000e+00 : f32
    %455 = vector.broadcast %cst_123 : f32 to vector<8x128xf32>
    %456 = arith.addf %455, %454 : vector<8x128xf32>
    %457 = arith.divf %455, %456 : vector<8x128xf32>
    %458 = vector.extract_strided_slice %441 {offsets = [0, 256], sizes = [8, 128], strides = [1, 1]} : vector<8x384xf32> to vector<8x128xf32>
    %459 = vector.extract_strided_slice %438 {offsets = [0, 256], sizes = [8, 128], strides = [1, 1]} : vector<8x384xf32> to vector<8x128xf32>
    %460 = arith.addf %459, %314 : vector<8x128xf32>
    %461 = arith.mulf %449, %460 : vector<8x128xf32>
    %462 = arith.addf %458, %461 : vector<8x128xf32>
    %463 = math.tanh %462 : vector<8x128xf32>
    %464 = arith.subf %436, %463 : vector<8x128xf32>
    %465 = arith.mulf %457, %464 : vector<8x128xf32>
    %466 = arith.addf %463, %465 : vector<8x128xf32>
    %c5_i32_124 = arith.constant 5 : i32
    %467 = arith.truncf %466 : vector<8x128xf32> to vector<8x128xbf16>
    %cst_125 = arith.constant dense<0.000000e+00> : vector<8x384xf32>
    %468 = tpu.matmul %467, %303, %cst_125 {dimension_numbers = #tpu.dot_dimension_numbers<[1], [0], [0], [1], [0, 0, 1, 1], [], []>} : vector<8x128xbf16>, vector<128x384xbf16>, vector<8x384xf32> -> vector<8x384xf32>
    %469 = arith.index_cast %c5_i32_124 : i32 to index
    %c0_126 = arith.constant 0 : index
    %c0_127 = arith.constant 0 : index
    %470 = vector.load %arg17[%469, %c0_126, %c0_127] : memref<8x8x384xf32, #tpu.memory_space<vmem>>, vector<1x8x384xf32>
    %471 = vector.shape_cast %470 : vector<1x8x384xf32> to vector<8x384xf32>
    %472 = vector.extract_strided_slice %471 {offsets = [0, 0], sizes = [8, 128], strides = [1, 1]} : vector<8x384xf32> to vector<8x128xf32>
    %473 = vector.extract_strided_slice %468 {offsets = [0, 0], sizes = [8, 128], strides = [1, 1]} : vector<8x384xf32> to vector<8x128xf32>
    %474 = arith.addf %472, %473 : vector<8x128xf32>
    %475 = arith.negf %474 : vector<8x128xf32>
    %476 = math.exp %475 : vector<8x128xf32>
    %cst_128 = arith.constant 1.000000e+00 : f32
    %477 = vector.broadcast %cst_128 : f32 to vector<8x128xf32>
    %478 = arith.addf %477, %476 : vector<8x128xf32>
    %479 = arith.divf %477, %478 : vector<8x128xf32>
    %480 = vector.extract_strided_slice %471 {offsets = [0, 128], sizes = [8, 128], strides = [1, 1]} : vector<8x384xf32> to vector<8x128xf32>
    %481 = vector.extract_strided_slice %468 {offsets = [0, 128], sizes = [8, 128], strides = [1, 1]} : vector<8x384xf32> to vector<8x128xf32>
    %482 = arith.addf %480, %481 : vector<8x128xf32>
    %483 = arith.negf %482 : vector<8x128xf32>
    %484 = math.exp %483 : vector<8x128xf32>
    %cst_129 = arith.constant 1.000000e+00 : f32
    %485 = vector.broadcast %cst_129 : f32 to vector<8x128xf32>
    %486 = arith.addf %485, %484 : vector<8x128xf32>
    %487 = arith.divf %485, %486 : vector<8x128xf32>
    %488 = vector.extract_strided_slice %471 {offsets = [0, 256], sizes = [8, 128], strides = [1, 1]} : vector<8x384xf32> to vector<8x128xf32>
    %489 = vector.extract_strided_slice %468 {offsets = [0, 256], sizes = [8, 128], strides = [1, 1]} : vector<8x384xf32> to vector<8x128xf32>
    %490 = arith.addf %489, %314 : vector<8x128xf32>
    %491 = arith.mulf %479, %490 : vector<8x128xf32>
    %492 = arith.addf %488, %491 : vector<8x128xf32>
    %493 = math.tanh %492 : vector<8x128xf32>
    %494 = arith.subf %466, %493 : vector<8x128xf32>
    %495 = arith.mulf %487, %494 : vector<8x128xf32>
    %496 = arith.addf %493, %495 : vector<8x128xf32>
    %c6_i32_130 = arith.constant 6 : i32
    %497 = arith.truncf %496 : vector<8x128xf32> to vector<8x128xbf16>
    %cst_131 = arith.constant dense<0.000000e+00> : vector<8x384xf32>
    %498 = tpu.matmul %497, %303, %cst_131 {dimension_numbers = #tpu.dot_dimension_numbers<[1], [0], [0], [1], [0, 0, 1, 1], [], []>} : vector<8x128xbf16>, vector<128x384xbf16>, vector<8x384xf32> -> vector<8x384xf32>
    %499 = arith.index_cast %c6_i32_130 : i32 to index
    %c0_132 = arith.constant 0 : index
    %c0_133 = arith.constant 0 : index
    %500 = vector.load %arg17[%499, %c0_132, %c0_133] : memref<8x8x384xf32, #tpu.memory_space<vmem>>, vector<1x8x384xf32>
    %501 = vector.shape_cast %500 : vector<1x8x384xf32> to vector<8x384xf32>
    %502 = vector.extract_strided_slice %501 {offsets = [0, 0], sizes = [8, 128], strides = [1, 1]} : vector<8x384xf32> to vector<8x128xf32>
    %503 = vector.extract_strided_slice %498 {offsets = [0, 0], sizes = [8, 128], strides = [1, 1]} : vector<8x384xf32> to vector<8x128xf32>
    %504 = arith.addf %502, %503 : vector<8x128xf32>
    %505 = arith.negf %504 : vector<8x128xf32>
    %506 = math.exp %505 : vector<8x128xf32>
    %cst_134 = arith.constant 1.000000e+00 : f32
    %507 = vector.broadcast %cst_134 : f32 to vector<8x128xf32>
    %508 = arith.addf %507, %506 : vector<8x128xf32>
    %509 = arith.divf %507, %508 : vector<8x128xf32>
    %510 = vector.extract_strided_slice %501 {offsets = [0, 128], sizes = [8, 128], strides = [1, 1]} : vector<8x384xf32> to vector<8x128xf32>
    %511 = vector.extract_strided_slice %498 {offsets = [0, 128], sizes = [8, 128], strides = [1, 1]} : vector<8x384xf32> to vector<8x128xf32>
    %512 = arith.addf %510, %511 : vector<8x128xf32>
    %513 = arith.negf %512 : vector<8x128xf32>
    %514 = math.exp %513 : vector<8x128xf32>
    %cst_135 = arith.constant 1.000000e+00 : f32
    %515 = vector.broadcast %cst_135 : f32 to vector<8x128xf32>
    %516 = arith.addf %515, %514 : vector<8x128xf32>
    %517 = arith.divf %515, %516 : vector<8x128xf32>
    %518 = vector.extract_strided_slice %501 {offsets = [0, 256], sizes = [8, 128], strides = [1, 1]} : vector<8x384xf32> to vector<8x128xf32>
    %519 = vector.extract_strided_slice %498 {offsets = [0, 256], sizes = [8, 128], strides = [1, 1]} : vector<8x384xf32> to vector<8x128xf32>
    %520 = arith.addf %519, %314 : vector<8x128xf32>
    %521 = arith.mulf %509, %520 : vector<8x128xf32>
    %522 = arith.addf %518, %521 : vector<8x128xf32>
    %523 = math.tanh %522 : vector<8x128xf32>
    %524 = arith.subf %496, %523 : vector<8x128xf32>
    %525 = arith.mulf %517, %524 : vector<8x128xf32>
    %526 = arith.addf %523, %525 : vector<8x128xf32>
    %c7_i32_136 = arith.constant 7 : i32
    %527 = arith.truncf %526 : vector<8x128xf32> to vector<8x128xbf16>
    %cst_137 = arith.constant dense<0.000000e+00> : vector<8x384xf32>
    %528 = tpu.matmul %527, %303, %cst_137 {dimension_numbers = #tpu.dot_dimension_numbers<[1], [0], [0], [1], [0, 0, 1, 1], [], []>} : vector<8x128xbf16>, vector<128x384xbf16>, vector<8x384xf32> -> vector<8x384xf32>
    %529 = arith.index_cast %c7_i32_136 : i32 to index
    %c0_138 = arith.constant 0 : index
    %c0_139 = arith.constant 0 : index
    %530 = vector.load %arg17[%529, %c0_138, %c0_139] : memref<8x8x384xf32, #tpu.memory_space<vmem>>, vector<1x8x384xf32>
    %531 = vector.shape_cast %530 : vector<1x8x384xf32> to vector<8x384xf32>
    %532 = vector.extract_strided_slice %531 {offsets = [0, 0], sizes = [8, 128], strides = [1, 1]} : vector<8x384xf32> to vector<8x128xf32>
    %533 = vector.extract_strided_slice %528 {offsets = [0, 0], sizes = [8, 128], strides = [1, 1]} : vector<8x384xf32> to vector<8x128xf32>
    %534 = arith.addf %532, %533 : vector<8x128xf32>
    %535 = arith.negf %534 : vector<8x128xf32>
    %536 = math.exp %535 : vector<8x128xf32>
    %cst_140 = arith.constant 1.000000e+00 : f32
    %537 = vector.broadcast %cst_140 : f32 to vector<8x128xf32>
    %538 = arith.addf %537, %536 : vector<8x128xf32>
    %539 = arith.divf %537, %538 : vector<8x128xf32>
    %540 = vector.extract_strided_slice %531 {offsets = [0, 128], sizes = [8, 128], strides = [1, 1]} : vector<8x384xf32> to vector<8x128xf32>
    %541 = vector.extract_strided_slice %528 {offsets = [0, 128], sizes = [8, 128], strides = [1, 1]} : vector<8x384xf32> to vector<8x128xf32>
    %542 = arith.addf %540, %541 : vector<8x128xf32>
    %543 = arith.negf %542 : vector<8x128xf32>
    %544 = math.exp %543 : vector<8x128xf32>
    %cst_141 = arith.constant 1.000000e+00 : f32
    %545 = vector.broadcast %cst_141 : f32 to vector<8x128xf32>
    %546 = arith.addf %545, %544 : vector<8x128xf32>
    %547 = arith.divf %545, %546 : vector<8x128xf32>
    %548 = vector.extract_strided_slice %531 {offsets = [0, 256], sizes = [8, 128], strides = [1, 1]} : vector<8x384xf32> to vector<8x128xf32>
    %549 = vector.extract_strided_slice %528 {offsets = [0, 256], sizes = [8, 128], strides = [1, 1]} : vector<8x384xf32> to vector<8x128xf32>
    %550 = arith.addf %549, %314 : vector<8x128xf32>
    %551 = arith.mulf %539, %550 : vector<8x128xf32>
    %552 = arith.addf %548, %551 : vector<8x128xf32>
    %553 = math.tanh %552 : vector<8x128xf32>
    %554 = arith.subf %526, %553 : vector<8x128xf32>
    %555 = arith.mulf %547, %554 : vector<8x128xf32>
    %556 = arith.addf %553, %555 : vector<8x128xf32>
    %c8_i32_142 = arith.constant 8 : i32
    %c1_143 = arith.constant 1 : index
    %c0_144 = arith.constant 0 : index
    %c0_145 = arith.constant 0 : index
    %557 = vector.load %arg15[%c1_143, %c0_144, %c0_145] : memref<2x8x128xf32, #tpu.memory_space<vmem>>, vector<1x8x128xf32>
    %558 = vector.shape_cast %557 : vector<1x8x128xf32> to vector<8x128xf32>
    %559 = vector.shape_cast %556 : vector<8x128xf32> to vector<1x8x128xf32>
    tpu.vector_store %arg15[%c1_143, %c0_144, %c0_145], %559 {strides = array<i32>} : memref<2x8x128xf32, #tpu.memory_space<vmem>>, vector<1x8x128xf32>,
    %c0_i32_146 = arith.constant 0 : i32
    %560 = arith.cmpi eq, %arg1, %c0_i32_146 : i32
    %561 = arith.extui %560 : i1 to i32
    %c0_i32_147 = arith.constant 0 : i32
    %562 = arith.cmpi ne, %561, %c0_i32_147 : i32
    scf.if %562 {
      %c1_148 = arith.constant 1 : index
      %c0_149 = arith.constant 0 : index
      %c0_150 = arith.constant 0 : index
      %563 = vector.load %arg15[%c1_148, %c0_149, %c0_150] : memref<2x8x128xf32, #tpu.memory_space<vmem>>, vector<1x8x128xf32>
      %564 = vector.shape_cast %563 : vector<1x8x128xf32> to vector<8x128xf32>
      %565 = arith.truncf %564 : vector<8x128xf32> to vector<8x128xbf16>
      %c0_151 = arith.constant 0 : index
      %c0_152 = arith.constant 0 : index
      %566 = vector.load %arg12[%c0_151, %c0_152] : memref<128x128xbf16, #tpu.memory_space<vmem>>, vector<128x128xbf16>
      %cst_153 = arith.constant dense<0.000000e+00> : vector<8x128xf32>
      %567 = tpu.matmul %565, %566, %cst_153 {dimension_numbers = #tpu.dot_dimension_numbers<[1], [0], [0], [1], [0, 0, 1, 1], [], []>} : vector<8x128xbf16>, vector<128x128xbf16>, vector<8x128xf32> -> vector<8x128xf32>
      %c0_154 = arith.constant 0 : index
      %c0_155 = arith.constant 0 : index
      %568 = vector.load %arg13[%c0_154, %c0_155] : memref<1x128xf32, #tpu.memory_space<vmem>>, vector<1x128xf32>
      %569 = vector.broadcast %568 : vector<1x128xf32> to vector<8x128xf32>
      %570 = arith.addf %567, %569 : vector<8x128xf32>
      %c0_156 = arith.constant 0 : index
      %c0_157 = arith.constant 0 : index
      %571 = vector.load %arg14[%c0_156, %c0_157] : memref<8x128xf32, #tpu.memory_space<vmem>>, vector<8x128xf32>
      tpu.vector_store %arg14[%c0_156, %c0_157], %570 {strides = array<i32>} : memref<8x128xf32, #tpu.memory_space<vmem>>, vector<8x128xf32>,
    } else {
    }
    return
  }
  func.func @transform_0(%arg0: i32, %arg1: i32) -> (i32, i32, i32) {
    %c0_i32 = arith.constant 0 : i32
    %c0_i32_0 = arith.constant 0 : i32
    return %arg1, %arg0, %c0_i32 : i32, i32, i32
  }
  func.func @transform_1(%arg0: i32, %arg1: i32) -> (i32, i32, i32) {
    %c0_i32 = arith.constant 0 : i32
    %c0_i32_0 = arith.constant 0 : i32
    %c0_i32_1 = arith.constant 0 : i32
    return %c0_i32, %arg0, %c0_i32_0 : i32, i32, i32
  }
  func.func @transform_2(%arg0: i32, %arg1: i32) -> (i32, i32) {
    %c0_i32 = arith.constant 0 : i32
    %c0_i32_0 = arith.constant 0 : i32
    %c0_i32_1 = arith.constant 0 : i32
    return %c0_i32, %c0_i32_0 : i32, i32
  }
  func.func @transform_3(%arg0: i32, %arg1: i32) -> (i32, i32) {
    %c0_i32 = arith.constant 0 : i32
    %c0_i32_0 = arith.constant 0 : i32
    %c0_i32_1 = arith.constant 0 : i32
    return %c0_i32, %c0_i32_0 : i32, i32
  }
  func.func @transform_4(%arg0: i32, %arg1: i32) -> (i32, i32) {
    %c0_i32 = arith.constant 0 : i32
    %c0_i32_0 = arith.constant 0 : i32
    %c0_i32_1 = arith.constant 0 : i32
    return %c0_i32, %c0_i32_0 : i32, i32
  }
  func.func @transform_5(%arg0: i32, %arg1: i32) -> (i32, i32) {
    %c0_i32 = arith.constant 0 : i32
    %c0_i32_0 = arith.constant 0 : i32
    %c0_i32_1 = arith.constant 0 : i32
    return %c0_i32, %c0_i32_0 : i32, i32
  }
  func.func @transform_6(%arg0: i32, %arg1: i32) -> (i32, i32) {
    %c0_i32 = arith.constant 0 : i32
    %c0_i32_0 = arith.constant 0 : i32
    %c0_i32_1 = arith.constant 0 : i32
    return %c0_i32, %c0_i32_0 : i32, i32
  }
  func.func @transform_7(%arg0: i32, %arg1: i32) -> (i32, i32) {
    %c0_i32 = arith.constant 0 : i32
    %c0_i32_0 = arith.constant 0 : i32
    %c0_i32_1 = arith.constant 0 : i32
    return %c0_i32, %c0_i32_0 : i32, i32
  }
  func.func @transform_8(%arg0: i32, %arg1: i32) -> (i32, i32) {
    %c0_i32 = arith.constant 0 : i32
    %c0_i32_0 = arith.constant 0 : i32
    %c0_i32_1 = arith.constant 0 : i32
    return %c0_i32, %c0_i32_0 : i32, i32
  }
  func.func @transform_9(%arg0: i32, %arg1: i32) -> (i32, i32) {
    %c0_i32 = arith.constant 0 : i32
    %c0_i32_0 = arith.constant 0 : i32
    %c0_i32_1 = arith.constant 0 : i32
    return %c0_i32, %c0_i32_0 : i32, i32
  }
  func.func @transform_10(%arg0: i32, %arg1: i32) -> (i32, i32) {
    %c0_i32 = arith.constant 0 : i32
    %c0_i32_0 = arith.constant 0 : i32
    %c0_i32_1 = arith.constant 0 : i32
    return %c0_i32, %c0_i32_0 : i32, i32
  }
  func.func @transform_11(%arg0: i32, %arg1: i32) -> (i32, i32) {
    %c0_i32 = arith.constant 0 : i32
    %c0_i32_0 = arith.constant 0 : i32
    %c0_i32_1 = arith.constant 0 : i32
    return %c0_i32, %c0_i32_0 : i32, i32
  }
  func.func @transform_12(%arg0: i32, %arg1: i32) -> (i32, i32) {
    %c0_i32 = arith.constant 0 : i32
    %c0_i32_0 = arith.constant 0 : i32
    return %arg0, %c0_i32 : i32, i32
  }
}

module attributes {stable_mosaic.version = 11 : i64} {
  func.func @kernel(%arg0: i32, %arg1: i32, %arg2: memref<8x8x4xf32, #tpu.memory_space<vmem>>, %arg3: memref<2x8x128xf32, #tpu.memory_space<vmem>>, %arg4: memref<4x384xbf16, #tpu.memory_space<vmem>>, %arg5: memref<128x384xbf16, #tpu.memory_space<vmem>>, %arg6: memref<1x384xf32, #tpu.memory_space<vmem>>, %arg7: memref<1x128xf32, #tpu.memory_space<vmem>>, %arg8: memref<128x384xbf16, #tpu.memory_space<vmem>>, %arg9: memref<128x384xbf16, #tpu.memory_space<vmem>>, %arg10: memref<1x384xf32, #tpu.memory_space<vmem>>, %arg11: memref<1x128xf32, #tpu.memory_space<vmem>>, %arg12: memref<128x128xbf16, #tpu.memory_space<vmem>>, %arg13: memref<1x128xf32, #tpu.memory_space<vmem>>, %arg14: memref<8x128xf32, #tpu.memory_space<vmem>>, %arg15: memref<2x8x128xf32, #tpu.memory_space<vmem>>, %arg16: memref<8x8x128xbf16, #tpu.memory_space<vmem>>, %arg17: memref<8x8x384xf32, #tpu.memory_space<vmem>>) attributes {dimension_semantics = [#tpu.dimension_semantics<parallel>, #tpu.dimension_semantics<arbitrary>], iteration_bounds = array<i64: 1, 1>, scalar_prefetch = 0 : i64, scratch_operands = 3 : i64, tpu.core_type = #tpu.core_type<tc>, window_params = [{transform_indices = @transform_0, window_bounds = array<i64: 8, 8, 4>}, {transform_indices = @transform_1, window_bounds = array<i64: 2, 8, 128>}, {pipeline_mode = #tpu.pipeline_mode<synchronous>, transform_indices = @transform_2, window_bounds = array<i64: 4, 384>}, {pipeline_mode = #tpu.pipeline_mode<synchronous>, transform_indices = @transform_3, window_bounds = array<i64: 128, 384>}, {pipeline_mode = #tpu.pipeline_mode<synchronous>, transform_indices = @transform_4, window_bounds = array<i64: 1, 384>}, {pipeline_mode = #tpu.pipeline_mode<synchronous>, transform_indices = @transform_5, window_bounds = array<i64: 1, 128>}, {pipeline_mode = #tpu.pipeline_mode<synchronous>, transform_indices = @transform_6, window_bounds = array<i64: 128, 384>}, {pipeline_mode = #tpu.pipeline_mode<synchronous>, transform_indices = @transform_7, window_bounds = array<i64: 128, 384>}, {pipeline_mode = #tpu.pipeline_mode<synchronous>, transform_indices = @transform_8, window_bounds = array<i64: 1, 384>}, {pipeline_mode = #tpu.pipeline_mode<synchronous>, transform_indices = @transform_9, window_bounds = array<i64: 1, 128>}, {pipeline_mode = #tpu.pipeline_mode<synchronous>, transform_indices = @transform_10, window_bounds = array<i64: 128, 128>}, {pipeline_mode = #tpu.pipeline_mode<synchronous>, transform_indices = @transform_11, window_bounds = array<i64: 1, 128>}, {transform_indices = @transform_12, window_bounds = array<i64: 8, 128>}]} {
    %c0_i32 = arith.constant 0 : i32
    %0 = arith.cmpi eq, %arg1, %c0_i32 : i32
    %1 = arith.extui %0 : i1 to i32
    %c0_i32_0 = arith.constant 0 : i32
    %2 = arith.cmpi ne, %1, %c0_i32_0 : i32
    scf.if %2 {
      %c0_148 = arith.constant 0 : index
      %c0_149 = arith.constant 0 : index
      %c0_150 = arith.constant 0 : index
      %563 = vector.load %arg3[%c0_148, %c0_149, %c0_150] : memref<2x8x128xf32, #tpu.memory_space<vmem>>, vector<2x8x128xf32>
      %c0_151 = arith.constant 0 : index
      %c0_152 = arith.constant 0 : index
      %c0_153 = arith.constant 0 : index
      %564 = vector.load %arg15[%c0_151, %c0_152, %c0_153] : memref<2x8x128xf32, #tpu.memory_space<vmem>>, vector<2x8x128xf32>
      tpu.vector_store %arg15[%c0_151, %c0_152, %c0_153], %563 {strides = array<i32>} : memref<2x8x128xf32, #tpu.memory_space<vmem>>, vector<2x8x128xf32>,
    } else {
    }
    %c0 = arith.constant 0 : index
    %c0_1 = arith.constant 0 : index
    %3 = vector.load %arg4[%c0, %c0_1] : memref<4x384xbf16, #tpu.memory_space<vmem>>, vector<4x384xbf16>
    %c0_2 = arith.constant 0 : index
    %c0_3 = arith.constant 0 : index
    %4 = vector.load %arg5[%c0_2, %c0_3] : memref<128x384xbf16, #tpu.memory_space<vmem>>, vector<128x384xbf16>
    %c0_4 = arith.constant 0 : index
    %c0_5 = arith.constant 0 : index
    %5 = vector.load %arg6[%c0_4, %c0_5] : memref<1x384xf32, #tpu.memory_space<vmem>>, vector<1x384xf32>
    %c0_6 = arith.constant 0 : index
    %c0_7 = arith.constant 0 : index
    %6 = vector.load %arg7[%c0_6, %c0_7] : memref<1x128xf32, #tpu.memory_space<vmem>>, vector<1x128xf32>
    %c0_8 = arith.constant 0 : index
    %c0_9 = arith.constant 0 : index
    %c0_10 = arith.constant 0 : index
    %7 = vector.load %arg2[%c0_8, %c0_9, %c0_10] : memref<8x8x4xf32, #tpu.memory_space<vmem>>, vector<8x8x4xf32>
    %8 = vector.shape_cast %7 : vector<8x8x4xf32> to vector<64x4xf32>
    %9 = arith.truncf %8 : vector<64x4xf32> to vector<64x4xbf16>
    %cst = arith.constant dense<0.000000e+00> : vector<64x384xf32>
    %10 = tpu.matmul %9, %3, %cst {dimension_numbers = #tpu.dot_dimension_numbers<[1], [0], [0], [1], [0, 0, 1, 1], [], []>} : vector<64x4xbf16>, vector<4x384xbf16>, vector<64x384xf32> -> vector<64x384xf32>
    %11 = vector.broadcast %5 : vector<1x384xf32> to vector<64x384xf32>
    %12 = arith.addf %10, %11 : vector<64x384xf32>
    %13 = vector.shape_cast %12 : vector<64x384xf32> to vector<8x8x384xf32>
    %c0_11 = arith.constant 0 : index
    %c0_12 = arith.constant 0 : index
    %c0_13 = arith.constant 0 : index
    %14 = vector.load %arg17[%c0_11, %c0_12, %c0_13] : memref<8x8x384xf32, #tpu.memory_space<vmem>>, vector<8x8x384xf32>
    tpu.vector_store %arg17[%c0_11, %c0_12, %c0_13], %13 {strides = array<i32>} : memref<8x8x384xf32, #tpu.memory_space<vmem>>, vector<8x8x384xf32>,
    %15 = vector.shape_cast %6 : vector<1x128xf32> to vector<1x128xf32>
    %16 = vector.broadcast %15 : vector<1x128xf32> to vector<8x128xf32>
    %c0_14 = arith.constant 0 : index
    %c0_15 = arith.constant 0 : index
    %c0_16 = arith.constant 0 : index
    %17 = vector.load %arg15[%c0_14, %c0_15, %c0_16] : memref<2x8x128xf32, #tpu.memory_space<vmem>>, vector<1x8x128xf32>
    %18 = vector.shape_cast %17 : vector<1x8x128xf32> to vector<8x128xf32>
    %c0_i32_17 = arith.constant 0 : i32
    %19 = arith.truncf %18 : vector<8x128xf32> to vector<8x128xbf16>
    %cst_18 = arith.constant dense<0.000000e+00> : vector<8x384xf32>
    %20 = tpu.matmul %19, %4, %cst_18 {dimension_numbers = #tpu.dot_dimension_numbers<[1], [0], [0], [1], [0, 0, 1, 1], [], []>} : vector<8x128xbf16>, vector<128x384xbf16>, vector<8x384xf32> -> vector<8x384xf32>
    %21 = arith.index_cast %c0_i32_17 : i32 to index
    %c0_19 = arith.constant 0 : index
    %c0_20 = arith.constant 0 : index
    %22 = vector.load %arg17[%21, %c0_19, %c0_20] : memref<8x8x384xf32, #tpu.memory_space<vmem>>, vector<1x8x384xf32>
    %23 = vector.shape_cast %22 : vector<1x8x384xf32> to vector<8x384xf32>
    %24 = vector.extract_strided_slice %23 {offsets = [0, 0], sizes = [8, 128], strides = [1, 1]} : vector<8x384xf32> to vector<8x128xf32>
    %25 = vector.extract_strided_slice %20 {offsets = [0, 0], sizes = [8, 128], strides = [1, 1]} : vector<8x384xf32> to vector<8x128xf32>
    %26 = arith.addf %24, %25 : vector<8x128xf32>
    %27 = arith.negf %26 : vector<8x128xf32>
    %28 = math.exp %27 : vector<8x128xf32>
    %cst_21 = arith.constant 1.000000e+00 : f32
    %29 = vector.broadcast %cst_21 : f32 to vector<8x128xf32>
    %30 = arith.addf %29, %28 : vector<8x128xf32>
    %31 = arith.divf %29, %30 : vector<8x128xf32>
    %32 = vector.extract_strided_slice %23 {offsets = [0, 128], sizes = [8, 128], strides = [1, 1]} : vector<8x384xf32> to vector<8x128xf32>
    %33 = vector.extract_strided_slice %20 {offsets = [0, 128], sizes = [8, 128], strides = [1, 1]} : vector<8x384xf32> to vector<8x128xf32>
    %34 = arith.addf %32, %33 : vector<8x128xf32>
    %35 = arith.negf %34 : vector<8x128xf32>
    %36 = math.exp %35 : vector<8x128xf32>
    %cst_22 = arith.constant 1.000000e+00 : f32
    %37 = vector.broadcast %cst_22 : f32 to vector<8x128xf32>
    %38 = arith.addf %37, %36 : vector<8x128xf32>
    %39 = arith.divf %37, %38 : vector<8x128xf32>
    %40 = vector.extract_strided_slice %23 {offsets = [0, 256], sizes = [8, 128], strides = [1, 1]} : vector<8x384xf32> to vector<8x128xf32>
    %41 = vector.extract_strided_slice %20 {offsets = [0, 256], sizes = [8, 128], strides = [1, 1]} : vector<8x384xf32> to vector<8x128xf32>
    %42 = arith.addf %41, %16 : vector<8x128xf32>
    %43 = arith.mulf %31, %42 : vector<8x128xf32>
    %44 = arith.addf %40, %43 : vector<8x128xf32>
    %45 = math.tanh %44 : vector<8x128xf32>
    %46 = arith.subf %18, %45 : vector<8x128xf32>
    %47 = arith.mulf %39, %46 : vector<8x128xf32>
    %48 = arith.addf %45, %47 : vector<8x128xf32>
    %49 = arith.truncf %48 : vector<8x128xf32> to vector<8x128xbf16>
    %50 = arith.index_cast %c0_i32_17 : i32 to index
    %c0_23 = arith.constant 0 : index
    %c0_24 = arith.constant 0 : index
    %51 = vector.load %arg16[%50, %c0_23, %c0_24] : memref<8x8x128xbf16, #tpu.memory_space<vmem>>, vector<1x8x128xbf16>
    %52 = vector.shape_cast %51 : vector<1x8x128xbf16> to vector<8x128xbf16>
    %53 = vector.shape_cast %49 : vector<8x128xbf16> to vector<1x8x128xbf16>
    tpu.vector_store %arg16[%50, %c0_23, %c0_24], %53 {strides = array<i32>} : memref<8x8x128xbf16, #tpu.memory_space<vmem>>, vector<1x8x128xbf16>,
    %c1_i32 = arith.constant 1 : i32
    %54 = arith.truncf %48 : vector<8x128xf32> to vector<8x128xbf16>
    %cst_25 = arith.constant dense<0.000000e+00> : vector<8x384xf32>
    %55 = tpu.matmul %54, %4, %cst_25 {dimension_numbers = #tpu.dot_dimension_numbers<[1], [0], [0], [1], [0, 0, 1, 1], [], []>} : vector<8x128xbf16>, vector<128x384xbf16>, vector<8x384xf32> -> vector<8x384xf32>
    %56 = arith.index_cast %c1_i32 : i32 to index
    %c0_26 = arith.constant 0 : index
    %c0_27 = arith.constant 0 : index
    %57 = vector.load %arg17[%56, %c0_26, %c0_27] : memref<8x8x384xf32, #tpu.memory_space<vmem>>, vector<1x8x384xf32>
    %58 = vector.shape_cast %57 : vector<1x8x384xf32> to vector<8x384xf32>
    %59 = vector.extract_strided_slice %58 {offsets = [0, 0], sizes = [8, 128], strides = [1, 1]} : vector<8x384xf32> to vector<8x128xf32>
    %60 = vector.extract_strided_slice %55 {offsets = [0, 0], sizes = [8, 128], strides = [1, 1]} : vector<8x384xf32> to vector<8x128xf32>
    %61 = arith.addf %59, %60 : vector<8x128xf32>
    %62 = arith.negf %61 : vector<8x128xf32>
    %63 = math.exp %62 : vector<8x128xf32>
    %cst_28 = arith.constant 1.000000e+00 : f32
    %64 = vector.broadcast %cst_28 : f32 to vector<8x128xf32>
    %65 = arith.addf %64, %63 : vector<8x128xf32>
    %66 = arith.divf %64, %65 : vector<8x128xf32>
    %67 = vector.extract_strided_slice %58 {offsets = [0, 128], sizes = [8, 128], strides = [1, 1]} : vector<8x384xf32> to vector<8x128xf32>
    %68 = vector.extract_strided_slice %55 {offsets = [0, 128], sizes = [8, 128], strides = [1, 1]} : vector<8x384xf32> to vector<8x128xf32>
    %69 = arith.addf %67, %68 : vector<8x128xf32>
    %70 = arith.negf %69 : vector<8x128xf32>
    %71 = math.exp %70 : vector<8x128xf32>
    %cst_29 = arith.constant 1.000000e+00 : f32
    %72 = vector.broadcast %cst_29 : f32 to vector<8x128xf32>
    %73 = arith.addf %72, %71 : vector<8x128xf32>
    %74 = arith.divf %72, %73 : vector<8x128xf32>
    %75 = vector.extract_strided_slice %58 {offsets = [0, 256], sizes = [8, 128], strides = [1, 1]} : vector<8x384xf32> to vector<8x128xf32>
    %76 = vector.extract_strided_slice %55 {offsets = [0, 256], sizes = [8, 128], strides = [1, 1]} : vector<8x384xf32> to vector<8x128xf32>
    %77 = arith.addf %76, %16 : vector<8x128xf32>
    %78 = arith.mulf %66, %77 : vector<8x128xf32>
    %79 = arith.addf %75, %78 : vector<8x128xf32>
    %80 = math.tanh %79 : vector<8x128xf32>
    %81 = arith.subf %48, %80 : vector<8x128xf32>
    %82 = arith.mulf %74, %81 : vector<8x128xf32>
    %83 = arith.addf %80, %82 : vector<8x128xf32>
    %84 = arith.truncf %83 : vector<8x128xf32> to vector<8x128xbf16>
    %85 = arith.index_cast %c1_i32 : i32 to index
    %c0_30 = arith.constant 0 : index
    %c0_31 = arith.constant 0 : index
    %86 = vector.load %arg16[%85, %c0_30, %c0_31] : memref<8x8x128xbf16, #tpu.memory_space<vmem>>, vector<1x8x128xbf16>
    %87 = vector.shape_cast %86 : vector<1x8x128xbf16> to vector<8x128xbf16>
    %88 = vector.shape_cast %84 : vector<8x128xbf16> to vector<1x8x128xbf16>
    tpu.vector_store %arg16[%85, %c0_30, %c0_31], %88 {strides = array<i32>} : memref<8x8x128xbf16, #tpu.memory_space<vmem>>, vector<1x8x128xbf16>,
    %c2_i32 = arith.constant 2 : i32
    %89 = arith.truncf %83 : vector<8x128xf32> to vector<8x128xbf16>
    %cst_32 = arith.constant dense<0.000000e+00> : vector<8x384xf32>
    %90 = tpu.matmul %89, %4, %cst_32 {dimension_numbers = #tpu.dot_dimension_numbers<[1], [0], [0], [1], [0, 0, 1, 1], [], []>} : vector<8x128xbf16>, vector<128x384xbf16>, vector<8x384xf32> -> vector<8x384xf32>
    %91 = arith.index_cast %c2_i32 : i32 to index
    %c0_33 = arith.constant 0 : index
    %c0_34 = arith.constant 0 : index
    %92 = vector.load %arg17[%91, %c0_33, %c0_34] : memref<8x8x384xf32, #tpu.memory_space<vmem>>, vector<1x8x384xf32>
    %93 = vector.shape_cast %92 : vector<1x8x384xf32> to vector<8x384xf32>
    %94 = vector.extract_strided_slice %93 {offsets = [0, 0], sizes = [8, 128], strides = [1, 1]} : vector<8x384xf32> to vector<8x128xf32>
    %95 = vector.extract_strided_slice %90 {offsets = [0, 0], sizes = [8, 128], strides = [1, 1]} : vector<8x384xf32> to vector<8x128xf32>
    %96 = arith.addf %94, %95 : vector<8x128xf32>
    %97 = arith.negf %96 : vector<8x128xf32>
    %98 = math.exp %97 : vector<8x128xf32>
    %cst_35 = arith.constant 1.000000e+00 : f32
    %99 = vector.broadcast %cst_35 : f32 to vector<8x128xf32>
    %100 = arith.addf %99, %98 : vector<8x128xf32>
    %101 = arith.divf %99, %100 : vector<8x128xf32>
    %102 = vector.extract_strided_slice %93 {offsets = [0, 128], sizes = [8, 128], strides = [1, 1]} : vector<8x384xf32> to vector<8x128xf32>
    %103 = vector.extract_strided_slice %90 {offsets = [0, 128], sizes = [8, 128], strides = [1, 1]} : vector<8x384xf32> to vector<8x128xf32>
    %104 = arith.addf %102, %103 : vector<8x128xf32>
    %105 = arith.negf %104 : vector<8x128xf32>
    %106 = math.exp %105 : vector<8x128xf32>
    %cst_36 = arith.constant 1.000000e+00 : f32
    %107 = vector.broadcast %cst_36 : f32 to vector<8x128xf32>
    %108 = arith.addf %107, %106 : vector<8x128xf32>
    %109 = arith.divf %107, %108 : vector<8x128xf32>
    %110 = vector.extract_strided_slice %93 {offsets = [0, 256], sizes = [8, 128], strides = [1, 1]} : vector<8x384xf32> to vector<8x128xf32>
    %111 = vector.extract_strided_slice %90 {offsets = [0, 256], sizes = [8, 128], strides = [1, 1]} : vector<8x384xf32> to vector<8x128xf32>
    %112 = arith.addf %111, %16 : vector<8x128xf32>
    %113 = arith.mulf %101, %112 : vector<8x128xf32>
    %114 = arith.addf %110, %113 : vector<8x128xf32>
    %115 = math.tanh %114 : vector<8x128xf32>
    %116 = arith.subf %83, %115 : vector<8x128xf32>
    %117 = arith.mulf %109, %116 : vector<8x128xf32>
    %118 = arith.addf %115, %117 : vector<8x128xf32>
    %119 = arith.truncf %118 : vector<8x128xf32> to vector<8x128xbf16>
    %120 = arith.index_cast %c2_i32 : i32 to index
    %c0_37 = arith.constant 0 : index
    %c0_38 = arith.constant 0 : index
    %121 = vector.load %arg16[%120, %c0_37, %c0_38] : memref<8x8x128xbf16, #tpu.memory_space<vmem>>, vector<1x8x128xbf16>
    %122 = vector.shape_cast %121 : vector<1x8x128xbf16> to vector<8x128xbf16>
    %123 = vector.shape_cast %119 : vector<8x128xbf16> to vector<1x8x128xbf16>
    tpu.vector_store %arg16[%120, %c0_37, %c0_38], %123 {strides = array<i32>} : memref<8x8x128xbf16, #tpu.memory_space<vmem>>, vector<1x8x128xbf16>,
    %c3_i32 = arith.constant 3 : i32
    %124 = arith.truncf %118 : vector<8x128xf32> to vector<8x128xbf16>
    %cst_39 = arith.constant dense<0.000000e+00> : vector<8x384xf32>
    %125 = tpu.matmul %124, %4, %cst_39 {dimension_numbers = #tpu.dot_dimension_numbers<[1], [0], [0], [1], [0, 0, 1, 1], [], []>} : vector<8x128xbf16>, vector<128x384xbf16>, vector<8x384xf32> -> vector<8x384xf32>
    %126 = arith.index_cast %c3_i32 : i32 to index
    %c0_40 = arith.constant 0 : index
    %c0_41 = arith.constant 0 : index
    %127 = vector.load %arg17[%126, %c0_40, %c0_41] : memref<8x8x384xf32, #tpu.memory_space<vmem>>, vector<1x8x384xf32>
    %128 = vector.shape_cast %127 : vector<1x8x384xf32> to vector<8x384xf32>
    %129 = vector.extract_strided_slice %128 {offsets = [0, 0], sizes = [8, 128], strides = [1, 1]} : vector<8x384xf32> to vector<8x128xf32>
    %130 = vector.extract_strided_slice %125 {offsets = [0, 0], sizes = [8, 128], strides = [1, 1]} : vector<8x384xf32> to vector<8x128xf32>
    %131 = arith.addf %129, %130 : vector<8x128xf32>
    %132 = arith.negf %131 : vector<8x128xf32>
    %133 = math.exp %132 : vector<8x128xf32>
    %cst_42 = arith.constant 1.000000e+00 : f32
    %134 = vector.broadcast %cst_42 : f32 to vector<8x128xf32>
    %135 = arith.addf %134, %133 : vector<8x128xf32>
    %136 = arith.divf %134, %135 : vector<8x128xf32>
    %137 = vector.extract_strided_slice %128 {offsets = [0, 128], sizes = [8, 128], strides = [1, 1]} : vector<8x384xf32> to vector<8x128xf32>
    %138 = vector.extract_strided_slice %125 {offsets = [0, 128], sizes = [8, 128], strides = [1, 1]} : vector<8x384xf32> to vector<8x128xf32>
    %139 = arith.addf %137, %138 : vector<8x128xf32>
    %140 = arith.negf %139 : vector<8x128xf32>
    %141 = math.exp %140 : vector<8x128xf32>
    %cst_43 = arith.constant 1.000000e+00 : f32
    %142 = vector.broadcast %cst_43 : f32 to vector<8x128xf32>
    %143 = arith.addf %142, %141 : vector<8x128xf32>
    %144 = arith.divf %142, %143 : vector<8x128xf32>
    %145 = vector.extract_strided_slice %128 {offsets = [0, 256], sizes = [8, 128], strides = [1, 1]} : vector<8x384xf32> to vector<8x128xf32>
    %146 = vector.extract_strided_slice %125 {offsets = [0, 256], sizes = [8, 128], strides = [1, 1]} : vector<8x384xf32> to vector<8x128xf32>
    %147 = arith.addf %146, %16 : vector<8x128xf32>
    %148 = arith.mulf %136, %147 : vector<8x128xf32>
    %149 = arith.addf %145, %148 : vector<8x128xf32>
    %150 = math.tanh %149 : vector<8x128xf32>
    %151 = arith.subf %118, %150 : vector<8x128xf32>
    %152 = arith.mulf %144, %151 : vector<8x128xf32>
    %153 = arith.addf %150, %152 : vector<8x128xf32>
    %154 = arith.truncf %153 : vector<8x128xf32> to vector<8x128xbf16>
    %155 = arith.index_cast %c3_i32 : i32 to index
    %c0_44 = arith.constant 0 : index
    %c0_45 = arith.constant 0 : index
    %156 = vector.load %arg16[%155, %c0_44, %c0_45] : memref<8x8x128xbf16, #tpu.memory_space<vmem>>, vector<1x8x128xbf16>
    %157 = vector.shape_cast %156 : vector<1x8x128xbf16> to vector<8x128xbf16>
    %158 = vector.shape_cast %154 : vector<8x128xbf16> to vector<1x8x128xbf16>
    tpu.vector_store %arg16[%155, %c0_44, %c0_45], %158 {strides = array<i32>} : memref<8x8x128xbf16, #tpu.memory_space<vmem>>, vector<1x8x128xbf16>,
    %c4_i32 = arith.constant 4 : i32
    %159 = arith.truncf %153 : vector<8x128xf32> to vector<8x128xbf16>
    %cst_46 = arith.constant dense<0.000000e+00> : vector<8x384xf32>
    %160 = tpu.matmul %159, %4, %cst_46 {dimension_numbers = #tpu.dot_dimension_numbers<[1], [0], [0], [1], [0, 0, 1, 1], [], []>} : vector<8x128xbf16>, vector<128x384xbf16>, vector<8x384xf32> -> vector<8x384xf32>
    %161 = arith.index_cast %c4_i32 : i32 to index
    %c0_47 = arith.constant 0 : index
    %c0_48 = arith.constant 0 : index
    %162 = vector.load %arg17[%161, %c0_47, %c0_48] : memref<8x8x384xf32, #tpu.memory_space<vmem>>, vector<1x8x384xf32>
    %163 = vector.shape_cast %162 : vector<1x8x384xf32> to vector<8x384xf32>
    %164 = vector.extract_strided_slice %163 {offsets = [0, 0], sizes = [8, 128], strides = [1, 1]} : vector<8x384xf32> to vector<8x128xf32>
    %165 = vector.extract_strided_slice %160 {offsets = [0, 0], sizes = [8, 128], strides = [1, 1]} : vector<8x384xf32> to vector<8x128xf32>
    %166 = arith.addf %164, %165 : vector<8x128xf32>
    %167 = arith.negf %166 : vector<8x128xf32>
    %168 = math.exp %167 : vector<8x128xf32>
    %cst_49 = arith.constant 1.000000e+00 : f32
    %169 = vector.broadcast %cst_49 : f32 to vector<8x128xf32>
    %170 = arith.addf %169, %168 : vector<8x128xf32>
    %171 = arith.divf %169, %170 : vector<8x128xf32>
    %172 = vector.extract_strided_slice %163 {offsets = [0, 128], sizes = [8, 128], strides = [1, 1]} : vector<8x384xf32> to vector<8x128xf32>
    %173 = vector.extract_strided_slice %160 {offsets = [0, 128], sizes = [8, 128], strides = [1, 1]} : vector<8x384xf32> to vector<8x128xf32>
    %174 = arith.addf %172, %173 : vector<8x128xf32>
    %175 = arith.negf %174 : vector<8x128xf32>
    %176 = math.exp %175 : vector<8x128xf32>
    %cst_50 = arith.constant 1.000000e+00 : f32
    %177 = vector.broadcast %cst_50 : f32 to vector<8x128xf32>
    %178 = arith.addf %177, %176 : vector<8x128xf32>
    %179 = arith.divf %177, %178 : vector<8x128xf32>
    %180 = vector.extract_strided_slice %163 {offsets = [0, 256], sizes = [8, 128], strides = [1, 1]} : vector<8x384xf32> to vector<8x128xf32>
    %181 = vector.extract_strided_slice %160 {offsets = [0, 256], sizes = [8, 128], strides = [1, 1]} : vector<8x384xf32> to vector<8x128xf32>
    %182 = arith.addf %181, %16 : vector<8x128xf32>
    %183 = arith.mulf %171, %182 : vector<8x128xf32>
    %184 = arith.addf %180, %183 : vector<8x128xf32>
    %185 = math.tanh %184 : vector<8x128xf32>
    %186 = arith.subf %153, %185 : vector<8x128xf32>
    %187 = arith.mulf %179, %186 : vector<8x128xf32>
    %188 = arith.addf %185, %187 : vector<8x128xf32>
    %189 = arith.truncf %188 : vector<8x128xf32> to vector<8x128xbf16>
    %190 = arith.index_cast %c4_i32 : i32 to index
    %c0_51 = arith.constant 0 : index
    %c0_52 = arith.constant 0 : index
    %191 = vector.load %arg16[%190, %c0_51, %c0_52] : memref<8x8x128xbf16, #tpu.memory_space<vmem>>, vector<1x8x128xbf16>
    %192 = vector.shape_cast %191 : vector<1x8x128xbf16> to vector<8x128xbf16>
    %193 = vector.shape_cast %189 : vector<8x128xbf16> to vector<1x8x128xbf16>
    tpu.vector_store %arg16[%190, %c0_51, %c0_52], %193 {strides = array<i32>} : memref<8x8x128xbf16, #tpu.memory_space<vmem>>, vector<1x8x128xbf16>,
    %c5_i32 = arith.constant 5 : i32
    %194 = arith.truncf %188 : vector<8x128xf32> to vector<8x128xbf16>
    %cst_53 = arith.constant dense<0.000000e+00> : vector<8x384xf32>
    %195 = tpu.matmul %194, %4, %cst_53 {dimension_numbers = #tpu.dot_dimension_numbers<[1], [0], [0], [1], [0, 0, 1, 1], [], []>} : vector<8x128xbf16>, vector<128x384xbf16>, vector<8x384xf32> -> vector<8x384xf32>
    %196 = arith.index_cast %c5_i32 : i32 to index
    %c0_54 = arith.constant 0 : index
    %c0_55 = arith.constant 0 : index
    %197 = vector.load %arg17[%196, %c0_54, %c0_55] : memref<8x8x384xf32, #tpu.memory_space<vmem>>, vector<1x8x384xf32>
    %198 = vector.shape_cast %197 : vector<1x8x384xf32> to vector<8x384xf32>
    %199 = vector.extract_strided_slice %198 {offsets = [0, 0], sizes = [8, 128], strides = [1, 1]} : vector<8x384xf32> to vector<8x128xf32>
    %200 = vector.extract_strided_slice %195 {offsets = [0, 0], sizes = [8, 128], strides = [1, 1]} : vector<8x384xf32> to vector<8x128xf32>
    %201 = arith.addf %199, %200 : vector<8x128xf32>
    %202 = arith.negf %201 : vector<8x128xf32>
    %203 = math.exp %202 : vector<8x128xf32>
    %cst_56 = arith.constant 1.000000e+00 : f32
    %204 = vector.broadcast %cst_56 : f32 to vector<8x128xf32>
    %205 = arith.addf %204, %203 : vector<8x128xf32>
    %206 = arith.divf %204, %205 : vector<8x128xf32>
    %207 = vector.extract_strided_slice %198 {offsets = [0, 128], sizes = [8, 128], strides = [1, 1]} : vector<8x384xf32> to vector<8x128xf32>
    %208 = vector.extract_strided_slice %195 {offsets = [0, 128], sizes = [8, 128], strides = [1, 1]} : vector<8x384xf32> to vector<8x128xf32>
    %209 = arith.addf %207, %208 : vector<8x128xf32>
    %210 = arith.negf %209 : vector<8x128xf32>
    %211 = math.exp %210 : vector<8x128xf32>
    %cst_57 = arith.constant 1.000000e+00 : f32
    %212 = vector.broadcast %cst_57 : f32 to vector<8x128xf32>
    %213 = arith.addf %212, %211 : vector<8x128xf32>
    %214 = arith.divf %212, %213 : vector<8x128xf32>
    %215 = vector.extract_strided_slice %198 {offsets = [0, 256], sizes = [8, 128], strides = [1, 1]} : vector<8x384xf32> to vector<8x128xf32>
    %216 = vector.extract_strided_slice %195 {offsets = [0, 256], sizes = [8, 128], strides = [1, 1]} : vector<8x384xf32> to vector<8x128xf32>
    %217 = arith.addf %216, %16 : vector<8x128xf32>
    %218 = arith.mulf %206, %217 : vector<8x128xf32>
    %219 = arith.addf %215, %218 : vector<8x128xf32>
    %220 = math.tanh %219 : vector<8x128xf32>
    %221 = arith.subf %188, %220 : vector<8x128xf32>
    %222 = arith.mulf %214, %221 : vector<8x128xf32>
    %223 = arith.addf %220, %222 : vector<8x128xf32>
    %224 = arith.truncf %223 : vector<8x128xf32> to vector<8x128xbf16>
    %225 = arith.index_cast %c5_i32 : i32 to index
    %c0_58 = arith.constant 0 : index
    %c0_59 = arith.constant 0 : index
    %226 = vector.load %arg16[%225, %c0_58, %c0_59] : memref<8x8x128xbf16, #tpu.memory_space<vmem>>, vector<1x8x128xbf16>
    %227 = vector.shape_cast %226 : vector<1x8x128xbf16> to vector<8x128xbf16>
    %228 = vector.shape_cast %224 : vector<8x128xbf16> to vector<1x8x128xbf16>
    tpu.vector_store %arg16[%225, %c0_58, %c0_59], %228 {strides = array<i32>} : memref<8x8x128xbf16, #tpu.memory_space<vmem>>, vector<1x8x128xbf16>,
    %c6_i32 = arith.constant 6 : i32
    %229 = arith.truncf %223 : vector<8x128xf32> to vector<8x128xbf16>
    %cst_60 = arith.constant dense<0.000000e+00> : vector<8x384xf32>
    %230 = tpu.matmul %229, %4, %cst_60 {dimension_numbers = #tpu.dot_dimension_numbers<[1], [0], [0], [1], [0, 0, 1, 1], [], []>} : vector<8x128xbf16>, vector<128x384xbf16>, vector<8x384xf32> -> vector<8x384xf32>
    %231 = arith.index_cast %c6_i32 : i32 to index
    %c0_61 = arith.constant 0 : index
    %c0_62 = arith.constant 0 : index
    %232 = vector.load %arg17[%231, %c0_61, %c0_62] : memref<8x8x384xf32, #tpu.memory_space<vmem>>, vector<1x8x384xf32>
    %233 = vector.shape_cast %232 : vector<1x8x384xf32> to vector<8x384xf32>
    %234 = vector.extract_strided_slice %233 {offsets = [0, 0], sizes = [8, 128], strides = [1, 1]} : vector<8x384xf32> to vector<8x128xf32>
    %235 = vector.extract_strided_slice %230 {offsets = [0, 0], sizes = [8, 128], strides = [1, 1]} : vector<8x384xf32> to vector<8x128xf32>
    %236 = arith.addf %234, %235 : vector<8x128xf32>
    %237 = arith.negf %236 : vector<8x128xf32>
    %238 = math.exp %237 : vector<8x128xf32>
    %cst_63 = arith.constant 1.000000e+00 : f32
    %239 = vector.broadcast %cst_63 : f32 to vector<8x128xf32>
    %240 = arith.addf %239, %238 : vector<8x128xf32>
    %241 = arith.divf %239, %240 : vector<8x128xf32>
    %242 = vector.extract_strided_slice %233 {offsets = [0, 128], sizes = [8, 128], strides = [1, 1]} : vector<8x384xf32> to vector<8x128xf32>
    %243 = vector.extract_strided_slice %230 {offsets = [0, 128], sizes = [8, 128], strides = [1, 1]} : vector<8x384xf32> to vector<8x128xf32>
    %244 = arith.addf %242, %243 : vector<8x128xf32>
    %245 = arith.negf %244 : vector<8x128xf32>
    %246 = math.exp %245 : vector<8x128xf32>
    %cst_64 = arith.constant 1.000000e+00 : f32
    %247 = vector.broadcast %cst_64 : f32 to vector<8x128xf32>
    %248 = arith.addf %247, %246 : vector<8x128xf32>
    %249 = arith.divf %247, %248 : vector<8x128xf32>
    %250 = vector.extract_strided_slice %233 {offsets = [0, 256], sizes = [8, 128], strides = [1, 1]} : vector<8x384xf32> to vector<8x128xf32>
    %251 = vector.extract_strided_slice %230 {offsets = [0, 256], sizes = [8, 128], strides = [1, 1]} : vector<8x384xf32> to vector<8x128xf32>
    %252 = arith.addf %251, %16 : vector<8x128xf32>
    %253 = arith.mulf %241, %252 : vector<8x128xf32>
    %254 = arith.addf %250, %253 : vector<8x128xf32>
    %255 = math.tanh %254 : vector<8x128xf32>
    %256 = arith.subf %223, %255 : vector<8x128xf32>
    %257 = arith.mulf %249, %256 : vector<8x128xf32>
    %258 = arith.addf %255, %257 : vector<8x128xf32>
    %259 = arith.truncf %258 : vector<8x128xf32> to vector<8x128xbf16>
    %260 = arith.index_cast %c6_i32 : i32 to index
    %c0_65 = arith.constant 0 : index
    %c0_66 = arith.constant 0 : index
    %261 = vector.load %arg16[%260, %c0_65, %c0_66] : memref<8x8x128xbf16, #tpu.memory_space<vmem>>, vector<1x8x128xbf16>
    %262 = vector.shape_cast %261 : vector<1x8x128xbf16> to vector<8x128xbf16>
    %263 = vector.shape_cast %259 : vector<8x128xbf16> to vector<1x8x128xbf16>
    tpu.vector_store %arg16[%260, %c0_65, %c0_66], %263 {strides = array<i32>} : memref<8x8x128xbf16, #tpu.memory_space<vmem>>, vector<1x8x128xbf16>,
    %c7_i32 = arith.constant 7 : i32
    %264 = arith.truncf %258 : vector<8x128xf32> to vector<8x128xbf16>
    %cst_67 = arith.constant dense<0.000000e+00> : vector<8x384xf32>
    %265 = tpu.matmul %264, %4, %cst_67 {dimension_numbers = #tpu.dot_dimension_numbers<[1], [0], [0], [1], [0, 0, 1, 1], [], []>} : vector<8x128xbf16>, vector<128x384xbf16>, vector<8x384xf32> -> vector<8x384xf32>
    %266 = arith.index_cast %c7_i32 : i32 to index
    %c0_68 = arith.constant 0 : index
    %c0_69 = arith.constant 0 : index
    %267 = vector.load %arg17[%266, %c0_68, %c0_69] : memref<8x8x384xf32, #tpu.memory_space<vmem>>, vector<1x8x384xf32>
    %268 = vector.shape_cast %267 : vector<1x8x384xf32> to vector<8x384xf32>
    %269 = vector.extract_strided_slice %268 {offsets = [0, 0], sizes = [8, 128], strides = [1, 1]} : vector<8x384xf32> to vector<8x128xf32>
    %270 = vector.extract_strided_slice %265 {offsets = [0, 0], sizes = [8, 128], strides = [1, 1]} : vector<8x384xf32> to vector<8x128xf32>
    %271 = arith.addf %269, %270 : vector<8x128xf32>
    %272 = arith.negf %271 : vector<8x128xf32>
    %273 = math.exp %272 : vector<8x128xf32>
    %cst_70 = arith.constant 1.000000e+00 : f32
    %274 = vector.broadcast %cst_70 : f32 to vector<8x128xf32>
    %275 = arith.addf %274, %273 : vector<8x128xf32>
    %276 = arith.divf %274, %275 : vector<8x128xf32>
    %277 = vector.extract_strided_slice %268 {offsets = [0, 128], sizes = [8, 128], strides = [1, 1]} : vector<8x384xf32> to vector<8x128xf32>
    %278 = vector.extract_strided_slice %265 {offsets = [0, 128], sizes = [8, 128], strides = [1, 1]} : vector<8x384xf32> to vector<8x128xf32>
    %279 = arith.addf %277, %278 : vector<8x128xf32>
    %280 = arith.negf %279 : vector<8x128xf32>
    %281 = math.exp %280 : vector<8x128xf32>
    %cst_71 = arith.constant 1.000000e+00 : f32
    %282 = vector.broadcast %cst_71 : f32 to vector<8x128xf32>
    %283 = arith.addf %282, %281 : vector<8x128xf32>
    %284 = arith.divf %282, %283 : vector<8x128xf32>
    %285 = vector.extract_strided_slice %268 {offsets = [0, 256], sizes = [8, 128], strides = [1, 1]} : vector<8x384xf32> to vector<8x128xf32>
    %286 = vector.extract_strided_slice %265 {offsets = [0, 256], sizes = [8, 128], strides = [1, 1]} : vector<8x384xf32> to vector<8x128xf32>
    %287 = arith.addf %286, %16 : vector<8x128xf32>
    %288 = arith.mulf %276, %287 : vector<8x128xf32>
    %289 = arith.addf %285, %288 : vector<8x128xf32>
    %290 = math.tanh %289 : vector<8x128xf32>
    %291 = arith.subf %258, %290 : vector<8x128xf32>
    %292 = arith.mulf %284, %291 : vector<8x128xf32>
    %293 = arith.addf %290, %292 : vector<8x128xf32>
    %294 = arith.truncf %293 : vector<8x128xf32> to vector<8x128xbf16>
    %295 = arith.index_cast %c7_i32 : i32 to index
    %c0_72 = arith.constant 0 : index
    %c0_73 = arith.constant 0 : index
    %296 = vector.load %arg16[%295, %c0_72, %c0_73] : memref<8x8x128xbf16, #tpu.memory_space<vmem>>, vector<1x8x128xbf16>
    %297 = vector.shape_cast %296 : vector<1x8x128xbf16> to vector<8x128xbf16>
    %298 = vector.shape_cast %294 : vector<8x128xbf16> to vector<1x8x128xbf16>
    tpu.vector_store %arg16[%295, %c0_72, %c0_73], %298 {strides = array<i32>} : memref<8x8x128xbf16, #tpu.memory_space<vmem>>, vector<1x8x128xbf16>,
    %c8_i32 = arith.constant 8 : i32
    %c0_74 = arith.constant 0 : index
    %c0_75 = arith.constant 0 : index
    %c0_76 = arith.constant 0 : index
    %299 = vector.load %arg15[%c0_74, %c0_75, %c0_76] : memref<2x8x128xf32, #tpu.memory_space<vmem>>, vector<1x8x128xf32>
    %300 = vector.shape_cast %299 : vector<1x8x128xf32> to vector<8x128xf32>
    %301 = vector.shape_cast %293 : vector<8x128xf32> to vector<1x8x128xf32>
    tpu.vector_store %arg15[%c0_74, %c0_75, %c0_76], %301 {strides = array<i32>} : memref<2x8x128xf32, #tpu.memory_space<vmem>>, vector<1x8x128xf32>,
    %c0_77 = arith.constant 0 : index
    %c0_78 = arith.constant 0 : index
    %302 = vector.load %arg8[%c0_77, %c0_78] : memref<128x384xbf16, #tpu.memory_space<vmem>>, vector<128x384xbf16>
    %c0_79 = arith.constant 0 : index
    %c0_80 = arith.constant 0 : index
    %303 = vector.load %arg9[%c0_79, %c0_80] : memref<128x384xbf16, #tpu.memory_space<vmem>>, vector<128x384xbf16>
    %c0_81 = arith.constant 0 : index
    %c0_82 = arith.constant 0 : index
    %304 = vector.load %arg10[%c0_81, %c0_82] : memref<1x384xf32, #tpu.memory_space<vmem>>, vector<1x384xf32>
    %c0_83 = arith.constant 0 : index
    %c0_84 = arith.constant 0 : index
    %305 = vector.load %arg11[%c0_83, %c0_84] : memref<1x128xf32, #tpu.memory_space<vmem>>, vector<1x128xf32>
    %c0_85 = arith.constant 0 : index
    %c0_86 = arith.constant 0 : index
    %c0_87 = arith.constant 0 : index
    %306 = vector.load %arg16[%c0_85, %c0_86, %c0_87] : memref<8x8x128xbf16, #tpu.memory_space<vmem>>, vector<8x8x128xbf16>
    %307 = vector.shape_cast %306 : vector<8x8x128xbf16> to vector<64x128xbf16>
    %cst_88 = arith.constant dense<0.000000e+00> : vector<64x384xf32>
    %308 = tpu.matmul %307, %302, %cst_88 {dimension_numbers = #tpu.dot_dimension_numbers<[1], [0], [0], [1], [0, 0, 1, 1], [], []>} : vector<64x128xbf16>, vector<128x384xbf16>, vector<64x384xf32> -> vector<64x384xf32>
    %309 = vector.broadcast %304 : vector<1x384xf32> to vector<64x384xf32>
    %310 = arith.addf %308, %309 : vector<64x384xf32>
    %311 = vector.shape_cast %310 : vector<64x384xf32> to vector<8x8x384xf32>
    %c0_89 = arith.constant 0 : index
    %c0_90 = arith.constant 0 : index
    %c0_91 = arith.constant 0 : index
    %312 = vector.load %arg17[%c0_89, %c0_90, %c0_91] : memref<8x8x384xf32, #tpu.memory_space<vmem>>, vector<8x8x384xf32>
    tpu.vector_store %arg17[%c0_89, %c0_90, %c0_91], %311 {strides = array<i32>} : memref<8x8x384xf32, #tpu.memory_space<vmem>>, vector<8x8x384xf32>,
    %313 = vector.shape_cast %305 : vector<1x128xf32> to vector<1x128xf32>
    %314 = vector.broadcast %313 : vector<1x128xf32> to vector<8x128xf32>
    %c1 = arith.constant 1 : index
    %c0_92 = arith.constant 0 : index
    %c0_93 = arith.constant 0 : index
    %315 = vector.load %arg15[%c1, %c0_92, %c0_93] : memref<2x8x128xf32, #tpu.memory_space<vmem>>, vector<1x8x128xf32>
    %316 = vector.shape_cast %315 : vector<1x8x128xf32> to vector<8x128xf32>
    %c0_i32_94 = arith.constant 0 : i32
    %317 = arith.truncf %316 : vector<8x128xf32> to vector<8x128xbf16>
    %cst_95 = arith.constant dense<0.000000e+00> : vector<8x384xf32>
    %318 = tpu.matmul %317, %303, %cst_95 {dimension_numbers = #tpu.dot_dimension_numbers<[1], [0], [0], [1], [0, 0, 1, 1], [], []>} : vector<8x128xbf16>, vector<128x384xbf16>, vector<8x384xf32> -> vector<8x384xf32>
    %319 = arith.index_cast %c0_i32_94 : i32 to index
    %c0_96 = arith.constant 0 : index
    %c0_97 = arith.constant 0 : index
    %320 = vector.load %arg17[%319, %c0_96, %c0_97] : memref<8x8x384xf32, #tpu.memory_space<vmem>>, vector<1x8x384xf32>
    %321 = vector.shape_cast %320 : vector<1x8x384xf32> to vector<8x384xf32>
    %322 = vector.extract_strided_slice %321 {offsets = [0, 0], sizes = [8, 128], strides = [1, 1]} : vector<8x384xf32> to vector<8x128xf32>
    %323 = vector.extract_strided_slice %318 {offsets = [0, 0], sizes = [8, 128], strides = [1, 1]} : vector<8x384xf32> to vector<8x128xf32>
    %324 = arith.addf %322, %323 : vector<8x128xf32>
    %325 = arith.negf %324 : vector<8x128xf32>
    %326 = math.exp %325 : vector<8x128xf32>
    %cst_98 = arith.constant 1.000000e+00 : f32
    %327 = vector.broadcast %cst_98 : f32 to vector<8x128xf32>
    %328 = arith.addf %327, %326 : vector<8x128xf32>
    %329 = arith.divf %327, %328 : vector<8x128xf32>
    %330 = vector.extract_strided_slice %321 {offsets = [0, 128], sizes = [8, 128], strides = [1, 1]} : vector<8x384xf32> to vector<8x128xf32>
    %331 = vector.extract_strided_slice %318 {offsets = [0, 128], sizes = [8, 128], strides = [1, 1]} : vector<8x384xf32> to vector<8x128xf32>
    %332 = arith.addf %330, %331 : vector<8x128xf32>
    %333 = arith.negf %332 : vector<8x128xf32>
    %334 = math.exp %333 : vector<8x128xf32>
    %cst_99 = arith.constant 1.000000e+00 : f32
    %335 = vector.broadcast %cst_99 : f32 to vector<8x128xf32>
    %336 = arith.addf %335, %334 : vector<8x128xf32>
    %337 = arith.divf %335, %336 : vector<8x128xf32>
    %338 = vector.extract_strided_slice %321 {offsets = [0, 256], sizes = [8, 128], strides = [1, 1]} : vector<8x384xf32> to vector<8x128xf32>
    %339 = vector.extract_strided_slice %318 {offsets = [0, 256], sizes = [8, 128], strides = [1, 1]} : vector<8x384xf32> to vector<8x128xf32>
    %340 = arith.addf %339, %314 : vector<8x128xf32>
    %341 = arith.mulf %329, %340 : vector<8x128xf32>
    %342 = arith.addf %338, %341 : vector<8x128xf32>
    %343 = math.tanh %342 : vector<8x128xf32>
    %344 = arith.subf %316, %343 : vector<8x128xf32>
    %345 = arith.mulf %337, %344 : vector<8x128xf32>
    %346 = arith.addf %343, %345 : vector<8x128xf32>
    %c1_i32_100 = arith.constant 1 : i32
    %347 = arith.truncf %346 : vector<8x128xf32> to vector<8x128xbf16>
    %cst_101 = arith.constant dense<0.000000e+00> : vector<8x384xf32>
    %348 = tpu.matmul %347, %303, %cst_101 {dimension_numbers = #tpu.dot_dimension_numbers<[1], [0], [0], [1], [0, 0, 1, 1], [], []>} : vector<8x128xbf16>, vector<128x384xbf16>, vector<8x384xf32> -> vector<8x384xf32>
    %349 = arith.index_cast %c1_i32_100 : i32 to index
    %c0_102 = arith.constant 0 : index
    %c0_103 = arith.constant 0 : index
    %350 = vector.load %arg17[%349, %c0_102, %c0_103] : memref<8x8x384xf32, #tpu.memory_space<vmem>>, vector<1x8x384xf32>
    %351 = vector.shape_cast %350 : vector<1x8x384xf32> to vector<8x384xf32>
    %352 = vector.extract_strided_slice %351 {offsets = [0, 0], sizes = [8, 128], strides = [1, 1]} : vector<8x384xf32> to vector<8x128xf32>
    %353 = vector.extract_strided_slice %348 {offsets = [0, 0], sizes = [8, 128], strides = [1, 1]} : vector<8x384xf32> to vector<8x128xf32>
    %354 = arith.addf %352, %353 : vector<8x128xf32>
    %355 = arith.negf %354 : vector<8x128xf32>
    %356 = math.exp %355 : vector<8x128xf32>
    %cst_104 = arith.constant 1.000000e+00 : f32
    %357 = vector.broadcast %cst_104 : f32 to vector<8x128xf32>
    %358 = arith.addf %357, %356 : vector<8x128xf32>
    %359 = arith.divf %357, %358 : vector<8x128xf32>
    %360 = vector.extract_strided_slice %351 {offsets = [0, 128], sizes = [8, 128], strides = [1, 1]} : vector<8x384xf32> to vector<8x128xf32>
    %361 = vector.extract_strided_slice %348 {offsets = [0, 128], sizes = [8, 128], strides = [1, 1]} : vector<8x384xf32> to vector<8x128xf32>
    %362 = arith.addf %360, %361 : vector<8x128xf32>
    %363 = arith.negf %362 : vector<8x128xf32>
    %364 = math.exp %363 : vector<8x128xf32>
    %cst_105 = arith.constant 1.000000e+00 : f32
    %365 = vector.broadcast %cst_105 : f32 to vector<8x128xf32>
    %366 = arith.addf %365, %364 : vector<8x128xf32>
    %367 = arith.divf %365, %366 : vector<8x128xf32>
    %368 = vector.extract_strided_slice %351 {offsets = [0, 256], sizes = [8, 128], strides = [1, 1]} : vector<8x384xf32> to vector<8x128xf32>
    %369 = vector.extract_strided_slice %348 {offsets = [0, 256], sizes = [8, 128], strides = [1, 1]} : vector<8x384xf32> to vector<8x128xf32>
    %370 = arith.addf %369, %314 : vector<8x128xf32>
    %371 = arith.mulf %359, %370 : vector<8x128xf32>
    %372 = arith.addf %368, %371 : vector<8x128xf32>
    %373 = math.tanh %372 : vector<8x128xf32>
    %374 = arith.subf %346, %373 : vector<8x128xf32>
    %375 = arith.mulf %367, %374 : vector<8x128xf32>
    %376 = arith.addf %373, %375 : vector<8x128xf32>
    %c2_i32_106 = arith.constant 2 : i32
    %377 = arith.truncf %376 : vector<8x128xf32> to vector<8x128xbf16>
    %cst_107 = arith.constant dense<0.000000e+00> : vector<8x384xf32>
    %378 = tpu.matmul %377, %303, %cst_107 {dimension_numbers = #tpu.dot_dimension_numbers<[1], [0], [0], [1], [0, 0, 1, 1], [], []>} : vector<8x128xbf16>, vector<128x384xbf16>, vector<8x384xf32> -> vector<8x384xf32>
    %379 = arith.index_cast %c2_i32_106 : i32 to index
    %c0_108 = arith.constant 0 : index
    %c0_109 = arith.constant 0 : index
    %380 = vector.load %arg17[%379, %c0_108, %c0_109] : memref<8x8x384xf32, #tpu.memory_space<vmem>>, vector<1x8x384xf32>
    %381 = vector.shape_cast %380 : vector<1x8x384xf32> to vector<8x384xf32>
    %382 = vector.extract_strided_slice %381 {offsets = [0, 0], sizes = [8, 128], strides = [1, 1]} : vector<8x384xf32> to vector<8x128xf32>
    %383 = vector.extract_strided_slice %378 {offsets = [0, 0], sizes = [8, 128], strides = [1, 1]} : vector<8x384xf32> to vector<8x128xf32>
    %384 = arith.addf %382, %383 : vector<8x128xf32>
    %385 = arith.negf %384 : vector<8x128xf32>
    %386 = math.exp %385 : vector<8x128xf32>
    %cst_110 = arith.constant 1.000000e+00 : f32
    %387 = vector.broadcast %cst_110 : f32 to vector<8x128xf32>
    %388 = arith.addf %387, %386 : vector<8x128xf32>
    %389 = arith.divf %387, %388 : vector<8x128xf32>
    %390 = vector.extract_strided_slice %381 {offsets = [0, 128], sizes = [8, 128], strides = [1, 1]} : vector<8x384xf32> to vector<8x128xf32>
    %391 = vector.extract_strided_slice %378 {offsets = [0, 128], sizes = [8, 128], strides = [1, 1]} : vector<8x384xf32> to vector<8x128xf32>
    %392 = arith.addf %390, %391 : vector<8x128xf32>
    %393 = arith.negf %392 : vector<8x128xf32>
    %394 = math.exp %393 : vector<8x128xf32>
    %cst_111 = arith.constant 1.000000e+00 : f32
    %395 = vector.broadcast %cst_111 : f32 to vector<8x128xf32>
    %396 = arith.addf %395, %394 : vector<8x128xf32>
    %397 = arith.divf %395, %396 : vector<8x128xf32>
    %398 = vector.extract_strided_slice %381 {offsets = [0, 256], sizes = [8, 128], strides = [1, 1]} : vector<8x384xf32> to vector<8x128xf32>
    %399 = vector.extract_strided_slice %378 {offsets = [0, 256], sizes = [8, 128], strides = [1, 1]} : vector<8x384xf32> to vector<8x128xf32>
    %400 = arith.addf %399, %314 : vector<8x128xf32>
    %401 = arith.mulf %389, %400 : vector<8x128xf32>
    %402 = arith.addf %398, %401 : vector<8x128xf32>
    %403 = math.tanh %402 : vector<8x128xf32>
    %404 = arith.subf %376, %403 : vector<8x128xf32>
    %405 = arith.mulf %397, %404 : vector<8x128xf32>
    %406 = arith.addf %403, %405 : vector<8x128xf32>
    %c3_i32_112 = arith.constant 3 : i32
    %407 = arith.truncf %406 : vector<8x128xf32> to vector<8x128xbf16>
    %cst_113 = arith.constant dense<0.000000e+00> : vector<8x384xf32>
    %408 = tpu.matmul %407, %303, %cst_113 {dimension_numbers = #tpu.dot_dimension_numbers<[1], [0], [0], [1], [0, 0, 1, 1], [], []>} : vector<8x128xbf16>, vector<128x384xbf16>, vector<8x384xf32> -> vector<8x384xf32>
    %409 = arith.index_cast %c3_i32_112 : i32 to index
    %c0_114 = arith.constant 0 : index
    %c0_115 = arith.constant 0 : index
    %410 = vector.load %arg17[%409, %c0_114, %c0_115] : memref<8x8x384xf32, #tpu.memory_space<vmem>>, vector<1x8x384xf32>
    %411 = vector.shape_cast %410 : vector<1x8x384xf32> to vector<8x384xf32>
    %412 = vector.extract_strided_slice %411 {offsets = [0, 0], sizes = [8, 128], strides = [1, 1]} : vector<8x384xf32> to vector<8x128xf32>
    %413 = vector.extract_strided_slice %408 {offsets = [0, 0], sizes = [8, 128], strides = [1, 1]} : vector<8x384xf32> to vector<8x128xf32>
    %414 = arith.addf %412, %413 : vector<8x128xf32>
    %415 = arith.negf %414 : vector<8x128xf32>
    %416 = math.exp %415 : vector<8x128xf32>
    %cst_116 = arith.constant 1.000000e+00 : f32
    %417 = vector.broadcast %cst_116 : f32 to vector<8x128xf32>
    %418 = arith.addf %417, %416 : vector<8x128xf32>
    %419 = arith.divf %417, %418 : vector<8x128xf32>
    %420 = vector.extract_strided_slice %411 {offsets = [0, 128], sizes = [8, 128], strides = [1, 1]} : vector<8x384xf32> to vector<8x128xf32>
    %421 = vector.extract_strided_slice %408 {offsets = [0, 128], sizes = [8, 128], strides = [1, 1]} : vector<8x384xf32> to vector<8x128xf32>
    %422 = arith.addf %420, %421 : vector<8x128xf32>
    %423 = arith.negf %422 : vector<8x128xf32>
    %424 = math.exp %423 : vector<8x128xf32>
    %cst_117 = arith.constant 1.000000e+00 : f32
    %425 = vector.broadcast %cst_117 : f32 to vector<8x128xf32>
    %426 = arith.addf %425, %424 : vector<8x128xf32>
    %427 = arith.divf %425, %426 : vector<8x128xf32>
    %428 = vector.extract_strided_slice %411 {offsets = [0, 256], sizes = [8, 128], strides = [1, 1]} : vector<8x384xf32> to vector<8x128xf32>
    %429 = vector.extract_strided_slice %408 {offsets = [0, 256], sizes = [8, 128], strides = [1, 1]} : vector<8x384xf32> to vector<8x128xf32>
    %430 = arith.addf %429, %314 : vector<8x128xf32>
    %431 = arith.mulf %419, %430 : vector<8x128xf32>
    %432 = arith.addf %428, %431 : vector<8x128xf32>
    %433 = math.tanh %432 : vector<8x128xf32>
    %434 = arith.subf %406, %433 : vector<8x128xf32>
    %435 = arith.mulf %427, %434 : vector<8x128xf32>
    %436 = arith.addf %433, %435 : vector<8x128xf32>
    %c4_i32_118 = arith.constant 4 : i32
    %437 = arith.truncf %436 : vector<8x128xf32> to vector<8x128xbf16>
    %cst_119 = arith.constant dense<0.000000e+00> : vector<8x384xf32>
    %438 = tpu.matmul %437, %303, %cst_119 {dimension_numbers = #tpu.dot_dimension_numbers<[1], [0], [0], [1], [0, 0, 1, 1], [], []>} : vector<8x128xbf16>, vector<128x384xbf16>, vector<8x384xf32> -> vector<8x384xf32>
    %439 = arith.index_cast %c4_i32_118 : i32 to index
    %c0_120 = arith.constant 0 : index
    %c0_121 = arith.constant 0 : index
    %440 = vector.load %arg17[%439, %c0_120, %c0_121] : memref<8x8x384xf32, #tpu.memory_space<vmem>>, vector<1x8x384xf32>
    %441 = vector.shape_cast %440 : vector<1x8x384xf32> to vector<8x384xf32>
    %442 = vector.extract_strided_slice %441 {offsets = [0, 0], sizes = [8, 128], strides = [1, 1]} : vector<8x384xf32> to vector<8x128xf32>
    %443 = vector.extract_strided_slice %438 {offsets = [0, 0], sizes = [8, 128], strides = [1, 1]} : vector<8x384xf32> to vector<8x128xf32>
    %444 = arith.addf %442, %443 : vector<8x128xf32>
    %445 = arith.negf %444 : vector<8x128xf32>
    %446 = math.exp %445 : vector<8x128xf32>
    %cst_122 = arith.constant 1.000000e+00 : f32
    %447 = vector.broadcast %cst_122 : f32 to vector<8x128xf32>
    %448 = arith.addf %447, %446 : vector<8x128xf32>
    %449 = arith.divf %447, %448 : vector<8x128xf32>
    %450 = vector.extract_strided_slice %441 {offsets = [0, 128], sizes = [8, 128], strides = [1, 1]} : vector<8x384xf32> to vector<8x128xf32>
    %451 = vector.extract_strided_slice %438 {offsets = [0, 128], sizes = [8, 128], strides = [1, 1]} : vector<8x384xf32> to vector<8x128xf32>
    %452 = arith.addf %450, %451 : vector<8x128xf32>
    %453 = arith.negf %452 : vector<8x128xf32>
    %454 = math.exp %453 : vector<8x128xf32>
    %cst_123 = arith.constant 1.000000e+00 : f32
    %455 = vector.broadcast %cst_123 : f32 to vector<8x128xf32>
    %456 = arith.addf %455, %454 : vector<8x128xf32>
    %457 = arith.divf %455, %456 : vector<8x128xf32>
    %458 = vector.extract_strided_slice %441 {offsets = [0, 256], sizes = [8, 128], strides = [1, 1]} : vector<8x384xf32> to vector<8x128xf32>
    %459 = vector.extract_strided_slice %438 {offsets = [0, 256], sizes = [8, 128], strides = [1, 1]} : vector<8x384xf32> to vector<8x128xf32>
    %460 = arith.addf %459, %314 : vector<8x128xf32>
    %461 = arith.mulf %449, %460 : vector<8x128xf32>
    %462 = arith.addf %458, %461 : vector<8x128xf32>
    %463 = math.tanh %462 : vector<8x128xf32>
    %464 = arith.subf %436, %463 : vector<8x128xf32>
    %465 = arith.mulf %457, %464 : vector<8x128xf32>
    %466 = arith.addf %463, %465 : vector<8x128xf32>
    %c5_i32_124 = arith.constant 5 : i32
    %467 = arith.truncf %466 : vector<8x128xf32> to vector<8x128xbf16>
    %cst_125 = arith.constant dense<0.000000e+00> : vector<8x384xf32>
    %468 = tpu.matmul %467, %303, %cst_125 {dimension_numbers = #tpu.dot_dimension_numbers<[1], [0], [0], [1], [0, 0, 1, 1], [], []>} : vector<8x128xbf16>, vector<128x384xbf16>, vector<8x384xf32> -> vector<8x384xf32>
    %469 = arith.index_cast %c5_i32_124 : i32 to index
    %c0_126 = arith.constant 0 : index
    %c0_127 = arith.constant 0 : index
    %470 = vector.load %arg17[%469, %c0_126, %c0_127] : memref<8x8x384xf32, #tpu.memory_space<vmem>>, vector<1x8x384xf32>
    %471 = vector.shape_cast %470 : vector<1x8x384xf32> to vector<8x384xf32>
    %472 = vector.extract_strided_slice %471 {offsets = [0, 0], sizes = [8, 128], strides = [1, 1]} : vector<8x384xf32> to vector<8x128xf32>
    %473 = vector.extract_strided_slice %468 {offsets = [0, 0], sizes = [8, 128], strides = [1, 1]} : vector<8x384xf32> to vector<8x128xf32>
    %474 = arith.addf %472, %473 : vector<8x128xf32>
    %475 = arith.negf %474 : vector<8x128xf32>
    %476 = math.exp %475 : vector<8x128xf32>
    %cst_128 = arith.constant 1.000000e+00 : f32
    %477 = vector.broadcast %cst_128 : f32 to vector<8x128xf32>
    %478 = arith.addf %477, %476 : vector<8x128xf32>
    %479 = arith.divf %477, %478 : vector<8x128xf32>
    %480 = vector.extract_strided_slice %471 {offsets = [0, 128], sizes = [8, 128], strides = [1, 1]} : vector<8x384xf32> to vector<8x128xf32>
    %481 = vector.extract_strided_slice %468 {offsets = [0, 128], sizes = [8, 128], strides = [1, 1]} : vector<8x384xf32> to vector<8x128xf32>
    %482 = arith.addf %480, %481 : vector<8x128xf32>
    %483 = arith.negf %482 : vector<8x128xf32>
    %484 = math.exp %483 : vector<8x128xf32>
    %cst_129 = arith.constant 1.000000e+00 : f32
    %485 = vector.broadcast %cst_129 : f32 to vector<8x128xf32>
    %486 = arith.addf %485, %484 : vector<8x128xf32>
    %487 = arith.divf %485, %486 : vector<8x128xf32>
    %488 = vector.extract_strided_slice %471 {offsets = [0, 256], sizes = [8, 128], strides = [1, 1]} : vector<8x384xf32> to vector<8x128xf32>
    %489 = vector.extract_strided_slice %468 {offsets = [0, 256], sizes = [8, 128], strides = [1, 1]} : vector<8x384xf32> to vector<8x128xf32>
    %490 = arith.addf %489, %314 : vector<8x128xf32>
    %491 = arith.mulf %479, %490 : vector<8x128xf32>
    %492 = arith.addf %488, %491 : vector<8x128xf32>
    %493 = math.tanh %492 : vector<8x128xf32>
    %494 = arith.subf %466, %493 : vector<8x128xf32>
    %495 = arith.mulf %487, %494 : vector<8x128xf32>
    %496 = arith.addf %493, %495 : vector<8x128xf32>
    %c6_i32_130 = arith.constant 6 : i32
    %497 = arith.truncf %496 : vector<8x128xf32> to vector<8x128xbf16>
    %cst_131 = arith.constant dense<0.000000e+00> : vector<8x384xf32>
    %498 = tpu.matmul %497, %303, %cst_131 {dimension_numbers = #tpu.dot_dimension_numbers<[1], [0], [0], [1], [0, 0, 1, 1], [], []>} : vector<8x128xbf16>, vector<128x384xbf16>, vector<8x384xf32> -> vector<8x384xf32>
    %499 = arith.index_cast %c6_i32_130 : i32 to index
    %c0_132 = arith.constant 0 : index
    %c0_133 = arith.constant 0 : index
    %500 = vector.load %arg17[%499, %c0_132, %c0_133] : memref<8x8x384xf32, #tpu.memory_space<vmem>>, vector<1x8x384xf32>
    %501 = vector.shape_cast %500 : vector<1x8x384xf32> to vector<8x384xf32>
    %502 = vector.extract_strided_slice %501 {offsets = [0, 0], sizes = [8, 128], strides = [1, 1]} : vector<8x384xf32> to vector<8x128xf32>
    %503 = vector.extract_strided_slice %498 {offsets = [0, 0], sizes = [8, 128], strides = [1, 1]} : vector<8x384xf32> to vector<8x128xf32>
    %504 = arith.addf %502, %503 : vector<8x128xf32>
    %505 = arith.negf %504 : vector<8x128xf32>
    %506 = math.exp %505 : vector<8x128xf32>
    %cst_134 = arith.constant 1.000000e+00 : f32
    %507 = vector.broadcast %cst_134 : f32 to vector<8x128xf32>
    %508 = arith.addf %507, %506 : vector<8x128xf32>
    %509 = arith.divf %507, %508 : vector<8x128xf32>
    %510 = vector.extract_strided_slice %501 {offsets = [0, 128], sizes = [8, 128], strides = [1, 1]} : vector<8x384xf32> to vector<8x128xf32>
    %511 = vector.extract_strided_slice %498 {offsets = [0, 128], sizes = [8, 128], strides = [1, 1]} : vector<8x384xf32> to vector<8x128xf32>
    %512 = arith.addf %510, %511 : vector<8x128xf32>
    %513 = arith.negf %512 : vector<8x128xf32>
    %514 = math.exp %513 : vector<8x128xf32>
    %cst_135 = arith.constant 1.000000e+00 : f32
    %515 = vector.broadcast %cst_135 : f32 to vector<8x128xf32>
    %516 = arith.addf %515, %514 : vector<8x128xf32>
    %517 = arith.divf %515, %516 : vector<8x128xf32>
    %518 = vector.extract_strided_slice %501 {offsets = [0, 256], sizes = [8, 128], strides = [1, 1]} : vector<8x384xf32> to vector<8x128xf32>
    %519 = vector.extract_strided_slice %498 {offsets = [0, 256], sizes = [8, 128], strides = [1, 1]} : vector<8x384xf32> to vector<8x128xf32>
    %520 = arith.addf %519, %314 : vector<8x128xf32>
    %521 = arith.mulf %509, %520 : vector<8x128xf32>
    %522 = arith.addf %518, %521 : vector<8x128xf32>
    %523 = math.tanh %522 : vector<8x128xf32>
    %524 = arith.subf %496, %523 : vector<8x128xf32>
    %525 = arith.mulf %517, %524 : vector<8x128xf32>
    %526 = arith.addf %523, %525 : vector<8x128xf32>
    %c7_i32_136 = arith.constant 7 : i32
    %527 = arith.truncf %526 : vector<8x128xf32> to vector<8x128xbf16>
    %cst_137 = arith.constant dense<0.000000e+00> : vector<8x384xf32>
    %528 = tpu.matmul %527, %303, %cst_137 {dimension_numbers = #tpu.dot_dimension_numbers<[1], [0], [0], [1], [0, 0, 1, 1], [], []>} : vector<8x128xbf16>, vector<128x384xbf16>, vector<8x384xf32> -> vector<8x384xf32>
    %529 = arith.index_cast %c7_i32_136 : i32 to index
    %c0_138 = arith.constant 0 : index
    %c0_139 = arith.constant 0 : index
    %530 = vector.load %arg17[%529, %c0_138, %c0_139] : memref<8x8x384xf32, #tpu.memory_space<vmem>>, vector<1x8x384xf32>
    %531 = vector.shape_cast %530 : vector<1x8x384xf32> to vector<8x384xf32>
    %532 = vector.extract_strided_slice %531 {offsets = [0, 0], sizes = [8, 128], strides = [1, 1]} : vector<8x384xf32> to vector<8x128xf32>
    %533 = vector.extract_strided_slice %528 {offsets = [0, 0], sizes = [8, 128], strides = [1, 1]} : vector<8x384xf32> to vector<8x128xf32>
    %534 = arith.addf %532, %533 : vector<8x128xf32>
    %535 = arith.negf %534 : vector<8x128xf32>
    %536 = math.exp %535 : vector<8x128xf32>
    %cst_140 = arith.constant 1.000000e+00 : f32
    %537 = vector.broadcast %cst_140 : f32 to vector<8x128xf32>
    %538 = arith.addf %537, %536 : vector<8x128xf32>
    %539 = arith.divf %537, %538 : vector<8x128xf32>
    %540 = vector.extract_strided_slice %531 {offsets = [0, 128], sizes = [8, 128], strides = [1, 1]} : vector<8x384xf32> to vector<8x128xf32>
    %541 = vector.extract_strided_slice %528 {offsets = [0, 128], sizes = [8, 128], strides = [1, 1]} : vector<8x384xf32> to vector<8x128xf32>
    %542 = arith.addf %540, %541 : vector<8x128xf32>
    %543 = arith.negf %542 : vector<8x128xf32>
    %544 = math.exp %543 : vector<8x128xf32>
    %cst_141 = arith.constant 1.000000e+00 : f32
    %545 = vector.broadcast %cst_141 : f32 to vector<8x128xf32>
    %546 = arith.addf %545, %544 : vector<8x128xf32>
    %547 = arith.divf %545, %546 : vector<8x128xf32>
    %548 = vector.extract_strided_slice %531 {offsets = [0, 256], sizes = [8, 128], strides = [1, 1]} : vector<8x384xf32> to vector<8x128xf32>
    %549 = vector.extract_strided_slice %528 {offsets = [0, 256], sizes = [8, 128], strides = [1, 1]} : vector<8x384xf32> to vector<8x128xf32>
    %550 = arith.addf %549, %314 : vector<8x128xf32>
    %551 = arith.mulf %539, %550 : vector<8x128xf32>
    %552 = arith.addf %548, %551 : vector<8x128xf32>
    %553 = math.tanh %552 : vector<8x128xf32>
    %554 = arith.subf %526, %553 : vector<8x128xf32>
    %555 = arith.mulf %547, %554 : vector<8x128xf32>
    %556 = arith.addf %553, %555 : vector<8x128xf32>
    %c8_i32_142 = arith.constant 8 : i32
    %c1_143 = arith.constant 1 : index
    %c0_144 = arith.constant 0 : index
    %c0_145 = arith.constant 0 : index
    %557 = vector.load %arg15[%c1_143, %c0_144, %c0_145] : memref<2x8x128xf32, #tpu.memory_space<vmem>>, vector<1x8x128xf32>
    %558 = vector.shape_cast %557 : vector<1x8x128xf32> to vector<8x128xf32>
    %559 = vector.shape_cast %556 : vector<8x128xf32> to vector<1x8x128xf32>
    tpu.vector_store %arg15[%c1_143, %c0_144, %c0_145], %559 {strides = array<i32>} : memref<2x8x128xf32, #tpu.memory_space<vmem>>, vector<1x8x128xf32>,
    %c0_i32_146 = arith.constant 0 : i32
    %560 = arith.cmpi eq, %arg1, %c0_i32_146 : i32
    %561 = arith.extui %560 : i1 to i32
    %c0_i32_147 = arith.constant 0 : i32
    %562 = arith.cmpi ne, %561, %c0_i32_147 : i32
    scf.if %562 {
      %c1_148 = arith.constant 1 : index
      %c0_149 = arith.constant 0 : index
      %c0_150 = arith.constant 0 : index
      %563 = vector.load %arg15[%c1_148, %c0_149, %c0_150] : memref<2x8x128xf32, #tpu.memory_space<vmem>>, vector<1x8x128xf32>
      %564 = vector.shape_cast %563 : vector<1x8x128xf32> to vector<8x128xf32>
      %565 = arith.truncf %564 : vector<8x128xf32> to vector<8x128xbf16>
      %c0_151 = arith.constant 0 : index
      %c0_152 = arith.constant 0 : index
      %566 = vector.load %arg12[%c0_151, %c0_152] : memref<128x128xbf16, #tpu.memory_space<vmem>>, vector<128x128xbf16>
      %cst_153 = arith.constant dense<0.000000e+00> : vector<8x128xf32>
      %567 = tpu.matmul %565, %566, %cst_153 {dimension_numbers = #tpu.dot_dimension_numbers<[1], [0], [0], [1], [0, 0, 1, 1], [], []>} : vector<8x128xbf16>, vector<128x128xbf16>, vector<8x128xf32> -> vector<8x128xf32>
      %c0_154 = arith.constant 0 : index
      %c0_155 = arith.constant 0 : index
      %568 = vector.load %arg13[%c0_154, %c0_155] : memref<1x128xf32, #tpu.memory_space<vmem>>, vector<1x128xf32>
      %569 = vector.broadcast %568 : vector<1x128xf32> to vector<8x128xf32>
      %570 = arith.addf %567, %569 : vector<8x128xf32>
      %c0_156 = arith.constant 0 : index
      %c0_157 = arith.constant 0 : index
      %571 = vector.load %arg14[%c0_156, %c0_157] : memref<8x128xf32, #tpu.memory_space<vmem>>, vector<8x128xf32>
      tpu.vector_store %arg14[%c0_156, %c0_157], %570 {strides = array<i32>} : memref<8x128xf32, #tpu.memory_space<vmem>>, vector<8x128xf32>,
    } else {
    }
    return
  }
  func.func @transform_0(%arg0: i32, %arg1: i32) -> (i32, i32, i32) {
    %c0_i32 = arith.constant 0 : i32
    %c0_i32_0 = arith.constant 0 : i32
    return %arg1, %arg0, %c0_i32 : i32, i32, i32
  }
  func.func @transform_1(%arg0: i32, %arg1: i32) -> (i32, i32, i32) {
    %c0_i32 = arith.constant 0 : i32
    %c0_i32_0 = arith.constant 0 : i32
    %c0_i32_1 = arith.constant 0 : i32
    return %c0_i32, %arg0, %c0_i32_0 : i32, i32, i32
  }
  func.func @transform_2(%arg0: i32, %arg1: i32) -> (i32, i32) {
    %c0_i32 = arith.constant 0 : i32
    %c0_i32_0 = arith.constant 0 : i32
    %c0_i32_1 = arith.constant 0 : i32
    return %c0_i32, %c0_i32_0 : i32, i32
  }
  func.func @transform_3(%arg0: i32, %arg1: i32) -> (i32, i32) {
    %c0_i32 = arith.constant 0 : i32
    %c0_i32_0 = arith.constant 0 : i32
    %c0_i32_1 = arith.constant 0 : i32
    return %c0_i32, %c0_i32_0 : i32, i32
  }
  func.func @transform_4(%arg0: i32, %arg1: i32) -> (i32, i32) {
    %c0_i32 = arith.constant 0 : i32
    %c0_i32_0 = arith.constant 0 : i32
    %c0_i32_1 = arith.constant 0 : i32
    return %c0_i32, %c0_i32_0 : i32, i32
  }
  func.func @transform_5(%arg0: i32, %arg1: i32) -> (i32, i32) {
    %c0_i32 = arith.constant 0 : i32
    %c0_i32_0 = arith.constant 0 : i32
    %c0_i32_1 = arith.constant 0 : i32
    return %c0_i32, %c0_i32_0 : i32, i32
  }
  func.func @transform_6(%arg0: i32, %arg1: i32) -> (i32, i32) {
    %c0_i32 = arith.constant 0 : i32
    %c0_i32_0 = arith.constant 0 : i32
    %c0_i32_1 = arith.constant 0 : i32
    return %c0_i32, %c0_i32_0 : i32, i32
  }
  func.func @transform_7(%arg0: i32, %arg1: i32) -> (i32, i32) {
    %c0_i32 = arith.constant 0 : i32
    %c0_i32_0 = arith.constant 0 : i32
    %c0_i32_1 = arith.constant 0 : i32
    return %c0_i32, %c0_i32_0 : i32, i32
  }
  func.func @transform_8(%arg0: i32, %arg1: i32) -> (i32, i32) {
    %c0_i32 = arith.constant 0 : i32
    %c0_i32_0 = arith.constant 0 : i32
    %c0_i32_1 = arith.constant 0 : i32
    return %c0_i32, %c0_i32_0 : i32, i32
  }
  func.func @transform_9(%arg0: i32, %arg1: i32) -> (i32, i32) {
    %c0_i32 = arith.constant 0 : i32
    %c0_i32_0 = arith.constant 0 : i32
    %c0_i32_1 = arith.constant 0 : i32
    return %c0_i32, %c0_i32_0 : i32, i32
  }
  func.func @transform_10(%arg0: i32, %arg1: i32) -> (i32, i32) {
    %c0_i32 = arith.constant 0 : i32
    %c0_i32_0 = arith.constant 0 : i32
    %c0_i32_1 = arith.constant 0 : i32
    return %c0_i32, %c0_i32_0 : i32, i32
  }
  func.func @transform_11(%arg0: i32, %arg1: i32) -> (i32, i32) {
    %c0_i32 = arith.constant 0 : i32
    %c0_i32_0 = arith.constant 0 : i32
    %c0_i32_1 = arith.constant 0 : i32
    return %c0_i32, %c0_i32_0 : i32, i32
  }
  func.func @transform_12(%arg0: i32, %arg1: i32) -> (i32, i32) {
    %c0_i32 = arith.constant 0 : i32
    %c0_i32_0 = arith.constant 0 : i32
    return %arg0, %c0_i32 : i32, i32
  }
}

</mosaic_0001>

<llo_original>
// kernel: tpu_custom_call.1
$region0: #{tpu_custom_call.1}
  #allocation0 [shape = 'u32[]', space=smem, size = 0x4, offset = 0x4, fixed_abs, tag = 'smem constant byte address 0x4 - core index']
  #allocation1 [shape = 'u32[144,128]{1,0:T(1,128)}', space=vmem, size = 0x12000, scoped, tag = 'internal scratch']
  #allocation2 [shape = 'f32[2,8,128]{2,1,0:T(8,128)}', space=vmem, size = 0x2000, scoped, tag = 'scratch operand']
  #allocation3 [shape = 'bf16[8,8,128]{2,1,0:T(8,128)(2,1)}', space=vmem, size = 0x4000, scoped, tag = 'scratch operand']
  #allocation4 [shape = 'f32[8,8,384]{2,1,0:T(8,128)}', space=vmem, size = 0x18000, scoped, tag = 'scratch operand']
  %s0 = inlined_call_operand.vmem [shape: f32[8,8,4], index: 0, kind: input, shape index: {}]
  %s1 = inlined_call_operand.vmem [shape: f32[2,8,128], index: 1, kind: input, shape index: {}]
  %s2 = inlined_call_operand.vmem [shape: bf16[4,384], index: 2, kind: input, shape index: {}]
  %s3 = inlined_call_operand.hbm [shape: bf16[128,384], index: 3, kind: input, shape index: {}]
  %s4 = inlined_call_operand.vmem [shape: f32[1,384], index: 4, kind: input, shape index: {}]
  %s5 = inlined_call_operand.vmem [shape: f32[1,128], index: 5, kind: input, shape index: {}]
  %s6 = inlined_call_operand.hbm [shape: bf16[128,384], index: 6, kind: input, shape index: {}]
  %s7 = inlined_call_operand.hbm [shape: bf16[128,384], index: 7, kind: input, shape index: {}]
  %s8 = inlined_call_operand.vmem [shape: f32[1,384], index: 8, kind: input, shape index: {}]
  %s9 = inlined_call_operand.vmem [shape: f32[1,128], index: 9, kind: input, shape index: {}]
  %s10 = inlined_call_operand.vmem [shape: bf16[128,128], index: 10, kind: input, shape index: {}]
  %s11 = inlined_call_operand.vmem [shape: f32[1,128], index: 11, kind: input, shape index: {}]
  %s12 = inlined_call_operand.hbm [shape: f32[8,128], index: 12, kind: output, shape index: {}]
  %s13 = sld [smem:[#allocation0]]
  $region78: #{tpu_custom_call.1} parent=0
    _
  %s15 = ssub.s32 1, %s13
  %s16 = scalar_select 0, %s15, %s13
  $region1: #{tpu_custom_call.1} parent=0
    #allocation5 [shape = 'u8[98304]{0}', space=vmem, size = 0x18000, scoped, tag = 'input window, operand 3, single buffered']
    #allocation6 [shape = 's32[1]{0}', space=sflag, size = 0x4, scoped, tag = 'scoped memory for tpu_custom_call.1']
    #allocation7 [shape = 's32[1]{0}', space=sflag, size = 0x4, scoped, tag = 'scoped memory for tpu_custom_call.1']
    #allocation8 [shape = 'u8[98304]{0}', space=vmem, size = 0x18000, scoped, tag = 'input window, operand 6, single buffered']
    #allocation9 [shape = 's32[1]{0}', space=sflag, size = 0x4, scoped, tag = 'scoped memory for tpu_custom_call.1']
    #allocation10 [shape = 'u8[98304]{0}', space=vmem, size = 0x18000, scoped, tag = 'input window, operand 7, single buffered']
    #allocation11 [shape = 'u8[4096]{0}', space=vmem, size = 0x1000, scoped, tag = 'output window, operand 0, single buffered']
    %17 = vsyncpa [#allocation6], 0
    %18 = vsyncpa [#allocation9], 0
    %19 = vsyncpa [#allocation7], 0
    // Predicated region
    $region2: #{tpu_custom_call.1} parent=1 // pred_check
      _
    $region3: #{tpu_custom_call.1} parent=1 // pred_check_branch
      %21 = sbr.rel (0) target = $region5
    $region4: #{tpu_custom_call.1} parent=1 // pred_region
      _
    $region5: #{tpu_custom_call.1} parent=1 // pred_fallthru
      _
    // Predicated region
    $region6: #{tpu_custom_call.1} parent=1 // pred_check
      _
    $region7: #{tpu_custom_call.1} parent=1 // pred_check_branch
      %23 = sbr.rel (0) target = $region9
    $region8: #{tpu_custom_call.1} parent=1 // pred_region
      _
    $region9: #{tpu_custom_call.1} parent=1 // pred_fallthru
      _
    // Predicated region
    $region10: #{tpu_custom_call.1} parent=1 // pred_check
      _
    $region11: #{tpu_custom_call.1} parent=1 // pred_check_branch
      %25 = sbr.rel (0) target = $region13
    $region12: #{tpu_custom_call.1} parent=1 // pred_region
      _
    $region13: #{tpu_custom_call.1} parent=1 // pred_fallthru
      _
    // Predicated region
    $region14: #{tpu_custom_call.1} parent=1 // pred_check
      _
    $region15: #{tpu_custom_call.1} parent=1 // pred_check_branch
      %27 = sbr.rel (0) target = $region17
    $region16: #{tpu_custom_call.1} parent=1 // pred_region
      %s29 = ssub.s32 3072, 3072
      %30 = vsyncadd [#allocation6], %s29
      %s31 = sshll.u32 [#allocation5], 4
      %s32 = int_to_ptr.vmem [resolvable:$true] %s31
      %37 = dma.hbm_to_vmem [thread:$0]  %s3, 3072, %s32, [#allocation6], 192, 192, 12
    $region17: #{tpu_custom_call.1} parent=1 // pred_fallthru
      _
    // Predicated region
    $region18: #{tpu_custom_call.1} parent=1 // pred_check
      _
    $region19: #{tpu_custom_call.1} parent=1 // pred_check_branch
      %39 = sbr.rel (0) target = $region21
    $region20: #{tpu_custom_call.1} parent=1 // pred_region
      _
    $region21: #{tpu_custom_call.1} parent=1 // pred_fallthru
      _
    // Predicated region
    $region22: #{tpu_custom_call.1} parent=1 // pred_check
      _
    $region23: #{tpu_custom_call.1} parent=1 // pred_check_branch
      %41 = sbr.rel (0) target = $region25
    $region24: #{tpu_custom_call.1} parent=1 // pred_region
      _
    $region25: #{tpu_custom_call.1} parent=1 // pred_fallthru
      _
    // Predicated region
    $region26: #{tpu_custom_call.1} parent=1 // pred_check
      _
    $region27: #{tpu_custom_call.1} parent=1 // pred_check_branch
      %43 = sbr.rel (0) target = $region29
    $region28: #{tpu_custom_call.1} parent=1 // pred_region
      %s45 = ssub.s32 3072, 3072
      %46 = vsyncadd [#allocation9], %s45
      %s47 = sshll.u32 [#allocation8], 4
      %s48 = int_to_ptr.vmem [resolvable:$true] %s47
      %53 = dma.hbm_to_vmem [thread:$0]  %s6, 3072, %s48, [#allocation9], 192, 192, 12
    $region29: #{tpu_custom_call.1} parent=1 // pred_fallthru
      _
    // Predicated region
    $region30: #{tpu_custom_call.1} parent=1 // pred_check
      _
    $region31: #{tpu_custom_call.1} parent=1 // pred_check_branch
      %55 = sbr.rel (0) target = $region33
    $region32: #{tpu_custom_call.1} parent=1 // pred_region
      %s57 = ssub.s32 3072, 3072
      %58 = vsyncadd [#allocation9], %s57
      %s59 = sshll.u32 [#allocation10], 4
      %s60 = int_to_ptr.vmem [resolvable:$true] %s59
      %65 = dma.hbm_to_vmem [thread:$0]  %s7, 3072, %s60, [#allocation9], 192, 192, 12
    $region33: #{tpu_custom_call.1} parent=1 // pred_fallthru
      _
    // Predicated region
    $region34: #{tpu_custom_call.1} parent=1 // pred_check
      _
    $region35: #{tpu_custom_call.1} parent=1 // pred_check_branch
      %67 = sbr.rel (0) target = $region37
    $region36: #{tpu_custom_call.1} parent=1 // pred_region
      _
    $region37: #{tpu_custom_call.1} parent=1 // pred_fallthru
      _
    // Predicated region
    $region38: #{tpu_custom_call.1} parent=1 // pred_check
      _
    $region39: #{tpu_custom_call.1} parent=1 // pred_check_branch
      %69 = sbr.rel (0) target = $region41
    $region40: #{tpu_custom_call.1} parent=1 // pred_region
      _
    $region41: #{tpu_custom_call.1} parent=1 // pred_fallthru
      _
    // Predicated region
    $region42: #{tpu_custom_call.1} parent=1 // pred_check
      _
    $region43: #{tpu_custom_call.1} parent=1 // pred_check_branch
      %71 = sbr.rel (0) target = $region45
    $region44: #{tpu_custom_call.1} parent=1 // pred_region
      _
    $region45: #{tpu_custom_call.1} parent=1 // pred_fallthru
      _
    // Predicated region
    $region46: #{tpu_custom_call.1} parent=1 // pred_check
      _
    $region47: #{tpu_custom_call.1} parent=1 // pred_check_branch
      %73 = sbr.rel (0) target = $region49
    $region48: #{tpu_custom_call.1} parent=1 // pred_region
      _
    $region49: #{tpu_custom_call.1} parent=1 // pred_fallthru
      _
    // Predicated region
    $region50: #{tpu_custom_call.1} parent=1 // pred_check
      _
    $region51: #{tpu_custom_call.1} parent=1 // pred_check_branch
      %75 = sbr.rel (0) target = $region53
    $region52: #{tpu_custom_call.1} parent=1 // pred_region
      %76 = dma.done [#allocation6], 3072
    $region53: #{tpu_custom_call.1} parent=1 // pred_fallthru
      _
    // Predicated region
    $region54: #{tpu_custom_call.1} parent=1 // pred_check
      _
    $region55: #{tpu_custom_call.1} parent=1 // pred_check_branch
      %78 = sbr.rel (0) target = $region57
    $region56: #{tpu_custom_call.1} parent=1 // pred_region
      %79 = dma.done [#allocation9], 3072
    $region57: #{tpu_custom_call.1} parent=1 // pred_fallthru
      _
    // Predicated region
    $region58: #{tpu_custom_call.1} parent=1 // pred_check
      _
    $region59: #{tpu_custom_call.1} parent=1 // pred_check_branch
      %81 = sbr.rel (0) target = $region61
    $region60: #{tpu_custom_call.1} parent=1 // pred_region
      %82 = dma.done [#allocation9], 3072
    $region61: #{tpu_custom_call.1} parent=1 // pred_fallthru
      _
    %p84 = scmp.eq.s32.totalorder 0, 0
    // Predicated region
    $region62: #{tpu_custom_call.1} parent=1 // pred_check
      %p85 = pneg %p84
    $region63: #{tpu_custom_call.1} parent=1 // pred_check_branch
      %87 = sbr.rel (%p85) target = $region65
    $region64: #{tpu_custom_call.1} parent=1 // pred_region
      %v88 = vld [vmem:[%s1] sm:$0xff]
      %v89 = vld [vmem:[%s1 + $0x8] sm:$0xff]
      %90 = vst [vmem:[#allocation2] sm:$0xff] %v88
      %91 = vst [vmem:[#allocation2 + $0x8] sm:$0xff] %v89
    $region65: #{tpu_custom_call.1} parent=1 // pred_fallthru
      _
    %v92 = vld [vmem:[%s2] sm:$0x3f]
    %v93 = vld [vmem:[#allocation5] sm:$0xff]
    %v94 = vld [vmem:[#allocation5 + $0x8] sm:$0xf]
    %v95 = vld [vmem:[#allocation5 + $0xc] sm:$0xff]
    %v96 = vld [vmem:[#allocation5 + $0x14] sm:$0xf]
    %v97 = vld [vmem:[#allocation5 + $0x18] sm:$0xff]
    %v98 = vld [vmem:[#allocation5 + $0x20] sm:$0xf]
    %v99 = vld [vmem:[#allocation5 + $0x24] sm:$0xff]
    %v100 = vld [vmem:[#allocation5 + $0x2c] sm:$0xf]
    %v101 = vld [vmem:[#allocation5 + $0x30] sm:$0xff]
    %v102 = vld [vmem:[#allocation5 + $0x38] sm:$0xf]
    %v103 = vld [vmem:[#allocation5 + $0x3c] sm:$0xff]
    %v104 = vld [vmem:[#allocation5 + $0x44] sm:$0xf]
    %v105 = vld [vmem:[#allocation5 + $0x48] sm:$0xff]
    %v106 = vld [vmem:[#allocation5 + $0x50] sm:$0xf]
    %v107 = vld [vmem:[#allocation5 + $0x54] sm:$0xff]
    %v108 = vld [vmem:[#allocation5 + $0x5c] sm:$0xf]
    %v109 = vld [vmem:[#allocation5 + $0x60] sm:$0xff]
    %v110 = vld [vmem:[#allocation5 + $0x68] sm:$0xf]
    %v111 = vld [vmem:[#allocation5 + $0x6c] sm:$0xff]
    %v112 = vld [vmem:[#allocation5 + $0x74] sm:$0xf]
    %v113 = vld [vmem:[#allocation5 + $0x78] sm:$0xff]
    %v114 = vld [vmem:[#allocation5 + $0x80] sm:$0xf]
    %v115 = vld [vmem:[#allocation5 + $0x84] sm:$0xff]
    %v116 = vld [vmem:[#allocation5 + $0x8c] sm:$0xf]
    %v117 = vld [vmem:[#allocation5 + $0x90] sm:$0xff]
    %v118 = vld [vmem:[#allocation5 + $0x98] sm:$0xf]
    %v119 = vld [vmem:[#allocation5 + $0x9c] sm:$0xff]
    %v120 = vld [vmem:[#allocation5 + $0xa4] sm:$0xf]
    %v121 = vld [vmem:[#allocation5 + $0xa8] sm:$0xff]
    %v122 = vld [vmem:[#allocation5 + $0xb0] sm:$0xf]
    %v123 = vld [vmem:[#allocation5 + $0xb4] sm:$0xff]
    %v124 = vld [vmem:[#allocation5 + $0xbc] sm:$0xf]
    %v125 = vld [vmem:[%s4] sm:$0x7]
    %v126 = vld [vmem:[%s5] sm:$0x1]
    %v127 = vld [vmem:[%s0] sm:$0xff]
    %v128 = vld [vmem:[%s0 + $0x8] sm:$0xff]
    %v129 = vld [vmem:[%s0 + $0x10] sm:$0xff]
    %v130 = vld [vmem:[%s0 + $0x18] sm:$0xff]
    %v131 = vld [vmem:[%s0 + $0x20] sm:$0xff]
    %v132 = vld [vmem:[%s0 + $0x28] sm:$0xff]
    %v133 = vld [vmem:[%s0 + $0x30] sm:$0xff]
    %v134 = vld [vmem:[%s0 + $0x38] sm:$0xff]
    %v135 = vpack.c.bf16 %v128, %v127
    %v136 = vpack.c.bf16 %v130, %v129
    %v137 = vpack.c.bf16 %v132, %v131
    %v138 = vpack.c.bf16 %v134, %v133
    %v140 = vlaneseq
    %v141 = vshrl.u32 %v140, 7
    %v142 = vsub.s32 0, %v141
    %v143 = vrot.slane %v125, %v142
    %v144 = vlaneseq
    %v145 = vshrl.u32 %v144, 7
    %v146 = vsub.s32 1, %v145
    %v147 = vrot.slane %v125, %v146
    %v148 = vlaneseq
    %v149 = vshrl.u32 %v148, 7
    %v150 = vsub.s32 2, %v149
    %v151 = vrot.slane %v125, %v150
    %v156 = vcombine.high %v92, %v92
    %v158 = vunpack.c.l.s4 1983009808
    %v159 = vunpack.c.0.s8 %v158
    %v160 = vlaneseq
    %v161 = vshrl.u32 %v160, 7
    %v162 = vsub.s32 %v159, %v161
    %v163 = vrot.slane %v92, %v162
    %v165 = vunpack.c.l.s4 1983009808
    %v166 = vunpack.c.0.s8 %v165
    %v167 = vlaneseq
    %v168 = vshrl.u32 %v167, 7
    %v169 = vsub.s32 %v166, %v168
    %v170 = vrot.slane %v156, %v169
    %v171 = vcombine.high %v163, %v163
    %vm172 = vcmask 31744
    %v174 = vsel %vm172, %v135, 0
    %v177 = vsel %vm172, %v136, 0
    %v180 = vsel %vm172, %v137, 0
    %v183 = vsel %vm172, %v138, 0
    %vm185 = vcmask 1041408
    %v187 = vsel %vm185, %v163, 0
    %v190 = vsel %vm185, %v171, 0
    %v193 = vsel %vm185, %v170, 0
    %195 = vmatprep.subr.bf16.mxu0 %v190
    %196 = vmatpush1.bf16.msra.mxu0 %v187
    %197 = vmatprep.subr.bf16.mxu0 0
    %198 = vmatpush1.bf16.msra.mxu0 0
    %199 = vmatprep.subr.bf16.mxu0 0
    %200 = vmatpush1.bf16.msra.mxu0 0
    %201 = vmatprep.subr.bf16.mxu0 0
    %202 = vmatpush1.bf16.msra.mxu0 0
    %203 = vmatprep.subr.bf16.mxu0 0
    %204 = vmatpush1.bf16.msra.mxu0 0
    %205 = vmatprep.subr.bf16.mxu0 0
    %206 = vmatpush1.bf16.msra.mxu0 0
    %207 = vmatprep.subr.bf16.mxu0 0
    %208 = vmatpush1.bf16.msra.mxu0 0
    %209 = vmatprep.subr.bf16.mxu0 0
    %210 = vmatpush1.bf16.msra.mxu0 0
    %211 = vmatprep.subr.bf16.mxu0 0
    %212 = vmatpush1.bf16.msra.mxu0 0
    %213 = vmatprep.subr.bf16.mxu0 0
    %214 = vmatpush1.bf16.msra.mxu0 0
    %215 = vmatprep.subr.bf16.mxu0 0
    %216 = vmatpush1.bf16.msra.mxu0 0
    %217 = vmatprep.subr.bf16.mxu0 0
    %218 = vmatpush1.bf16.msra.mxu0 0
    %219 = vmatprep.subr.bf16.mxu0 0
    %220 = vmatpush1.bf16.msra.mxu0 0
    %221 = vmatprep.subr.bf16.mxu0 0
    %222 = vmatpush1.bf16.msra.mxu0 0
    %223 = vmatprep.subr.bf16.mxu0 0
    %224 = vmatpush1.bf16.msra.mxu0 0
    %225 = vmatprep.subr.bf16.mxu0 0
    %226 = vmatpush1.bf16.msra.mxu0 0
    %227 = vmatprep.mubr.bf16.mxu0 0
    %228 = vmatmul.mubr.bf16.gmra.mrb[0].mxu0 %v174
    %v229 = vpop.f32.mrb[0].mxu0
    %v230 = vadd.f32 %v143, %v229
    %v231 = vpop.f32.mrb[0].mxu0
    %v232 = vadd.f32 %v147, %v231
    %v233 = vpop.f32.mrb[0].mxu0
    %v234 = vadd.f32 %v143, %v233
    %v235 = vpop.f32.mrb[0].mxu0
    %v236 = vadd.f32 %v147, %v235
    %237 = vmatprep.mubr.bf16.mxu0 0
    %238 = vmatmul.mubr.bf16.gmra.mrb[0].mxu0 %v177
    %v239 = vpop.f32.mrb[0].mxu0
    %v240 = vadd.f32 %v143, %v239
    %v241 = vpop.f32.mrb[0].mxu0
    %v242 = vadd.f32 %v147, %v241
    %v243 = vpop.f32.mrb[0].mxu0
    %v244 = vadd.f32 %v143, %v243
    %v245 = vpop.f32.mrb[0].mxu0
    %v246 = vadd.f32 %v147, %v245
    %247 = vmatprep.mubr.bf16.mxu0 0
    %248 = vmatmul.mubr.bf16.gmra.mrb[0].mxu0 %v180
    %v249 = vpop.f32.mrb[0].mxu0
    %v250 = vadd.f32 %v143, %v249
    %v251 = vpop.f32.mrb[0].mxu0
    %v252 = vadd.f32 %v147, %v251
    %v253 = vpop.f32.mrb[0].mxu0
    %v254 = vadd.f32 %v143, %v253
    %v255 = vpop.f32.mrb[0].mxu0
    %v256 = vadd.f32 %v147, %v255
    %257 = vmatprep.mubr.bf16.mxu0 0
    %258 = vmatmul.mubr.bf16.gmra.mrb[0].mxu0 %v183
    %v259 = vpop.f32.mrb[0].mxu0
    %v260 = vadd.f32 %v143, %v259
    %v261 = vpop.f32.mrb[0].mxu0
    %v262 = vadd.f32 %v147, %v261
    %v263 = vpop.f32.mrb[0].mxu0
    %v264 = vadd.f32 %v143, %v263
    %v265 = vpop.f32.mrb[0].mxu0
    %v266 = vadd.f32 %v147, %v265
    %267 = vdwg.mxu0
    %268 = vmatprep.subr.bf16.mxu0 0
    %269 = vmatpush1.bf16.msra.mxu0 %v193
    %270 = vmatprep.subr.bf16.mxu0 0
    %271 = vmatpush1.bf16.msra.mxu0 0
    %272 = vmatprep.subr.bf16.mxu0 0
    %273 = vmatpush1.bf16.msra.mxu0 0
    %274 = vmatprep.subr.bf16.mxu0 0
    %275 = vmatpush1.bf16.msra.mxu0 0
    %276 = vmatprep.subr.bf16.mxu0 0
    %277 = vmatpush1.bf16.msra.mxu0 0
    %278 = vmatprep.subr.bf16.mxu0 0
    %279 = vmatpush1.bf16.msra.mxu0 0
    %280 = vmatprep.subr.bf16.mxu0 0
    %281 = vmatpush1.bf16.msra.mxu0 0
    %282 = vmatprep.subr.bf16.mxu0 0
    %283 = vmatpush1.bf16.msra.mxu0 0
    %284 = vmatprep.subr.bf16.mxu0 0
    %285 = vmatpush1.bf16.msra.mxu0 0
    %286 = vmatprep.subr.bf16.mxu0 0
    %287 = vmatpush1.bf16.msra.mxu0 0
    %288 = vmatprep.subr.bf16.mxu0 0
    %289 = vmatpush1.bf16.msra.mxu0 0
    %290 = vmatprep.subr.bf16.mxu0 0
    %291 = vmatpush1.bf16.msra.mxu0 0
    %292 = vmatprep.subr.bf16.mxu0 0
    %293 = vmatpush1.bf16.msra.mxu0 0
    %294 = vmatprep.subr.bf16.mxu0 0
    %295 = vmatpush1.bf16.msra.mxu0 0
    %296 = vmatprep.subr.bf16.mxu0 0
    %297 = vmatpush1.bf16.msra.mxu0 0
    %298 = vmatprep.subr.bf16.mxu0 0
    %299 = vmatpush1.bf16.msra.mxu0 0
    %300 = vmatprep.mubr.bf16.mxu0 0
    %301 = vmatmul.mubr.bf16.gmra.mrb[0].mxu0 %v174
    %v302 = vpop.f32.mrb[0].mxu0
    %v303 = vadd.f32 %v151, %v302
    %v304 = vpop.f32.mrb[0].mxu0
    %v305 = vpop.f32.mrb[0].mxu0
    %v306 = vadd.f32 %v151, %v305
    %v307 = vpop.f32.mrb[0].mxu0
    %308 = vmatprep.mubr.bf16.mxu0 0
    %309 = vmatmul.mubr.bf16.gmra.mrb[0].mxu0 %v177
    %v310 = vpop.f32.mrb[0].mxu0
    %v311 = vadd.f32 %v151, %v310
    %v312 = vpop.f32.mrb[0].mxu0
    %v313 = vpop.f32.mrb[0].mxu0
    %v314 = vadd.f32 %v151, %v313
    %v315 = vpop.f32.mrb[0].mxu0
    %316 = vmatprep.mubr.bf16.mxu0 0
    %317 = vmatmul.mubr.bf16.gmra.mrb[0].mxu0 %v180
    %v318 = vpop.f32.mrb[0].mxu0
    %v319 = vadd.f32 %v151, %v318
    %v320 = vpop.f32.mrb[0].mxu0
    %v321 = vpop.f32.mrb[0].mxu0
    %v322 = vadd.f32 %v151, %v321
    %v323 = vpop.f32.mrb[0].mxu0
    %324 = vmatprep.mubr.bf16.mxu0 0
    %325 = vmatmul.mubr.bf16.gmra.mrb[0].mxu0 %v183
    %v326 = vpop.f32.mrb[0].mxu0
    %v327 = vadd.f32 %v151, %v326
    %v328 = vpop.f32.mrb[0].mxu0
    %v329 = vpop.f32.mrb[0].mxu0
    %v330 = vadd.f32 %v151, %v329
    %v331 = vpop.f32.mrb[0].mxu0
    %332 = vdwg.mxu0
    %333 = vst [vmem:[#allocation4] sm:$0xff] %v230
    %334 = vst [vmem:[#allocation4 + $0x8] sm:$0xff] %v232
    %335 = vst [vmem:[#allocation4 + $0x10] sm:$0xff] %v303
    %336 = vst [vmem:[#allocation4 + $0x18] sm:$0xff] %v234
    %337 = vst [vmem:[#allocation4 + $0x20] sm:$0xff] %v236
    %338 = vst [vmem:[#allocation4 + $0x28] sm:$0xff] %v306
    %339 = vst [vmem:[#allocation4 + $0x30] sm:$0xff] %v240
    %340 = vst [vmem:[#allocation4 + $0x38] sm:$0xff] %v242
    %341 = vst [vmem:[#allocation4 + $0x40] sm:$0xff] %v311
    %342 = vst [vmem:[#allocation4 + $0x48] sm:$0xff] %v244
    %343 = vst [vmem:[#allocation4 + $0x50] sm:$0xff] %v246
    %344 = vst [vmem:[#allocation4 + $0x58] sm:$0xff] %v314
    %345 = vst [vmem:[#allocation4 + $0x60] sm:$0xff] %v250
    %346 = vst [vmem:[#allocation4 + $0x68] sm:$0xff] %v252
    %347 = vst [vmem:[#allocation4 + $0x70] sm:$0xff] %v319
    %348 = vst [vmem:[#allocation4 + $0x78] sm:$0xff] %v254
    %349 = vst [vmem:[#allocation4 + $0x80] sm:$0xff] %v256
    %350 = vst [vmem:[#allocation4 + $0x88] sm:$0xff] %v322
    %351 = vst [vmem:[#allocation4 + $0x90] sm:$0xff] %v260
    %352 = vst [vmem:[#allocation4 + $0x98] sm:$0xff] %v262
    %353 = vst [vmem:[#allocation4 + $0xa0] sm:$0xff] %v327
    %354 = vst [vmem:[#allocation4 + $0xa8] sm:$0xff] %v264
    %355 = vst [vmem:[#allocation4 + $0xb0] sm:$0xff] %v266
    %356 = vst [vmem:[#allocation4 + $0xb8] sm:$0xff] %v330
    %v358 = vlaneseq
    %v359 = vshrl.u32 %v358, 7
    %v360 = vsub.s32 0, %v359
    %v361 = vrot.slane %v126, %v360
    %v363 = vld [vmem:[#allocation2] sm:$0xff]
    %v364 = vpack.c.bf16 %v363, %v363
    %v397 = vunpack.c.l.b16 %v93
    %v398 = vunpack.c.h.b16 %v93
    %v399 = vunpack.c.l.b16 %v94
    %v400 = vunpack.c.l.b16 %v95
    %v401 = vunpack.c.h.b16 %v95
    %v402 = vunpack.c.l.b16 %v96
    %v403 = vunpack.c.l.b16 %v97
    %v404 = vunpack.c.h.b16 %v97
    %v405 = vunpack.c.l.b16 %v98
    %v406 = vunpack.c.l.b16 %v99
    %v407 = vunpack.c.h.b16 %v99
    %v408 = vunpack.c.l.b16 %v100
    %v409 = vunpack.c.l.b16 %v101
    %v410 = vunpack.c.h.b16 %v101
    %v411 = vunpack.c.l.b16 %v102
    %v412 = vunpack.c.l.b16 %v103
    %v413 = vunpack.c.h.b16 %v103
    %v414 = vunpack.c.l.b16 %v104
    %v415 = vunpack.c.l.b16 %v105
    %v416 = vunpack.c.h.b16 %v105
    %v417 = vunpack.c.l.b16 %v106
    %v418 = vunpack.c.l.b16 %v107
    %v419 = vunpack.c.h.b16 %v107
    %v420 = vunpack.c.l.b16 %v108
    %v421 = vunpack.c.l.b16 %v109
    %v422 = vunpack.c.h.b16 %v109
    %v423 = vunpack.c.l.b16 %v110
    %v424 = vunpack.c.l.b16 %v111
    %v425 = vunpack.c.h.b16 %v111
    %v426 = vunpack.c.l.b16 %v112
    %v427 = vunpack.c.l.b16 %v113
    %v428 = vunpack.c.h.b16 %v113
    %v429 = vunpack.c.l.b16 %v114
    %v430 = vunpack.c.l.b16 %v115
    %v431 = vunpack.c.h.b16 %v115
    %v432 = vunpack.c.l.b16 %v116
    %v433 = vunpack.c.l.b16 %v117
    %v434 = vunpack.c.h.b16 %v117
    %v435 = vunpack.c.l.b16 %v118
    %v436 = vunpack.c.l.b16 %v119
    %v437 = vunpack.c.h.b16 %v119
    %v438 = vunpack.c.l.b16 %v120
    %v439 = vunpack.c.l.b16 %v121
    %v440 = vunpack.c.h.b16 %v121
    %v441 = vunpack.c.l.b16 %v122
    %v442 = vunpack.c.l.b16 %v123
    %v443 = vunpack.c.h.b16 %v123
    %v444 = vunpack.c.l.b16 %v124
    %v445 = vpack.c.b16 %v400, %v397
    %v446 = vpack.c.b16 %v401, %v398
    %v447 = vpack.c.b16 %v402, %v399
    %v448 = vpack.c.b16 %v406, %v403
    %v449 = vpack.c.b16 %v407, %v404
    %v450 = vpack.c.b16 %v408, %v405
    %v451 = vpack.c.b16 %v412, %v409
    %v452 = vpack.c.b16 %v413, %v410
    %v453 = vpack.c.b16 %v414, %v411
    %v454 = vpack.c.b16 %v418, %v415
    %v455 = vpack.c.b16 %v419, %v416
    %v456 = vpack.c.b16 %v420, %v417
    %v457 = vpack.c.b16 %v424, %v421
    %v458 = vpack.c.b16 %v425, %v422
    %v459 = vpack.c.b16 %v426, %v423
    %v460 = vpack.c.b16 %v430, %v427
    %v461 = vpack.c.b16 %v431, %v428
    %v462 = vpack.c.b16 %v432, %v429
    %v463 = vpack.c.b16 %v436, %v433
    %v464 = vpack.c.b16 %v437, %v434
    %v465 = vpack.c.b16 %v438, %v435
    %v466 = vpack.c.b16 %v442, %v439
    %v467 = vpack.c.b16 %v443, %v440
    %v468 = vpack.c.b16 %v444, %v441
    %493 = vmatprep.subr.bf16.mxu0 %v446
    %494 = vmatpush1.bf16.msra.mxu0 %v445
    %495 = vmatprep.subr.bf16.mxu0 %v449
    %496 = vmatpush1.bf16.msra.mxu0 %v448
    %497 = vmatprep.subr.bf16.mxu0 %v452
    %498 = vmatpush1.bf16.msra.mxu0 %v451
    %499 = vmatprep.subr.bf16.mxu0 %v455
    %500 = vmatpush1.bf16.msra.mxu0 %v454
    %501 = vmatprep.subr.bf16.mxu0 %v458
    %502 = vmatpush1.bf16.msra.mxu0 %v457
    %503 = vmatprep.subr.bf16.mxu0 %v461
    %504 = vmatpush1.bf16.msra.mxu0 %v460
    %505 = vmatprep.subr.bf16.mxu0 %v464
    %506 = vmatpush1.bf16.msra.mxu0 %v463
    %507 = vmatprep.subr.bf16.mxu0 %v467
    %508 = vmatpush1.bf16.msra.mxu0 %v466
    %509 = vmatprep.subr.bf16.mxu0 0
    %510 = vmatpush1.bf16.msra.mxu0 0
    %511 = vmatprep.subr.bf16.mxu0 0
    %512 = vmatpush1.bf16.msra.mxu0 0
    %513 = vmatprep.subr.bf16.mxu0 0
    %514 = vmatpush1.bf16.msra.mxu0 0
    %515 = vmatprep.subr.bf16.mxu0 0
    %516 = vmatpush1.bf16.msra.mxu0 0
    %517 = vmatprep.subr.bf16.mxu0 0
    %518 = vmatpush1.bf16.msra.mxu0 0
    %519 = vmatprep.subr.bf16.mxu0 0
    %520 = vmatpush1.bf16.msra.mxu0 0
    %521 = vmatprep.subr.bf16.mxu0 0
    %522 = vmatpush1.bf16.msra.mxu0 0
    %523 = vmatprep.subr.bf16.mxu0 0
    %524 = vmatpush1.bf16.msra.mxu0 0
    %525 = vmatprep.mubr.bf16.mxu0 0
    %526 = vmatmul.mubr.bf16.gmra.mrb[0].mxu0 %v364
    %v527 = vpop.f32.mrb[0].mxu0
    %v528 = vadd.f32 0.0, %v527
    %v529 = vpop.f32.mrb[0].mxu0
    %v530 = vadd.f32 0.0, %v529
    %v531 = vpop.f32.mrb[0].mxu0
    %v532 = vpop.f32.mrb[0].mxu0
    %533 = vdwg.mxu0
    %534 = vmatprep.subr.bf16.mxu0 0
    %535 = vmatpush1.bf16.msra.mxu0 %v447
    %536 = vmatprep.subr.bf16.mxu0 0
    %537 = vmatpush1.bf16.msra.mxu0 %v450
    %538 = vmatprep.subr.bf16.mxu0 0
    %539 = vmatpush1.bf16.msra.mxu0 %v453
    %540 = vmatprep.subr.bf16.mxu0 0
    %541 = vmatpush1.bf16.msra.mxu0 %v456
    %542 = vmatprep.subr.bf16.mxu0 0
    %543 = vmatpush1.bf16.msra.mxu0 %v459
    %544 = vmatprep.subr.bf16.mxu0 0
    %545 = vmatpush1.bf16.msra.mxu0 %v462
    %546 = vmatprep.subr.bf16.mxu0 0
    %547 = vmatpush1.bf16.msra.mxu0 %v465
    %548 = vmatprep.subr.bf16.mxu0 0
    %549 = vmatpush1.bf16.msra.mxu0 %v468
    %550 = vmatprep.subr.bf16.mxu0 0
    %551 = vmatpush1.bf16.msra.mxu0 0
    %552 = vmatprep.subr.bf16.mxu0 0
    %553 = vmatpush1.bf16.msra.mxu0 0
    %554 = vmatprep.subr.bf16.mxu0 0
    %555 = vmatpush1.bf16.msra.mxu0 0
    %556 = vmatprep.subr.bf16.mxu0 0
    %557 = vmatpush1.bf16.msra.mxu0 0
    %558 = vmatprep.subr.bf16.mxu0 0
    %559 = vmatpush1.bf16.msra.mxu0 0
    %560 = vmatprep.subr.bf16.mxu0 0
    %561 = vmatpush1.bf16.msra.mxu0 0
    %562 = vmatprep.subr.bf16.mxu0 0
    %563 = vmatpush1.bf16.msra.mxu0 0
    %564 = vmatprep.subr.bf16.mxu0 0
    %565 = vmatpush1.bf16.msra.mxu0 0
    %566 = vmatprep.mubr.bf16.mxu0 0
    %567 = vmatmul.mubr.bf16.gmra.mrb[0].mxu0 %v364
    %v568 = vpop.f32.mrb[0].mxu0
    %v569 = vadd.f32 0.0, %v568
    %v570 = vpop.f32.mrb[0].mxu0
    %v571 = vpop.f32.mrb[0].mxu0
    %v572 = vpop.f32.mrb[0].mxu0
    %573 = vdwg.mxu0
    %v574 = vld [vmem:[#allocation4] sm:$0xff]
    %v575 = vld [vmem:[#allocation4 + $0x8] sm:$0xff]
    %v576 = vld [vmem:[#allocation4 + $0x10] sm:$0xff]
    %v577 = vadd.f32 %v574, %v528
    %v578 = vxor.u32 %v577, 2147483648
    %v579 = vmul.f32 %v578, 1.442695
    %v580 = vpow.pop %v579
    %v581 = vadd.f32 %v580, 1.0
    %v582 = vrcp.pop %v581
    %v583 = vmul.f32 1.0, %v582
    %v584 = vadd.f32 %v575, %v530
    %v585 = vxor.u32 %v584, 2147483648
    %v586 = vmul.f32 %v585, 1.442695
    %v587 = vpow.pop %v586
    %v588 = vadd.f32 %v587, 1.0
    %v589 = vrcp.pop %v588
    %v590 = vmul.f32 1.0, %v589
    %v591 = vadd.f32 %v569, %v361
    %v592 = vmul.f32 %v583, %v591
    %v593 = vadd.f32 %v576, %v592
    %v594 = vtanh.pop %v593
    %v595 = vsub.f32 %v363, %v594
    %v596 = vmul.f32 %v590, %v595
    %v597 = vadd.f32 %v594, %v596
    %v598 = vpack.c.bf16 %v597, %v597
    %599 = vst [vmem:[#allocation3] sm:$0xf] %v598
    %600 = vmatprep.subr.bf16.mxu0 %v446
    %601 = vmatpush1.bf16.msra.mxu0 %v445
    %602 = vmatprep.subr.bf16.mxu0 %v449
    %603 = vmatpush1.bf16.msra.mxu0 %v448
    %604 = vmatprep.subr.bf16.mxu0 %v452
    %605 = vmatpush1.bf16.msra.mxu0 %v451
    %606 = vmatprep.subr.bf16.mxu0 %v455
    %607 = vmatpush1.bf16.msra.mxu0 %v454
    %608 = vmatprep.subr.bf16.mxu0 %v458
    %609 = vmatpush1.bf16.msra.mxu0 %v457
    %610 = vmatprep.subr.bf16.mxu0 %v461
    %611 = vmatpush1.bf16.msra.mxu0 %v460
    %612 = vmatprep.subr.bf16.mxu0 %v464
    %613 = vmatpush1.bf16.msra.mxu0 %v463
    %614 = vmatprep.subr.bf16.mxu0 %v467
    %615 = vmatpush1.bf16.msra.mxu0 %v466
    %616 = vmatprep.subr.bf16.mxu0 0
    %617 = vmatpush1.bf16.msra.mxu0 0
    %618 = vmatprep.subr.bf16.mxu0 0
    %619 = vmatpush1.bf16.msra.mxu0 0
    %620 = vmatprep.subr.bf16.mxu0 0
    %621 = vmatpush1.bf16.msra.mxu0 0
    %622 = vmatprep.subr.bf16.mxu0 0
    %623 = vmatpush1.bf16.msra.mxu0 0
    %624 = vmatprep.subr.bf16.mxu0 0
    %625 = vmatpush1.bf16.msra.mxu0 0
    %626 = vmatprep.subr.bf16.mxu0 0
    %627 = vmatpush1.bf16.msra.mxu0 0
    %628 = vmatprep.subr.bf16.mxu0 0
    %629 = vmatpush1.bf16.msra.mxu0 0
    %630 = vmatprep.subr.bf16.mxu0 0
    %631 = vmatpush1.bf16.msra.mxu0 0
    %632 = vmatprep.mubr.bf16.mxu0 0
    %633 = vmatmul.mubr.bf16.gmra.mrb[0].mxu0 %v598
    %v634 = vpop.f32.mrb[0].mxu0
    %v635 = vadd.f32 0.0, %v634
    %v636 = vpop.f32.mrb[0].mxu0
    %v637 = vadd.f32 0.0, %v636
    %v638 = vpop.f32.mrb[0].mxu0
    %v639 = vpop.f32.mrb[0].mxu0
    %640 = vdwg.mxu0
    %641 = vmatprep.subr.bf16.mxu0 0
    %642 = vmatpush1.bf16.msra.mxu0 %v447
    %643 = vmatprep.subr.bf16.mxu0 0
    %644 = vmatpush1.bf16.msra.mxu0 %v450
    %645 = vmatprep.subr.bf16.mxu0 0
    %646 = vmatpush1.bf16.msra.mxu0 %v453
    %647 = vmatprep.subr.bf16.mxu0 0
    %648 = vmatpush1.bf16.msra.mxu0 %v456
    %649 = vmatprep.subr.bf16.mxu0 0
    %650 = vmatpush1.bf16.msra.mxu0 %v459
    %651 = vmatprep.subr.bf16.mxu0 0
    %652 = vmatpush1.bf16.msra.mxu0 %v462
    %653 = vmatprep.subr.bf16.mxu0 0
    %654 = vmatpush1.bf16.msra.mxu0 %v465
    %655 = vmatprep.subr.bf16.mxu0 0
    %656 = vmatpush1.bf16.msra.mxu0 %v468
    %657 = vmatprep.subr.bf16.mxu0 0
    %658 = vmatpush1.bf16.msra.mxu0 0
    %659 = vmatprep.subr.bf16.mxu0 0
    %660 = vmatpush1.bf16.msra.mxu0 0
    %661 = vmatprep.subr.bf16.mxu0 0
    %662 = vmatpush1.bf16.msra.mxu0 0
    %663 = vmatprep.subr.bf16.mxu0 0
    %664 = vmatpush1.bf16.msra.mxu0 0
    %665 = vmatprep.subr.bf16.mxu0 0
    %666 = vmatpush1.bf16.msra.mxu0 0
    %667 = vmatprep.subr.bf16.mxu0 0
    %668 = vmatpush1.bf16.msra.mxu0 0
    %669 = vmatprep.subr.bf16.mxu0 0
    %670 = vmatpush1.bf16.msra.mxu0 0
    %671 = vmatprep.subr.bf16.mxu0 0
    %672 = vmatpush1.bf16.msra.mxu0 0
    %673 = vmatprep.mubr.bf16.mxu0 0
    %674 = vmatmul.mubr.bf16.gmra.mrb[0].mxu0 %v598
    %v675 = vpop.f32.mrb[0].mxu0
    %v676 = vadd.f32 0.0, %v675
    %v677 = vpop.f32.mrb[0].mxu0
    %v678 = vpop.f32.mrb[0].mxu0
    %v679 = vpop.f32.mrb[0].mxu0
    %680 = vdwg.mxu0
    %s681 = scalar_lea.vmem [#allocation4], 24
    %v682 = vld [vmem:[%s681] sm:$0xff]
    %v683 = vld [vmem:[%s681 + $0x8] sm:$0xff]
    %v684 = vld [vmem:[%s681 + $0x10] sm:$0xff]
    %v685 = vadd.f32 %v682, %v635
    %v686 = vxor.u32 %v685, 2147483648
    %v687 = vmul.f32 %v686, 1.442695
    %v688 = vpow.pop %v687
    %v689 = vadd.f32 %v688, 1.0
    %v690 = vrcp.pop %v689
    %v691 = vmul.f32 1.0, %v690
    %v692 = vadd.f32 %v683, %v637
    %v693 = vxor.u32 %v692, 2147483648
    %v694 = vmul.f32 %v693, 1.442695
    %v695 = vpow.pop %v694
    %v696 = vadd.f32 %v695, 1.0
    %v697 = vrcp.pop %v696
    %v698 = vmul.f32 1.0, %v697
    %v699 = vadd.f32 %v676, %v361
    %v700 = vmul.f32 %v691, %v699
    %v701 = vadd.f32 %v684, %v700
    %v702 = vtanh.pop %v701
    %v703 = vsub.f32 %v597, %v702
    %v704 = vmul.f32 %v698, %v703
    %v705 = vadd.f32 %v702, %v704
    %v706 = vpack.c.bf16 %v705, %v705
    %s707 = scalar_lea.vmem [#allocation3], 4
    %708 = vst [vmem:[%s707] sm:$0xf] %v706
    %709 = vmatprep.subr.bf16.mxu0 %v446
    %710 = vmatpush1.bf16.msra.mxu0 %v445
    %711 = vmatprep.subr.bf16.mxu0 %v449
    %712 = vmatpush1.bf16.msra.mxu0 %v448
    %713 = vmatprep.subr.bf16.mxu0 %v452
    %714 = vmatpush1.bf16.msra.mxu0 %v451
    %715 = vmatprep.subr.bf16.mxu0 %v455
    %716 = vmatpush1.bf16.msra.mxu0 %v454
    %717 = vmatprep.subr.bf16.mxu0 %v458
    %718 = vmatpush1.bf16.msra.mxu0 %v457
    %719 = vmatprep.subr.bf16.mxu0 %v461
    %720 = vmatpush1.bf16.msra.mxu0 %v460
    %721 = vmatprep.subr.bf16.mxu0 %v464
    %722 = vmatpush1.bf16.msra.mxu0 %v463
    %723 = vmatprep.subr.bf16.mxu0 %v467
    %724 = vmatpush1.bf16.msra.mxu0 %v466
    %725 = vmatprep.subr.bf16.mxu0 0
    %726 = vmatpush1.bf16.msra.mxu0 0
    %727 = vmatprep.subr.bf16.mxu0 0
    %728 = vmatpush1.bf16.msra.mxu0 0
    %729 = vmatprep.subr.bf16.mxu0 0
    %730 = vmatpush1.bf16.msra.mxu0 0
    %731 = vmatprep.subr.bf16.mxu0 0
    %732 = vmatpush1.bf16.msra.mxu0 0
    %733 = vmatprep.subr.bf16.mxu0 0
    %734 = vmatpush1.bf16.msra.mxu0 0
    %735 = vmatprep.subr.bf16.mxu0 0
    %736 = vmatpush1.bf16.msra.mxu0 0
    %737 = vmatprep.subr.bf16.mxu0 0
    %738 = vmatpush1.bf16.msra.mxu0 0
    %739 = vmatprep.subr.bf16.mxu0 0
    %740 = vmatpush1.bf16.msra.mxu0 0
    %741 = vmatprep.mubr.bf16.mxu0 0
    %742 = vmatmul.mubr.bf16.gmra.mrb[0].mxu0 %v706
    %v743 = vpop.f32.mrb[0].mxu0
    %v744 = vadd.f32 0.0, %v743
    %v745 = vpop.f32.mrb[0].mxu0
    %v746 = vadd.f32 0.0, %v745
    %v747 = vpop.f32.mrb[0].mxu0
    %v748 = vpop.f32.mrb[0].mxu0
    %749 = vdwg.mxu0
    %750 = vmatprep.subr.bf16.mxu0 0
    %751 = vmatpush1.bf16.msra.mxu0 %v447
    %752 = vmatprep.subr.bf16.mxu0 0
    %753 = vmatpush1.bf16.msra.mxu0 %v450
    %754 = vmatprep.subr.bf16.mxu0 0
    %755 = vmatpush1.bf16.msra.mxu0 %v453
    %756 = vmatprep.subr.bf16.mxu0 0
    %757 = vmatpush1.bf16.msra.mxu0 %v456
    %758 = vmatprep.subr.bf16.mxu0 0
    %759 = vmatpush1.bf16.msra.mxu0 %v459
    %760 = vmatprep.subr.bf16.mxu0 0
    %761 = vmatpush1.bf16.msra.mxu0 %v462
    %762 = vmatprep.subr.bf16.mxu0 0
    %763 = vmatpush1.bf16.msra.mxu0 %v465
    %764 = vmatprep.subr.bf16.mxu0 0
    %765 = vmatpush1.bf16.msra.mxu0 %v468
    %766 = vmatprep.subr.bf16.mxu0 0
    %767 = vmatpush1.bf16.msra.mxu0 0
    %768 = vmatprep.subr.bf16.mxu0 0
    %769 = vmatpush1.bf16.msra.mxu0 0
    %770 = vmatprep.subr.bf16.mxu0 0
    %771 = vmatpush1.bf16.msra.mxu0 0
    %772 = vmatprep.subr.bf16.mxu0 0
    %773 = vmatpush1.bf16.msra.mxu0 0
    %774 = vmatprep.subr.bf16.mxu0 0
    %775 = vmatpush1.bf16.msra.mxu0 0
    %776 = vmatprep.subr.bf16.mxu0 0
    %777 = vmatpush1.bf16.msra.mxu0 0
    %778 = vmatprep.subr.bf16.mxu0 0
    %779 = vmatpush1.bf16.msra.mxu0 0
    %780 = vmatprep.subr.bf16.mxu0 0
    %781 = vmatpush1.bf16.msra.mxu0 0
    %782 = vmatprep.mubr.bf16.mxu0 0
    %783 = vmatmul.mubr.bf16.gmra.mrb[0].mxu0 %v706
    %v784 = vpop.f32.mrb[0].mxu0
    %v785 = vadd.f32 0.0, %v784
    %v786 = vpop.f32.mrb[0].mxu0
    %v787 = vpop.f32.mrb[0].mxu0
    %v788 = vpop.f32.mrb[0].mxu0
    %789 = vdwg.mxu0
    %s790 = scalar_lea.vmem [#allocation4], 48
    %v791 = vld [vmem:[%s790] sm:$0xff]
    %v792 = vld [vmem:[%s790 + $0x8] sm:$0xff]
    %v793 = vld [vmem:[%s790 + $0x10] sm:$0xff]
    %v794 = vadd.f32 %v791, %v744
    %v795 = vxor.u32 %v794, 2147483648
    %v796 = vmul.f32 %v795, 1.442695
    %v797 = vpow.pop %v796
    %v798 = vadd.f32 %v797, 1.0
    %v799 = vrcp.pop %v798
    %v800 = vmul.f32 1.0, %v799
    %v801 = vadd.f32 %v792, %v746
    %v802 = vxor.u32 %v801, 2147483648
    %v803 = vmul.f32 %v802, 1.442695
    %v804 = vpow.pop %v803
    %v805 = vadd.f32 %v804, 1.0
    %v806 = vrcp.pop %v805
    %v807 = vmul.f32 1.0, %v806
    %v808 = vadd.f32 %v785, %v361
    %v809 = vmul.f32 %v800, %v808
    %v810 = vadd.f32 %v793, %v809
    %v811 = vtanh.pop %v810
    %v812 = vsub.f32 %v705, %v811
    %v813 = vmul.f32 %v807, %v812
    %v814 = vadd.f32 %v811, %v813
    %v815 = vpack.c.bf16 %v814, %v814
    %s816 = scalar_lea.vmem [#allocation3], 8
    %817 = vst [vmem:[%s816] sm:$0xf] %v815
    %818 = vmatprep.subr.bf16.mxu0 %v446
    %819 = vmatpush1.bf16.msra.mxu0 %v445
    %820 = vmatprep.subr.bf16.mxu0 %v449
    %821 = vmatpush1.bf16.msra.mxu0 %v448
    %822 = vmatprep.subr.bf16.mxu0 %v452
    %823 = vmatpush1.bf16.msra.mxu0 %v451
    %824 = vmatprep.subr.bf16.mxu0 %v455
    %825 = vmatpush1.bf16.msra.mxu0 %v454
    %826 = vmatprep.subr.bf16.mxu0 %v458
    %827 = vmatpush1.bf16.msra.mxu0 %v457
    %828 = vmatprep.subr.bf16.mxu0 %v461
    %829 = vmatpush1.bf16.msra.mxu0 %v460
    %830 = vmatprep.subr.bf16.mxu0 %v464
    %831 = vmatpush1.bf16.msra.mxu0 %v463
    %832 = vmatprep.subr.bf16.mxu0 %v467
    %833 = vmatpush1.bf16.msra.mxu0 %v466
    %834 = vmatprep.subr.bf16.mxu0 0
    %835 = vmatpush1.bf16.msra.mxu0 0
    %836 = vmatprep.subr.bf16.mxu0 0
    %837 = vmatpush1.bf16.msra.mxu0 0
    %838 = vmatprep.subr.bf16.mxu0 0
    %839 = vmatpush1.bf16.msra.mxu0 0
    %840 = vmatprep.subr.bf16.mxu0 0
    %841 = vmatpush1.bf16.msra.mxu0 0
    %842 = vmatprep.subr.bf16.mxu0 0
    %843 = vmatpush1.bf16.msra.mxu0 0
    %844 = vmatprep.subr.bf16.mxu0 0
    %845 = vmatpush1.bf16.msra.mxu0 0
    %846 = vmatprep.subr.bf16.mxu0 0
    %847 = vmatpush1.bf16.msra.mxu0 0
    %848 = vmatprep.subr.bf16.mxu0 0
    %849 = vmatpush1.bf16.msra.mxu0 0
    %850 = vmatprep.mubr.bf16.mxu0 0
    %851 = vmatmul.mubr.bf16.gmra.mrb[0].mxu0 %v815
    %v852 = vpop.f32.mrb[0].mxu0
    %v853 = vadd.f32 0.0, %v852
    %v854 = vpop.f32.mrb[0].mxu0
    %v855 = vadd.f32 0.0, %v854
    %v856 = vpop.f32.mrb[0].mxu0
    %v857 = vpop.f32.mrb[0].mxu0
    %858 = vdwg.mxu0
    %859 = vmatprep.subr.bf16.mxu0 0
    %860 = vmatpush1.bf16.msra.mxu0 %v447
    %861 = vmatprep.subr.bf16.mxu0 0
    %862 = vmatpush1.bf16.msra.mxu0 %v450
    %863 = vmatprep.subr.bf16.mxu0 0
    %864 = vmatpush1.bf16.msra.mxu0 %v453
    %865 = vmatprep.subr.bf16.mxu0 0
    %866 = vmatpush1.bf16.msra.mxu0 %v456
    %867 = vmatprep.subr.bf16.mxu0 0
    %868 = vmatpush1.bf16.msra.mxu0 %v459
    %869 = vmatprep.subr.bf16.mxu0 0
    %870 = vmatpush1.bf16.msra.mxu0 %v462
    %871 = vmatprep.subr.bf16.mxu0 0
    %872 = vmatpush1.bf16.msra.mxu0 %v465
    %873 = vmatprep.subr.bf16.mxu0 0
    %874 = vmatpush1.bf16.msra.mxu0 %v468
    %875 = vmatprep.subr.bf16.mxu0 0
    %876 = vmatpush1.bf16.msra.mxu0 0
    %877 = vmatprep.subr.bf16.mxu0 0
    %878 = vmatpush1.bf16.msra.mxu0 0
    %879 = vmatprep.subr.bf16.mxu0 0
    %880 = vmatpush1.bf16.msra.mxu0 0
    %881 = vmatprep.subr.bf16.mxu0 0
    %882 = vmatpush1.bf16.msra.mxu0 0
    %883 = vmatprep.subr.bf16.mxu0 0
    %884 = vmatpush1.bf16.msra.mxu0 0
    %885 = vmatprep.subr.bf16.mxu0 0
    %886 = vmatpush1.bf16.msra.mxu0 0
    %887 = vmatprep.subr.bf16.mxu0 0
    %888 = vmatpush1.bf16.msra.mxu0 0
    %889 = vmatprep.subr.bf16.mxu0 0
    %890 = vmatpush1.bf16.msra.mxu0 0
    %891 = vmatprep.mubr.bf16.mxu0 0
    %892 = vmatmul.mubr.bf16.gmra.mrb[0].mxu0 %v815
    %v893 = vpop.f32.mrb[0].mxu0
    %v894 = vadd.f32 0.0, %v893
    %v895 = vpop.f32.mrb[0].mxu0
    %v896 = vpop.f32.mrb[0].mxu0
    %v897 = vpop.f32.mrb[0].mxu0
    %898 = vdwg.mxu0
    %s899 = scalar_lea.vmem [#allocation4], 72
    %v900 = vld [vmem:[%s899] sm:$0xff]
    %v901 = vld [vmem:[%s899 + $0x8] sm:$0xff]
    %v902 = vld [vmem:[%s899 + $0x10] sm:$0xff]
    %v903 = vadd.f32 %v900, %v853
    %v904 = vxor.u32 %v903, 2147483648
    %v905 = vmul.f32 %v904, 1.442695
    %v906 = vpow.pop %v905
    %v907 = vadd.f32 %v906, 1.0
    %v908 = vrcp.pop %v907
    %v909 = vmul.f32 1.0, %v908
    %v910 = vadd.f32 %v901, %v855
    %v911 = vxor.u32 %v910, 2147483648
    %v912 = vmul.f32 %v911, 1.442695
    %v913 = vpow.pop %v912
    %v914 = vadd.f32 %v913, 1.0
    %v915 = vrcp.pop %v914
    %v916 = vmul.f32 1.0, %v915
    %v917 = vadd.f32 %v894, %v361
    %v918 = vmul.f32 %v909, %v917
    %v919 = vadd.f32 %v902, %v918
    %v920 = vtanh.pop %v919
    %v921 = vsub.f32 %v814, %v920
    %v922 = vmul.f32 %v916, %v921
    %v923 = vadd.f32 %v920, %v922
    %v924 = vpack.c.bf16 %v923, %v923
    %s925 = scalar_lea.vmem [#allocation3], 12
    %926 = vst [vmem:[%s925] sm:$0xf] %v924
    %927 = vmatprep.subr.bf16.mxu0 %v446
    %928 = vmatpush1.bf16.msra.mxu0 %v445
    %929 = vmatprep.subr.bf16.mxu0 %v449
    %930 = vmatpush1.bf16.msra.mxu0 %v448
    %931 = vmatprep.subr.bf16.mxu0 %v452
    %932 = vmatpush1.bf16.msra.mxu0 %v451
    %933 = vmatprep.subr.bf16.mxu0 %v455
    %934 = vmatpush1.bf16.msra.mxu0 %v454
    %935 = vmatprep.subr.bf16.mxu0 %v458
    %936 = vmatpush1.bf16.msra.mxu0 %v457
    %937 = vmatprep.subr.bf16.mxu0 %v461
    %938 = vmatpush1.bf16.msra.mxu0 %v460
    %939 = vmatprep.subr.bf16.mxu0 %v464
    %940 = vmatpush1.bf16.msra.mxu0 %v463
    %941 = vmatprep.subr.bf16.mxu0 %v467
    %942 = vmatpush1.bf16.msra.mxu0 %v466
    %943 = vmatprep.subr.bf16.mxu0 0
    %944 = vmatpush1.bf16.msra.mxu0 0
    %945 = vmatprep.subr.bf16.mxu0 0
    %946 = vmatpush1.bf16.msra.mxu0 0
    %947 = vmatprep.subr.bf16.mxu0 0
    %948 = vmatpush1.bf16.msra.mxu0 0
    %949 = vmatprep.subr.bf16.mxu0 0
    %950 = vmatpush1.bf16.msra.mxu0 0
    %951 = vmatprep.subr.bf16.mxu0 0
    %952 = vmatpush1.bf16.msra.mxu0 0
    %953 = vmatprep.subr.bf16.mxu0 0
    %954 = vmatpush1.bf16.msra.mxu0 0
    %955 = vmatprep.subr.bf16.mxu0 0
    %956 = vmatpush1.bf16.msra.mxu0 0
    %957 = vmatprep.subr.bf16.mxu0 0
    %958 = vmatpush1.bf16.msra.mxu0 0
    %959 = vmatprep.mubr.bf16.mxu0 0
    %960 = vmatmul.mubr.bf16.gmra.mrb[0].mxu0 %v924
    %v961 = vpop.f32.mrb[0].mxu0
    %v962 = vadd.f32 0.0, %v961
    %v963 = vpop.f32.mrb[0].mxu0
    %v964 = vadd.f32 0.0, %v963
    %v965 = vpop.f32.mrb[0].mxu0
    %v966 = vpop.f32.mrb[0].mxu0
    %967 = vdwg.mxu0
    %968 = vmatprep.subr.bf16.mxu0 0
    %969 = vmatpush1.bf16.msra.mxu0 %v447
    %970 = vmatprep.subr.bf16.mxu0 0
    %971 = vmatpush1.bf16.msra.mxu0 %v450
    %972 = vmatprep.subr.bf16.mxu0 0
    %973 = vmatpush1.bf16.msra.mxu0 %v453
    %974 = vmatprep.subr.bf16.mxu0 0
    %975 = vmatpush1.bf16.msra.mxu0 %v456
    %976 = vmatprep.subr.bf16.mxu0 0
    %977 = vmatpush1.bf16.msra.mxu0 %v459
    %978 = vmatprep.subr.bf16.mxu0 0
    %979 = vmatpush1.bf16.msra.mxu0 %v462
    %980 = vmatprep.subr.bf16.mxu0 0
    %981 = vmatpush1.bf16.msra.mxu0 %v465
    %982 = vmatprep.subr.bf16.mxu0 0
    %983 = vmatpush1.bf16.msra.mxu0 %v468
    %984 = vmatprep.subr.bf16.mxu0 0
    %985 = vmatpush1.bf16.msra.mxu0 0
    %986 = vmatprep.subr.bf16.mxu0 0
    %987 = vmatpush1.bf16.msra.mxu0 0
    %988 = vmatprep.subr.bf16.mxu0 0
    %989 = vmatpush1.bf16.msra.mxu0 0
    %990 = vmatprep.subr.bf16.mxu0 0
    %991 = vmatpush1.bf16.msra.mxu0 0
    %992 = vmatprep.subr.bf16.mxu0 0
    %993 = vmatpush1.bf16.msra.mxu0 0
    %994 = vmatprep.subr.bf16.mxu0 0
    %995 = vmatpush1.bf16.msra.mxu0 0
    %996 = vmatprep.subr.bf16.mxu0 0
    %997 = vmatpush1.bf16.msra.mxu0 0
    %998 = vmatprep.subr.bf16.mxu0 0
    %999 = vmatpush1.bf16.msra.mxu0 0
    %1000 = vmatprep.mubr.bf16.mxu0 0
    %1001 = vmatmul.mubr.bf16.gmra.mrb[0].mxu0 %v924
    %v1002 = vpop.f32.mrb[0].mxu0
    %v1003 = vadd.f32 0.0, %v1002
    %v1004 = vpop.f32.mrb[0].mxu0
    %v1005 = vpop.f32.mrb[0].mxu0
    %v1006 = vpop.f32.mrb[0].mxu0
    %1007 = vdwg.mxu0
    %s1008 = scalar_lea.vmem [#allocation4], 96
    %v1009 = vld [vmem:[%s1008] sm:$0xff]
    %v1010 = vld [vmem:[%s1008 + $0x8] sm:$0xff]
    %v1011 = vld [vmem:[%s1008 + $0x10] sm:$0xff]
    %v1012 = vadd.f32 %v1009, %v962
    %v1013 = vxor.u32 %v1012, 2147483648
    %v1014 = vmul.f32 %v1013, 1.442695
    %v1015 = vpow.pop %v1014
    %v1016 = vadd.f32 %v1015, 1.0
    %v1017 = vrcp.pop %v1016
    %v1018 = vmul.f32 1.0, %v1017
    %v1019 = vadd.f32 %v1010, %v964
    %v1020 = vxor.u32 %v1019, 2147483648
    %v1021 = vmul.f32 %v1020, 1.442695
    %v1022 = vpow.pop %v1021
    %v1023 = vadd.f32 %v1022, 1.0
    %v1024 = vrcp.pop %v1023
    %v1025 = vmul.f32 1.0, %v1024
    %v1026 = vadd.f32 %v1003, %v361
    %v1027 = vmul.f32 %v1018, %v1026
    %v1028 = vadd.f32 %v1011, %v1027
    %v1029 = vtanh.pop %v1028
    %v1030 = vsub.f32 %v923, %v1029
    %v1031 = vmul.f32 %v1025, %v1030
    %v1032 = vadd.f32 %v1029, %v1031
    %v1033 = vpack.c.bf16 %v1032, %v1032
    %s1034 = scalar_lea.vmem [#allocation3], 16
    %1035 = vst [vmem:[%s1034] sm:$0xf] %v1033
    %1036 = vmatprep.subr.bf16.mxu0 %v446
    %1037 = vmatpush1.bf16.msra.mxu0 %v445
    %1038 = vmatprep.subr.bf16.mxu0 %v449
    %1039 = vmatpush1.bf16.msra.mxu0 %v448
    %1040 = vmatprep.subr.bf16.mxu0 %v452
    %1041 = vmatpush1.bf16.msra.mxu0 %v451
    %1042 = vmatprep.subr.bf16.mxu0 %v455
    %1043 = vmatpush1.bf16.msra.mxu0 %v454
    %1044 = vmatprep.subr.bf16.mxu0 %v458
    %1045 = vmatpush1.bf16.msra.mxu0 %v457
    %1046 = vmatprep.subr.bf16.mxu0 %v461
    %1047 = vmatpush1.bf16.msra.mxu0 %v460
    %1048 = vmatprep.subr.bf16.mxu0 %v464
    %1049 = vmatpush1.bf16.msra.mxu0 %v463
    %1050 = vmatprep.subr.bf16.mxu0 %v467
    %1051 = vmatpush1.bf16.msra.mxu0 %v466
    %1052 = vmatprep.subr.bf16.mxu0 0
    %1053 = vmatpush1.bf16.msra.mxu0 0
    %1054 = vmatprep.subr.bf16.mxu0 0
    %1055 = vmatpush1.bf16.msra.mxu0 0
    %1056 = vmatprep.subr.bf16.mxu0 0
    %1057 = vmatpush1.bf16.msra.mxu0 0
    %1058 = vmatprep.subr.bf16.mxu0 0
    %1059 = vmatpush1.bf16.msra.mxu0 0
    %1060 = vmatprep.subr.bf16.mxu0 0
    %1061 = vmatpush1.bf16.msra.mxu0 0
    %1062 = vmatprep.subr.bf16.mxu0 0
    %1063 = vmatpush1.bf16.msra.mxu0 0
    %1064 = vmatprep.subr.bf16.mxu0 0
    %1065 = vmatpush1.bf16.msra.mxu0 0
    %1066 = vmatprep.subr.bf16.mxu0 0
    %1067 = vmatpush1.bf16.msra.mxu0 0
    %1068 = vmatprep.mubr.bf16.mxu0 0
    %1069 = vmatmul.mubr.bf16.gmra.mrb[0].mxu0 %v1033
    %v1070 = vpop.f32.mrb[0].mxu0
    %v1071 = vadd.f32 0.0, %v1070
    %v1072 = vpop.f32.mrb[0].mxu0
    %v1073 = vadd.f32 0.0, %v1072
    %v1074 = vpop.f32.mrb[0].mxu0
    %v1075 = vpop.f32.mrb[0].mxu0
    %1076 = vdwg.mxu0
    %1077 = vmatprep.subr.bf16.mxu0 0
    %1078 = vmatpush1.bf16.msra.mxu0 %v447
    %1079 = vmatprep.subr.bf16.mxu0 0
    %1080 = vmatpush1.bf16.msra.mxu0 %v450
    %1081 = vmatprep.subr.bf16.mxu0 0
    %1082 = vmatpush1.bf16.msra.mxu0 %v453
    %1083 = vmatprep.subr.bf16.mxu0 0
    %1084 = vmatpush1.bf16.msra.mxu0 %v456
    %1085 = vmatprep.subr.bf16.mxu0 0
    %1086 = vmatpush1.bf16.msra.mxu0 %v459
    %1087 = vmatprep.subr.bf16.mxu0 0
    %1088 = vmatpush1.bf16.msra.mxu0 %v462
    %1089 = vmatprep.subr.bf16.mxu0 0
    %1090 = vmatpush1.bf16.msra.mxu0 %v465
    %1091 = vmatprep.subr.bf16.mxu0 0
    %1092 = vmatpush1.bf16.msra.mxu0 %v468
    %1093 = vmatprep.subr.bf16.mxu0 0
    %1094 = vmatpush1.bf16.msra.mxu0 0
    %1095 = vmatprep.subr.bf16.mxu0 0
    %1096 = vmatpush1.bf16.msra.mxu0 0
    %1097 = vmatprep.subr.bf16.mxu0 0
    %1098 = vmatpush1.bf16.msra.mxu0 0
    %1099 = vmatprep.subr.bf16.mxu0 0
    %1100 = vmatpush1.bf16.msra.mxu0 0
    %1101 = vmatprep.subr.bf16.mxu0 0
    %1102 = vmatpush1.bf16.msra.mxu0 0
    %1103 = vmatprep.subr.bf16.mxu0 0
    %1104 = vmatpush1.bf16.msra.mxu0 0
    %1105 = vmatprep.subr.bf16.mxu0 0
    %1106 = vmatpush1.bf16.msra.mxu0 0
    %1107 = vmatprep.subr.bf16.mxu0 0
    %1108 = vmatpush1.bf16.msra.mxu0 0
    %1109 = vmatprep.mubr.bf16.mxu0 0
    %1110 = vmatmul.mubr.bf16.gmra.mrb[0].mxu0 %v1033
    %v1111 = vpop.f32.mrb[0].mxu0
    %v1112 = vadd.f32 0.0, %v1111
    %v1113 = vpop.f32.mrb[0].mxu0
    %v1114 = vpop.f32.mrb[0].mxu0
    %v1115 = vpop.f32.mrb[0].mxu0
    %1116 = vdwg.mxu0
    %s1117 = scalar_lea.vmem [#allocation4], 120
    %v1118 = vld [vmem:[%s1117] sm:$0xff]
    %v1119 = vld [vmem:[%s1117 + $0x8] sm:$0xff]
    %v1120 = vld [vmem:[%s1117 + $0x10] sm:$0xff]
    %v1121 = vadd.f32 %v1118, %v1071
    %v1122 = vxor.u32 %v1121, 2147483648
    %v1123 = vmul.f32 %v1122, 1.442695
    %v1124 = vpow.pop %v1123
    %v1125 = vadd.f32 %v1124, 1.0
    %v1126 = vrcp.pop %v1125
    %v1127 = vmul.f32 1.0, %v1126
    %v1128 = vadd.f32 %v1119, %v1073
    %v1129 = vxor.u32 %v1128, 2147483648
    %v1130 = vmul.f32 %v1129, 1.442695
    %v1131 = vpow.pop %v1130
    %v1132 = vadd.f32 %v1131, 1.0
    %v1133 = vrcp.pop %v1132
    %v1134 = vmul.f32 1.0, %v1133
    %v1135 = vadd.f32 %v1112, %v361
    %v1136 = vmul.f32 %v1127, %v1135
    %v1137 = vadd.f32 %v1120, %v1136
    %v1138 = vtanh.pop %v1137
    %v1139 = vsub.f32 %v1032, %v1138
    %v1140 = vmul.f32 %v1134, %v1139
    %v1141 = vadd.f32 %v1138, %v1140
    %v1142 = vpack.c.bf16 %v1141, %v1141
    %s1143 = scalar_lea.vmem [#allocation3], 20
    %1144 = vst [vmem:[%s1143] sm:$0xf] %v1142
    %1145 = vmatprep.subr.bf16.mxu0 %v446
    %1146 = vmatpush1.bf16.msra.mxu0 %v445
    %1147 = vmatprep.subr.bf16.mxu0 %v449
    %1148 = vmatpush1.bf16.msra.mxu0 %v448
    %1149 = vmatprep.subr.bf16.mxu0 %v452
    %1150 = vmatpush1.bf16.msra.mxu0 %v451
    %1151 = vmatprep.subr.bf16.mxu0 %v455
    %1152 = vmatpush1.bf16.msra.mxu0 %v454
    %1153 = vmatprep.subr.bf16.mxu0 %v458
    %1154 = vmatpush1.bf16.msra.mxu0 %v457
    %1155 = vmatprep.subr.bf16.mxu0 %v461
    %1156 = vmatpush1.bf16.msra.mxu0 %v460
    %1157 = vmatprep.subr.bf16.mxu0 %v464
    %1158 = vmatpush1.bf16.msra.mxu0 %v463
    %1159 = vmatprep.subr.bf16.mxu0 %v467
    %1160 = vmatpush1.bf16.msra.mxu0 %v466
    %1161 = vmatprep.subr.bf16.mxu0 0
    %1162 = vmatpush1.bf16.msra.mxu0 0
    %1163 = vmatprep.subr.bf16.mxu0 0
    %1164 = vmatpush1.bf16.msra.mxu0 0
    %1165 = vmatprep.subr.bf16.mxu0 0
    %1166 = vmatpush1.bf16.msra.mxu0 0
    %1167 = vmatprep.subr.bf16.mxu0 0
    %1168 = vmatpush1.bf16.msra.mxu0 0
    %1169 = vmatprep.subr.bf16.mxu0 0
    %1170 = vmatpush1.bf16.msra.mxu0 0
    %1171 = vmatprep.subr.bf16.mxu0 0
    %1172 = vmatpush1.bf16.msra.mxu0 0
    %1173 = vmatprep.subr.bf16.mxu0 0
    %1174 = vmatpush1.bf16.msra.mxu0 0
    %1175 = vmatprep.subr.bf16.mxu0 0
    %1176 = vmatpush1.bf16.msra.mxu0 0
    %1177 = vmatprep.mubr.bf16.mxu0 0
    %1178 = vmatmul.mubr.bf16.gmra.mrb[0].mxu0 %v1142
    %v1179 = vpop.f32.mrb[0].mxu0
    %v1180 = vadd.f32 0.0, %v1179
    %v1181 = vpop.f32.mrb[0].mxu0
    %v1182 = vadd.f32 0.0, %v1181
    %v1183 = vpop.f32.mrb[0].mxu0
    %v1184 = vpop.f32.mrb[0].mxu0
    %1185 = vdwg.mxu0
    %1186 = vmatprep.subr.bf16.mxu0 0
    %1187 = vmatpush1.bf16.msra.mxu0 %v447
    %1188 = vmatprep.subr.bf16.mxu0 0
    %1189 = vmatpush1.bf16.msra.mxu0 %v450
    %1190 = vmatprep.subr.bf16.mxu0 0
    %1191 = vmatpush1.bf16.msra.mxu0 %v453
    %1192 = vmatprep.subr.bf16.mxu0 0
    %1193 = vmatpush1.bf16.msra.mxu0 %v456
    %1194 = vmatprep.subr.bf16.mxu0 0
    %1195 = vmatpush1.bf16.msra.mxu0 %v459
    %1196 = vmatprep.subr.bf16.mxu0 0
    %1197 = vmatpush1.bf16.msra.mxu0 %v462
    %1198 = vmatprep.subr.bf16.mxu0 0
    %1199 = vmatpush1.bf16.msra.mxu0 %v465
    %1200 = vmatprep.subr.bf16.mxu0 0
    %1201 = vmatpush1.bf16.msra.mxu0 %v468
    %1202 = vmatprep.subr.bf16.mxu0 0
    %1203 = vmatpush1.bf16.msra.mxu0 0
    %1204 = vmatprep.subr.bf16.mxu0 0
    %1205 = vmatpush1.bf16.msra.mxu0 0
    %1206 = vmatprep.subr.bf16.mxu0 0
    %1207 = vmatpush1.bf16.msra.mxu0 0
    %1208 = vmatprep.subr.bf16.mxu0 0
    %1209 = vmatpush1.bf16.msra.mxu0 0
    %1210 = vmatprep.subr.bf16.mxu0 0
    %1211 = vmatpush1.bf16.msra.mxu0 0
    %1212 = vmatprep.subr.bf16.mxu0 0
    %1213 = vmatpush1.bf16.msra.mxu0 0
    %1214 = vmatprep.subr.bf16.mxu0 0
    %1215 = vmatpush1.bf16.msra.mxu0 0
    %1216 = vmatprep.subr.bf16.mxu0 0
    %1217 = vmatpush1.bf16.msra.mxu0 0
    %1218 = vmatprep.mubr.bf16.mxu0 0
    %1219 = vmatmul.mubr.bf16.gmra.mrb[0].mxu0 %v1142
    %v1220 = vpop.f32.mrb[0].mxu0
    %v1221 = vadd.f32 0.0, %v1220
    %v1222 = vpop.f32.mrb[0].mxu0
    %v1223 = vpop.f32.mrb[0].mxu0
    %v1224 = vpop.f32.mrb[0].mxu0
    %1225 = vdwg.mxu0
    %s1226 = scalar_lea.vmem [#allocation4], 144
    %v1227 = vld [vmem:[%s1226] sm:$0xff]
    %v1228 = vld [vmem:[%s1226 + $0x8] sm:$0xff]
    %v1229 = vld [vmem:[%s1226 + $0x10] sm:$0xff]
    %v1230 = vadd.f32 %v1227, %v1180
    %v1231 = vxor.u32 %v1230, 2147483648
    %v1232 = vmul.f32 %v1231, 1.442695
    %v1233 = vpow.pop %v1232
    %v1234 = vadd.f32 %v1233, 1.0
    %v1235 = vrcp.pop %v1234
    %v1236 = vmul.f32 1.0, %v1235
    %v1237 = vadd.f32 %v1228, %v1182
    %v1238 = vxor.u32 %v1237, 2147483648
    %v1239 = vmul.f32 %v1238, 1.442695
    %v1240 = vpow.pop %v1239
    %v1241 = vadd.f32 %v1240, 1.0
    %v1242 = vrcp.pop %v1241
    %v1243 = vmul.f32 1.0, %v1242
    %v1244 = vadd.f32 %v1221, %v361
    %v1245 = vmul.f32 %v1236, %v1244
    %v1246 = vadd.f32 %v1229, %v1245
    %v1247 = vtanh.pop %v1246
    %v1248 = vsub.f32 %v1141, %v1247
    %v1249 = vmul.f32 %v1243, %v1248
    %v1250 = vadd.f32 %v1247, %v1249
    %v1251 = vpack.c.bf16 %v1250, %v1250
    %s1252 = scalar_lea.vmem [#allocation3], 24
    %1253 = vst [vmem:[%s1252] sm:$0xf] %v1251
    %1254 = vmatprep.subr.bf16.mxu0 %v446
    %1255 = vmatpush1.bf16.msra.mxu0 %v445
    %1256 = vmatprep.subr.bf16.mxu0 %v449
    %1257 = vmatpush1.bf16.msra.mxu0 %v448
    %1258 = vmatprep.subr.bf16.mxu0 %v452
    %1259 = vmatpush1.bf16.msra.mxu0 %v451
    %1260 = vmatprep.subr.bf16.mxu0 %v455
    %1261 = vmatpush1.bf16.msra.mxu0 %v454
    %1262 = vmatprep.subr.bf16.mxu0 %v458
    %1263 = vmatpush1.bf16.msra.mxu0 %v457
    %1264 = vmatprep.subr.bf16.mxu0 %v461
    %1265 = vmatpush1.bf16.msra.mxu0 %v460
    %1266 = vmatprep.subr.bf16.mxu0 %v464
    %1267 = vmatpush1.bf16.msra.mxu0 %v463
    %1268 = vmatprep.subr.bf16.mxu0 %v467
    %1269 = vmatpush1.bf16.msra.mxu0 %v466
    %1270 = vmatprep.subr.bf16.mxu0 0
    %1271 = vmatpush1.bf16.msra.mxu0 0
    %1272 = vmatprep.subr.bf16.mxu0 0
    %1273 = vmatpush1.bf16.msra.mxu0 0
    %1274 = vmatprep.subr.bf16.mxu0 0
    %1275 = vmatpush1.bf16.msra.mxu0 0
    %1276 = vmatprep.subr.bf16.mxu0 0
    %1277 = vmatpush1.bf16.msra.mxu0 0
    %1278 = vmatprep.subr.bf16.mxu0 0
    %1279 = vmatpush1.bf16.msra.mxu0 0
    %1280 = vmatprep.subr.bf16.mxu0 0
    %1281 = vmatpush1.bf16.msra.mxu0 0
    %1282 = vmatprep.subr.bf16.mxu0 0
    %1283 = vmatpush1.bf16.msra.mxu0 0
    %1284 = vmatprep.subr.bf16.mxu0 0
    %1285 = vmatpush1.bf16.msra.mxu0 0
    %1286 = vmatprep.mubr.bf16.mxu0 0
    %1287 = vmatmul.mubr.bf16.gmra.mrb[0].mxu0 %v1251
    %v1288 = vpop.f32.mrb[0].mxu0
    %v1289 = vadd.f32 0.0, %v1288
    %v1290 = vpop.f32.mrb[0].mxu0
    %v1291 = vadd.f32 0.0, %v1290
    %v1292 = vpop.f32.mrb[0].mxu0
    %v1293 = vpop.f32.mrb[0].mxu0
    %1294 = vdwg.mxu0
    %1295 = vmatprep.subr.bf16.mxu0 0
    %1296 = vmatpush1.bf16.msra.mxu0 %v447
    %1297 = vmatprep.subr.bf16.mxu0 0
    %1298 = vmatpush1.bf16.msra.mxu0 %v450
    %1299 = vmatprep.subr.bf16.mxu0 0
    %1300 = vmatpush1.bf16.msra.mxu0 %v453
    %1301 = vmatprep.subr.bf16.mxu0 0
    %1302 = vmatpush1.bf16.msra.mxu0 %v456
    %1303 = vmatprep.subr.bf16.mxu0 0
    %1304 = vmatpush1.bf16.msra.mxu0 %v459
    %1305 = vmatprep.subr.bf16.mxu0 0
    %1306 = vmatpush1.bf16.msra.mxu0 %v462
    %1307 = vmatprep.subr.bf16.mxu0 0
    %1308 = vmatpush1.bf16.msra.mxu0 %v465
    %1309 = vmatprep.subr.bf16.mxu0 0
    %1310 = vmatpush1.bf16.msra.mxu0 %v468
    %1311 = vmatprep.subr.bf16.mxu0 0
    %1312 = vmatpush1.bf16.msra.mxu0 0
    %1313 = vmatprep.subr.bf16.mxu0 0
    %1314 = vmatpush1.bf16.msra.mxu0 0
    %1315 = vmatprep.subr.bf16.mxu0 0
    %1316 = vmatpush1.bf16.msra.mxu0 0
    %1317 = vmatprep.subr.bf16.mxu0 0
    %1318 = vmatpush1.bf16.msra.mxu0 0
    %1319 = vmatprep.subr.bf16.mxu0 0
    %1320 = vmatpush1.bf16.msra.mxu0 0
    %1321 = vmatprep.subr.bf16.mxu0 0
    %1322 = vmatpush1.bf16.msra.mxu0 0
    %1323 = vmatprep.subr.bf16.mxu0 0
    %1324 = vmatpush1.bf16.msra.mxu0 0
    %1325 = vmatprep.subr.bf16.mxu0 0
    %1326 = vmatpush1.bf16.msra.mxu0 0
    %1327 = vmatprep.mubr.bf16.mxu0 0
    %1328 = vmatmul.mubr.bf16.gmra.mrb[0].mxu0 %v1251
    %v1329 = vpop.f32.mrb[0].mxu0
    %v1330 = vadd.f32 0.0, %v1329
    %v1331 = vpop.f32.mrb[0].mxu0
    %v1332 = vpop.f32.mrb[0].mxu0
    %v1333 = vpop.f32.mrb[0].mxu0
    %1334 = vdwg.mxu0
    %s1335 = scalar_lea.vmem [#allocation4], 168
    %v1336 = vld [vmem:[%s1335] sm:$0xff]
    %v1337 = vld [vmem:[%s1335 + $0x8] sm:$0xff]
    %v1338 = vld [vmem:[%s1335 + $0x10] sm:$0xff]
    %v1339 = vadd.f32 %v1336, %v1289
    %v1340 = vxor.u32 %v1339, 2147483648
    %v1341 = vmul.f32 %v1340, 1.442695
    %v1342 = vpow.pop %v1341
    %v1343 = vadd.f32 %v1342, 1.0
    %v1344 = vrcp.pop %v1343
    %v1345 = vmul.f32 1.0, %v1344
    %v1346 = vadd.f32 %v1337, %v1291
    %v1347 = vxor.u32 %v1346, 2147483648
    %v1348 = vmul.f32 %v1347, 1.442695
    %v1349 = vpow.pop %v1348
    %v1350 = vadd.f32 %v1349, 1.0
    %v1351 = vrcp.pop %v1350
    %v1352 = vmul.f32 1.0, %v1351
    %v1353 = vadd.f32 %v1330, %v361
    %v1354 = vmul.f32 %v1345, %v1353
    %v1355 = vadd.f32 %v1338, %v1354
    %v1356 = vtanh.pop %v1355
    %v1357 = vsub.f32 %v1250, %v1356
    %v1358 = vmul.f32 %v1352, %v1357
    %v1359 = vadd.f32 %v1356, %v1358
    %v1360 = vpack.c.bf16 %v1359, %v1359
    %s1361 = scalar_lea.vmem [#allocation3], 28
    %1362 = vst [vmem:[%s1361] sm:$0xf] %v1360
    %1363 = vst [vmem:[#allocation2] sm:$0xff] %v1359
    %v1364 = vld [vmem:[#allocation8] sm:$0xff]
    %v1365 = vld [vmem:[#allocation8 + $0x8] sm:$0xf]
    %v1366 = vld [vmem:[#allocation8 + $0xc] sm:$0xff]
    %v1367 = vld [vmem:[#allocation8 + $0x14] sm:$0xf]
    %v1368 = vld [vmem:[#allocation8 + $0x18] sm:$0xff]
    %v1369 = vld [vmem:[#allocation8 + $0x20] sm:$0xf]
    %v1370 = vld [vmem:[#allocation8 + $0x24] sm:$0xff]
    %v1371 = vld [vmem:[#allocation8 + $0x2c] sm:$0xf]
    %v1372 = vld [vmem:[#allocation8 + $0x30] sm:$0xff]
    %v1373 = vld [vmem:[#allocation8 + $0x38] sm:$0xf]
    %v1374 = vld [vmem:[#allocation8 + $0x3c] sm:$0xff]
    %v1375 = vld [vmem:[#allocation8 + $0x44] sm:$0xf]
    %v1376 = vld [vmem:[#allocation8 + $0x48] sm:$0xff]
    %v1377 = vld [vmem:[#allocation8 + $0x50] sm:$0xf]
    %v1378 = vld [vmem:[#allocation8 + $0x54] sm:$0xff]
    %v1379 = vld [vmem:[#allocation8 + $0x5c] sm:$0xf]
    %v1380 = vld [vmem:[#allocation8 + $0x60] sm:$0xff]
    %v1381 = vld [vmem:[#allocation8 + $0x68] sm:$0xf]
    %v1382 = vld [vmem:[#allocation8 + $0x6c] sm:$0xff]
    %v1383 = vld [vmem:[#allocation8 + $0x74] sm:$0xf]
    %v1384 = vld [vmem:[#allocation8 + $0x78] sm:$0xff]
    %v1385 = vld [vmem:[#allocation8 + $0x80] sm:$0xf]
    %v1386 = vld [vmem:[#allocation8 + $0x84] sm:$0xff]
    %v1387 = vld [vmem:[#allocation8 + $0x8c] sm:$0xf]
    %v1388 = vld [vmem:[#allocation8 + $0x90] sm:$0xff]
    %v1389 = vld [vmem:[#allocation8 + $0x98] sm:$0xf]
    %v1390 = vld [vmem:[#allocation8 + $0x9c] sm:$0xff]
    %v1391 = vld [vmem:[#allocation8 + $0xa4] sm:$0xf]
    %v1392 = vld [vmem:[#allocation8 + $0xa8] sm:$0xff]
    %v1393 = vld [vmem:[#allocation8 + $0xb0] sm:$0xf]
    %v1394 = vld [vmem:[#allocation8 + $0xb4] sm:$0xff]
    %v1395 = vld [vmem:[#allocation8 + $0xbc] sm:$0xf]
    %v1396 = vld [vmem:[#allocation10] sm:$0xff]
    %v1397 = vld [vmem:[#allocation10 + $0x8] sm:$0xf]
    %v1398 = vld [vmem:[#allocation10 + $0xc] sm:$0xff]
    %v1399 = vld [vmem:[#allocation10 + $0x14] sm:$0xf]
    %v1400 = vld [vmem:[#allocation10 + $0x18] sm:$0xff]
    %v1401 = vld [vmem:[#allocation10 + $0x20] sm:$0xf]
    %v1402 = vld [vmem:[#allocation10 + $0x24] sm:$0xff]
    %v1403 = vld [vmem:[#allocation10 + $0x2c] sm:$0xf]
    %v1404 = vld [vmem:[#allocation10 + $0x30] sm:$0xff]
    %v1405 = vld [vmem:[#allocation10 + $0x38] sm:$0xf]
    %v1406 = vld [vmem:[#allocation10 + $0x3c] sm:$0xff]
    %v1407 = vld [vmem:[#allocation10 + $0x44] sm:$0xf]
    %v1408 = vld [vmem:[#allocation10 + $0x48] sm:$0xff]
    %v1409 = vld [vmem:[#allocation10 + $0x50] sm:$0xf]
    %v1410 = vld [vmem:[#allocation10 + $0x54] sm:$0xff]
    %v1411 = vld [vmem:[#allocation10 + $0x5c] sm:$0xf]
    %v1412 = vld [vmem:[#allocation10 + $0x60] sm:$0xff]
    %v1413 = vld [vmem:[#allocation10 + $0x68] sm:$0xf]
    %v1414 = vld [vmem:[#allocation10 + $0x6c] sm:$0xff]
    %v1415 = vld [vmem:[#allocation10 + $0x74] sm:$0xf]
    %v1416 = vld [vmem:[#allocation10 + $0x78] sm:$0xff]
    %v1417 = vld [vmem:[#allocation10 + $0x80] sm:$0xf]
    %v1418 = vld [vmem:[#allocation10 + $0x84] sm:$0xff]
    %v1419 = vld [vmem:[#allocation10 + $0x8c] sm:$0xf]
    %v1420 = vld [vmem:[#allocation10 + $0x90] sm:$0xff]
    %v1421 = vld [vmem:[#allocation10 + $0x98] sm:$0xf]
    %v1422 = vld [vmem:[#allocation10 + $0x9c] sm:$0xff]
    %v1423 = vld [vmem:[#allocation10 + $0xa4] sm:$0xf]
    %v1424 = vld [vmem:[#allocation10 + $0xa8] sm:$0xff]
    %v1425 = vld [vmem:[#allocation10 + $0xb0] sm:$0xf]
    %v1426 = vld [vmem:[#allocation10 + $0xb4] sm:$0xff]
    %v1427 = vld [vmem:[#allocation10 + $0xbc] sm:$0xf]
    %v1428 = vld [vmem:[%s8] sm:$0x7]
    %v1429 = vld [vmem:[%s9] sm:$0x1]
    %v1430 = vld [vmem:[#allocation3] sm:$0xf]
    %v1431 = vld [vmem:[#allocation3 + $0x4] sm:$0xf]
    %v1432 = vld [vmem:[#allocation3 + $0x8] sm:$0xf]
    %v1433 = vld [vmem:[#allocation3 + $0xc] sm:$0xf]
    %v1434 = vld [vmem:[#allocation3 + $0x10] sm:$0xf]
    %v1435 = vld [vmem:[#allocation3 + $0x14] sm:$0xf]
    %v1436 = vld [vmem:[#allocation3 + $0x18] sm:$0xf]
    %v1437 = vld [vmem:[#allocation3 + $0x1c] sm:$0xf]
    %v1439 = vlaneseq
    %v1440 = vshrl.u32 %v1439, 7
    %v1441 = vsub.s32 0, %v1440
    %v1442 = vrot.slane %v1428, %v1441
    %v1443 = vlaneseq
    %v1444 = vshrl.u32 %v1443, 7
    %v1445 = vsub.s32 1, %v1444
    %v1446 = vrot.slane %v1428, %v1445
    %v1447 = vlaneseq
    %v1448 = vshrl.u32 %v1447, 7
    %v1449 = vsub.s32 2, %v1448
    %v1450 = vrot.slane %v1428, %v1449
    %v1462 = vunpack.c.l.b16 %v1430
    %v1463 = vunpack.c.l.b16 %v1431
    %v1464 = vunpack.c.l.b16 %v1432
    %v1465 = vunpack.c.l.b16 %v1433
    %v1466 = vunpack.c.l.b16 %v1434
    %v1467 = vunpack.c.l.b16 %v1435
    %v1468 = vunpack.c.l.b16 %v1436
    %v1469 = vunpack.c.l.b16 %v1437
    %v1470 = vpack.c.b16 %v1463, %v1462
    %v1471 = vpack.c.b16 %v1465, %v1464
    %v1472 = vpack.c.b16 %v1467, %v1466
    %v1473 = vpack.c.b16 %v1469, %v1468
    %v1510 = vunpack.c.l.b16 %v1364
    %v1511 = vunpack.c.h.b16 %v1364
    %v1512 = vunpack.c.l.b16 %v1365
    %v1513 = vunpack.c.l.b16 %v1366
    %v1514 = vunpack.c.h.b16 %v1366
    %v1515 = vunpack.c.l.b16 %v1367
    %v1516 = vunpack.c.l.b16 %v1368
    %v1517 = vunpack.c.h.b16 %v1368
    %v1518 = vunpack.c.l.b16 %v1369
    %v1519 = vunpack.c.l.b16 %v1370
    %v1520 = vunpack.c.h.b16 %v1370
    %v1521 = vunpack.c.l.b16 %v1371
    %v1522 = vunpack.c.l.b16 %v1372
    %v1523 = vunpack.c.h.b16 %v1372
    %v1524 = vunpack.c.l.b16 %v1373
    %v1525 = vunpack.c.l.b16 %v1374
    %v1526 = vunpack.c.h.b16 %v1374
    %v1527 = vunpack.c.l.b16 %v1375
    %v1528 = vunpack.c.l.b16 %v1376
    %v1529 = vunpack.c.h.b16 %v1376
    %v1530 = vunpack.c.l.b16 %v1377
    %v1531 = vunpack.c.l.b16 %v1378
    %v1532 = vunpack.c.h.b16 %v1378
    %v1533 = vunpack.c.l.b16 %v1379
    %v1534 = vunpack.c.l.b16 %v1380
    %v1535 = vunpack.c.h.b16 %v1380
    %v1536 = vunpack.c.l.b16 %v1381
    %v1537 = vunpack.c.l.b16 %v1382
    %v1538 = vunpack.c.h.b16 %v1382
    %v1539 = vunpack.c.l.b16 %v1383
    %v1540 = vunpack.c.l.b16 %v1384
    %v1541 = vunpack.c.h.b16 %v1384
    %v1542 = vunpack.c.l.b16 %v1385
    %v1543 = vunpack.c.l.b16 %v1386
    %v1544 = vunpack.c.h.b16 %v1386
    %v1545 = vunpack.c.l.b16 %v1387
    %v1546 = vunpack.c.l.b16 %v1388
    %v1547 = vunpack.c.h.b16 %v1388
    %v1548 = vunpack.c.l.b16 %v1389
    %v1549 = vunpack.c.l.b16 %v1390
    %v1550 = vunpack.c.h.b16 %v1390
    %v1551 = vunpack.c.l.b16 %v1391
    %v1552 = vunpack.c.l.b16 %v1392
    %v1553 = vunpack.c.h.b16 %v1392
    %v1554 = vunpack.c.l.b16 %v1393
    %v1555 = vunpack.c.l.b16 %v1394
    %v1556 = vunpack.c.h.b16 %v1394
    %v1557 = vunpack.c.l.b16 %v1395
    %v1558 = vpack.c.b16 %v1513, %v1510
    %v1559 = vpack.c.b16 %v1514, %v1511
    %v1560 = vpack.c.b16 %v1515, %v1512
    %v1561 = vpack.c.b16 %v1519, %v1516
    %v1562 = vpack.c.b16 %v1520, %v1517
    %v1563 = vpack.c.b16 %v1521, %v1518
    %v1564 = vpack.c.b16 %v1525, %v1522
    %v1565 = vpack.c.b16 %v1526, %v1523
    %v1566 = vpack.c.b16 %v1527, %v1524
    %v1567 = vpack.c.b16 %v1531, %v1528
    %v1568 = vpack.c.b16 %v1532, %v1529
    %v1569 = vpack.c.b16 %v1533, %v1530
    %v1570 = vpack.c.b16 %v1537, %v1534
    %v1571 = vpack.c.b16 %v1538, %v1535
    %v1572 = vpack.c.b16 %v1539, %v1536
    %v1573 = vpack.c.b16 %v1543, %v1540
    %v1574 = vpack.c.b16 %v1544, %v1541
    %v1575 = vpack.c.b16 %v1545, %v1542
    %v1576 = vpack.c.b16 %v1549, %v1546
    %v1577 = vpack.c.b16 %v1550, %v1547
    %v1578 = vpack.c.b16 %v1551, %v1548
    %v1579 = vpack.c.b16 %v1555, %v1552
    %v1580 = vpack.c.b16 %v1556, %v1553
    %v1581 = vpack.c.b16 %v1557, %v1554
    %1606 = vmatprep.subr.bf16.mxu0 %v1559
    %1607 = vmatpush1.bf16.msra.mxu0 %v1558
    %1608 = vmatprep.subr.bf16.mxu0 %v1562
    %1609 = vmatpush1.bf16.msra.mxu0 %v1561
    %1610 = vmatprep.subr.bf16.mxu0 %v1565
    %1611 = vmatpush1.bf16.msra.mxu0 %v1564
    %1612 = vmatprep.subr.bf16.mxu0 %v1568
    %1613 = vmatpush1.bf16.msra.mxu0 %v1567
    %1614 = vmatprep.subr.bf16.mxu0 %v1571
    %1615 = vmatpush1.bf16.msra.mxu0 %v1570
    %1616 = vmatprep.subr.bf16.mxu0 %v1574
    %1617 = vmatpush1.bf16.msra.mxu0 %v1573
    %1618 = vmatprep.subr.bf16.mxu0 %v1577
    %1619 = vmatpush1.bf16.msra.mxu0 %v1576
    %1620 = vmatprep.subr.bf16.mxu0 %v1580
    %1621 = vmatpush1.bf16.msra.mxu0 %v1579
    %1622 = vmatprep.subr.bf16.mxu0 0
    %1623 = vmatpush1.bf16.msra.mxu0 0
    %1624 = vmatprep.subr.bf16.mxu0 0
    %1625 = vmatpush1.bf16.msra.mxu0 0
    %1626 = vmatprep.subr.bf16.mxu0 0
    %1627 = vmatpush1.bf16.msra.mxu0 0
    %1628 = vmatprep.subr.bf16.mxu0 0
    %1629 = vmatpush1.bf16.msra.mxu0 0
    %1630 = vmatprep.subr.bf16.mxu0 0
    %1631 = vmatpush1.bf16.msra.mxu0 0
    %1632 = vmatprep.subr.bf16.mxu0 0
    %1633 = vmatpush1.bf16.msra.mxu0 0
    %1634 = vmatprep.subr.bf16.mxu0 0
    %1635 = vmatpush1.bf16.msra.mxu0 0
    %1636 = vmatprep.subr.bf16.mxu0 0
    %1637 = vmatpush1.bf16.msra.mxu0 0
    %1638 = vmatprep.mubr.bf16.mxu0 0
    %1639 = vmatmul.mubr.bf16.gmra.mrb[0].mxu0 %v1470
    %v1640 = vpop.f32.mrb[0].mxu0
    %v1641 = vadd.f32 %v1442, %v1640
    %v1642 = vpop.f32.mrb[0].mxu0
    %v1643 = vadd.f32 %v1446, %v1642
    %v1644 = vpop.f32.mrb[0].mxu0
    %v1645 = vadd.f32 %v1442, %v1644
    %v1646 = vpop.f32.mrb[0].mxu0
    %v1647 = vadd.f32 %v1446, %v1646
    %1648 = vmatprep.mubr.bf16.mxu0 0
    %1649 = vmatmul.mubr.bf16.gmra.mrb[0].mxu0 %v1471
    %v1650 = vpop.f32.mrb[0].mxu0
    %v1651 = vadd.f32 %v1442, %v1650
    %v1652 = vpop.f32.mrb[0].mxu0
    %v1653 = vadd.f32 %v1446, %v1652
    %v1654 = vpop.f32.mrb[0].mxu0
    %v1655 = vadd.f32 %v1442, %v1654
    %v1656 = vpop.f32.mrb[0].mxu0
    %v1657 = vadd.f32 %v1446, %v1656
    %1658 = vmatprep.mubr.bf16.mxu0 0
    %1659 = vmatmul.mubr.bf16.gmra.mrb[0].mxu0 %v1472
    %v1660 = vpop.f32.mrb[0].mxu0
    %v1661 = vadd.f32 %v1442, %v1660
    %v1662 = vpop.f32.mrb[0].mxu0
    %v1663 = vadd.f32 %v1446, %v1662
    %v1664 = vpop.f32.mrb[0].mxu0
    %v1665 = vadd.f32 %v1442, %v1664
    %v1666 = vpop.f32.mrb[0].mxu0
    %v1667 = vadd.f32 %v1446, %v1666
    %1668 = vmatprep.mubr.bf16.mxu0 0
    %1669 = vmatmul.mubr.bf16.gmra.mrb[0].mxu0 %v1473
    %v1670 = vpop.f32.mrb[0].mxu0
    %v1671 = vadd.f32 %v1442, %v1670
    %v1672 = vpop.f32.mrb[0].mxu0
    %v1673 = vadd.f32 %v1446, %v1672
    %v1674 = vpop.f32.mrb[0].mxu0
    %v1675 = vadd.f32 %v1442, %v1674
    %v1676 = vpop.f32.mrb[0].mxu0
    %v1677 = vadd.f32 %v1446, %v1676
    %1678 = vdwg.mxu0
    %1679 = vmatprep.subr.bf16.mxu0 0
    %1680 = vmatpush1.bf16.msra.mxu0 %v1560
    %1681 = vmatprep.subr.bf16.mxu0 0
    %1682 = vmatpush1.bf16.msra.mxu0 %v1563
    %1683 = vmatprep.subr.bf16.mxu0 0
    %1684 = vmatpush1.bf16.msra.mxu0 %v1566
    %1685 = vmatprep.subr.bf16.mxu0 0
    %1686 = vmatpush1.bf16.msra.mxu0 %v1569
    %1687 = vmatprep.subr.bf16.mxu0 0
    %1688 = vmatpush1.bf16.msra.mxu0 %v1572
    %1689 = vmatprep.subr.bf16.mxu0 0
    %1690 = vmatpush1.bf16.msra.mxu0 %v1575
    %1691 = vmatprep.subr.bf16.mxu0 0
    %1692 = vmatpush1.bf16.msra.mxu0 %v1578
    %1693 = vmatprep.subr.bf16.mxu0 0
    %1694 = vmatpush1.bf16.msra.mxu0 %v1581
    %1695 = vmatprep.subr.bf16.mxu0 0
    %1696 = vmatpush1.bf16.msra.mxu0 0
    %1697 = vmatprep.subr.bf16.mxu0 0
    %1698 = vmatpush1.bf16.msra.mxu0 0
    %1699 = vmatprep.subr.bf16.mxu0 0
    %1700 = vmatpush1.bf16.msra.mxu0 0
    %1701 = vmatprep.subr.bf16.mxu0 0
    %1702 = vmatpush1.bf16.msra.mxu0 0
    %1703 = vmatprep.subr.bf16.mxu0 0
    %1704 = vmatpush1.bf16.msra.mxu0 0
    %1705 = vmatprep.subr.bf16.mxu0 0
    %1706 = vmatpush1.bf16.msra.mxu0 0
    %1707 = vmatprep.subr.bf16.mxu0 0
    %1708 = vmatpush1.bf16.msra.mxu0 0
    %1709 = vmatprep.subr.bf16.mxu0 0
    %1710 = vmatpush1.bf16.msra.mxu0 0
    %1711 = vmatprep.mubr.bf16.mxu0 0
    %1712 = vmatmul.mubr.bf16.gmra.mrb[0].mxu0 %v1470
    %v1713 = vpop.f32.mrb[0].mxu0
    %v1714 = vadd.f32 %v1450, %v1713
    %v1715 = vpop.f32.mrb[0].mxu0
    %v1716 = vpop.f32.mrb[0].mxu0
    %v1717 = vadd.f32 %v1450, %v1716
    %v1718 = vpop.f32.mrb[0].mxu0
    %1719 = vmatprep.mubr.bf16.mxu0 0
    %1720 = vmatmul.mubr.bf16.gmra.mrb[0].mxu0 %v1471
    %v1721 = vpop.f32.mrb[0].mxu0
    %v1722 = vadd.f32 %v1450, %v1721
    %v1723 = vpop.f32.mrb[0].mxu0
    %v1724 = vpop.f32.mrb[0].mxu0
    %v1725 = vadd.f32 %v1450, %v1724
    %v1726 = vpop.f32.mrb[0].mxu0
    %1727 = vmatprep.mubr.bf16.mxu0 0
    %1728 = vmatmul.mubr.bf16.gmra.mrb[0].mxu0 %v1472
    %v1729 = vpop.f32.mrb[0].mxu0
    %v1730 = vadd.f32 %v1450, %v1729
    %v1731 = vpop.f32.mrb[0].mxu0
    %v1732 = vpop.f32.mrb[0].mxu0
    %v1733 = vadd.f32 %v1450, %v1732
    %v1734 = vpop.f32.mrb[0].mxu0
    %1735 = vmatprep.mubr.bf16.mxu0 0
    %1736 = vmatmul.mubr.bf16.gmra.mrb[0].mxu0 %v1473
    %v1737 = vpop.f32.mrb[0].mxu0
    %v1738 = vadd.f32 %v1450, %v1737
    %v1739 = vpop.f32.mrb[0].mxu0
    %v1740 = vpop.f32.mrb[0].mxu0
    %v1741 = vadd.f32 %v1450, %v1740
    %v1742 = vpop.f32.mrb[0].mxu0
    %1743 = vdwg.mxu0
    %1744 = vst [vmem:[#allocation4] sm:$0xff] %v1641
    %1745 = vst [vmem:[#allocation4 + $0x8] sm:$0xff] %v1643
    %1746 = vst [vmem:[#allocation4 + $0x10] sm:$0xff] %v1714
    %1747 = vst [vmem:[#allocation4 + $0x18] sm:$0xff] %v1645
    %1748 = vst [vmem:[#allocation4 + $0x20] sm:$0xff] %v1647
    %1749 = vst [vmem:[#allocation4 + $0x28] sm:$0xff] %v1717
    %1750 = vst [vmem:[#allocation4 + $0x30] sm:$0xff] %v1651
    %1751 = vst [vmem:[#allocation4 + $0x38] sm:$0xff] %v1653
    %1752 = vst [vmem:[#allocation4 + $0x40] sm:$0xff] %v1722
    %1753 = vst [vmem:[#allocation4 + $0x48] sm:$0xff] %v1655
    %1754 = vst [vmem:[#allocation4 + $0x50] sm:$0xff] %v1657
    %1755 = vst [vmem:[#allocation4 + $0x58] sm:$0xff] %v1725
    %1756 = vst [vmem:[#allocation4 + $0x60] sm:$0xff] %v1661
    %1757 = vst [vmem:[#allocation4 + $0x68] sm:$0xff] %v1663
    %1758 = vst [vmem:[#allocation4 + $0x70] sm:$0xff] %v1730
    %1759 = vst [vmem:[#allocation4 + $0x78] sm:$0xff] %v1665
    %1760 = vst [vmem:[#allocation4 + $0x80] sm:$0xff] %v1667
    %1761 = vst [vmem:[#allocation4 + $0x88] sm:$0xff] %v1733
    %1762 = vst [vmem:[#allocation4 + $0x90] sm:$0xff] %v1671
    %1763 = vst [vmem:[#allocation4 + $0x98] sm:$0xff] %v1673
    %1764 = vst [vmem:[#allocation4 + $0xa0] sm:$0xff] %v1738
    %1765 = vst [vmem:[#allocation4 + $0xa8] sm:$0xff] %v1675
    %1766 = vst [vmem:[#allocation4 + $0xb0] sm:$0xff] %v1677
    %1767 = vst [vmem:[#allocation4 + $0xb8] sm:$0xff] %v1741
    %v1769 = vlaneseq
    %v1770 = vshrl.u32 %v1769, 7
    %v1771 = vsub.s32 0, %v1770
    %v1772 = vrot.slane %v1429, %v1771
    %s1774 = scalar_lea.vmem [#allocation2], 8
    %v1775 = vld [vmem:[%s1774] sm:$0xff]
    %v1776 = vpack.c.bf16 %v1775, %v1775
    %v1809 = vunpack.c.l.b16 %v1396
    %v1810 = vunpack.c.h.b16 %v1396
    %v1811 = vunpack.c.l.b16 %v1397
    %v1812 = vunpack.c.l.b16 %v1398
    %v1813 = vunpack.c.h.b16 %v1398
    %v1814 = vunpack.c.l.b16 %v1399
    %v1815 = vunpack.c.l.b16 %v1400
    %v1816 = vunpack.c.h.b16 %v1400
    %v1817 = vunpack.c.l.b16 %v1401
    %v1818 = vunpack.c.l.b16 %v1402
    %v1819 = vunpack.c.h.b16 %v1402
    %v1820 = vunpack.c.l.b16 %v1403
    %v1821 = vunpack.c.l.b16 %v1404
    %v1822 = vunpack.c.h.b16 %v1404
    %v1823 = vunpack.c.l.b16 %v1405
    %v1824 = vunpack.c.l.b16 %v1406
    %v1825 = vunpack.c.h.b16 %v1406
    %v1826 = vunpack.c.l.b16 %v1407
    %v1827 = vunpack.c.l.b16 %v1408
    %v1828 = vunpack.c.h.b16 %v1408
    %v1829 = vunpack.c.l.b16 %v1409
    %v1830 = vunpack.c.l.b16 %v1410
    %v1831 = vunpack.c.h.b16 %v1410
    %v1832 = vunpack.c.l.b16 %v1411
    %v1833 = vunpack.c.l.b16 %v1412
    %v1834 = vunpack.c.h.b16 %v1412
    %v1835 = vunpack.c.l.b16 %v1413
    %v1836 = vunpack.c.l.b16 %v1414
    %v1837 = vunpack.c.h.b16 %v1414
    %v1838 = vunpack.c.l.b16 %v1415
    %v1839 = vunpack.c.l.b16 %v1416
    %v1840 = vunpack.c.h.b16 %v1416
    %v1841 = vunpack.c.l.b16 %v1417
    %v1842 = vunpack.c.l.b16 %v1418
    %v1843 = vunpack.c.h.b16 %v1418
    %v1844 = vunpack.c.l.b16 %v1419
    %v1845 = vunpack.c.l.b16 %v1420
    %v1846 = vunpack.c.h.b16 %v1420
    %v1847 = vunpack.c.l.b16 %v1421
    %v1848 = vunpack.c.l.b16 %v1422
    %v1849 = vunpack.c.h.b16 %v1422
    %v1850 = vunpack.c.l.b16 %v1423
    %v1851 = vunpack.c.l.b16 %v1424
    %v1852 = vunpack.c.h.b16 %v1424
    %v1853 = vunpack.c.l.b16 %v1425
    %v1854 = vunpack.c.l.b16 %v1426
    %v1855 = vunpack.c.h.b16 %v1426
    %v1856 = vunpack.c.l.b16 %v1427
    %v1857 = vpack.c.b16 %v1812, %v1809
    %v1858 = vpack.c.b16 %v1813, %v1810
    %v1859 = vpack.c.b16 %v1814, %v1811
    %v1860 = vpack.c.b16 %v1818, %v1815
    %v1861 = vpack.c.b16 %v1819, %v1816
    %v1862 = vpack.c.b16 %v1820, %v1817
    %v1863 = vpack.c.b16 %v1824, %v1821
    %v1864 = vpack.c.b16 %v1825, %v1822
    %v1865 = vpack.c.b16 %v1826, %v1823
    %v1866 = vpack.c.b16 %v1830, %v1827
    %v1867 = vpack.c.b16 %v1831, %v1828
    %v1868 = vpack.c.b16 %v1832, %v1829
    %v1869 = vpack.c.b16 %v1836, %v1833
    %v1870 = vpack.c.b16 %v1837, %v1834
    %v1871 = vpack.c.b16 %v1838, %v1835
    %v1872 = vpack.c.b16 %v1842, %v1839
    %v1873 = vpack.c.b16 %v1843, %v1840
    %v1874 = vpack.c.b16 %v1844, %v1841
    %v1875 = vpack.c.b16 %v1848, %v1845
    %v1876 = vpack.c.b16 %v1849, %v1846
    %v1877 = vpack.c.b16 %v1850, %v1847
    %v1878 = vpack.c.b16 %v1854, %v1851
    %v1879 = vpack.c.b16 %v1855, %v1852
    %v1880 = vpack.c.b16 %v1856, %v1853
    %1905 = vmatprep.subr.bf16.mxu0 %v1858
    %1906 = vmatpush1.bf16.msra.mxu0 %v1857
    %1907 = vmatprep.subr.bf16.mxu0 %v1861
    %1908 = vmatpush1.bf16.msra.mxu0 %v1860
    %1909 = vmatprep.subr.bf16.mxu0 %v1864
    %1910 = vmatpush1.bf16.msra.mxu0 %v1863
    %1911 = vmatprep.subr.bf16.mxu0 %v1867
    %1912 = vmatpush1.bf16.msra.mxu0 %v1866
    %1913 = vmatprep.subr.bf16.mxu0 %v1870
    %1914 = vmatpush1.bf16.msra.mxu0 %v1869
    %1915 = vmatprep.subr.bf16.mxu0 %v1873
    %1916 = vmatpush1.bf16.msra.mxu0 %v1872
    %1917 = vmatprep.subr.bf16.mxu0 %v1876
    %1918 = vmatpush1.bf16.msra.mxu0 %v1875
    %1919 = vmatprep.subr.bf16.mxu0 %v1879
    %1920 = vmatpush1.bf16.msra.mxu0 %v1878
    %1921 = vmatprep.subr.bf16.mxu0 0
    %1922 = vmatpush1.bf16.msra.mxu0 0
    %1923 = vmatprep.subr.bf16.mxu0 0
    %1924 = vmatpush1.bf16.msra.mxu0 0
    %1925 = vmatprep.subr.bf16.mxu0 0
    %1926 = vmatpush1.bf16.msra.mxu0 0
    %1927 = vmatprep.subr.bf16.mxu0 0
    %1928 = vmatpush1.bf16.msra.mxu0 0
    %1929 = vmatprep.subr.bf16.mxu0 0
    %1930 = vmatpush1.bf16.msra.mxu0 0
    %1931 = vmatprep.subr.bf16.mxu0 0
    %1932 = vmatpush1.bf16.msra.mxu0 0
    %1933 = vmatprep.subr.bf16.mxu0 0
    %1934 = vmatpush1.bf16.msra.mxu0 0
    %1935 = vmatprep.subr.bf16.mxu0 0
    %1936 = vmatpush1.bf16.msra.mxu0 0
    %1937 = vmatprep.mubr.bf16.mxu0 0
    %1938 = vmatmul.mubr.bf16.gmra.mrb[0].mxu0 %v1776
    %v1939 = vpop.f32.mrb[0].mxu0
    %v1940 = vadd.f32 0.0, %v1939
    %v1941 = vpop.f32.mrb[0].mxu0
    %v1942 = vadd.f32 0.0, %v1941
    %v1943 = vpop.f32.mrb[0].mxu0
    %v1944 = vpop.f32.mrb[0].mxu0
    %1945 = vdwg.mxu0
    %1946 = vmatprep.subr.bf16.mxu0 0
    %1947 = vmatpush1.bf16.msra.mxu0 %v1859
    %1948 = vmatprep.subr.bf16.mxu0 0
    %1949 = vmatpush1.bf16.msra.mxu0 %v1862
    %1950 = vmatprep.subr.bf16.mxu0 0
    %1951 = vmatpush1.bf16.msra.mxu0 %v1865
    %1952 = vmatprep.subr.bf16.mxu0 0
    %1953 = vmatpush1.bf16.msra.mxu0 %v1868
    %1954 = vmatprep.subr.bf16.mxu0 0
    %1955 = vmatpush1.bf16.msra.mxu0 %v1871
    %1956 = vmatprep.subr.bf16.mxu0 0
    %1957 = vmatpush1.bf16.msra.mxu0 %v1874
    %1958 = vmatprep.subr.bf16.mxu0 0
    %1959 = vmatpush1.bf16.msra.mxu0 %v1877
    %1960 = vmatprep.subr.bf16.mxu0 0
    %1961 = vmatpush1.bf16.msra.mxu0 %v1880
    %1962 = vmatprep.subr.bf16.mxu0 0
    %1963 = vmatpush1.bf16.msra.mxu0 0
    %1964 = vmatprep.subr.bf16.mxu0 0
    %1965 = vmatpush1.bf16.msra.mxu0 0
    %1966 = vmatprep.subr.bf16.mxu0 0
    %1967 = vmatpush1.bf16.msra.mxu0 0
    %1968 = vmatprep.subr.bf16.mxu0 0
    %1969 = vmatpush1.bf16.msra.mxu0 0
    %1970 = vmatprep.subr.bf16.mxu0 0
    %1971 = vmatpush1.bf16.msra.mxu0 0
    %1972 = vmatprep.subr.bf16.mxu0 0
    %1973 = vmatpush1.bf16.msra.mxu0 0
    %1974 = vmatprep.subr.bf16.mxu0 0
    %1975 = vmatpush1.bf16.msra.mxu0 0
    %1976 = vmatprep.subr.bf16.mxu0 0
    %1977 = vmatpush1.bf16.msra.mxu0 0
    %1978 = vmatprep.mubr.bf16.mxu0 0
    %1979 = vmatmul.mubr.bf16.gmra.mrb[0].mxu0 %v1776
    %v1980 = vpop.f32.mrb[0].mxu0
    %v1981 = vadd.f32 0.0, %v1980
    %v1982 = vpop.f32.mrb[0].mxu0
    %v1983 = vpop.f32.mrb[0].mxu0
    %v1984 = vpop.f32.mrb[0].mxu0
    %1985 = vdwg.mxu0
    %v1986 = vld [vmem:[#allocation4] sm:$0xff]
    %v1987 = vld [vmem:[#allocation4 + $0x8] sm:$0xff]
    %v1988 = vld [vmem:[#allocation4 + $0x10] sm:$0xff]
    %v1989 = vadd.f32 %v1986, %v1940
    %v1990 = vxor.u32 %v1989, 2147483648
    %v1991 = vmul.f32 %v1990, 1.442695
    %v1992 = vpow.pop %v1991
    %v1993 = vadd.f32 %v1992, 1.0
    %v1994 = vrcp.pop %v1993
    %v1995 = vmul.f32 1.0, %v1994
    %v1996 = vadd.f32 %v1987, %v1942
    %v1997 = vxor.u32 %v1996, 2147483648
    %v1998 = vmul.f32 %v1997, 1.442695
    %v1999 = vpow.pop %v1998
    %v2000 = vadd.f32 %v1999, 1.0
    %v2001 = vrcp.pop %v2000
    %v2002 = vmul.f32 1.0, %v2001
    %v2003 = vadd.f32 %v1981, %v1772
    %v2004 = vmul.f32 %v1995, %v2003
    %v2005 = vadd.f32 %v1988, %v2004
    %v2006 = vtanh.pop %v2005
    %v2007 = vsub.f32 %v1775, %v2006
    %v2008 = vmul.f32 %v2002, %v2007
    %v2009 = vadd.f32 %v2006, %v2008
    %v2010 = vpack.c.bf16 %v2009, %v2009
    %2011 = vmatprep.subr.bf16.mxu0 %v1858
    %2012 = vmatpush1.bf16.msra.mxu0 %v1857
    %2013 = vmatprep.subr.bf16.mxu0 %v1861
    %2014 = vmatpush1.bf16.msra.mxu0 %v1860
    %2015 = vmatprep.subr.bf16.mxu0 %v1864
    %2016 = vmatpush1.bf16.msra.mxu0 %v1863
    %2017 = vmatprep.subr.bf16.mxu0 %v1867
    %2018 = vmatpush1.bf16.msra.mxu0 %v1866
    %2019 = vmatprep.subr.bf16.mxu0 %v1870
    %2020 = vmatpush1.bf16.msra.mxu0 %v1869
    %2021 = vmatprep.subr.bf16.mxu0 %v1873
    %2022 = vmatpush1.bf16.msra.mxu0 %v1872
    %2023 = vmatprep.subr.bf16.mxu0 %v1876
    %2024 = vmatpush1.bf16.msra.mxu0 %v1875
    %2025 = vmatprep.subr.bf16.mxu0 %v1879
    %2026 = vmatpush1.bf16.msra.mxu0 %v1878
    %2027 = vmatprep.subr.bf16.mxu0 0
    %2028 = vmatpush1.bf16.msra.mxu0 0
    %2029 = vmatprep.subr.bf16.mxu0 0
    %2030 = vmatpush1.bf16.msra.mxu0 0
    %2031 = vmatprep.subr.bf16.mxu0 0
    %2032 = vmatpush1.bf16.msra.mxu0 0
    %2033 = vmatprep.subr.bf16.mxu0 0
    %2034 = vmatpush1.bf16.msra.mxu0 0
    %2035 = vmatprep.subr.bf16.mxu0 0
    %2036 = vmatpush1.bf16.msra.mxu0 0
    %2037 = vmatprep.subr.bf16.mxu0 0
    %2038 = vmatpush1.bf16.msra.mxu0 0
    %2039 = vmatprep.subr.bf16.mxu0 0
    %2040 = vmatpush1.bf16.msra.mxu0 0
    %2041 = vmatprep.subr.bf16.mxu0 0
    %2042 = vmatpush1.bf16.msra.mxu0 0
    %2043 = vmatprep.mubr.bf16.mxu0 0
    %2044 = vmatmul.mubr.bf16.gmra.mrb[0].mxu0 %v2010
    %v2045 = vpop.f32.mrb[0].mxu0
    %v2046 = vadd.f32 0.0, %v2045
    %v2047 = vpop.f32.mrb[0].mxu0
    %v2048 = vadd.f32 0.0, %v2047
    %v2049 = vpop.f32.mrb[0].mxu0
    %v2050 = vpop.f32.mrb[0].mxu0
    %2051 = vdwg.mxu0
    %2052 = vmatprep.subr.bf16.mxu0 0
    %2053 = vmatpush1.bf16.msra.mxu0 %v1859
    %2054 = vmatprep.subr.bf16.mxu0 0
    %2055 = vmatpush1.bf16.msra.mxu0 %v1862
    %2056 = vmatprep.subr.bf16.mxu0 0
    %2057 = vmatpush1.bf16.msra.mxu0 %v1865
    %2058 = vmatprep.subr.bf16.mxu0 0
    %2059 = vmatpush1.bf16.msra.mxu0 %v1868
    %2060 = vmatprep.subr.bf16.mxu0 0
    %2061 = vmatpush1.bf16.msra.mxu0 %v1871
    %2062 = vmatprep.subr.bf16.mxu0 0
    %2063 = vmatpush1.bf16.msra.mxu0 %v1874
    %2064 = vmatprep.subr.bf16.mxu0 0
    %2065 = vmatpush1.bf16.msra.mxu0 %v1877
    %2066 = vmatprep.subr.bf16.mxu0 0
    %2067 = vmatpush1.bf16.msra.mxu0 %v1880
    %2068 = vmatprep.subr.bf16.mxu0 0
    %2069 = vmatpush1.bf16.msra.mxu0 0
    %2070 = vmatprep.subr.bf16.mxu0 0
    %2071 = vmatpush1.bf16.msra.mxu0 0
    %2072 = vmatprep.subr.bf16.mxu0 0
    %2073 = vmatpush1.bf16.msra.mxu0 0
    %2074 = vmatprep.subr.bf16.mxu0 0
    %2075 = vmatpush1.bf16.msra.mxu0 0
    %2076 = vmatprep.subr.bf16.mxu0 0
    %2077 = vmatpush1.bf16.msra.mxu0 0
    %2078 = vmatprep.subr.bf16.mxu0 0
    %2079 = vmatpush1.bf16.msra.mxu0 0
    %2080 = vmatprep.subr.bf16.mxu0 0
    %2081 = vmatpush1.bf16.msra.mxu0 0
    %2082 = vmatprep.subr.bf16.mxu0 0
    %2083 = vmatpush1.bf16.msra.mxu0 0
    %2084 = vmatprep.mubr.bf16.mxu0 0
    %2085 = vmatmul.mubr.bf16.gmra.mrb[0].mxu0 %v2010
    %v2086 = vpop.f32.mrb[0].mxu0
    %v2087 = vadd.f32 0.0, %v2086
    %v2088 = vpop.f32.mrb[0].mxu0
    %v2089 = vpop.f32.mrb[0].mxu0
    %v2090 = vpop.f32.mrb[0].mxu0
    %2091 = vdwg.mxu0
    %v2092 = vld [vmem:[%s681] sm:$0xff]
    %v2093 = vld [vmem:[%s681 + $0x8] sm:$0xff]
    %v2094 = vld [vmem:[%s681 + $0x10] sm:$0xff]
    %v2095 = vadd.f32 %v2092, %v2046
    %v2096 = vxor.u32 %v2095, 2147483648
    %v2097 = vmul.f32 %v2096, 1.442695
    %v2098 = vpow.pop %v2097
    %v2099 = vadd.f32 %v2098, 1.0
    %v2100 = vrcp.pop %v2099
    %v2101 = vmul.f32 1.0, %v2100
    %v2102 = vadd.f32 %v2093, %v2048
    %v2103 = vxor.u32 %v2102, 2147483648
    %v2104 = vmul.f32 %v2103, 1.442695
    %v2105 = vpow.pop %v2104
    %v2106 = vadd.f32 %v2105, 1.0
    %v2107 = vrcp.pop %v2106
    %v2108 = vmul.f32 1.0, %v2107
    %v2109 = vadd.f32 %v2087, %v1772
    %v2110 = vmul.f32 %v2101, %v2109
    %v2111 = vadd.f32 %v2094, %v2110
    %v2112 = vtanh.pop %v2111
    %v2113 = vsub.f32 %v2009, %v2112
    %v2114 = vmul.f32 %v2108, %v2113
    %v2115 = vadd.f32 %v2112, %v2114
    %v2116 = vpack.c.bf16 %v2115, %v2115
    %2117 = vmatprep.subr.bf16.mxu0 %v1858
    %2118 = vmatpush1.bf16.msra.mxu0 %v1857
    %2119 = vmatprep.subr.bf16.mxu0 %v1861
    %2120 = vmatpush1.bf16.msra.mxu0 %v1860
    %2121 = vmatprep.subr.bf16.mxu0 %v1864
    %2122 = vmatpush1.bf16.msra.mxu0 %v1863
    %2123 = vmatprep.subr.bf16.mxu0 %v1867
    %2124 = vmatpush1.bf16.msra.mxu0 %v1866
    %2125 = vmatprep.subr.bf16.mxu0 %v1870
    %2126 = vmatpush1.bf16.msra.mxu0 %v1869
    %2127 = vmatprep.subr.bf16.mxu0 %v1873
    %2128 = vmatpush1.bf16.msra.mxu0 %v1872
    %2129 = vmatprep.subr.bf16.mxu0 %v1876
    %2130 = vmatpush1.bf16.msra.mxu0 %v1875
    %2131 = vmatprep.subr.bf16.mxu0 %v1879
    %2132 = vmatpush1.bf16.msra.mxu0 %v1878
    %2133 = vmatprep.subr.bf16.mxu0 0
    %2134 = vmatpush1.bf16.msra.mxu0 0
    %2135 = vmatprep.subr.bf16.mxu0 0
    %2136 = vmatpush1.bf16.msra.mxu0 0
    %2137 = vmatprep.subr.bf16.mxu0 0
    %2138 = vmatpush1.bf16.msra.mxu0 0
    %2139 = vmatprep.subr.bf16.mxu0 0
    %2140 = vmatpush1.bf16.msra.mxu0 0
    %2141 = vmatprep.subr.bf16.mxu0 0
    %2142 = vmatpush1.bf16.msra.mxu0 0
    %2143 = vmatprep.subr.bf16.mxu0 0
    %2144 = vmatpush1.bf16.msra.mxu0 0
    %2145 = vmatprep.subr.bf16.mxu0 0
    %2146 = vmatpush1.bf16.msra.mxu0 0
    %2147 = vmatprep.subr.bf16.mxu0 0
    %2148 = vmatpush1.bf16.msra.mxu0 0
    %2149 = vmatprep.mubr.bf16.mxu0 0
    %2150 = vmatmul.mubr.bf16.gmra.mrb[0].mxu0 %v2116
    %v2151 = vpop.f32.mrb[0].mxu0
    %v2152 = vadd.f32 0.0, %v2151
    %v2153 = vpop.f32.mrb[0].mxu0
    %v2154 = vadd.f32 0.0, %v2153
    %v2155 = vpop.f32.mrb[0].mxu0
    %v2156 = vpop.f32.mrb[0].mxu0
    %2157 = vdwg.mxu0
    %2158 = vmatprep.subr.bf16.mxu0 0
    %2159 = vmatpush1.bf16.msra.mxu0 %v1859
    %2160 = vmatprep.subr.bf16.mxu0 0
    %2161 = vmatpush1.bf16.msra.mxu0 %v1862
    %2162 = vmatprep.subr.bf16.mxu0 0
    %2163 = vmatpush1.bf16.msra.mxu0 %v1865
    %2164 = vmatprep.subr.bf16.mxu0 0
    %2165 = vmatpush1.bf16.msra.mxu0 %v1868
    %2166 = vmatprep.subr.bf16.mxu0 0
    %2167 = vmatpush1.bf16.msra.mxu0 %v1871
    %2168 = vmatprep.subr.bf16.mxu0 0
    %2169 = vmatpush1.bf16.msra.mxu0 %v1874
    %2170 = vmatprep.subr.bf16.mxu0 0
    %2171 = vmatpush1.bf16.msra.mxu0 %v1877
    %2172 = vmatprep.subr.bf16.mxu0 0
    %2173 = vmatpush1.bf16.msra.mxu0 %v1880
    %2174 = vmatprep.subr.bf16.mxu0 0
    %2175 = vmatpush1.bf16.msra.mxu0 0
    %2176 = vmatprep.subr.bf16.mxu0 0
    %2177 = vmatpush1.bf16.msra.mxu0 0
    %2178 = vmatprep.subr.bf16.mxu0 0
    %2179 = vmatpush1.bf16.msra.mxu0 0
    %2180 = vmatprep.subr.bf16.mxu0 0
    %2181 = vmatpush1.bf16.msra.mxu0 0
    %2182 = vmatprep.subr.bf16.mxu0 0
    %2183 = vmatpush1.bf16.msra.mxu0 0
    %2184 = vmatprep.subr.bf16.mxu0 0
    %2185 = vmatpush1.bf16.msra.mxu0 0
    %2186 = vmatprep.subr.bf16.mxu0 0
    %2187 = vmatpush1.bf16.msra.mxu0 0
    %2188 = vmatprep.subr.bf16.mxu0 0
    %2189 = vmatpush1.bf16.msra.mxu0 0
    %2190 = vmatprep.mubr.bf16.mxu0 0
    %2191 = vmatmul.mubr.bf16.gmra.mrb[0].mxu0 %v2116
    %v2192 = vpop.f32.mrb[0].mxu0
    %v2193 = vadd.f32 0.0, %v2192
    %v2194 = vpop.f32.mrb[0].mxu0
    %v2195 = vpop.f32.mrb[0].mxu0
    %v2196 = vpop.f32.mrb[0].mxu0
    %2197 = vdwg.mxu0
    %v2198 = vld [vmem:[%s790] sm:$0xff]
    %v2199 = vld [vmem:[%s790 + $0x8] sm:$0xff]
    %v2200 = vld [vmem:[%s790 + $0x10] sm:$0xff]
    %v2201 = vadd.f32 %v2198, %v2152
    %v2202 = vxor.u32 %v2201, 2147483648
    %v2203 = vmul.f32 %v2202, 1.442695
    %v2204 = vpow.pop %v2203
    %v2205 = vadd.f32 %v2204, 1.0
    %v2206 = vrcp.pop %v2205
    %v2207 = vmul.f32 1.0, %v2206
    %v2208 = vadd.f32 %v2199, %v2154
    %v2209 = vxor.u32 %v2208, 2147483648
    %v2210 = vmul.f32 %v2209, 1.442695
    %v2211 = vpow.pop %v2210
    %v2212 = vadd.f32 %v2211, 1.0
    %v2213 = vrcp.pop %v2212
    %v2214 = vmul.f32 1.0, %v2213
    %v2215 = vadd.f32 %v2193, %v1772
    %v2216 = vmul.f32 %v2207, %v2215
    %v2217 = vadd.f32 %v2200, %v2216
    %v2218 = vtanh.pop %v2217
    %v2219 = vsub.f32 %v2115, %v2218
    %v2220 = vmul.f32 %v2214, %v2219
    %v2221 = vadd.f32 %v2218, %v2220
    %v2222 = vpack.c.bf16 %v2221, %v2221
    %2223 = vmatprep.subr.bf16.mxu0 %v1858
    %2224 = vmatpush1.bf16.msra.mxu0 %v1857
    %2225 = vmatprep.subr.bf16.mxu0 %v1861
    %2226 = vmatpush1.bf16.msra.mxu0 %v1860
    %2227 = vmatprep.subr.bf16.mxu0 %v1864
    %2228 = vmatpush1.bf16.msra.mxu0 %v1863
    %2229 = vmatprep.subr.bf16.mxu0 %v1867
    %2230 = vmatpush1.bf16.msra.mxu0 %v1866
    %2231 = vmatprep.subr.bf16.mxu0 %v1870
    %2232 = vmatpush1.bf16.msra.mxu0 %v1869
    %2233 = vmatprep.subr.bf16.mxu0 %v1873
    %2234 = vmatpush1.bf16.msra.mxu0 %v1872
    %2235 = vmatprep.subr.bf16.mxu0 %v1876
    %2236 = vmatpush1.bf16.msra.mxu0 %v1875
    %2237 = vmatprep.subr.bf16.mxu0 %v1879
    %2238 = vmatpush1.bf16.msra.mxu0 %v1878
    %2239 = vmatprep.subr.bf16.mxu0 0
    %2240 = vmatpush1.bf16.msra.mxu0 0
    %2241 = vmatprep.subr.bf16.mxu0 0
    %2242 = vmatpush1.bf16.msra.mxu0 0
    %2243 = vmatprep.subr.bf16.mxu0 0
    %2244 = vmatpush1.bf16.msra.mxu0 0
    %2245 = vmatprep.subr.bf16.mxu0 0
    %2246 = vmatpush1.bf16.msra.mxu0 0
    %2247 = vmatprep.subr.bf16.mxu0 0
    %2248 = vmatpush1.bf16.msra.mxu0 0
    %2249 = vmatprep.subr.bf16.mxu0 0
    %2250 = vmatpush1.bf16.msra.mxu0 0
    %2251 = vmatprep.subr.bf16.mxu0 0
    %2252 = vmatpush1.bf16.msra.mxu0 0
    %2253 = vmatprep.subr.bf16.mxu0 0
    %2254 = vmatpush1.bf16.msra.mxu0 0
    %2255 = vmatprep.mubr.bf16.mxu0 0
    %2256 = vmatmul.mubr.bf16.gmra.mrb[0].mxu0 %v2222
    %v2257 = vpop.f32.mrb[0].mxu0
    %v2258 = vadd.f32 0.0, %v2257
    %v2259 = vpop.f32.mrb[0].mxu0
    %v2260 = vadd.f32 0.0, %v2259
    %v2261 = vpop.f32.mrb[0].mxu0
    %v2262 = vpop.f32.mrb[0].mxu0
    %2263 = vdwg.mxu0
    %2264 = vmatprep.subr.bf16.mxu0 0
    %2265 = vmatpush1.bf16.msra.mxu0 %v1859
    %2266 = vmatprep.subr.bf16.mxu0 0
    %2267 = vmatpush1.bf16.msra.mxu0 %v1862
    %2268 = vmatprep.subr.bf16.mxu0 0
    %2269 = vmatpush1.bf16.msra.mxu0 %v1865
    %2270 = vmatprep.subr.bf16.mxu0 0
    %2271 = vmatpush1.bf16.msra.mxu0 %v1868
    %2272 = vmatprep.subr.bf16.mxu0 0
    %2273 = vmatpush1.bf16.msra.mxu0 %v1871
    %2274 = vmatprep.subr.bf16.mxu0 0
    %2275 = vmatpush1.bf16.msra.mxu0 %v1874
    %2276 = vmatprep.subr.bf16.mxu0 0
    %2277 = vmatpush1.bf16.msra.mxu0 %v1877
    %2278 = vmatprep.subr.bf16.mxu0 0
    %2279 = vmatpush1.bf16.msra.mxu0 %v1880
    %2280 = vmatprep.subr.bf16.mxu0 0
    %2281 = vmatpush1.bf16.msra.mxu0 0
    %2282 = vmatprep.subr.bf16.mxu0 0
    %2283 = vmatpush1.bf16.msra.mxu0 0
    %2284 = vmatprep.subr.bf16.mxu0 0
    %2285 = vmatpush1.bf16.msra.mxu0 0
    %2286 = vmatprep.subr.bf16.mxu0 0
    %2287 = vmatpush1.bf16.msra.mxu0 0
    %2288 = vmatprep.subr.bf16.mxu0 0
    %2289 = vmatpush1.bf16.msra.mxu0 0
    %2290 = vmatprep.subr.bf16.mxu0 0
    %2291 = vmatpush1.bf16.msra.mxu0 0
    %2292 = vmatprep.subr.bf16.mxu0 0
    %2293 = vmatpush1.bf16.msra.mxu0 0
    %2294 = vmatprep.subr.bf16.mxu0 0
    %2295 = vmatpush1.bf16.msra.mxu0 0
    %2296 = vmatprep.mubr.bf16.mxu0 0
    %2297 = vmatmul.mubr.bf16.gmra.mrb[0].mxu0 %v2222
    %v2298 = vpop.f32.mrb[0].mxu0
    %v2299 = vadd.f32 0.0, %v2298
    %v2300 = vpop.f32.mrb[0].mxu0
    %v2301 = vpop.f32.mrb[0].mxu0
    %v2302 = vpop.f32.mrb[0].mxu0
    %2303 = vdwg.mxu0
    %v2304 = vld [vmem:[%s899] sm:$0xff]
    %v2305 = vld [vmem:[%s899 + $0x8] sm:$0xff]
    %v2306 = vld [vmem:[%s899 + $0x10] sm:$0xff]
    %v2307 = vadd.f32 %v2304, %v2258
    %v2308 = vxor.u32 %v2307, 2147483648
    %v2309 = vmul.f32 %v2308, 1.442695
    %v2310 = vpow.pop %v2309
    %v2311 = vadd.f32 %v2310, 1.0
    %v2312 = vrcp.pop %v2311
    %v2313 = vmul.f32 1.0, %v2312
    %v2314 = vadd.f32 %v2305, %v2260
    %v2315 = vxor.u32 %v2314, 2147483648
    %v2316 = vmul.f32 %v2315, 1.442695
    %v2317 = vpow.pop %v2316
    %v2318 = vadd.f32 %v2317, 1.0
    %v2319 = vrcp.pop %v2318
    %v2320 = vmul.f32 1.0, %v2319
    %v2321 = vadd.f32 %v2299, %v1772
    %v2322 = vmul.f32 %v2313, %v2321
    %v2323 = vadd.f32 %v2306, %v2322
    %v2324 = vtanh.pop %v2323
    %v2325 = vsub.f32 %v2221, %v2324
    %v2326 = vmul.f32 %v2320, %v2325
    %v2327 = vadd.f32 %v2324, %v2326
    %v2328 = vpack.c.bf16 %v2327, %v2327
    %2329 = vmatprep.subr.bf16.mxu0 %v1858
    %2330 = vmatpush1.bf16.msra.mxu0 %v1857
    %2331 = vmatprep.subr.bf16.mxu0 %v1861
    %2332 = vmatpush1.bf16.msra.mxu0 %v1860
    %2333 = vmatprep.subr.bf16.mxu0 %v1864
    %2334 = vmatpush1.bf16.msra.mxu0 %v1863
    %2335 = vmatprep.subr.bf16.mxu0 %v1867
    %2336 = vmatpush1.bf16.msra.mxu0 %v1866
    %2337 = vmatprep.subr.bf16.mxu0 %v1870
    %2338 = vmatpush1.bf16.msra.mxu0 %v1869
    %2339 = vmatprep.subr.bf16.mxu0 %v1873
    %2340 = vmatpush1.bf16.msra.mxu0 %v1872
    %2341 = vmatprep.subr.bf16.mxu0 %v1876
    %2342 = vmatpush1.bf16.msra.mxu0 %v1875
    %2343 = vmatprep.subr.bf16.mxu0 %v1879
    %2344 = vmatpush1.bf16.msra.mxu0 %v1878
    %2345 = vmatprep.subr.bf16.mxu0 0
    %2346 = vmatpush1.bf16.msra.mxu0 0
    %2347 = vmatprep.subr.bf16.mxu0 0
    %2348 = vmatpush1.bf16.msra.mxu0 0
    %2349 = vmatprep.subr.bf16.mxu0 0
    %2350 = vmatpush1.bf16.msra.mxu0 0
    %2351 = vmatprep.subr.bf16.mxu0 0
    %2352 = vmatpush1.bf16.msra.mxu0 0
    %2353 = vmatprep.subr.bf16.mxu0 0
    %2354 = vmatpush1.bf16.msra.mxu0 0
    %2355 = vmatprep.subr.bf16.mxu0 0
    %2356 = vmatpush1.bf16.msra.mxu0 0
    %2357 = vmatprep.subr.bf16.mxu0 0
    %2358 = vmatpush1.bf16.msra.mxu0 0
    %2359 = vmatprep.subr.bf16.mxu0 0
    %2360 = vmatpush1.bf16.msra.mxu0 0
    %2361 = vmatprep.mubr.bf16.mxu0 0
    %2362 = vmatmul.mubr.bf16.gmra.mrb[0].mxu0 %v2328
    %v2363 = vpop.f32.mrb[0].mxu0
    %v2364 = vadd.f32 0.0, %v2363
    %v2365 = vpop.f32.mrb[0].mxu0
    %v2366 = vadd.f32 0.0, %v2365
    %v2367 = vpop.f32.mrb[0].mxu0
    %v2368 = vpop.f32.mrb[0].mxu0
    %2369 = vdwg.mxu0
    %2370 = vmatprep.subr.bf16.mxu0 0
    %2371 = vmatpush1.bf16.msra.mxu0 %v1859
    %2372 = vmatprep.subr.bf16.mxu0 0
    %2373 = vmatpush1.bf16.msra.mxu0 %v1862
    %2374 = vmatprep.subr.bf16.mxu0 0
    %2375 = vmatpush1.bf16.msra.mxu0 %v1865
    %2376 = vmatprep.subr.bf16.mxu0 0
    %2377 = vmatpush1.bf16.msra.mxu0 %v1868
    %2378 = vmatprep.subr.bf16.mxu0 0
    %2379 = vmatpush1.bf16.msra.mxu0 %v1871
    %2380 = vmatprep.subr.bf16.mxu0 0
    %2381 = vmatpush1.bf16.msra.mxu0 %v1874
    %2382 = vmatprep.subr.bf16.mxu0 0
    %2383 = vmatpush1.bf16.msra.mxu0 %v1877
    %2384 = vmatprep.subr.bf16.mxu0 0
    %2385 = vmatpush1.bf16.msra.mxu0 %v1880
    %2386 = vmatprep.subr.bf16.mxu0 0
    %2387 = vmatpush1.bf16.msra.mxu0 0
    %2388 = vmatprep.subr.bf16.mxu0 0
    %2389 = vmatpush1.bf16.msra.mxu0 0
    %2390 = vmatprep.subr.bf16.mxu0 0
    %2391 = vmatpush1.bf16.msra.mxu0 0
    %2392 = vmatprep.subr.bf16.mxu0 0
    %2393 = vmatpush1.bf16.msra.mxu0 0
    %2394 = vmatprep.subr.bf16.mxu0 0
    %2395 = vmatpush1.bf16.msra.mxu0 0
    %2396 = vmatprep.subr.bf16.mxu0 0
    %2397 = vmatpush1.bf16.msra.mxu0 0
    %2398 = vmatprep.subr.bf16.mxu0 0
    %2399 = vmatpush1.bf16.msra.mxu0 0
    %2400 = vmatprep.subr.bf16.mxu0 0
    %2401 = vmatpush1.bf16.msra.mxu0 0
    %2402 = vmatprep.mubr.bf16.mxu0 0
    %2403 = vmatmul.mubr.bf16.gmra.mrb[0].mxu0 %v2328
    %v2404 = vpop.f32.mrb[0].mxu0
    %v2405 = vadd.f32 0.0, %v2404
    %v2406 = vpop.f32.mrb[0].mxu0
    %v2407 = vpop.f32.mrb[0].mxu0
    %v2408 = vpop.f32.mrb[0].mxu0
    %2409 = vdwg.mxu0
    %v2410 = vld [vmem:[%s1008] sm:$0xff]
    %v2411 = vld [vmem:[%s1008 + $0x8] sm:$0xff]
    %v2412 = vld [vmem:[%s1008 + $0x10] sm:$0xff]
    %v2413 = vadd.f32 %v2410, %v2364
    %v2414 = vxor.u32 %v2413, 2147483648
    %v2415 = vmul.f32 %v2414, 1.442695
    %v2416 = vpow.pop %v2415
    %v2417 = vadd.f32 %v2416, 1.0
    %v2418 = vrcp.pop %v2417
    %v2419 = vmul.f32 1.0, %v2418
    %v2420 = vadd.f32 %v2411, %v2366
    %v2421 = vxor.u32 %v2420, 2147483648
    %v2422 = vmul.f32 %v2421, 1.442695
    %v2423 = vpow.pop %v2422
    %v2424 = vadd.f32 %v2423, 1.0
    %v2425 = vrcp.pop %v2424
    %v2426 = vmul.f32 1.0, %v2425
    %v2427 = vadd.f32 %v2405, %v1772
    %v2428 = vmul.f32 %v2419, %v2427
    %v2429 = vadd.f32 %v2412, %v2428
    %v2430 = vtanh.pop %v2429
    %v2431 = vsub.f32 %v2327, %v2430
    %v2432 = vmul.f32 %v2426, %v2431
    %v2433 = vadd.f32 %v2430, %v2432
    %v2434 = vpack.c.bf16 %v2433, %v2433
    %2435 = vmatprep.subr.bf16.mxu0 %v1858
    %2436 = vmatpush1.bf16.msra.mxu0 %v1857
    %2437 = vmatprep.subr.bf16.mxu0 %v1861
    %2438 = vmatpush1.bf16.msra.mxu0 %v1860
    %2439 = vmatprep.subr.bf16.mxu0 %v1864
    %2440 = vmatpush1.bf16.msra.mxu0 %v1863
    %2441 = vmatprep.subr.bf16.mxu0 %v1867
    %2442 = vmatpush1.bf16.msra.mxu0 %v1866
    %2443 = vmatprep.subr.bf16.mxu0 %v1870
    %2444 = vmatpush1.bf16.msra.mxu0 %v1869
    %2445 = vmatprep.subr.bf16.mxu0 %v1873
    %2446 = vmatpush1.bf16.msra.mxu0 %v1872
    %2447 = vmatprep.subr.bf16.mxu0 %v1876
    %2448 = vmatpush1.bf16.msra.mxu0 %v1875
    %2449 = vmatprep.subr.bf16.mxu0 %v1879
    %2450 = vmatpush1.bf16.msra.mxu0 %v1878
    %2451 = vmatprep.subr.bf16.mxu0 0
    %2452 = vmatpush1.bf16.msra.mxu0 0
    %2453 = vmatprep.subr.bf16.mxu0 0
    %2454 = vmatpush1.bf16.msra.mxu0 0
    %2455 = vmatprep.subr.bf16.mxu0 0
    %2456 = vmatpush1.bf16.msra.mxu0 0
    %2457 = vmatprep.subr.bf16.mxu0 0
    %2458 = vmatpush1.bf16.msra.mxu0 0
    %2459 = vmatprep.subr.bf16.mxu0 0
    %2460 = vmatpush1.bf16.msra.mxu0 0
    %2461 = vmatprep.subr.bf16.mxu0 0
    %2462 = vmatpush1.bf16.msra.mxu0 0
    %2463 = vmatprep.subr.bf16.mxu0 0
    %2464 = vmatpush1.bf16.msra.mxu0 0
    %2465 = vmatprep.subr.bf16.mxu0 0
    %2466 = vmatpush1.bf16.msra.mxu0 0
    %2467 = vmatprep.mubr.bf16.mxu0 0
    %2468 = vmatmul.mubr.bf16.gmra.mrb[0].mxu0 %v2434
    %v2469 = vpop.f32.mrb[0].mxu0
    %v2470 = vadd.f32 0.0, %v2469
    %v2471 = vpop.f32.mrb[0].mxu0
    %v2472 = vadd.f32 0.0, %v2471
    %v2473 = vpop.f32.mrb[0].mxu0
    %v2474 = vpop.f32.mrb[0].mxu0
    %2475 = vdwg.mxu0
    %2476 = vmatprep.subr.bf16.mxu0 0
    %2477 = vmatpush1.bf16.msra.mxu0 %v1859
    %2478 = vmatprep.subr.bf16.mxu0 0
    %2479 = vmatpush1.bf16.msra.mxu0 %v1862
    %2480 = vmatprep.subr.bf16.mxu0 0
    %2481 = vmatpush1.bf16.msra.mxu0 %v1865
    %2482 = vmatprep.subr.bf16.mxu0 0
    %2483 = vmatpush1.bf16.msra.mxu0 %v1868
    %2484 = vmatprep.subr.bf16.mxu0 0
    %2485 = vmatpush1.bf16.msra.mxu0 %v1871
    %2486 = vmatprep.subr.bf16.mxu0 0
    %2487 = vmatpush1.bf16.msra.mxu0 %v1874
    %2488 = vmatprep.subr.bf16.mxu0 0
    %2489 = vmatpush1.bf16.msra.mxu0 %v1877
    %2490 = vmatprep.subr.bf16.mxu0 0
    %2491 = vmatpush1.bf16.msra.mxu0 %v1880
    %2492 = vmatprep.subr.bf16.mxu0 0
    %2493 = vmatpush1.bf16.msra.mxu0 0
    %2494 = vmatprep.subr.bf16.mxu0 0
    %2495 = vmatpush1.bf16.msra.mxu0 0
    %2496 = vmatprep.subr.bf16.mxu0 0
    %2497 = vmatpush1.bf16.msra.mxu0 0
    %2498 = vmatprep.subr.bf16.mxu0 0
    %2499 = vmatpush1.bf16.msra.mxu0 0
    %2500 = vmatprep.subr.bf16.mxu0 0
    %2501 = vmatpush1.bf16.msra.mxu0 0
    %2502 = vmatprep.subr.bf16.mxu0 0
    %2503 = vmatpush1.bf16.msra.mxu0 0
    %2504 = vmatprep.subr.bf16.mxu0 0
    %2505 = vmatpush1.bf16.msra.mxu0 0
    %2506 = vmatprep.subr.bf16.mxu0 0
    %2507 = vmatpush1.bf16.msra.mxu0 0
    %2508 = vmatprep.mubr.bf16.mxu0 0
    %2509 = vmatmul.mubr.bf16.gmra.mrb[0].mxu0 %v2434
    %v2510 = vpop.f32.mrb[0].mxu0
    %v2511 = vadd.f32 0.0, %v2510
    %v2512 = vpop.f32.mrb[0].mxu0
    %v2513 = vpop.f32.mrb[0].mxu0
    %v2514 = vpop.f32.mrb[0].mxu0
    %2515 = vdwg.mxu0
    %v2516 = vld [vmem:[%s1117] sm:$0xff]
    %v2517 = vld [vmem:[%s1117 + $0x8] sm:$0xff]
    %v2518 = vld [vmem:[%s1117 + $0x10] sm:$0xff]
    %v2519 = vadd.f32 %v2516, %v2470
    %v2520 = vxor.u32 %v2519, 2147483648
    %v2521 = vmul.f32 %v2520, 1.442695
    %v2522 = vpow.pop %v2521
    %v2523 = vadd.f32 %v2522, 1.0
    %v2524 = vrcp.pop %v2523
    %v2525 = vmul.f32 1.0, %v2524
    %v2526 = vadd.f32 %v2517, %v2472
    %v2527 = vxor.u32 %v2526, 2147483648
    %v2528 = vmul.f32 %v2527, 1.442695
    %v2529 = vpow.pop %v2528
    %v2530 = vadd.f32 %v2529, 1.0
    %v2531 = vrcp.pop %v2530
    %v2532 = vmul.f32 1.0, %v2531
    %v2533 = vadd.f32 %v2511, %v1772
    %v2534 = vmul.f32 %v2525, %v2533
    %v2535 = vadd.f32 %v2518, %v2534
    %v2536 = vtanh.pop %v2535
    %v2537 = vsub.f32 %v2433, %v2536
    %v2538 = vmul.f32 %v2532, %v2537
    %v2539 = vadd.f32 %v2536, %v2538
    %v2540 = vpack.c.bf16 %v2539, %v2539
    %2541 = vmatprep.subr.bf16.mxu0 %v1858
    %2542 = vmatpush1.bf16.msra.mxu0 %v1857
    %2543 = vmatprep.subr.bf16.mxu0 %v1861
    %2544 = vmatpush1.bf16.msra.mxu0 %v1860
    %2545 = vmatprep.subr.bf16.mxu0 %v1864
    %2546 = vmatpush1.bf16.msra.mxu0 %v1863
    %2547 = vmatprep.subr.bf16.mxu0 %v1867
    %2548 = vmatpush1.bf16.msra.mxu0 %v1866
    %2549 = vmatprep.subr.bf16.mxu0 %v1870
    %2550 = vmatpush1.bf16.msra.mxu0 %v1869
    %2551 = vmatprep.subr.bf16.mxu0 %v1873
    %2552 = vmatpush1.bf16.msra.mxu0 %v1872
    %2553 = vmatprep.subr.bf16.mxu0 %v1876
    %2554 = vmatpush1.bf16.msra.mxu0 %v1875
    %2555 = vmatprep.subr.bf16.mxu0 %v1879
    %2556 = vmatpush1.bf16.msra.mxu0 %v1878
    %2557 = vmatprep.subr.bf16.mxu0 0
    %2558 = vmatpush1.bf16.msra.mxu0 0
    %2559 = vmatprep.subr.bf16.mxu0 0
    %2560 = vmatpush1.bf16.msra.mxu0 0
    %2561 = vmatprep.subr.bf16.mxu0 0
    %2562 = vmatpush1.bf16.msra.mxu0 0
    %2563 = vmatprep.subr.bf16.mxu0 0
    %2564 = vmatpush1.bf16.msra.mxu0 0
    %2565 = vmatprep.subr.bf16.mxu0 0
    %2566 = vmatpush1.bf16.msra.mxu0 0
    %2567 = vmatprep.subr.bf16.mxu0 0
    %2568 = vmatpush1.bf16.msra.mxu0 0
    %2569 = vmatprep.subr.bf16.mxu0 0
    %2570 = vmatpush1.bf16.msra.mxu0 0
    %2571 = vmatprep.subr.bf16.mxu0 0
    %2572 = vmatpush1.bf16.msra.mxu0 0
    %2573 = vmatprep.mubr.bf16.mxu0 0
    %2574 = vmatmul.mubr.bf16.gmra.mrb[0].mxu0 %v2540
    %v2575 = vpop.f32.mrb[0].mxu0
    %v2576 = vadd.f32 0.0, %v2575
    %v2577 = vpop.f32.mrb[0].mxu0
    %v2578 = vadd.f32 0.0, %v2577
    %v2579 = vpop.f32.mrb[0].mxu0
    %v2580 = vpop.f32.mrb[0].mxu0
    %2581 = vdwg.mxu0
    %2582 = vmatprep.subr.bf16.mxu0 0
    %2583 = vmatpush1.bf16.msra.mxu0 %v1859
    %2584 = vmatprep.subr.bf16.mxu0 0
    %2585 = vmatpush1.bf16.msra.mxu0 %v1862
    %2586 = vmatprep.subr.bf16.mxu0 0
    %2587 = vmatpush1.bf16.msra.mxu0 %v1865
    %2588 = vmatprep.subr.bf16.mxu0 0
    %2589 = vmatpush1.bf16.msra.mxu0 %v1868
    %2590 = vmatprep.subr.bf16.mxu0 0
    %2591 = vmatpush1.bf16.msra.mxu0 %v1871
    %2592 = vmatprep.subr.bf16.mxu0 0
    %2593 = vmatpush1.bf16.msra.mxu0 %v1874
    %2594 = vmatprep.subr.bf16.mxu0 0
    %2595 = vmatpush1.bf16.msra.mxu0 %v1877
    %2596 = vmatprep.subr.bf16.mxu0 0
    %2597 = vmatpush1.bf16.msra.mxu0 %v1880
    %2598 = vmatprep.subr.bf16.mxu0 0
    %2599 = vmatpush1.bf16.msra.mxu0 0
    %2600 = vmatprep.subr.bf16.mxu0 0
    %2601 = vmatpush1.bf16.msra.mxu0 0
    %2602 = vmatprep.subr.bf16.mxu0 0
    %2603 = vmatpush1.bf16.msra.mxu0 0
    %2604 = vmatprep.subr.bf16.mxu0 0
    %2605 = vmatpush1.bf16.msra.mxu0 0
    %2606 = vmatprep.subr.bf16.mxu0 0
    %2607 = vmatpush1.bf16.msra.mxu0 0
    %2608 = vmatprep.subr.bf16.mxu0 0
    %2609 = vmatpush1.bf16.msra.mxu0 0
    %2610 = vmatprep.subr.bf16.mxu0 0
    %2611 = vmatpush1.bf16.msra.mxu0 0
    %2612 = vmatprep.subr.bf16.mxu0 0
    %2613 = vmatpush1.bf16.msra.mxu0 0
    %2614 = vmatprep.mubr.bf16.mxu0 0
    %2615 = vmatmul.mubr.bf16.gmra.mrb[0].mxu0 %v2540
    %v2616 = vpop.f32.mrb[0].mxu0
    %v2617 = vadd.f32 0.0, %v2616
    %v2618 = vpop.f32.mrb[0].mxu0
    %v2619 = vpop.f32.mrb[0].mxu0
    %v2620 = vpop.f32.mrb[0].mxu0
    %2621 = vdwg.mxu0
    %v2622 = vld [vmem:[%s1226] sm:$0xff]
    %v2623 = vld [vmem:[%s1226 + $0x8] sm:$0xff]
    %v2624 = vld [vmem:[%s1226 + $0x10] sm:$0xff]
    %v2625 = vadd.f32 %v2622, %v2576
    %v2626 = vxor.u32 %v2625, 2147483648
    %v2627 = vmul.f32 %v2626, 1.442695
    %v2628 = vpow.pop %v2627
    %v2629 = vadd.f32 %v2628, 1.0
    %v2630 = vrcp.pop %v2629
    %v2631 = vmul.f32 1.0, %v2630
    %v2632 = vadd.f32 %v2623, %v2578
    %v2633 = vxor.u32 %v2632, 2147483648
    %v2634 = vmul.f32 %v2633, 1.442695
    %v2635 = vpow.pop %v2634
    %v2636 = vadd.f32 %v2635, 1.0
    %v2637 = vrcp.pop %v2636
    %v2638 = vmul.f32 1.0, %v2637
    %v2639 = vadd.f32 %v2617, %v1772
    %v2640 = vmul.f32 %v2631, %v2639
    %v2641 = vadd.f32 %v2624, %v2640
    %v2642 = vtanh.pop %v2641
    %v2643 = vsub.f32 %v2539, %v2642
    %v2644 = vmul.f32 %v2638, %v2643
    %v2645 = vadd.f32 %v2642, %v2644
    %v2646 = vpack.c.bf16 %v2645, %v2645
    %2647 = vmatprep.subr.bf16.mxu0 %v1858
    %2648 = vmatpush1.bf16.msra.mxu0 %v1857
    %2649 = vmatprep.subr.bf16.mxu0 %v1861
    %2650 = vmatpush1.bf16.msra.mxu0 %v1860
    %2651 = vmatprep.subr.bf16.mxu0 %v1864
    %2652 = vmatpush1.bf16.msra.mxu0 %v1863
    %2653 = vmatprep.subr.bf16.mxu0 %v1867
    %2654 = vmatpush1.bf16.msra.mxu0 %v1866
    %2655 = vmatprep.subr.bf16.mxu0 %v1870
    %2656 = vmatpush1.bf16.msra.mxu0 %v1869
    %2657 = vmatprep.subr.bf16.mxu0 %v1873
    %2658 = vmatpush1.bf16.msra.mxu0 %v1872
    %2659 = vmatprep.subr.bf16.mxu0 %v1876
    %2660 = vmatpush1.bf16.msra.mxu0 %v1875
    %2661 = vmatprep.subr.bf16.mxu0 %v1879
    %2662 = vmatpush1.bf16.msra.mxu0 %v1878
    %2663 = vmatprep.subr.bf16.mxu0 0
    %2664 = vmatpush1.bf16.msra.mxu0 0
    %2665 = vmatprep.subr.bf16.mxu0 0
    %2666 = vmatpush1.bf16.msra.mxu0 0
    %2667 = vmatprep.subr.bf16.mxu0 0
    %2668 = vmatpush1.bf16.msra.mxu0 0
    %2669 = vmatprep.subr.bf16.mxu0 0
    %2670 = vmatpush1.bf16.msra.mxu0 0
    %2671 = vmatprep.subr.bf16.mxu0 0
    %2672 = vmatpush1.bf16.msra.mxu0 0
    %2673 = vmatprep.subr.bf16.mxu0 0
    %2674 = vmatpush1.bf16.msra.mxu0 0
    %2675 = vmatprep.subr.bf16.mxu0 0
    %2676 = vmatpush1.bf16.msra.mxu0 0
    %2677 = vmatprep.subr.bf16.mxu0 0
    %2678 = vmatpush1.bf16.msra.mxu0 0
    %2679 = vmatprep.mubr.bf16.mxu0 0
    %2680 = vmatmul.mubr.bf16.gmra.mrb[0].mxu0 %v2646
    %v2681 = vpop.f32.mrb[0].mxu0
    %v2682 = vadd.f32 0.0, %v2681
    %v2683 = vpop.f32.mrb[0].mxu0
    %v2684 = vadd.f32 0.0, %v2683
    %v2685 = vpop.f32.mrb[0].mxu0
    %v2686 = vpop.f32.mrb[0].mxu0
    %2687 = vdwg.mxu0
    %2688 = vmatprep.subr.bf16.mxu0 0
    %2689 = vmatpush1.bf16.msra.mxu0 %v1859
    %2690 = vmatprep.subr.bf16.mxu0 0
    %2691 = vmatpush1.bf16.msra.mxu0 %v1862
    %2692 = vmatprep.subr.bf16.mxu0 0
    %2693 = vmatpush1.bf16.msra.mxu0 %v1865
    %2694 = vmatprep.subr.bf16.mxu0 0
    %2695 = vmatpush1.bf16.msra.mxu0 %v1868
    %2696 = vmatprep.subr.bf16.mxu0 0
    %2697 = vmatpush1.bf16.msra.mxu0 %v1871
    %2698 = vmatprep.subr.bf16.mxu0 0
    %2699 = vmatpush1.bf16.msra.mxu0 %v1874
    %2700 = vmatprep.subr.bf16.mxu0 0
    %2701 = vmatpush1.bf16.msra.mxu0 %v1877
    %2702 = vmatprep.subr.bf16.mxu0 0
    %2703 = vmatpush1.bf16.msra.mxu0 %v1880
    %2704 = vmatprep.subr.bf16.mxu0 0
    %2705 = vmatpush1.bf16.msra.mxu0 0
    %2706 = vmatprep.subr.bf16.mxu0 0
    %2707 = vmatpush1.bf16.msra.mxu0 0
    %2708 = vmatprep.subr.bf16.mxu0 0
    %2709 = vmatpush1.bf16.msra.mxu0 0
    %2710 = vmatprep.subr.bf16.mxu0 0
    %2711 = vmatpush1.bf16.msra.mxu0 0
    %2712 = vmatprep.subr.bf16.mxu0 0
    %2713 = vmatpush1.bf16.msra.mxu0 0
    %2714 = vmatprep.subr.bf16.mxu0 0
    %2715 = vmatpush1.bf16.msra.mxu0 0
    %2716 = vmatprep.subr.bf16.mxu0 0
    %2717 = vmatpush1.bf16.msra.mxu0 0
    %2718 = vmatprep.subr.bf16.mxu0 0
    %2719 = vmatpush1.bf16.msra.mxu0 0
    %2720 = vmatprep.mubr.bf16.mxu0 0
    %2721 = vmatmul.mubr.bf16.gmra.mrb[0].mxu0 %v2646
    %v2722 = vpop.f32.mrb[0].mxu0
    %v2723 = vadd.f32 0.0, %v2722
    %v2724 = vpop.f32.mrb[0].mxu0
    %v2725 = vpop.f32.mrb[0].mxu0
    %v2726 = vpop.f32.mrb[0].mxu0
    %2727 = vdwg.mxu0
    %v2728 = vld [vmem:[%s1335] sm:$0xff]
    %v2729 = vld [vmem:[%s1335 + $0x8] sm:$0xff]
    %v2730 = vld [vmem:[%s1335 + $0x10] sm:$0xff]
    %v2731 = vadd.f32 %v2728, %v2682
    %v2732 = vxor.u32 %v2731, 2147483648
    %v2733 = vmul.f32 %v2732, 1.442695
    %v2734 = vpow.pop %v2733
    %v2735 = vadd.f32 %v2734, 1.0
    %v2736 = vrcp.pop %v2735
    %v2737 = vmul.f32 1.0, %v2736
    %v2738 = vadd.f32 %v2729, %v2684
    %v2739 = vxor.u32 %v2738, 2147483648
    %v2740 = vmul.f32 %v2739, 1.442695
    %v2741 = vpow.pop %v2740
    %v2742 = vadd.f32 %v2741, 1.0
    %v2743 = vrcp.pop %v2742
    %v2744 = vmul.f32 1.0, %v2743
    %v2745 = vadd.f32 %v2723, %v1772
    %v2746 = vmul.f32 %v2737, %v2745
    %v2747 = vadd.f32 %v2730, %v2746
    %v2748 = vtanh.pop %v2747
    %v2749 = vsub.f32 %v2645, %v2748
    %v2750 = vmul.f32 %v2744, %v2749
    %v2751 = vadd.f32 %v2748, %v2750
    %2752 = vst [vmem:[%s1774] sm:$0xff] %v2751
    // Predicated region
    $region66: #{tpu_custom_call.1} parent=1 // pred_check
      %p2753 = pneg %p84
    $region67: #{tpu_custom_call.1} parent=1 // pred_check_branch
      %2755 = sbr.rel (%p2753) target = $region69
    $region68: #{tpu_custom_call.1} parent=1 // pred_region
      %v2756 = vld [vmem:[%s1774] sm:$0xff]
      %v2757 = vpack.c.bf16 %v2756, %v2756
      %v2758 = vld [vmem:[%s10] sm:$0xf]
      %v2759 = vld [vmem:[%s10 + $0x4] sm:$0xf]
      %v2760 = vld [vmem:[%s10 + $0x8] sm:$0xf]
      %v2761 = vld [vmem:[%s10 + $0xc] sm:$0xf]
      %v2762 = vld [vmem:[%s10 + $0x10] sm:$0xf]
      %v2763 = vld [vmem:[%s10 + $0x14] sm:$0xf]
      %v2764 = vld [vmem:[%s10 + $0x18] sm:$0xf]
      %v2765 = vld [vmem:[%s10 + $0x1c] sm:$0xf]
      %v2766 = vld [vmem:[%s10 + $0x20] sm:$0xf]
      %v2767 = vld [vmem:[%s10 + $0x24] sm:$0xf]
      %v2768 = vld [vmem:[%s10 + $0x28] sm:$0xf]
      %v2769 = vld [vmem:[%s10 + $0x2c] sm:$0xf]
      %v2770 = vld [vmem:[%s10 + $0x30] sm:$0xf]
      %v2771 = vld [vmem:[%s10 + $0x34] sm:$0xf]
      %v2772 = vld [vmem:[%s10 + $0x38] sm:$0xf]
      %v2773 = vld [vmem:[%s10 + $0x3c] sm:$0xf]
      %v2774 = vld [vmem:[%s11] sm:$0x1]
      %v2776 = vlaneseq
      %v2777 = vshrl.u32 %v2776, 7
      %v2778 = vsub.s32 0, %v2777
      %v2779 = vrot.slane %v2774, %v2778
      %v2797 = vunpack.c.l.b16 %v2758
      %v2798 = vunpack.c.l.b16 %v2759
      %v2799 = vunpack.c.l.b16 %v2760
      %v2800 = vunpack.c.l.b16 %v2761
      %v2801 = vunpack.c.l.b16 %v2762
      %v2802 = vunpack.c.l.b16 %v2763
      %v2803 = vunpack.c.l.b16 %v2764
      %v2804 = vunpack.c.l.b16 %v2765
      %v2805 = vunpack.c.l.b16 %v2766
      %v2806 = vunpack.c.l.b16 %v2767
      %v2807 = vunpack.c.l.b16 %v2768
      %v2808 = vunpack.c.l.b16 %v2769
      %v2809 = vunpack.c.l.b16 %v2770
      %v2810 = vunpack.c.l.b16 %v2771
      %v2811 = vunpack.c.l.b16 %v2772
      %v2812 = vunpack.c.l.b16 %v2773
      %v2813 = vpack.c.b16 %v2798, %v2797
      %v2814 = vpack.c.b16 %v2800, %v2799
      %v2815 = vpack.c.b16 %v2802, %v2801
      %v2816 = vpack.c.b16 %v2804, %v2803
      %v2817 = vpack.c.b16 %v2806, %v2805
      %v2818 = vpack.c.b16 %v2808, %v2807
      %v2819 = vpack.c.b16 %v2810, %v2809
      %v2820 = vpack.c.b16 %v2812, %v2811
      %2829 = vmatprep.subr.bf16.mxu0 0
      %2830 = vmatpush1.bf16.msra.mxu0 %v2813
      %2831 = vmatprep.subr.bf16.mxu0 0
      %2832 = vmatpush1.bf16.msra.mxu0 %v2814
      %2833 = vmatprep.subr.bf16.mxu0 0
      %2834 = vmatpush1.bf16.msra.mxu0 %v2815
      %2835 = vmatprep.subr.bf16.mxu0 0
      %2836 = vmatpush1.bf16.msra.mxu0 %v2816
      %2837 = vmatprep.subr.bf16.mxu0 0
      %2838 = vmatpush1.bf16.msra.mxu0 %v2817
      %2839 = vmatprep.subr.bf16.mxu0 0
      %2840 = vmatpush1.bf16.msra.mxu0 %v2818
      %2841 = vmatprep.subr.bf16.mxu0 0
      %2842 = vmatpush1.bf16.msra.mxu0 %v2819
      %2843 = vmatprep.subr.bf16.mxu0 0
      %2844 = vmatpush1.bf16.msra.mxu0 %v2820
      %2845 = vmatprep.subr.bf16.mxu0 0
      %2846 = vmatpush1.bf16.msra.mxu0 0
      %2847 = vmatprep.subr.bf16.mxu0 0
      %2848 = vmatpush1.bf16.msra.mxu0 0
      %2849 = vmatprep.subr.bf16.mxu0 0
      %2850 = vmatpush1.bf16.msra.mxu0 0
      %2851 = vmatprep.subr.bf16.mxu0 0
      %2852 = vmatpush1.bf16.msra.mxu0 0
      %2853 = vmatprep.subr.bf16.mxu0 0
      %2854 = vmatpush1.bf16.msra.mxu0 0
      %2855 = vmatprep.subr.bf16.mxu0 0
      %2856 = vmatpush1.bf16.msra.mxu0 0
      %2857 = vmatprep.subr.bf16.mxu0 0
      %2858 = vmatpush1.bf16.msra.mxu0 0
      %2859 = vmatprep.subr.bf16.mxu0 0
      %2860 = vmatpush1.bf16.msra.mxu0 0
      %2861 = vmatprep.mubr.bf16.mxu0 0
      %2862 = vmatmul.mubr.bf16.gmra.mrb[0].mxu0 %v2757
      %v2863 = vpop.f32.mrb[0].mxu0
      %v2864 = vadd.f32 %v2779, %v2863
      %v2865 = vpop.f32.mrb[0].mxu0
      %v2866 = vpop.f32.mrb[0].mxu0
      %v2867 = vpop.f32.mrb[0].mxu0
      %2868 = vdwg.mxu0
      %2869 = vst [vmem:[#allocation11] sm:$0xff] %v2864
    $region69: #{tpu_custom_call.1} parent=1 // pred_fallthru
      _
    // Predicated region
    $region70: #{tpu_custom_call.1} parent=1 // pred_check
      _
    $region71: #{tpu_custom_call.1} parent=1 // pred_check_branch
      %2871 = sbr.rel (0) target = $region73
    $region72: #{tpu_custom_call.1} parent=1 // pred_region
      %s2873 = ssub.s32 128, 128
      %2874 = vsyncadd [#allocation7], %s2873
      %s2876 = sshll.u32 [#allocation11], 4
      %s2877 = int_to_ptr.vmem [resolvable:$true] %s2876
      %2879 = dma.vmem_to_hbm [thread:$0]  %s2877, 128, %s12, [#allocation7]
    $region73: #{tpu_custom_call.1} parent=1 // pred_fallthru
      _
    // Predicated region
    $region74: #{tpu_custom_call.1} parent=1 // pred_check
      _
    $region75: #{tpu_custom_call.1} parent=1 // pred_check_branch
      %2881 = sbr.rel (0) target = $region77
    $region76: #{tpu_custom_call.1} parent=1 // pred_region
      %2882 = dma.done [#allocation7], 128
    $region77: #{tpu_custom_call.1} parent=1 // pred_fallthru
      _
    %2883 = vsyncpa [#allocation6], 1
    %2884 = vsyncpa [#allocation9], 1
    %2885 = vsyncpa [#allocation7], 1

// kernel: tpu_custom_call.1
$region0: #{tpu_custom_call.1}
  #allocation0 [shape = 'u32[]', space=smem, size = 0x4, offset = 0x4, fixed_abs, tag = 'smem constant byte address 0x4 - core index']
  #allocation1 [shape = 'u32[144,128]{1,0:T(1,128)}', space=vmem, size = 0x12000, scoped, tag = 'internal scratch']
  #allocation2 [shape = 'f32[2,8,128]{2,1,0:T(8,128)}', space=vmem, size = 0x2000, scoped, tag = 'scratch operand']
  #allocation3 [shape = 'bf16[8,8,128]{2,1,0:T(8,128)(2,1)}', space=vmem, size = 0x4000, scoped, tag = 'scratch operand']
  #allocation4 [shape = 'f32[8,8,384]{2,1,0:T(8,128)}', space=vmem, size = 0x18000, scoped, tag = 'scratch operand']
  %s0 = inlined_call_operand.vmem [shape: f32[8,8,4], index: 0, kind: input, shape index: {}]
  %s1 = inlined_call_operand.vmem [shape: f32[2,8,128], index: 1, kind: input, shape index: {}]
  %s2 = inlined_call_operand.vmem [shape: bf16[4,384], index: 2, kind: input, shape index: {}]
  %s3 = inlined_call_operand.hbm [shape: bf16[128,384], index: 3, kind: input, shape index: {}]
  %s4 = inlined_call_operand.vmem [shape: f32[1,384], index: 4, kind: input, shape index: {}]
  %s5 = inlined_call_operand.vmem [shape: f32[1,128], index: 5, kind: input, shape index: {}]
  %s6 = inlined_call_operand.hbm [shape: bf16[128,384], index: 6, kind: input, shape index: {}]
  %s7 = inlined_call_operand.hbm [shape: bf16[128,384], index: 7, kind: input, shape index: {}]
  %s8 = inlined_call_operand.vmem [shape: f32[1,384], index: 8, kind: input, shape index: {}]
  %s9 = inlined_call_operand.vmem [shape: f32[1,128], index: 9, kind: input, shape index: {}]
  %s10 = inlined_call_operand.vmem [shape: bf16[128,128], index: 10, kind: input, shape index: {}]
  %s11 = inlined_call_operand.vmem [shape: f32[1,128], index: 11, kind: input, shape index: {}]
  %s12 = inlined_call_operand.hbm [shape: f32[8,128], index: 12, kind: output, shape index: {}]
  %s13 = sld [smem:[#allocation0]]
  $region78: #{tpu_custom_call.1} parent=0
    _
  %s15 = ssub.s32 1, %s13
  %s16 = scalar_select 0, %s15, %s13
  $region1: #{tpu_custom_call.1} parent=0
    #allocation5 [shape = 'u8[98304]{0}', space=vmem, size = 0x18000, scoped, tag = 'input window, operand 3, single buffered']
    #allocation6 [shape = 's32[1]{0}', space=sflag, size = 0x4, scoped, tag = 'scoped memory for tpu_custom_call.1']
    #allocation7 [shape = 's32[1]{0}', space=sflag, size = 0x4, scoped, tag = 'scoped memory for tpu_custom_call.1']
    #allocation8 [shape = 'u8[98304]{0}', space=vmem, size = 0x18000, scoped, tag = 'input window, operand 6, single buffered']
    #allocation9 [shape = 's32[1]{0}', space=sflag, size = 0x4, scoped, tag = 'scoped memory for tpu_custom_call.1']
    #allocation10 [shape = 'u8[98304]{0}', space=vmem, size = 0x18000, scoped, tag = 'input window, operand 7, single buffered']
    #allocation11 [shape = 'u8[4096]{0}', space=vmem, size = 0x1000, scoped, tag = 'output window, operand 0, single buffered']
    %17 = vsyncpa [#allocation6], 0
    %18 = vsyncpa [#allocation9], 0
    %19 = vsyncpa [#allocation7], 0
    // Predicated region
    $region2: #{tpu_custom_call.1} parent=1 // pred_check
      _
    $region3: #{tpu_custom_call.1} parent=1 // pred_check_branch
      %21 = sbr.rel (0) target = $region5
    $region4: #{tpu_custom_call.1} parent=1 // pred_region
      _
    $region5: #{tpu_custom_call.1} parent=1 // pred_fallthru
      _
    // Predicated region
    $region6: #{tpu_custom_call.1} parent=1 // pred_check
      _
    $region7: #{tpu_custom_call.1} parent=1 // pred_check_branch
      %23 = sbr.rel (0) target = $region9
    $region8: #{tpu_custom_call.1} parent=1 // pred_region
      _
    $region9: #{tpu_custom_call.1} parent=1 // pred_fallthru
      _
    // Predicated region
    $region10: #{tpu_custom_call.1} parent=1 // pred_check
      _
    $region11: #{tpu_custom_call.1} parent=1 // pred_check_branch
      %25 = sbr.rel (0) target = $region13
    $region12: #{tpu_custom_call.1} parent=1 // pred_region
      _
    $region13: #{tpu_custom_call.1} parent=1 // pred_fallthru
      _
    // Predicated region
    $region14: #{tpu_custom_call.1} parent=1 // pred_check
      _
    $region15: #{tpu_custom_call.1} parent=1 // pred_check_branch
      %27 = sbr.rel (0) target = $region17
    $region16: #{tpu_custom_call.1} parent=1 // pred_region
      %s29 = ssub.s32 3072, 3072
      %30 = vsyncadd [#allocation6], %s29
      %s31 = sshll.u32 [#allocation5], 4
      %s32 = int_to_ptr.vmem [resolvable:$true] %s31
      %37 = dma.hbm_to_vmem [thread:$0]  %s3, 3072, %s32, [#allocation6], 192, 192, 12
    $region17: #{tpu_custom_call.1} parent=1 // pred_fallthru
      _
    // Predicated region
    $region18: #{tpu_custom_call.1} parent=1 // pred_check
      _
    $region19: #{tpu_custom_call.1} parent=1 // pred_check_branch
      %39 = sbr.rel (0) target = $region21
    $region20: #{tpu_custom_call.1} parent=1 // pred_region
      _
    $region21: #{tpu_custom_call.1} parent=1 // pred_fallthru
      _
    // Predicated region
    $region22: #{tpu_custom_call.1} parent=1 // pred_check
      _
    $region23: #{tpu_custom_call.1} parent=1 // pred_check_branch
      %41 = sbr.rel (0) target = $region25
    $region24: #{tpu_custom_call.1} parent=1 // pred_region
      _
    $region25: #{tpu_custom_call.1} parent=1 // pred_fallthru
      _
    // Predicated region
    $region26: #{tpu_custom_call.1} parent=1 // pred_check
      _
    $region27: #{tpu_custom_call.1} parent=1 // pred_check_branch
      %43 = sbr.rel (0) target = $region29
    $region28: #{tpu_custom_call.1} parent=1 // pred_region
      %s45 = ssub.s32 3072, 3072
      %46 = vsyncadd [#allocation9], %s45
      %s47 = sshll.u32 [#allocation8], 4
      %s48 = int_to_ptr.vmem [resolvable:$true] %s47
      %53 = dma.hbm_to_vmem [thread:$0]  %s6, 3072, %s48, [#allocation9], 192, 192, 12
    $region29: #{tpu_custom_call.1} parent=1 // pred_fallthru
      _
    // Predicated region
    $region30: #{tpu_custom_call.1} parent=1 // pred_check
      _
    $region31: #{tpu_custom_call.1} parent=1 // pred_check_branch
      %55 = sbr.rel (0) target = $region33
    $region32: #{tpu_custom_call.1} parent=1 // pred_region
      %s57 = ssub.s32 3072, 3072
      %58 = vsyncadd [#allocation9], %s57
      %s59 = sshll.u32 [#allocation10], 4
      %s60 = int_to_ptr.vmem [resolvable:$true] %s59
      %65 = dma.hbm_to_vmem [thread:$0]  %s7, 3072, %s60, [#allocation9], 192, 192, 12
    $region33: #{tpu_custom_call.1} parent=1 // pred_fallthru
      _
    // Predicated region
    $region34: #{tpu_custom_call.1} parent=1 // pred_check
      _
    $region35: #{tpu_custom_call.1} parent=1 // pred_check_branch
      %67 = sbr.rel (0) target = $region37
    $region36: #{tpu_custom_call.1} parent=1 // pred_region
      _
    $region37: #{tpu_custom_call.1} parent=1 // pred_fallthru
      _
    // Predicated region
    $region38: #{tpu_custom_call.1} parent=1 // pred_check
      _
    $region39: #{tpu_custom_call.1} parent=1 // pred_check_branch
      %69 = sbr.rel (0) target = $region41
    $region40: #{tpu_custom_call.1} parent=1 // pred_region
      _
    $region41: #{tpu_custom_call.1} parent=1 // pred_fallthru
      _
    // Predicated region
    $region42: #{tpu_custom_call.1} parent=1 // pred_check
      _
    $region43: #{tpu_custom_call.1} parent=1 // pred_check_branch
      %71 = sbr.rel (0) target = $region45
    $region44: #{tpu_custom_call.1} parent=1 // pred_region
      _
    $region45: #{tpu_custom_call.1} parent=1 // pred_fallthru
      _
    // Predicated region
    $region46: #{tpu_custom_call.1} parent=1 // pred_check
      _
    $region47: #{tpu_custom_call.1} parent=1 // pred_check_branch
      %73 = sbr.rel (0) target = $region49
    $region48: #{tpu_custom_call.1} parent=1 // pred_region
      _
    $region49: #{tpu_custom_call.1} parent=1 // pred_fallthru
      _
    // Predicated region
    $region50: #{tpu_custom_call.1} parent=1 // pred_check
      _
    $region51: #{tpu_custom_call.1} parent=1 // pred_check_branch
      %75 = sbr.rel (0) target = $region53
    $region52: #{tpu_custom_call.1} parent=1 // pred_region
      %76 = dma.done [#allocation6], 3072
    $region53: #{tpu_custom_call.1} parent=1 // pred_fallthru
      _
    // Predicated region
    $region54: #{tpu_custom_call.1} parent=1 // pred_check
      _
    $region55: #{tpu_custom_call.1} parent=1 // pred_check_branch
      %78 = sbr.rel (0) target = $region57
    $region56: #{tpu_custom_call.1} parent=1 // pred_region
      %79 = dma.done [#allocation9], 3072
    $region57: #{tpu_custom_call.1} parent=1 // pred_fallthru
      _
    // Predicated region
    $region58: #{tpu_custom_call.1} parent=1 // pred_check
      _
    $region59: #{tpu_custom_call.1} parent=1 // pred_check_branch
      %81 = sbr.rel (0) target = $region61
    $region60: #{tpu_custom_call.1} parent=1 // pred_region
      %82 = dma.done [#allocation9], 3072
    $region61: #{tpu_custom_call.1} parent=1 // pred_fallthru
      _
    %p84 = scmp.eq.s32.totalorder 0, 0
    // Predicated region
    $region62: #{tpu_custom_call.1} parent=1 // pred_check
      %p85 = pneg %p84
    $region63: #{tpu_custom_call.1} parent=1 // pred_check_branch
      %87 = sbr.rel (%p85) target = $region65
    $region64: #{tpu_custom_call.1} parent=1 // pred_region
      %v88 = vld [vmem:[%s1] sm:$0xff]
      %v89 = vld [vmem:[%s1 + $0x8] sm:$0xff]
      %90 = vst [vmem:[#allocation2] sm:$0xff] %v88
      %91 = vst [vmem:[#allocation2 + $0x8] sm:$0xff] %v89
    $region65: #{tpu_custom_call.1} parent=1 // pred_fallthru
      _
    %v92 = vld [vmem:[%s2] sm:$0x3f]
    %v93 = vld [vmem:[#allocation5] sm:$0xff]
    %v94 = vld [vmem:[#allocation5 + $0x8] sm:$0xf]
    %v95 = vld [vmem:[#allocation5 + $0xc] sm:$0xff]
    %v96 = vld [vmem:[#allocation5 + $0x14] sm:$0xf]
    %v97 = vld [vmem:[#allocation5 + $0x18] sm:$0xff]
    %v98 = vld [vmem:[#allocation5 + $0x20] sm:$0xf]
    %v99 = vld [vmem:[#allocation5 + $0x24] sm:$0xff]
    %v100 = vld [vmem:[#allocation5 + $0x2c] sm:$0xf]
    %v101 = vld [vmem:[#allocation5 + $0x30] sm:$0xff]
    %v102 = vld [vmem:[#allocation5 + $0x38] sm:$0xf]
    %v103 = vld [vmem:[#allocation5 + $0x3c] sm:$0xff]
    %v104 = vld [vmem:[#allocation5 + $0x44] sm:$0xf]
    %v105 = vld [vmem:[#allocation5 + $0x48] sm:$0xff]
    %v106 = vld [vmem:[#allocation5 + $0x50] sm:$0xf]
    %v107 = vld [vmem:[#allocation5 + $0x54] sm:$0xff]
    %v108 = vld [vmem:[#allocation5 + $0x5c] sm:$0xf]
    %v109 = vld [vmem:[#allocation5 + $0x60] sm:$0xff]
    %v110 = vld [vmem:[#allocation5 + $0x68] sm:$0xf]
    %v111 = vld [vmem:[#allocation5 + $0x6c] sm:$0xff]
    %v112 = vld [vmem:[#allocation5 + $0x74] sm:$0xf]
    %v113 = vld [vmem:[#allocation5 + $0x78] sm:$0xff]
    %v114 = vld [vmem:[#allocation5 + $0x80] sm:$0xf]
    %v115 = vld [vmem:[#allocation5 + $0x84] sm:$0xff]
    %v116 = vld [vmem:[#allocation5 + $0x8c] sm:$0xf]
    %v117 = vld [vmem:[#allocation5 + $0x90] sm:$0xff]
    %v118 = vld [vmem:[#allocation5 + $0x98] sm:$0xf]
    %v119 = vld [vmem:[#allocation5 + $0x9c] sm:$0xff]
    %v120 = vld [vmem:[#allocation5 + $0xa4] sm:$0xf]
    %v121 = vld [vmem:[#allocation5 + $0xa8] sm:$0xff]
    %v122 = vld [vmem:[#allocation5 + $0xb0] sm:$0xf]
    %v123 = vld [vmem:[#allocation5 + $0xb4] sm:$0xff]
    %v124 = vld [vmem:[#allocation5 + $0xbc] sm:$0xf]
    %v125 = vld [vmem:[%s4] sm:$0x7]
    %v126 = vld [vmem:[%s5] sm:$0x1]
    %v127 = vld [vmem:[%s0] sm:$0xff]
    %v128 = vld [vmem:[%s0 + $0x8] sm:$0xff]
    %v129 = vld [vmem:[%s0 + $0x10] sm:$0xff]
    %v130 = vld [vmem:[%s0 + $0x18] sm:$0xff]
    %v131 = vld [vmem:[%s0 + $0x20] sm:$0xff]
    %v132 = vld [vmem:[%s0 + $0x28] sm:$0xff]
    %v133 = vld [vmem:[%s0 + $0x30] sm:$0xff]
    %v134 = vld [vmem:[%s0 + $0x38] sm:$0xff]
    %v135 = vpack.c.bf16 %v128, %v127
    %v136 = vpack.c.bf16 %v130, %v129
    %v137 = vpack.c.bf16 %v132, %v131
    %v138 = vpack.c.bf16 %v134, %v133
    %v140 = vlaneseq
    %v141 = vshrl.u32 %v140, 7
    %v142 = vsub.s32 0, %v141
    %v143 = vrot.slane %v125, %v142
    %v144 = vlaneseq
    %v145 = vshrl.u32 %v144, 7
    %v146 = vsub.s32 1, %v145
    %v147 = vrot.slane %v125, %v146
    %v148 = vlaneseq
    %v149 = vshrl.u32 %v148, 7
    %v150 = vsub.s32 2, %v149
    %v151 = vrot.slane %v125, %v150
    %v156 = vcombine.high %v92, %v92
    %v158 = vunpack.c.l.s4 1983009808
    %v159 = vunpack.c.0.s8 %v158
    %v160 = vlaneseq
    %v161 = vshrl.u32 %v160, 7
    %v162 = vsub.s32 %v159, %v161
    %v163 = vrot.slane %v92, %v162
    %v165 = vunpack.c.l.s4 1983009808
    %v166 = vunpack.c.0.s8 %v165
    %v167 = vlaneseq
    %v168 = vshrl.u32 %v167, 7
    %v169 = vsub.s32 %v166, %v168
    %v170 = vrot.slane %v156, %v169
    %v171 = vcombine.high %v163, %v163
    %vm172 = vcmask 31744
    %v174 = vsel %vm172, %v135, 0
    %v177 = vsel %vm172, %v136, 0
    %v180 = vsel %vm172, %v137, 0
    %v183 = vsel %vm172, %v138, 0
    %vm185 = vcmask 1041408
    %v187 = vsel %vm185, %v163, 0
    %v190 = vsel %vm185, %v171, 0
    %v193 = vsel %vm185, %v170, 0
    %195 = vmatprep.subr.bf16.mxu0 %v190
    %196 = vmatpush1.bf16.msra.mxu0 %v187
    %197 = vmatprep.subr.bf16.mxu0 0
    %198 = vmatpush1.bf16.msra.mxu0 0
    %199 = vmatprep.subr.bf16.mxu0 0
    %200 = vmatpush1.bf16.msra.mxu0 0
    %201 = vmatprep.subr.bf16.mxu0 0
    %202 = vmatpush1.bf16.msra.mxu0 0
    %203 = vmatprep.subr.bf16.mxu0 0
    %204 = vmatpush1.bf16.msra.mxu0 0
    %205 = vmatprep.subr.bf16.mxu0 0
    %206 = vmatpush1.bf16.msra.mxu0 0
    %207 = vmatprep.subr.bf16.mxu0 0
    %208 = vmatpush1.bf16.msra.mxu0 0
    %209 = vmatprep.subr.bf16.mxu0 0
    %210 = vmatpush1.bf16.msra.mxu0 0
    %211 = vmatprep.subr.bf16.mxu0 0
    %212 = vmatpush1.bf16.msra.mxu0 0
    %213 = vmatprep.subr.bf16.mxu0 0
    %214 = vmatpush1.bf16.msra.mxu0 0
    %215 = vmatprep.subr.bf16.mxu0 0
    %216 = vmatpush1.bf16.msra.mxu0 0
    %217 = vmatprep.subr.bf16.mxu0 0
    %218 = vmatpush1.bf16.msra.mxu0 0
    %219 = vmatprep.subr.bf16.mxu0 0
    %220 = vmatpush1.bf16.msra.mxu0 0
    %221 = vmatprep.subr.bf16.mxu0 0
    %222 = vmatpush1.bf16.msra.mxu0 0
    %223 = vmatprep.subr.bf16.mxu0 0
    %224 = vmatpush1.bf16.msra.mxu0 0
    %225 = vmatprep.subr.bf16.mxu0 0
    %226 = vmatpush1.bf16.msra.mxu0 0
    %227 = vmatprep.mubr.bf16.mxu0 0
    %228 = vmatmul.mubr.bf16.gmra.mrb[0].mxu0 %v174
    %v229 = vpop.f32.mrb[0].mxu0
    %v230 = vadd.f32 %v143, %v229
    %v231 = vpop.f32.mrb[0].mxu0
    %v232 = vadd.f32 %v147, %v231
    %v233 = vpop.f32.mrb[0].mxu0
    %v234 = vadd.f32 %v143, %v233
    %v235 = vpop.f32.mrb[0].mxu0
    %v236 = vadd.f32 %v147, %v235
    %237 = vmatprep.mubr.bf16.mxu0 0
    %238 = vmatmul.mubr.bf16.gmra.mrb[0].mxu0 %v177
    %v239 = vpop.f32.mrb[0].mxu0
    %v240 = vadd.f32 %v143, %v239
    %v241 = vpop.f32.mrb[0].mxu0
    %v242 = vadd.f32 %v147, %v241
    %v243 = vpop.f32.mrb[0].mxu0
    %v244 = vadd.f32 %v143, %v243
    %v245 = vpop.f32.mrb[0].mxu0
    %v246 = vadd.f32 %v147, %v245
    %247 = vmatprep.mubr.bf16.mxu0 0
    %248 = vmatmul.mubr.bf16.gmra.mrb[0].mxu0 %v180
    %v249 = vpop.f32.mrb[0].mxu0
    %v250 = vadd.f32 %v143, %v249
    %v251 = vpop.f32.mrb[0].mxu0
    %v252 = vadd.f32 %v147, %v251
    %v253 = vpop.f32.mrb[0].mxu0
    %v254 = vadd.f32 %v143, %v253
    %v255 = vpop.f32.mrb[0].mxu0
    %v256 = vadd.f32 %v147, %v255
    %257 = vmatprep.mubr.bf16.mxu0 0
    %258 = vmatmul.mubr.bf16.gmra.mrb[0].mxu0 %v183
    %v259 = vpop.f32.mrb[0].mxu0
    %v260 = vadd.f32 %v143, %v259
    %v261 = vpop.f32.mrb[0].mxu0
    %v262 = vadd.f32 %v147, %v261
    %v263 = vpop.f32.mrb[0].mxu0
    %v264 = vadd.f32 %v143, %v263
    %v265 = vpop.f32.mrb[0].mxu0
    %v266 = vadd.f32 %v147, %v265
    %267 = vdwg.mxu0
    %268 = vmatprep.subr.bf16.mxu0 0
    %269 = vmatpush1.bf16.msra.mxu0 %v193
    %270 = vmatprep.subr.bf16.mxu0 0
    %271 = vmatpush1.bf16.msra.mxu0 0
    %272 = vmatprep.subr.bf16.mxu0 0
    %273 = vmatpush1.bf16.msra.mxu0 0
    %274 = vmatprep.subr.bf16.mxu0 0
    %275 = vmatpush1.bf16.msra.mxu0 0
    %276 = vmatprep.subr.bf16.mxu0 0
    %277 = vmatpush1.bf16.msra.mxu0 0
    %278 = vmatprep.subr.bf16.mxu0 0
    %279 = vmatpush1.bf16.msra.mxu0 0
    %280 = vmatprep.subr.bf16.mxu0 0
    %281 = vmatpush1.bf16.msra.mxu0 0
    %282 = vmatprep.subr.bf16.mxu0 0
    %283 = vmatpush1.bf16.msra.mxu0 0
    %284 = vmatprep.subr.bf16.mxu0 0
    %285 = vmatpush1.bf16.msra.mxu0 0
    %286 = vmatprep.subr.bf16.mxu0 0
    %287 = vmatpush1.bf16.msra.mxu0 0
    %288 = vmatprep.subr.bf16.mxu0 0
    %289 = vmatpush1.bf16.msra.mxu0 0
    %290 = vmatprep.subr.bf16.mxu0 0
    %291 = vmatpush1.bf16.msra.mxu0 0
    %292 = vmatprep.subr.bf16.mxu0 0
    %293 = vmatpush1.bf16.msra.mxu0 0
    %294 = vmatprep.subr.bf16.mxu0 0
    %295 = vmatpush1.bf16.msra.mxu0 0
    %296 = vmatprep.subr.bf16.mxu0 0
    %297 = vmatpush1.bf16.msra.mxu0 0
    %298 = vmatprep.subr.bf16.mxu0 0
    %299 = vmatpush1.bf16.msra.mxu0 0
    %300 = vmatprep.mubr.bf16.mxu0 0
    %301 = vmatmul.mubr.bf16.gmra.mrb[0].mxu0 %v174
    %v302 = vpop.f32.mrb[0].mxu0
    %v303 = vadd.f32 %v151, %v302
    %v304 = vpop.f32.mrb[0].mxu0
    %v305 = vpop.f32.mrb[0].mxu0
    %v306 = vadd.f32 %v151, %v305
    %v307 = vpop.f32.mrb[0].mxu0
    %308 = vmatprep.mubr.bf16.mxu0 0
    %309 = vmatmul.mubr.bf16.gmra.mrb[0].mxu0 %v177
    %v310 = vpop.f32.mrb[0].mxu0
    %v311 = vadd.f32 %v151, %v310
    %v312 = vpop.f32.mrb[0].mxu0
    %v313 = vpop.f32.mrb[0].mxu0
    %v314 = vadd.f32 %v151, %v313
    %v315 = vpop.f32.mrb[0].mxu0
    %316 = vmatprep.mubr.bf16.mxu0 0
    %317 = vmatmul.mubr.bf16.gmra.mrb[0].mxu0 %v180
    %v318 = vpop.f32.mrb[0].mxu0
    %v319 = vadd.f32 %v151, %v318
    %v320 = vpop.f32.mrb[0].mxu0
    %v321 = vpop.f32.mrb[0].mxu0
    %v322 = vadd.f32 %v151, %v321
    %v323 = vpop.f32.mrb[0].mxu0
    %324 = vmatprep.mubr.bf16.mxu0 0
    %325 = vmatmul.mubr.bf16.gmra.mrb[0].mxu0 %v183
    %v326 = vpop.f32.mrb[0].mxu0
    %v327 = vadd.f32 %v151, %v326
    %v328 = vpop.f32.mrb[0].mxu0
    %v329 = vpop.f32.mrb[0].mxu0
    %v330 = vadd.f32 %v151, %v329
    %v331 = vpop.f32.mrb[0].mxu0
    %332 = vdwg.mxu0
    %333 = vst [vmem:[#allocation4] sm:$0xff] %v230
    %334 = vst [vmem:[#allocation4 + $0x8] sm:$0xff] %v232
    %335 = vst [vmem:[#allocation4 + $0x10] sm:$0xff] %v303
    %336 = vst [vmem:[#allocation4 + $0x18] sm:$0xff] %v234
    %337 = vst [vmem:[#allocation4 + $0x20] sm:$0xff] %v236
    %338 = vst [vmem:[#allocation4 + $0x28] sm:$0xff] %v306
    %339 = vst [vmem:[#allocation4 + $0x30] sm:$0xff] %v240
    %340 = vst [vmem:[#allocation4 + $0x38] sm:$0xff] %v242
    %341 = vst [vmem:[#allocation4 + $0x40] sm:$0xff] %v311
    %342 = vst [vmem:[#allocation4 + $0x48] sm:$0xff] %v244
    %343 = vst [vmem:[#allocation4 + $0x50] sm:$0xff] %v246
    %344 = vst [vmem:[#allocation4 + $0x58] sm:$0xff] %v314
    %345 = vst [vmem:[#allocation4 + $0x60] sm:$0xff] %v250
    %346 = vst [vmem:[#allocation4 + $0x68] sm:$0xff] %v252
    %347 = vst [vmem:[#allocation4 + $0x70] sm:$0xff] %v319
    %348 = vst [vmem:[#allocation4 + $0x78] sm:$0xff] %v254
    %349 = vst [vmem:[#allocation4 + $0x80] sm:$0xff] %v256
    %350 = vst [vmem:[#allocation4 + $0x88] sm:$0xff] %v322
    %351 = vst [vmem:[#allocation4 + $0x90] sm:$0xff] %v260
    %352 = vst [vmem:[#allocation4 + $0x98] sm:$0xff] %v262
    %353 = vst [vmem:[#allocation4 + $0xa0] sm:$0xff] %v327
    %354 = vst [vmem:[#allocation4 + $0xa8] sm:$0xff] %v264
    %355 = vst [vmem:[#allocation4 + $0xb0] sm:$0xff] %v266
    %356 = vst [vmem:[#allocation4 + $0xb8] sm:$0xff] %v330
    %v358 = vlaneseq
    %v359 = vshrl.u32 %v358, 7
    %v360 = vsub.s32 0, %v359
    %v361 = vrot.slane %v126, %v360
    %v363 = vld [vmem:[#allocation2] sm:$0xff]
    %v364 = vpack.c.bf16 %v363, %v363
    %v397 = vunpack.c.l.b16 %v93
    %v398 = vunpack.c.h.b16 %v93
    %v399 = vunpack.c.l.b16 %v94
    %v400 = vunpack.c.l.b16 %v95
    %v401 = vunpack.c.h.b16 %v95
    %v402 = vunpack.c.l.b16 %v96
    %v403 = vunpack.c.l.b16 %v97
    %v404 = vunpack.c.h.b16 %v97
    %v405 = vunpack.c.l.b16 %v98
    %v406 = vunpack.c.l.b16 %v99
    %v407 = vunpack.c.h.b16 %v99
    %v408 = vunpack.c.l.b16 %v100
    %v409 = vunpack.c.l.b16 %v101
    %v410 = vunpack.c.h.b16 %v101
    %v411 = vunpack.c.l.b16 %v102
    %v412 = vunpack.c.l.b16 %v103
    %v413 = vunpack.c.h.b16 %v103
    %v414 = vunpack.c.l.b16 %v104
    %v415 = vunpack.c.l.b16 %v105
    %v416 = vunpack.c.h.b16 %v105
    %v417 = vunpack.c.l.b16 %v106
    %v418 = vunpack.c.l.b16 %v107
    %v419 = vunpack.c.h.b16 %v107
    %v420 = vunpack.c.l.b16 %v108
    %v421 = vunpack.c.l.b16 %v109
    %v422 = vunpack.c.h.b16 %v109
    %v423 = vunpack.c.l.b16 %v110
    %v424 = vunpack.c.l.b16 %v111
    %v425 = vunpack.c.h.b16 %v111
    %v426 = vunpack.c.l.b16 %v112
    %v427 = vunpack.c.l.b16 %v113
    %v428 = vunpack.c.h.b16 %v113
    %v429 = vunpack.c.l.b16 %v114
    %v430 = vunpack.c.l.b16 %v115
    %v431 = vunpack.c.h.b16 %v115
    %v432 = vunpack.c.l.b16 %v116
    %v433 = vunpack.c.l.b16 %v117
    %v434 = vunpack.c.h.b16 %v117
    %v435 = vunpack.c.l.b16 %v118
    %v436 = vunpack.c.l.b16 %v119
    %v437 = vunpack.c.h.b16 %v119
    %v438 = vunpack.c.l.b16 %v120
    %v439 = vunpack.c.l.b16 %v121
    %v440 = vunpack.c.h.b16 %v121
    %v441 = vunpack.c.l.b16 %v122
    %v442 = vunpack.c.l.b16 %v123
    %v443 = vunpack.c.h.b16 %v123
    %v444 = vunpack.c.l.b16 %v124
    %v445 = vpack.c.b16 %v400, %v397
    %v446 = vpack.c.b16 %v401, %v398
    %v447 = vpack.c.b16 %v402, %v399
    %v448 = vpack.c.b16 %v406, %v403
    %v449 = vpack.c.b16 %v407, %v404
    %v450 = vpack.c.b16 %v408, %v405
    %v451 = vpack.c.b16 %v412, %v409
    %v452 = vpack.c.b16 %v413, %v410
    %v453 = vpack.c.b16 %v414, %v411
    %v454 = vpack.c.b16 %v418, %v415
    %v455 = vpack.c.b16 %v419, %v416
    %v456 = vpack.c.b16 %v420, %v417
    %v457 = vpack.c.b16 %v424, %v421
    %v458 = vpack.c.b16 %v425, %v422
    %v459 = vpack.c.b16 %v426, %v423
    %v460 = vpack.c.b16 %v430, %v427
    %v461 = vpack.c.b16 %v431, %v428
    %v462 = vpack.c.b16 %v432, %v429
    %v463 = vpack.c.b16 %v436, %v433
    %v464 = vpack.c.b16 %v437, %v434
    %v465 = vpack.c.b16 %v438, %v435
    %v466 = vpack.c.b16 %v442, %v439
    %v467 = vpack.c.b16 %v443, %v440
    %v468 = vpack.c.b16 %v444, %v441
    %493 = vmatprep.subr.bf16.mxu0 %v446
    %494 = vmatpush1.bf16.msra.mxu0 %v445
    %495 = vmatprep.subr.bf16.mxu0 %v449
    %496 = vmatpush1.bf16.msra.mxu0 %v448
    %497 = vmatprep.subr.bf16.mxu0 %v452
    %498 = vmatpush1.bf16.msra.mxu0 %v451
    %499 = vmatprep.subr.bf16.mxu0 %v455
    %500 = vmatpush1.bf16.msra.mxu0 %v454
    %501 = vmatprep.subr.bf16.mxu0 %v458
    %502 = vmatpush1.bf16.msra.mxu0 %v457
    %503 = vmatprep.subr.bf16.mxu0 %v461
    %504 = vmatpush1.bf16.msra.mxu0 %v460
    %505 = vmatprep.subr.bf16.mxu0 %v464
    %506 = vmatpush1.bf16.msra.mxu0 %v463
    %507 = vmatprep.subr.bf16.mxu0 %v467
    %508 = vmatpush1.bf16.msra.mxu0 %v466
    %509 = vmatprep.subr.bf16.mxu0 0
    %510 = vmatpush1.bf16.msra.mxu0 0
    %511 = vmatprep.subr.bf16.mxu0 0
    %512 = vmatpush1.bf16.msra.mxu0 0
    %513 = vmatprep.subr.bf16.mxu0 0
    %514 = vmatpush1.bf16.msra.mxu0 0
    %515 = vmatprep.subr.bf16.mxu0 0
    %516 = vmatpush1.bf16.msra.mxu0 0
    %517 = vmatprep.subr.bf16.mxu0 0
    %518 = vmatpush1.bf16.msra.mxu0 0
    %519 = vmatprep.subr.bf16.mxu0 0
    %520 = vmatpush1.bf16.msra.mxu0 0
    %521 = vmatprep.subr.bf16.mxu0 0
    %522 = vmatpush1.bf16.msra.mxu0 0
    %523 = vmatprep.subr.bf16.mxu0 0
    %524 = vmatpush1.bf16.msra.mxu0 0
    %525 = vmatprep.mubr.bf16.mxu0 0
    %526 = vmatmul.mubr.bf16.gmra.mrb[0].mxu0 %v364
    %v527 = vpop.f32.mrb[0].mxu0
    %v528 = vadd.f32 0.0, %v527
    %v529 = vpop.f32.mrb[0].mxu0
    %v530 = vadd.f32 0.0, %v529
    %v531 = vpop.f32.mrb[0].mxu0
    %v532 = vpop.f32.mrb[0].mxu0
    %533 = vdwg.mxu0
    %534 = vmatprep.subr.bf16.mxu0 0
    %535 = vmatpush1.bf16.msra.mxu0 %v447
    %536 = vmatprep.subr.bf16.mxu0 0
    %537 = vmatpush1.bf16.msra.mxu0 %v450
    %538 = vmatprep.subr.bf16.mxu0 0
    %539 = vmatpush1.bf16.msra.mxu0 %v453
    %540 = vmatprep.subr.bf16.mxu0 0
    %541 = vmatpush1.bf16.msra.mxu0 %v456
    %542 = vmatprep.subr.bf16.mxu0 0
    %543 = vmatpush1.bf16.msra.mxu0 %v459
    %544 = vmatprep.subr.bf16.mxu0 0
    %545 = vmatpush1.bf16.msra.mxu0 %v462
    %546 = vmatprep.subr.bf16.mxu0 0
    %547 = vmatpush1.bf16.msra.mxu0 %v465
    %548 = vmatprep.subr.bf16.mxu0 0
    %549 = vmatpush1.bf16.msra.mxu0 %v468
    %550 = vmatprep.subr.bf16.mxu0 0
    %551 = vmatpush1.bf16.msra.mxu0 0
    %552 = vmatprep.subr.bf16.mxu0 0
    %553 = vmatpush1.bf16.msra.mxu0 0
    %554 = vmatprep.subr.bf16.mxu0 0
    %555 = vmatpush1.bf16.msra.mxu0 0
    %556 = vmatprep.subr.bf16.mxu0 0
    %557 = vmatpush1.bf16.msra.mxu0 0
    %558 = vmatprep.subr.bf16.mxu0 0
    %559 = vmatpush1.bf16.msra.mxu0 0
    %560 = vmatprep.subr.bf16.mxu0 0
    %561 = vmatpush1.bf16.msra.mxu0 0
    %562 = vmatprep.subr.bf16.mxu0 0
    %563 = vmatpush1.bf16.msra.mxu0 0
    %564 = vmatprep.subr.bf16.mxu0 0
    %565 = vmatpush1.bf16.msra.mxu0 0
    %566 = vmatprep.mubr.bf16.mxu0 0
    %567 = vmatmul.mubr.bf16.gmra.mrb[0].mxu0 %v364
    %v568 = vpop.f32.mrb[0].mxu0
    %v569 = vadd.f32 0.0, %v568
    %v570 = vpop.f32.mrb[0].mxu0
    %v571 = vpop.f32.mrb[0].mxu0
    %v572 = vpop.f32.mrb[0].mxu0
    %573 = vdwg.mxu0
    %v574 = vld [vmem:[#allocation4] sm:$0xff]
    %v575 = vld [vmem:[#allocation4 + $0x8] sm:$0xff]
    %v576 = vld [vmem:[#allocation4 + $0x10] sm:$0xff]
    %v577 = vadd.f32 %v574, %v528
    %v578 = vxor.u32 %v577, 2147483648
    %v579 = vmul.f32 %v578, 1.442695
    %v580 = vpow.pop %v579
    %v581 = vadd.f32 %v580, 1.0
    %v582 = vrcp.pop %v581
    %v583 = vmul.f32 1.0, %v582
    %v584 = vadd.f32 %v575, %v530
    %v585 = vxor.u32 %v584, 2147483648
    %v586 = vmul.f32 %v585, 1.442695
    %v587 = vpow.pop %v586
    %v588 = vadd.f32 %v587, 1.0
    %v589 = vrcp.pop %v588
    %v590 = vmul.f32 1.0, %v589
    %v591 = vadd.f32 %v569, %v361
    %v592 = vmul.f32 %v583, %v591
    %v593 = vadd.f32 %v576, %v592
    %v594 = vtanh.pop %v593
    %v595 = vsub.f32 %v363, %v594
    %v596 = vmul.f32 %v590, %v595
    %v597 = vadd.f32 %v594, %v596
    %v598 = vpack.c.bf16 %v597, %v597
    %599 = vst [vmem:[#allocation3] sm:$0xf] %v598
    %600 = vmatprep.subr.bf16.mxu0 %v446
    %601 = vmatpush1.bf16.msra.mxu0 %v445
    %602 = vmatprep.subr.bf16.mxu0 %v449
    %603 = vmatpush1.bf16.msra.mxu0 %v448
    %604 = vmatprep.subr.bf16.mxu0 %v452
    %605 = vmatpush1.bf16.msra.mxu0 %v451
    %606 = vmatprep.subr.bf16.mxu0 %v455
    %607 = vmatpush1.bf16.msra.mxu0 %v454
    %608 = vmatprep.subr.bf16.mxu0 %v458
    %609 = vmatpush1.bf16.msra.mxu0 %v457
    %610 = vmatprep.subr.bf16.mxu0 %v461
    %611 = vmatpush1.bf16.msra.mxu0 %v460
    %612 = vmatprep.subr.bf16.mxu0 %v464
    %613 = vmatpush1.bf16.msra.mxu0 %v463
    %614 = vmatprep.subr.bf16.mxu0 %v467
    %615 = vmatpush1.bf16.msra.mxu0 %v466
    %616 = vmatprep.subr.bf16.mxu0 0
    %617 = vmatpush1.bf16.msra.mxu0 0
    %618 = vmatprep.subr.bf16.mxu0 0
    %619 = vmatpush1.bf16.msra.mxu0 0
    %620 = vmatprep.subr.bf16.mxu0 0
    %621 = vmatpush1.bf16.msra.mxu0 0
    %622 = vmatprep.subr.bf16.mxu0 0
    %623 = vmatpush1.bf16.msra.mxu0 0
    %624 = vmatprep.subr.bf16.mxu0 0
    %625 = vmatpush1.bf16.msra.mxu0 0
    %626 = vmatprep.subr.bf16.mxu0 0
    %627 = vmatpush1.bf16.msra.mxu0 0
    %628 = vmatprep.subr.bf16.mxu0 0
    %629 = vmatpush1.bf16.msra.mxu0 0
    %630 = vmatprep.subr.bf16.mxu0 0
    %631 = vmatpush1.bf16.msra.mxu0 0
    %632 = vmatprep.mubr.bf16.mxu0 0
    %633 = vmatmul.mubr.bf16.gmra.mrb[0].mxu0 %v598
    %v634 = vpop.f32.mrb[0].mxu0
    %v635 = vadd.f32 0.0, %v634
    %v636 = vpop.f32.mrb[0].mxu0
    %v637 = vadd.f32 0.0, %v636
    %v638 = vpop.f32.mrb[0].mxu0
    %v639 = vpop.f32.mrb[0].mxu0
    %640 = vdwg.mxu0
    %641 = vmatprep.subr.bf16.mxu0 0
    %642 = vmatpush1.bf16.msra.mxu0 %v447
    %643 = vmatprep.subr.bf16.mxu0 0
    %644 = vmatpush1.bf16.msra.mxu0 %v450
    %645 = vmatprep.subr.bf16.mxu0 0
    %646 = vmatpush1.bf16.msra.mxu0 %v453
    %647 = vmatprep.subr.bf16.mxu0 0
    %648 = vmatpush1.bf16.msra.mxu0 %v456
    %649 = vmatprep.subr.bf16.mxu0 0
    %650 = vmatpush1.bf16.msra.mxu0 %v459
    %651 = vmatprep.subr.bf16.mxu0 0
    %652 = vmatpush1.bf16.msra.mxu0 %v462
    %653 = vmatprep.subr.bf16.mxu0 0
    %654 = vmatpush1.bf16.msra.mxu0 %v465
    %655 = vmatprep.subr.bf16.mxu0 0
    %656 = vmatpush1.bf16.msra.mxu0 %v468
    %657 = vmatprep.subr.bf16.mxu0 0
    %658 = vmatpush1.bf16.msra.mxu0 0
    %659 = vmatprep.subr.bf16.mxu0 0
    %660 = vmatpush1.bf16.msra.mxu0 0
    %661 = vmatprep.subr.bf16.mxu0 0
    %662 = vmatpush1.bf16.msra.mxu0 0
    %663 = vmatprep.subr.bf16.mxu0 0
    %664 = vmatpush1.bf16.msra.mxu0 0
    %665 = vmatprep.subr.bf16.mxu0 0
    %666 = vmatpush1.bf16.msra.mxu0 0
    %667 = vmatprep.subr.bf16.mxu0 0
    %668 = vmatpush1.bf16.msra.mxu0 0
    %669 = vmatprep.subr.bf16.mxu0 0
    %670 = vmatpush1.bf16.msra.mxu0 0
    %671 = vmatprep.subr.bf16.mxu0 0
    %672 = vmatpush1.bf16.msra.mxu0 0
    %673 = vmatprep.mubr.bf16.mxu0 0
    %674 = vmatmul.mubr.bf16.gmra.mrb[0].mxu0 %v598
    %v675 = vpop.f32.mrb[0].mxu0
    %v676 = vadd.f32 0.0, %v675
    %v677 = vpop.f32.mrb[0].mxu0
    %v678 = vpop.f32.mrb[0].mxu0
    %v679 = vpop.f32.mrb[0].mxu0
    %680 = vdwg.mxu0
    %s681 = scalar_lea.vmem [#allocation4], 24
    %v682 = vld [vmem:[%s681] sm:$0xff]
    %v683 = vld [vmem:[%s681 + $0x8] sm:$0xff]
    %v684 = vld [vmem:[%s681 + $0x10] sm:$0xff]
    %v685 = vadd.f32 %v682, %v635
    %v686 = vxor.u32 %v685, 2147483648
    %v687 = vmul.f32 %v686, 1.442695
    %v688 = vpow.pop %v687
    %v689 = vadd.f32 %v688, 1.0
    %v690 = vrcp.pop %v689
    %v691 = vmul.f32 1.0, %v690
    %v692 = vadd.f32 %v683, %v637
    %v693 = vxor.u32 %v692, 2147483648
    %v694 = vmul.f32 %v693, 1.442695
    %v695 = vpow.pop %v694
    %v696 = vadd.f32 %v695, 1.0
    %v697 = vrcp.pop %v696
    %v698 = vmul.f32 1.0, %v697
    %v699 = vadd.f32 %v676, %v361
    %v700 = vmul.f32 %v691, %v699
    %v701 = vadd.f32 %v684, %v700
    %v702 = vtanh.pop %v701
    %v703 = vsub.f32 %v597, %v702
    %v704 = vmul.f32 %v698, %v703
    %v705 = vadd.f32 %v702, %v704
    %v706 = vpack.c.bf16 %v705, %v705
    %s707 = scalar_lea.vmem [#allocation3], 4
    %708 = vst [vmem:[%s707] sm:$0xf] %v706
    %709 = vmatprep.subr.bf16.mxu0 %v446
    %710 = vmatpush1.bf16.msra.mxu0 %v445
    %711 = vmatprep.subr.bf16.mxu0 %v449
    %712 = vmatpush1.bf16.msra.mxu0 %v448
    %713 = vmatprep.subr.bf16.mxu0 %v452
    %714 = vmatpush1.bf16.msra.mxu0 %v451
    %715 = vmatprep.subr.bf16.mxu0 %v455
    %716 = vmatpush1.bf16.msra.mxu0 %v454
    %717 = vmatprep.subr.bf16.mxu0 %v458
    %718 = vmatpush1.bf16.msra.mxu0 %v457
    %719 = vmatprep.subr.bf16.mxu0 %v461
    %720 = vmatpush1.bf16.msra.mxu0 %v460
    %721 = vmatprep.subr.bf16.mxu0 %v464
    %722 = vmatpush1.bf16.msra.mxu0 %v463
    %723 = vmatprep.subr.bf16.mxu0 %v467
    %724 = vmatpush1.bf16.msra.mxu0 %v466
    %725 = vmatprep.subr.bf16.mxu0 0
    %726 = vmatpush1.bf16.msra.mxu0 0
    %727 = vmatprep.subr.bf16.mxu0 0
    %728 = vmatpush1.bf16.msra.mxu0 0
    %729 = vmatprep.subr.bf16.mxu0 0
    %730 = vmatpush1.bf16.msra.mxu0 0
    %731 = vmatprep.subr.bf16.mxu0 0
    %732 = vmatpush1.bf16.msra.mxu0 0
    %733 = vmatprep.subr.bf16.mxu0 0
    %734 = vmatpush1.bf16.msra.mxu0 0
    %735 = vmatprep.subr.bf16.mxu0 0
    %736 = vmatpush1.bf16.msra.mxu0 0
    %737 = vmatprep.subr.bf16.mxu0 0
    %738 = vmatpush1.bf16.msra.mxu0 0
    %739 = vmatprep.subr.bf16.mxu0 0
    %740 = vmatpush1.bf16.msra.mxu0 0
    %741 = vmatprep.mubr.bf16.mxu0 0
    %742 = vmatmul.mubr.bf16.gmra.mrb[0].mxu0 %v706
    %v743 = vpop.f32.mrb[0].mxu0
    %v744 = vadd.f32 0.0, %v743
    %v745 = vpop.f32.mrb[0].mxu0
    %v746 = vadd.f32 0.0, %v745
    %v747 = vpop.f32.mrb[0].mxu0
    %v748 = vpop.f32.mrb[0].mxu0
    %749 = vdwg.mxu0
    %750 = vmatprep.subr.bf16.mxu0 0
    %751 = vmatpush1.bf16.msra.mxu0 %v447
    %752 = vmatprep.subr.bf16.mxu0 0
    %753 = vmatpush1.bf16.msra.mxu0 %v450
    %754 = vmatprep.subr.bf16.mxu0 0
    %755 = vmatpush1.bf16.msra.mxu0 %v453
    %756 = vmatprep.subr.bf16.mxu0 0
    %757 = vmatpush1.bf16.msra.mxu0 %v456
    %758 = vmatprep.subr.bf16.mxu0 0
    %759 = vmatpush1.bf16.msra.mxu0 %v459
    %760 = vmatprep.subr.bf16.mxu0 0
    %761 = vmatpush1.bf16.msra.mxu0 %v462
    %762 = vmatprep.subr.bf16.mxu0 0
    %763 = vmatpush1.bf16.msra.mxu0 %v465
    %764 = vmatprep.subr.bf16.mxu0 0
    %765 = vmatpush1.bf16.msra.mxu0 %v468
    %766 = vmatprep.subr.bf16.mxu0 0
    %767 = vmatpush1.bf16.msra.mxu0 0
    %768 = vmatprep.subr.bf16.mxu0 0
    %769 = vmatpush1.bf16.msra.mxu0 0
    %770 = vmatprep.subr.bf16.mxu0 0
    %771 = vmatpush1.bf16.msra.mxu0 0
    %772 = vmatprep.subr.bf16.mxu0 0
    %773 = vmatpush1.bf16.msra.mxu0 0
    %774 = vmatprep.subr.bf16.mxu0 0
    %775 = vmatpush1.bf16.msra.mxu0 0
    %776 = vmatprep.subr.bf16.mxu0 0
    %777 = vmatpush1.bf16.msra.mxu0 0
    %778 = vmatprep.subr.bf16.mxu0 0
    %779 = vmatpush1.bf16.msra.mxu0 0
    %780 = vmatprep.subr.bf16.mxu0 0
    %781 = vmatpush1.bf16.msra.mxu0 0
    %782 = vmatprep.mubr.bf16.mxu0 0
    %783 = vmatmul.mubr.bf16.gmra.mrb[0].mxu0 %v706
    %v784 = vpop.f32.mrb[0].mxu0
    %v785 = vadd.f32 0.0, %v784
    %v786 = vpop.f32.mrb[0].mxu0
    %v787 = vpop.f32.mrb[0].mxu0
    %v788 = vpop.f32.mrb[0].mxu0
    %789 = vdwg.mxu0
    %s790 = scalar_lea.vmem [#allocation4], 48
    %v791 = vld [vmem:[%s790] sm:$0xff]
    %v792 = vld [vmem:[%s790 + $0x8] sm:$0xff]
    %v793 = vld [vmem:[%s790 + $0x10] sm:$0xff]
    %v794 = vadd.f32 %v791, %v744
    %v795 = vxor.u32 %v794, 2147483648
    %v796 = vmul.f32 %v795, 1.442695
    %v797 = vpow.pop %v796
    %v798 = vadd.f32 %v797, 1.0
    %v799 = vrcp.pop %v798
    %v800 = vmul.f32 1.0, %v799
    %v801 = vadd.f32 %v792, %v746
    %v802 = vxor.u32 %v801, 2147483648
    %v803 = vmul.f32 %v802, 1.442695
    %v804 = vpow.pop %v803
    %v805 = vadd.f32 %v804, 1.0
    %v806 = vrcp.pop %v805
    %v807 = vmul.f32 1.0, %v806
    %v808 = vadd.f32 %v785, %v361
    %v809 = vmul.f32 %v800, %v808
    %v810 = vadd.f32 %v793, %v809
    %v811 = vtanh.pop %v810
    %v812 = vsub.f32 %v705, %v811
    %v813 = vmul.f32 %v807, %v812
    %v814 = vadd.f32 %v811, %v813
    %v815 = vpack.c.bf16 %v814, %v814
    %s816 = scalar_lea.vmem [#allocation3], 8
    %817 = vst [vmem:[%s816] sm:$0xf] %v815
    %818 = vmatprep.subr.bf16.mxu0 %v446
    %819 = vmatpush1.bf16.msra.mxu0 %v445
    %820 = vmatprep.subr.bf16.mxu0 %v449
    %821 = vmatpush1.bf16.msra.mxu0 %v448
    %822 = vmatprep.subr.bf16.mxu0 %v452
    %823 = vmatpush1.bf16.msra.mxu0 %v451
    %824 = vmatprep.subr.bf16.mxu0 %v455
    %825 = vmatpush1.bf16.msra.mxu0 %v454
    %826 = vmatprep.subr.bf16.mxu0 %v458
    %827 = vmatpush1.bf16.msra.mxu0 %v457
    %828 = vmatprep.subr.bf16.mxu0 %v461
    %829 = vmatpush1.bf16.msra.mxu0 %v460
    %830 = vmatprep.subr.bf16.mxu0 %v464
    %831 = vmatpush1.bf16.msra.mxu0 %v463
    %832 = vmatprep.subr.bf16.mxu0 %v467
    %833 = vmatpush1.bf16.msra.mxu0 %v466
    %834 = vmatprep.subr.bf16.mxu0 0
    %835 = vmatpush1.bf16.msra.mxu0 0
    %836 = vmatprep.subr.bf16.mxu0 0
    %837 = vmatpush1.bf16.msra.mxu0 0
    %838 = vmatprep.subr.bf16.mxu0 0
    %839 = vmatpush1.bf16.msra.mxu0 0
    %840 = vmatprep.subr.bf16.mxu0 0
    %841 = vmatpush1.bf16.msra.mxu0 0
    %842 = vmatprep.subr.bf16.mxu0 0
    %843 = vmatpush1.bf16.msra.mxu0 0
    %844 = vmatprep.subr.bf16.mxu0 0
    %845 = vmatpush1.bf16.msra.mxu0 0
    %846 = vmatprep.subr.bf16.mxu0 0
    %847 = vmatpush1.bf16.msra.mxu0 0
    %848 = vmatprep.subr.bf16.mxu0 0
    %849 = vmatpush1.bf16.msra.mxu0 0
    %850 = vmatprep.mubr.bf16.mxu0 0
    %851 = vmatmul.mubr.bf16.gmra.mrb[0].mxu0 %v815
    %v852 = vpop.f32.mrb[0].mxu0
    %v853 = vadd.f32 0.0, %v852
    %v854 = vpop.f32.mrb[0].mxu0
    %v855 = vadd.f32 0.0, %v854
    %v856 = vpop.f32.mrb[0].mxu0
    %v857 = vpop.f32.mrb[0].mxu0
    %858 = vdwg.mxu0
    %859 = vmatprep.subr.bf16.mxu0 0
    %860 = vmatpush1.bf16.msra.mxu0 %v447
    %861 = vmatprep.subr.bf16.mxu0 0
    %862 = vmatpush1.bf16.msra.mxu0 %v450
    %863 = vmatprep.subr.bf16.mxu0 0
    %864 = vmatpush1.bf16.msra.mxu0 %v453
    %865 = vmatprep.subr.bf16.mxu0 0
    %866 = vmatpush1.bf16.msra.mxu0 %v456
    %867 = vmatprep.subr.bf16.mxu0 0
    %868 = vmatpush1.bf16.msra.mxu0 %v459
    %869 = vmatprep.subr.bf16.mxu0 0
    %870 = vmatpush1.bf16.msra.mxu0 %v462
    %871 = vmatprep.subr.bf16.mxu0 0
    %872 = vmatpush1.bf16.msra.mxu0 %v465
    %873 = vmatprep.subr.bf16.mxu0 0
    %874 = vmatpush1.bf16.msra.mxu0 %v468
    %875 = vmatprep.subr.bf16.mxu0 0
    %876 = vmatpush1.bf16.msra.mxu0 0
    %877 = vmatprep.subr.bf16.mxu0 0
    %878 = vmatpush1.bf16.msra.mxu0 0
    %879 = vmatprep.subr.bf16.mxu0 0
    %880 = vmatpush1.bf16.msra.mxu0 0
    %881 = vmatprep.subr.bf16.mxu0 0
    %882 = vmatpush1.bf16.msra.mxu0 0
    %883 = vmatprep.subr.bf16.mxu0 0
    %884 = vmatpush1.bf16.msra.mxu0 0
    %885 = vmatprep.subr.bf16.mxu0 0
    %886 = vmatpush1.bf16.msra.mxu0 0
    %887 = vmatprep.subr.bf16.mxu0 0
    %888 = vmatpush1.bf16.msra.mxu0 0
    %889 = vmatprep.subr.bf16.mxu0 0
    %890 = vmatpush1.bf16.msra.mxu0 0
    %891 = vmatprep.mubr.bf16.mxu0 0
    %892 = vmatmul.mubr.bf16.gmra.mrb[0].mxu0 %v815
    %v893 = vpop.f32.mrb[0].mxu0
    %v894 = vadd.f32 0.0, %v893
    %v895 = vpop.f32.mrb[0].mxu0
    %v896 = vpop.f32.mrb[0].mxu0
    %v897 = vpop.f32.mrb[0].mxu0
    %898 = vdwg.mxu0
    %s899 = scalar_lea.vmem [#allocation4], 72
    %v900 = vld [vmem:[%s899] sm:$0xff]
    %v901 = vld [vmem:[%s899 + $0x8] sm:$0xff]
    %v902 = vld [vmem:[%s899 + $0x10] sm:$0xff]
    %v903 = vadd.f32 %v900, %v853
    %v904 = vxor.u32 %v903, 2147483648
    %v905 = vmul.f32 %v904, 1.442695
    %v906 = vpow.pop %v905
    %v907 = vadd.f32 %v906, 1.0
    %v908 = vrcp.pop %v907
    %v909 = vmul.f32 1.0, %v908
    %v910 = vadd.f32 %v901, %v855
    %v911 = vxor.u32 %v910, 2147483648
    %v912 = vmul.f32 %v911, 1.442695
    %v913 = vpow.pop %v912
    %v914 = vadd.f32 %v913, 1.0
    %v915 = vrcp.pop %v914
    %v916 = vmul.f32 1.0, %v915
    %v917 = vadd.f32 %v894, %v361
    %v918 = vmul.f32 %v909, %v917
    %v919 = vadd.f32 %v902, %v918
    %v920 = vtanh.pop %v919
    %v921 = vsub.f32 %v814, %v920
    %v922 = vmul.f32 %v916, %v921
    %v923 = vadd.f32 %v920, %v922
    %v924 = vpack.c.bf16 %v923, %v923
    %s925 = scalar_lea.vmem [#allocation3], 12
    %926 = vst [vmem:[%s925] sm:$0xf] %v924
    %927 = vmatprep.subr.bf16.mxu0 %v446
    %928 = vmatpush1.bf16.msra.mxu0 %v445
    %929 = vmatprep.subr.bf16.mxu0 %v449
    %930 = vmatpush1.bf16.msra.mxu0 %v448
    %931 = vmatprep.subr.bf16.mxu0 %v452
    %932 = vmatpush1.bf16.msra.mxu0 %v451
    %933 = vmatprep.subr.bf16.mxu0 %v455
    %934 = vmatpush1.bf16.msra.mxu0 %v454
    %935 = vmatprep.subr.bf16.mxu0 %v458
    %936 = vmatpush1.bf16.msra.mxu0 %v457
    %937 = vmatprep.subr.bf16.mxu0 %v461
    %938 = vmatpush1.bf16.msra.mxu0 %v460
    %939 = vmatprep.subr.bf16.mxu0 %v464
    %940 = vmatpush1.bf16.msra.mxu0 %v463
    %941 = vmatprep.subr.bf16.mxu0 %v467
    %942 = vmatpush1.bf16.msra.mxu0 %v466
    %943 = vmatprep.subr.bf16.mxu0 0
    %944 = vmatpush1.bf16.msra.mxu0 0
    %945 = vmatprep.subr.bf16.mxu0 0
    %946 = vmatpush1.bf16.msra.mxu0 0
    %947 = vmatprep.subr.bf16.mxu0 0
    %948 = vmatpush1.bf16.msra.mxu0 0
    %949 = vmatprep.subr.bf16.mxu0 0
    %950 = vmatpush1.bf16.msra.mxu0 0
    %951 = vmatprep.subr.bf16.mxu0 0
    %952 = vmatpush1.bf16.msra.mxu0 0
    %953 = vmatprep.subr.bf16.mxu0 0
    %954 = vmatpush1.bf16.msra.mxu0 0
    %955 = vmatprep.subr.bf16.mxu0 0
    %956 = vmatpush1.bf16.msra.mxu0 0
    %957 = vmatprep.subr.bf16.mxu0 0
    %958 = vmatpush1.bf16.msra.mxu0 0
    %959 = vmatprep.mubr.bf16.mxu0 0
    %960 = vmatmul.mubr.bf16.gmra.mrb[0].mxu0 %v924
    %v961 = vpop.f32.mrb[0].mxu0
    %v962 = vadd.f32 0.0, %v961
    %v963 = vpop.f32.mrb[0].mxu0
    %v964 = vadd.f32 0.0, %v963
    %v965 = vpop.f32.mrb[0].mxu0
    %v966 = vpop.f32.mrb[0].mxu0
    %967 = vdwg.mxu0
    %968 = vmatprep.subr.bf16.mxu0 0
    %969 = vmatpush1.bf16.msra.mxu0 %v447
    %970 = vmatprep.subr.bf16.mxu0 0
    %971 = vmatpush1.bf16.msra.mxu0 %v450
    %972 = vmatprep.subr.bf16.mxu0 0
    %973 = vmatpush1.bf16.msra.mxu0 %v453
    %974 = vmatprep.subr.bf16.mxu0 0
    %975 = vmatpush1.bf16.msra.mxu0 %v456
    %976 = vmatprep.subr.bf16.mxu0 0
    %977 = vmatpush1.bf16.msra.mxu0 %v459
    %978 = vmatprep.subr.bf16.mxu0 0
    %979 = vmatpush1.bf16.msra.mxu0 %v462
    %980 = vmatprep.subr.bf16.mxu0 0
    %981 = vmatpush1.bf16.msra.mxu0 %v465
    %982 = vmatprep.subr.bf16.mxu0 0
    %983 = vmatpush1.bf16.msra.mxu0 %v468
    %984 = vmatprep.subr.bf16.mxu0 0
    %985 = vmatpush1.bf16.msra.mxu0 0
    %986 = vmatprep.subr.bf16.mxu0 0
    %987 = vmatpush1.bf16.msra.mxu0 0
    %988 = vmatprep.subr.bf16.mxu0 0
    %989 = vmatpush1.bf16.msra.mxu0 0
    %990 = vmatprep.subr.bf16.mxu0 0
    %991 = vmatpush1.bf16.msra.mxu0 0
    %992 = vmatprep.subr.bf16.mxu0 0
    %993 = vmatpush1.bf16.msra.mxu0 0
    %994 = vmatprep.subr.bf16.mxu0 0
    %995 = vmatpush1.bf16.msra.mxu0 0
    %996 = vmatprep.subr.bf16.mxu0 0
    %997 = vmatpush1.bf16.msra.mxu0 0
    %998 = vmatprep.subr.bf16.mxu0 0
    %999 = vmatpush1.bf16.msra.mxu0 0
    %1000 = vmatprep.mubr.bf16.mxu0 0
    %1001 = vmatmul.mubr.bf16.gmra.mrb[0].mxu0 %v924
    %v1002 = vpop.f32.mrb[0].mxu0
    %v1003 = vadd.f32 0.0, %v1002
    %v1004 = vpop.f32.mrb[0].mxu0
    %v1005 = vpop.f32.mrb[0].mxu0
    %v1006 = vpop.f32.mrb[0].mxu0
    %1007 = vdwg.mxu0
    %s1008 = scalar_lea.vmem [#allocation4], 96
    %v1009 = vld [vmem:[%s1008] sm:$0xff]
    %v1010 = vld [vmem:[%s1008 + $0x8] sm:$0xff]
    %v1011 = vld [vmem:[%s1008 + $0x10] sm:$0xff]
    %v1012 = vadd.f32 %v1009, %v962
    %v1013 = vxor.u32 %v1012, 2147483648
    %v1014 = vmul.f32 %v1013, 1.442695
    %v1015 = vpow.pop %v1014
    %v1016 = vadd.f32 %v1015, 1.0
    %v1017 = vrcp.pop %v1016
    %v1018 = vmul.f32 1.0, %v1017
    %v1019 = vadd.f32 %v1010, %v964
    %v1020 = vxor.u32 %v1019, 2147483648
    %v1021 = vmul.f32 %v1020, 1.442695
    %v1022 = vpow.pop %v1021
    %v1023 = vadd.f32 %v1022, 1.0
    %v1024 = vrcp.pop %v1023
    %v1025 = vmul.f32 1.0, %v1024
    %v1026 = vadd.f32 %v1003, %v361
    %v1027 = vmul.f32 %v1018, %v1026
    %v1028 = vadd.f32 %v1011, %v1027
    %v1029 = vtanh.pop %v1028
    %v1030 = vsub.f32 %v923, %v1029
    %v1031 = vmul.f32 %v1025, %v1030
    %v1032 = vadd.f32 %v1029, %v1031
    %v1033 = vpack.c.bf16 %v1032, %v1032
    %s1034 = scalar_lea.vmem [#allocation3], 16
    %1035 = vst [vmem:[%s1034] sm:$0xf] %v1033
    %1036 = vmatprep.subr.bf16.mxu0 %v446
    %1037 = vmatpush1.bf16.msra.mxu0 %v445
    %1038 = vmatprep.subr.bf16.mxu0 %v449
    %1039 = vmatpush1.bf16.msra.mxu0 %v448
    %1040 = vmatprep.subr.bf16.mxu0 %v452
    %1041 = vmatpush1.bf16.msra.mxu0 %v451
    %1042 = vmatprep.subr.bf16.mxu0 %v455
    %1043 = vmatpush1.bf16.msra.mxu0 %v454
    %1044 = vmatprep.subr.bf16.mxu0 %v458
    %1045 = vmatpush1.bf16.msra.mxu0 %v457
    %1046 = vmatprep.subr.bf16.mxu0 %v461
    %1047 = vmatpush1.bf16.msra.mxu0 %v460
    %1048 = vmatprep.subr.bf16.mxu0 %v464
    %1049 = vmatpush1.bf16.msra.mxu0 %v463
    %1050 = vmatprep.subr.bf16.mxu0 %v467
    %1051 = vmatpush1.bf16.msra.mxu0 %v466
    %1052 = vmatprep.subr.bf16.mxu0 0
    %1053 = vmatpush1.bf16.msra.mxu0 0
    %1054 = vmatprep.subr.bf16.mxu0 0
    %1055 = vmatpush1.bf16.msra.mxu0 0
    %1056 = vmatprep.subr.bf16.mxu0 0
    %1057 = vmatpush1.bf16.msra.mxu0 0
    %1058 = vmatprep.subr.bf16.mxu0 0
    %1059 = vmatpush1.bf16.msra.mxu0 0
    %1060 = vmatprep.subr.bf16.mxu0 0
    %1061 = vmatpush1.bf16.msra.mxu0 0
    %1062 = vmatprep.subr.bf16.mxu0 0
    %1063 = vmatpush1.bf16.msra.mxu0 0
    %1064 = vmatprep.subr.bf16.mxu0 0
    %1065 = vmatpush1.bf16.msra.mxu0 0
    %1066 = vmatprep.subr.bf16.mxu0 0
    %1067 = vmatpush1.bf16.msra.mxu0 0
    %1068 = vmatprep.mubr.bf16.mxu0 0
    %1069 = vmatmul.mubr.bf16.gmra.mrb[0].mxu0 %v1033
    %v1070 = vpop.f32.mrb[0].mxu0
    %v1071 = vadd.f32 0.0, %v1070
    %v1072 = vpop.f32.mrb[0].mxu0
    %v1073 = vadd.f32 0.0, %v1072
    %v1074 = vpop.f32.mrb[0].mxu0
    %v1075 = vpop.f32.mrb[0].mxu0
    %1076 = vdwg.mxu0
    %1077 = vmatprep.subr.bf16.mxu0 0
    %1078 = vmatpush1.bf16.msra.mxu0 %v447
    %1079 = vmatprep.subr.bf16.mxu0 0
    %1080 = vmatpush1.bf16.msra.mxu0 %v450
    %1081 = vmatprep.subr.bf16.mxu0 0
    %1082 = vmatpush1.bf16.msra.mxu0 %v453
    %1083 = vmatprep.subr.bf16.mxu0 0
    %1084 = vmatpush1.bf16.msra.mxu0 %v456
    %1085 = vmatprep.subr.bf16.mxu0 0
    %1086 = vmatpush1.bf16.msra.mxu0 %v459
    %1087 = vmatprep.subr.bf16.mxu0 0
    %1088 = vmatpush1.bf16.msra.mxu0 %v462
    %1089 = vmatprep.subr.bf16.mxu0 0
    %1090 = vmatpush1.bf16.msra.mxu0 %v465
    %1091 = vmatprep.subr.bf16.mxu0 0
    %1092 = vmatpush1.bf16.msra.mxu0 %v468
    %1093 = vmatprep.subr.bf16.mxu0 0
    %1094 = vmatpush1.bf16.msra.mxu0 0
    %1095 = vmatprep.subr.bf16.mxu0 0
    %1096 = vmatpush1.bf16.msra.mxu0 0
    %1097 = vmatprep.subr.bf16.mxu0 0
    %1098 = vmatpush1.bf16.msra.mxu0 0
    %1099 = vmatprep.subr.bf16.mxu0 0
    %1100 = vmatpush1.bf16.msra.mxu0 0
    %1101 = vmatprep.subr.bf16.mxu0 0
    %1102 = vmatpush1.bf16.msra.mxu0 0
    %1103 = vmatprep.subr.bf16.mxu0 0
    %1104 = vmatpush1.bf16.msra.mxu0 0
    %1105 = vmatprep.subr.bf16.mxu0 0
    %1106 = vmatpush1.bf16.msra.mxu0 0
    %1107 = vmatprep.subr.bf16.mxu0 0
    %1108 = vmatpush1.bf16.msra.mxu0 0
    %1109 = vmatprep.mubr.bf16.mxu0 0
    %1110 = vmatmul.mubr.bf16.gmra.mrb[0].mxu0 %v1033
    %v1111 = vpop.f32.mrb[0].mxu0
    %v1112 = vadd.f32 0.0, %v1111
    %v1113 = vpop.f32.mrb[0].mxu0
    %v1114 = vpop.f32.mrb[0].mxu0
    %v1115 = vpop.f32.mrb[0].mxu0
    %1116 = vdwg.mxu0
    %s1117 = scalar_lea.vmem [#allocation4], 120
    %v1118 = vld [vmem:[%s1117] sm:$0xff]
    %v1119 = vld [vmem:[%s1117 + $0x8] sm:$0xff]
    %v1120 = vld [vmem:[%s1117 + $0x10] sm:$0xff]
    %v1121 = vadd.f32 %v1118, %v1071
    %v1122 = vxor.u32 %v1121, 2147483648
    %v1123 = vmul.f32 %v1122, 1.442695
    %v1124 = vpow.pop %v1123
    %v1125 = vadd.f32 %v1124, 1.0
    %v1126 = vrcp.pop %v1125
    %v1127 = vmul.f32 1.0, %v1126
    %v1128 = vadd.f32 %v1119, %v1073
    %v1129 = vxor.u32 %v1128, 2147483648
    %v1130 = vmul.f32 %v1129, 1.442695
    %v1131 = vpow.pop %v1130
    %v1132 = vadd.f32 %v1131, 1.0
    %v1133 = vrcp.pop %v1132
    %v1134 = vmul.f32 1.0, %v1133
    %v1135 = vadd.f32 %v1112, %v361
    %v1136 = vmul.f32 %v1127, %v1135
    %v1137 = vadd.f32 %v1120, %v1136
    %v1138 = vtanh.pop %v1137
    %v1139 = vsub.f32 %v1032, %v1138
    %v1140 = vmul.f32 %v1134, %v1139
    %v1141 = vadd.f32 %v1138, %v1140
    %v1142 = vpack.c.bf16 %v1141, %v1141
    %s1143 = scalar_lea.vmem [#allocation3], 20
    %1144 = vst [vmem:[%s1143] sm:$0xf] %v1142
    %1145 = vmatprep.subr.bf16.mxu0 %v446
    %1146 = vmatpush1.bf16.msra.mxu0 %v445
    %1147 = vmatprep.subr.bf16.mxu0 %v449
    %1148 = vmatpush1.bf16.msra.mxu0 %v448
    %1149 = vmatprep.subr.bf16.mxu0 %v452
    %1150 = vmatpush1.bf16.msra.mxu0 %v451
    %1151 = vmatprep.subr.bf16.mxu0 %v455
    %1152 = vmatpush1.bf16.msra.mxu0 %v454
    %1153 = vmatprep.subr.bf16.mxu0 %v458
    %1154 = vmatpush1.bf16.msra.mxu0 %v457
    %1155 = vmatprep.subr.bf16.mxu0 %v461
    %1156 = vmatpush1.bf16.msra.mxu0 %v460
    %1157 = vmatprep.subr.bf16.mxu0 %v464
    %1158 = vmatpush1.bf16.msra.mxu0 %v463
    %1159 = vmatprep.subr.bf16.mxu0 %v467
    %1160 = vmatpush1.bf16.msra.mxu0 %v466
    %1161 = vmatprep.subr.bf16.mxu0 0
    %1162 = vmatpush1.bf16.msra.mxu0 0
    %1163 = vmatprep.subr.bf16.mxu0 0
    %1164 = vmatpush1.bf16.msra.mxu0 0
    %1165 = vmatprep.subr.bf16.mxu0 0
    %1166 = vmatpush1.bf16.msra.mxu0 0
    %1167 = vmatprep.subr.bf16.mxu0 0
    %1168 = vmatpush1.bf16.msra.mxu0 0
    %1169 = vmatprep.subr.bf16.mxu0 0
    %1170 = vmatpush1.bf16.msra.mxu0 0
    %1171 = vmatprep.subr.bf16.mxu0 0
    %1172 = vmatpush1.bf16.msra.mxu0 0
    %1173 = vmatprep.subr.bf16.mxu0 0
    %1174 = vmatpush1.bf16.msra.mxu0 0
    %1175 = vmatprep.subr.bf16.mxu0 0
    %1176 = vmatpush1.bf16.msra.mxu0 0
    %1177 = vmatprep.mubr.bf16.mxu0 0
    %1178 = vmatmul.mubr.bf16.gmra.mrb[0].mxu0 %v1142
    %v1179 = vpop.f32.mrb[0].mxu0
    %v1180 = vadd.f32 0.0, %v1179
    %v1181 = vpop.f32.mrb[0].mxu0
    %v1182 = vadd.f32 0.0, %v1181
    %v1183 = vpop.f32.mrb[0].mxu0
    %v1184 = vpop.f32.mrb[0].mxu0
    %1185 = vdwg.mxu0
    %1186 = vmatprep.subr.bf16.mxu0 0
    %1187 = vmatpush1.bf16.msra.mxu0 %v447
    %1188 = vmatprep.subr.bf16.mxu0 0
    %1189 = vmatpush1.bf16.msra.mxu0 %v450
    %1190 = vmatprep.subr.bf16.mxu0 0
    %1191 = vmatpush1.bf16.msra.mxu0 %v453
    %1192 = vmatprep.subr.bf16.mxu0 0
    %1193 = vmatpush1.bf16.msra.mxu0 %v456
    %1194 = vmatprep.subr.bf16.mxu0 0
    %1195 = vmatpush1.bf16.msra.mxu0 %v459
    %1196 = vmatprep.subr.bf16.mxu0 0
    %1197 = vmatpush1.bf16.msra.mxu0 %v462
    %1198 = vmatprep.subr.bf16.mxu0 0
    %1199 = vmatpush1.bf16.msra.mxu0 %v465
    %1200 = vmatprep.subr.bf16.mxu0 0
    %1201 = vmatpush1.bf16.msra.mxu0 %v468
    %1202 = vmatprep.subr.bf16.mxu0 0
    %1203 = vmatpush1.bf16.msra.mxu0 0
    %1204 = vmatprep.subr.bf16.mxu0 0
    %1205 = vmatpush1.bf16.msra.mxu0 0
    %1206 = vmatprep.subr.bf16.mxu0 0
    %1207 = vmatpush1.bf16.msra.mxu0 0
    %1208 = vmatprep.subr.bf16.mxu0 0
    %1209 = vmatpush1.bf16.msra.mxu0 0
    %1210 = vmatprep.subr.bf16.mxu0 0
    %1211 = vmatpush1.bf16.msra.mxu0 0
    %1212 = vmatprep.subr.bf16.mxu0 0
    %1213 = vmatpush1.bf16.msra.mxu0 0
    %1214 = vmatprep.subr.bf16.mxu0 0
    %1215 = vmatpush1.bf16.msra.mxu0 0
    %1216 = vmatprep.subr.bf16.mxu0 0
    %1217 = vmatpush1.bf16.msra.mxu0 0
    %1218 = vmatprep.mubr.bf16.mxu0 0
    %1219 = vmatmul.mubr.bf16.gmra.mrb[0].mxu0 %v1142
    %v1220 = vpop.f32.mrb[0].mxu0
    %v1221 = vadd.f32 0.0, %v1220
    %v1222 = vpop.f32.mrb[0].mxu0
    %v1223 = vpop.f32.mrb[0].mxu0
    %v1224 = vpop.f32.mrb[0].mxu0
    %1225 = vdwg.mxu0
    %s1226 = scalar_lea.vmem [#allocation4], 144
    %v1227 = vld [vmem:[%s1226] sm:$0xff]
    %v1228 = vld [vmem:[%s1226 + $0x8] sm:$0xff]
    %v1229 = vld [vmem:[%s1226 + $0x10] sm:$0xff]
    %v1230 = vadd.f32 %v1227, %v1180
    %v1231 = vxor.u32 %v1230, 2147483648
    %v1232 = vmul.f32 %v1231, 1.442695
    %v1233 = vpow.pop %v1232
    %v1234 = vadd.f32 %v1233, 1.0
    %v1235 = vrcp.pop %v1234
    %v1236 = vmul.f32 1.0, %v1235
    %v1237 = vadd.f32 %v1228, %v1182
    %v1238 = vxor.u32 %v1237, 2147483648
    %v1239 = vmul.f32 %v1238, 1.442695
    %v1240 = vpow.pop %v1239
    %v1241 = vadd.f32 %v1240, 1.0
    %v1242 = vrcp.pop %v1241
    %v1243 = vmul.f32 1.0, %v1242
    %v1244 = vadd.f32 %v1221, %v361
    %v1245 = vmul.f32 %v1236, %v1244
    %v1246 = vadd.f32 %v1229, %v1245
    %v1247 = vtanh.pop %v1246
    %v1248 = vsub.f32 %v1141, %v1247
    %v1249 = vmul.f32 %v1243, %v1248
    %v1250 = vadd.f32 %v1247, %v1249
    %v1251 = vpack.c.bf16 %v1250, %v1250
    %s1252 = scalar_lea.vmem [#allocation3], 24
    %1253 = vst [vmem:[%s1252] sm:$0xf] %v1251
    %1254 = vmatprep.subr.bf16.mxu0 %v446
    %1255 = vmatpush1.bf16.msra.mxu0 %v445
    %1256 = vmatprep.subr.bf16.mxu0 %v449
    %1257 = vmatpush1.bf16.msra.mxu0 %v448
    %1258 = vmatprep.subr.bf16.mxu0 %v452
    %1259 = vmatpush1.bf16.msra.mxu0 %v451
    %1260 = vmatprep.subr.bf16.mxu0 %v455
    %1261 = vmatpush1.bf16.msra.mxu0 %v454
    %1262 = vmatprep.subr.bf16.mxu0 %v458
    %1263 = vmatpush1.bf16.msra.mxu0 %v457
    %1264 = vmatprep.subr.bf16.mxu0 %v461
    %1265 = vmatpush1.bf16.msra.mxu0 %v460
    %1266 = vmatprep.subr.bf16.mxu0 %v464
    %1267 = vmatpush1.bf16.msra.mxu0 %v463
    %1268 = vmatprep.subr.bf16.mxu0 %v467
    %1269 = vmatpush1.bf16.msra.mxu0 %v466
    %1270 = vmatprep.subr.bf16.mxu0 0
    %1271 = vmatpush1.bf16.msra.mxu0 0
    %1272 = vmatprep.subr.bf16.mxu0 0
    %1273 = vmatpush1.bf16.msra.mxu0 0
    %1274 = vmatprep.subr.bf16.mxu0 0
    %1275 = vmatpush1.bf16.msra.mxu0 0
    %1276 = vmatprep.subr.bf16.mxu0 0
    %1277 = vmatpush1.bf16.msra.mxu0 0
    %1278 = vmatprep.subr.bf16.mxu0 0
    %1279 = vmatpush1.bf16.msra.mxu0 0
    %1280 = vmatprep.subr.bf16.mxu0 0
    %1281 = vmatpush1.bf16.msra.mxu0 0
    %1282 = vmatprep.subr.bf16.mxu0 0
    %1283 = vmatpush1.bf16.msra.mxu0 0
    %1284 = vmatprep.subr.bf16.mxu0 0
    %1285 = vmatpush1.bf16.msra.mxu0 0
    %1286 = vmatprep.mubr.bf16.mxu0 0
    %1287 = vmatmul.mubr.bf16.gmra.mrb[0].mxu0 %v1251
    %v1288 = vpop.f32.mrb[0].mxu0
    %v1289 = vadd.f32 0.0, %v1288
    %v1290 = vpop.f32.mrb[0].mxu0
    %v1291 = vadd.f32 0.0, %v1290
    %v1292 = vpop.f32.mrb[0].mxu0
    %v1293 = vpop.f32.mrb[0].mxu0
    %1294 = vdwg.mxu0
    %1295 = vmatprep.subr.bf16.mxu0 0
    %1296 = vmatpush1.bf16.msra.mxu0 %v447
    %1297 = vmatprep.subr.bf16.mxu0 0
    %1298 = vmatpush1.bf16.msra.mxu0 %v450
    %1299 = vmatprep.subr.bf16.mxu0 0
    %1300 = vmatpush1.bf16.msra.mxu0 %v453
    %1301 = vmatprep.subr.bf16.mxu0 0
    %1302 = vmatpush1.bf16.msra.mxu0 %v456
    %1303 = vmatprep.subr.bf16.mxu0 0
    %1304 = vmatpush1.bf16.msra.mxu0 %v459
    %1305 = vmatprep.subr.bf16.mxu0 0
    %1306 = vmatpush1.bf16.msra.mxu0 %v462
    %1307 = vmatprep.subr.bf16.mxu0 0
    %1308 = vmatpush1.bf16.msra.mxu0 %v465
    %1309 = vmatprep.subr.bf16.mxu0 0
    %1310 = vmatpush1.bf16.msra.mxu0 %v468
    %1311 = vmatprep.subr.bf16.mxu0 0
    %1312 = vmatpush1.bf16.msra.mxu0 0
    %1313 = vmatprep.subr.bf16.mxu0 0
    %1314 = vmatpush1.bf16.msra.mxu0 0
    %1315 = vmatprep.subr.bf16.mxu0 0
    %1316 = vmatpush1.bf16.msra.mxu0 0
    %1317 = vmatprep.subr.bf16.mxu0 0
    %1318 = vmatpush1.bf16.msra.mxu0 0
    %1319 = vmatprep.subr.bf16.mxu0 0
    %1320 = vmatpush1.bf16.msra.mxu0 0
    %1321 = vmatprep.subr.bf16.mxu0 0
    %1322 = vmatpush1.bf16.msra.mxu0 0
    %1323 = vmatprep.subr.bf16.mxu0 0
    %1324 = vmatpush1.bf16.msra.mxu0 0
    %1325 = vmatprep.subr.bf16.mxu0 0
    %1326 = vmatpush1.bf16.msra.mxu0 0
    %1327 = vmatprep.mubr.bf16.mxu0 0
    %1328 = vmatmul.mubr.bf16.gmra.mrb[0].mxu0 %v1251
    %v1329 = vpop.f32.mrb[0].mxu0
    %v1330 = vadd.f32 0.0, %v1329
    %v1331 = vpop.f32.mrb[0].mxu0
    %v1332 = vpop.f32.mrb[0].mxu0
    %v1333 = vpop.f32.mrb[0].mxu0
    %1334 = vdwg.mxu0
    %s1335 = scalar_lea.vmem [#allocation4], 168
    %v1336 = vld [vmem:[%s1335] sm:$0xff]
    %v1337 = vld [vmem:[%s1335 + $0x8] sm:$0xff]
    %v1338 = vld [vmem:[%s1335 + $0x10] sm:$0xff]
    %v1339 = vadd.f32 %v1336, %v1289
    %v1340 = vxor.u32 %v1339, 2147483648
    %v1341 = vmul.f32 %v1340, 1.442695
    %v1342 = vpow.pop %v1341
    %v1343 = vadd.f32 %v1342, 1.0
    %v1344 = vrcp.pop %v1343
    %v1345 = vmul.f32 1.0, %v1344
    %v1346 = vadd.f32 %v1337, %v1291
    %v1347 = vxor.u32 %v1346, 2147483648
    %v1348 = vmul.f32 %v1347, 1.442695
    %v1349 = vpow.pop %v1348
    %v1350 = vadd.f32 %v1349, 1.0
    %v1351 = vrcp.pop %v1350
    %v1352 = vmul.f32 1.0, %v1351
    %v1353 = vadd.f32 %v1330, %v361
    %v1354 = vmul.f32 %v1345, %v1353
    %v1355 = vadd.f32 %v1338, %v1354
    %v1356 = vtanh.pop %v1355
    %v1357 = vsub.f32 %v1250, %v1356
    %v1358 = vmul.f32 %v1352, %v1357
    %v1359 = vadd.f32 %v1356, %v1358
    %v1360 = vpack.c.bf16 %v1359, %v1359
    %s1361 = scalar_lea.vmem [#allocation3], 28
    %1362 = vst [vmem:[%s1361] sm:$0xf] %v1360
    %1363 = vst [vmem:[#allocation2] sm:$0xff] %v1359
    %v1364 = vld [vmem:[#allocation8] sm:$0xff]
    %v1365 = vld [vmem:[#allocation8 + $0x8] sm:$0xf]
    %v1366 = vld [vmem:[#allocation8 + $0xc] sm:$0xff]
    %v1367 = vld [vmem:[#allocation8 + $0x14] sm:$0xf]
    %v1368 = vld [vmem:[#allocation8 + $0x18] sm:$0xff]
    %v1369 = vld [vmem:[#allocation8 + $0x20] sm:$0xf]
    %v1370 = vld [vmem:[#allocation8 + $0x24] sm:$0xff]
    %v1371 = vld [vmem:[#allocation8 + $0x2c] sm:$0xf]
    %v1372 = vld [vmem:[#allocation8 + $0x30] sm:$0xff]
    %v1373 = vld [vmem:[#allocation8 + $0x38] sm:$0xf]
    %v1374 = vld [vmem:[#allocation8 + $0x3c] sm:$0xff]
    %v1375 = vld [vmem:[#allocation8 + $0x44] sm:$0xf]
    %v1376 = vld [vmem:[#allocation8 + $0x48] sm:$0xff]
    %v1377 = vld [vmem:[#allocation8 + $0x50] sm:$0xf]
    %v1378 = vld [vmem:[#allocation8 + $0x54] sm:$0xff]
    %v1379 = vld [vmem:[#allocation8 + $0x5c] sm:$0xf]
    %v1380 = vld [vmem:[#allocation8 + $0x60] sm:$0xff]
    %v1381 = vld [vmem:[#allocation8 + $0x68] sm:$0xf]
    %v1382 = vld [vmem:[#allocation8 + $0x6c] sm:$0xff]
    %v1383 = vld [vmem:[#allocation8 + $0x74] sm:$0xf]
    %v1384 = vld [vmem:[#allocation8 + $0x78] sm:$0xff]
    %v1385 = vld [vmem:[#allocation8 + $0x80] sm:$0xf]
    %v1386 = vld [vmem:[#allocation8 + $0x84] sm:$0xff]
    %v1387 = vld [vmem:[#allocation8 + $0x8c] sm:$0xf]
    %v1388 = vld [vmem:[#allocation8 + $0x90] sm:$0xff]
    %v1389 = vld [vmem:[#allocation8 + $0x98] sm:$0xf]
    %v1390 = vld [vmem:[#allocation8 + $0x9c] sm:$0xff]
    %v1391 = vld [vmem:[#allocation8 + $0xa4] sm:$0xf]
    %v1392 = vld [vmem:[#allocation8 + $0xa8] sm:$0xff]
    %v1393 = vld [vmem:[#allocation8 + $0xb0] sm:$0xf]
    %v1394 = vld [vmem:[#allocation8 + $0xb4] sm:$0xff]
    %v1395 = vld [vmem:[#allocation8 + $0xbc] sm:$0xf]
    %v1396 = vld [vmem:[#allocation10] sm:$0xff]
    %v1397 = vld [vmem:[#allocation10 + $0x8] sm:$0xf]
    %v1398 = vld [vmem:[#allocation10 + $0xc] sm:$0xff]
    %v1399 = vld [vmem:[#allocation10 + $0x14] sm:$0xf]
    %v1400 = vld [vmem:[#allocation10 + $0x18] sm:$0xff]
    %v1401 = vld [vmem:[#allocation10 + $0x20] sm:$0xf]
    %v1402 = vld [vmem:[#allocation10 + $0x24] sm:$0xff]
    %v1403 = vld [vmem:[#allocation10 + $0x2c] sm:$0xf]
    %v1404 = vld [vmem:[#allocation10 + $0x30] sm:$0xff]
    %v1405 = vld [vmem:[#allocation10 + $0x38] sm:$0xf]
    %v1406 = vld [vmem:[#allocation10 + $0x3c] sm:$0xff]
    %v1407 = vld [vmem:[#allocation10 + $0x44] sm:$0xf]
    %v1408 = vld [vmem:[#allocation10 + $0x48] sm:$0xff]
    %v1409 = vld [vmem:[#allocation10 + $0x50] sm:$0xf]
    %v1410 = vld [vmem:[#allocation10 + $0x54] sm:$0xff]
    %v1411 = vld [vmem:[#allocation10 + $0x5c] sm:$0xf]
    %v1412 = vld [vmem:[#allocation10 + $0x60] sm:$0xff]
    %v1413 = vld [vmem:[#allocation10 + $0x68] sm:$0xf]
    %v1414 = vld [vmem:[#allocation10 + $0x6c] sm:$0xff]
    %v1415 = vld [vmem:[#allocation10 + $0x74] sm:$0xf]
    %v1416 = vld [vmem:[#allocation10 + $0x78] sm:$0xff]
    %v1417 = vld [vmem:[#allocation10 + $0x80] sm:$0xf]
    %v1418 = vld [vmem:[#allocation10 + $0x84] sm:$0xff]
    %v1419 = vld [vmem:[#allocation10 + $0x8c] sm:$0xf]
    %v1420 = vld [vmem:[#allocation10 + $0x90] sm:$0xff]
    %v1421 = vld [vmem:[#allocation10 + $0x98] sm:$0xf]
    %v1422 = vld [vmem:[#allocation10 + $0x9c] sm:$0xff]
    %v1423 = vld [vmem:[#allocation10 + $0xa4] sm:$0xf]
    %v1424 = vld [vmem:[#allocation10 + $0xa8] sm:$0xff]
    %v1425 = vld [vmem:[#allocation10 + $0xb0] sm:$0xf]
    %v1426 = vld [vmem:[#allocation10 + $0xb4] sm:$0xff]
    %v1427 = vld [vmem:[#allocation10 + $0xbc] sm:$0xf]
    %v1428 = vld [vmem:[%s8] sm:$0x7]
    %v1429 = vld [vmem:[%s9] sm:$0x1]
    %v1430 = vld [vmem:[#allocation3] sm:$0xf]
    %v1431 = vld [vmem:[#allocation3 + $0x4] sm:$0xf]
    %v1432 = vld [vmem:[#allocation3 + $0x8] sm:$0xf]
    %v1433 = vld [vmem:[#allocation3 + $0xc] sm:$0xf]
    %v1434 = vld [vmem:[#allocation3 + $0x10] sm:$0xf]
    %v1435 = vld [vmem:[#allocation3 + $0x14] sm:$0xf]
    %v1436 = vld [vmem:[#allocation3 + $0x18] sm:$0xf]
    %v1437 = vld [vmem:[#allocation3 + $0x1c] sm:$0xf]
    %v1439 = vlaneseq
    %v1440 = vshrl.u32 %v1439, 7
    %v1441 = vsub.s32 0, %v1440
    %v1442 = vrot.slane %v1428, %v1441
    %v1443 = vlaneseq
    %v1444 = vshrl.u32 %v1443, 7
    %v1445 = vsub.s32 1, %v1444
    %v1446 = vrot.slane %v1428, %v1445
    %v1447 = vlaneseq
    %v1448 = vshrl.u32 %v1447, 7
    %v1449 = vsub.s32 2, %v1448
    %v1450 = vrot.slane %v1428, %v1449
    %v1462 = vunpack.c.l.b16 %v1430
    %v1463 = vunpack.c.l.b16 %v1431
    %v1464 = vunpack.c.l.b16 %v1432
    %v1465 = vunpack.c.l.b16 %v1433
    %v1466 = vunpack.c.l.b16 %v1434
    %v1467 = vunpack.c.l.b16 %v1435
    %v1468 = vunpack.c.l.b16 %v1436
    %v1469 = vunpack.c.l.b16 %v1437
    %v1470 = vpack.c.b16 %v1463, %v1462
    %v1471 = vpack.c.b16 %v1465, %v1464
    %v1472 = vpack.c.b16 %v1467, %v1466
    %v1473 = vpack.c.b16 %v1469, %v1468
    %v1510 = vunpack.c.l.b16 %v1364
    %v1511 = vunpack.c.h.b16 %v1364
    %v1512 = vunpack.c.l.b16 %v1365
    %v1513 = vunpack.c.l.b16 %v1366
    %v1514 = vunpack.c.h.b16 %v1366
    %v1515 = vunpack.c.l.b16 %v1367
    %v1516 = vunpack.c.l.b16 %v1368
    %v1517 = vunpack.c.h.b16 %v1368
    %v1518 = vunpack.c.l.b16 %v1369
    %v1519 = vunpack.c.l.b16 %v1370
    %v1520 = vunpack.c.h.b16 %v1370
    %v1521 = vunpack.c.l.b16 %v1371
    %v1522 = vunpack.c.l.b16 %v1372
    %v1523 = vunpack.c.h.b16 %v1372
    %v1524 = vunpack.c.l.b16 %v1373
    %v1525 = vunpack.c.l.b16 %v1374
    %v1526 = vunpack.c.h.b16 %v1374
    %v1527 = vunpack.c.l.b16 %v1375
    %v1528 = vunpack.c.l.b16 %v1376
    %v1529 = vunpack.c.h.b16 %v1376
    %v1530 = vunpack.c.l.b16 %v1377
    %v1531 = vunpack.c.l.b16 %v1378
    %v1532 = vunpack.c.h.b16 %v1378
    %v1533 = vunpack.c.l.b16 %v1379
    %v1534 = vunpack.c.l.b16 %v1380
    %v1535 = vunpack.c.h.b16 %v1380
    %v1536 = vunpack.c.l.b16 %v1381
    %v1537 = vunpack.c.l.b16 %v1382
    %v1538 = vunpack.c.h.b16 %v1382
    %v1539 = vunpack.c.l.b16 %v1383
    %v1540 = vunpack.c.l.b16 %v1384
    %v1541 = vunpack.c.h.b16 %v1384
    %v1542 = vunpack.c.l.b16 %v1385
    %v1543 = vunpack.c.l.b16 %v1386
    %v1544 = vunpack.c.h.b16 %v1386
    %v1545 = vunpack.c.l.b16 %v1387
    %v1546 = vunpack.c.l.b16 %v1388
    %v1547 = vunpack.c.h.b16 %v1388
    %v1548 = vunpack.c.l.b16 %v1389
    %v1549 = vunpack.c.l.b16 %v1390
    %v1550 = vunpack.c.h.b16 %v1390
    %v1551 = vunpack.c.l.b16 %v1391
    %v1552 = vunpack.c.l.b16 %v1392
    %v1553 = vunpack.c.h.b16 %v1392
    %v1554 = vunpack.c.l.b16 %v1393
    %v1555 = vunpack.c.l.b16 %v1394
    %v1556 = vunpack.c.h.b16 %v1394
    %v1557 = vunpack.c.l.b16 %v1395
    %v1558 = vpack.c.b16 %v1513, %v1510
    %v1559 = vpack.c.b16 %v1514, %v1511
    %v1560 = vpack.c.b16 %v1515, %v1512
    %v1561 = vpack.c.b16 %v1519, %v1516
    %v1562 = vpack.c.b16 %v1520, %v1517
    %v1563 = vpack.c.b16 %v1521, %v1518
    %v1564 = vpack.c.b16 %v1525, %v1522
    %v1565 = vpack.c.b16 %v1526, %v1523
    %v1566 = vpack.c.b16 %v1527, %v1524
    %v1567 = vpack.c.b16 %v1531, %v1528
    %v1568 = vpack.c.b16 %v1532, %v1529
    %v1569 = vpack.c.b16 %v1533, %v1530
    %v1570 = vpack.c.b16 %v1537, %v1534
    %v1571 = vpack.c.b16 %v1538, %v1535
    %v1572 = vpack.c.b16 %v1539, %v1536
    %v1573 = vpack.c.b16 %v1543, %v1540
    %v1574 = vpack.c.b16 %v1544, %v1541
    %v1575 = vpack.c.b16 %v1545, %v1542
    %v1576 = vpack.c.b16 %v1549, %v1546
    %v1577 = vpack.c.b16 %v1550, %v1547
    %v1578 = vpack.c.b16 %v1551, %v1548
    %v1579 = vpack.c.b16 %v1555, %v1552
    %v1580 = vpack.c.b16 %v1556, %v1553
    %v1581 = vpack.c.b16 %v1557, %v1554
    %1606 = vmatprep.subr.bf16.mxu0 %v1559
    %1607 = vmatpush1.bf16.msra.mxu0 %v1558
    %1608 = vmatprep.subr.bf16.mxu0 %v1562
    %1609 = vmatpush1.bf16.msra.mxu0 %v1561
    %1610 = vmatprep.subr.bf16.mxu0 %v1565
    %1611 = vmatpush1.bf16.msra.mxu0 %v1564
    %1612 = vmatprep.subr.bf16.mxu0 %v1568
    %1613 = vmatpush1.bf16.msra.mxu0 %v1567
    %1614 = vmatprep.subr.bf16.mxu0 %v1571
    %1615 = vmatpush1.bf16.msra.mxu0 %v1570
    %1616 = vmatprep.subr.bf16.mxu0 %v1574
    %1617 = vmatpush1.bf16.msra.mxu0 %v1573
    %1618 = vmatprep.subr.bf16.mxu0 %v1577
    %1619 = vmatpush1.bf16.msra.mxu0 %v1576
    %1620 = vmatprep.subr.bf16.mxu0 %v1580
    %1621 = vmatpush1.bf16.msra.mxu0 %v1579
    %1622 = vmatprep.subr.bf16.mxu0 0
    %1623 = vmatpush1.bf16.msra.mxu0 0
    %1624 = vmatprep.subr.bf16.mxu0 0
    %1625 = vmatpush1.bf16.msra.mxu0 0
    %1626 = vmatprep.subr.bf16.mxu0 0
    %1627 = vmatpush1.bf16.msra.mxu0 0
    %1628 = vmatprep.subr.bf16.mxu0 0
    %1629 = vmatpush1.bf16.msra.mxu0 0
    %1630 = vmatprep.subr.bf16.mxu0 0
    %1631 = vmatpush1.bf16.msra.mxu0 0
    %1632 = vmatprep.subr.bf16.mxu0 0
    %1633 = vmatpush1.bf16.msra.mxu0 0
    %1634 = vmatprep.subr.bf16.mxu0 0
    %1635 = vmatpush1.bf16.msra.mxu0 0
    %1636 = vmatprep.subr.bf16.mxu0 0
    %1637 = vmatpush1.bf16.msra.mxu0 0
    %1638 = vmatprep.mubr.bf16.mxu0 0
    %1639 = vmatmul.mubr.bf16.gmra.mrb[0].mxu0 %v1470
    %v1640 = vpop.f32.mrb[0].mxu0
    %v1641 = vadd.f32 %v1442, %v1640
    %v1642 = vpop.f32.mrb[0].mxu0
    %v1643 = vadd.f32 %v1446, %v1642
    %v1644 = vpop.f32.mrb[0].mxu0
    %v1645 = vadd.f32 %v1442, %v1644
    %v1646 = vpop.f32.mrb[0].mxu0
    %v1647 = vadd.f32 %v1446, %v1646
    %1648 = vmatprep.mubr.bf16.mxu0 0
    %1649 = vmatmul.mubr.bf16.gmra.mrb[0].mxu0 %v1471
    %v1650 = vpop.f32.mrb[0].mxu0
    %v1651 = vadd.f32 %v1442, %v1650
    %v1652 = vpop.f32.mrb[0].mxu0
    %v1653 = vadd.f32 %v1446, %v1652
    %v1654 = vpop.f32.mrb[0].mxu0
    %v1655 = vadd.f32 %v1442, %v1654
    %v1656 = vpop.f32.mrb[0].mxu0
    %v1657 = vadd.f32 %v1446, %v1656
    %1658 = vmatprep.mubr.bf16.mxu0 0
    %1659 = vmatmul.mubr.bf16.gmra.mrb[0].mxu0 %v1472
    %v1660 = vpop.f32.mrb[0].mxu0
    %v1661 = vadd.f32 %v1442, %v1660
    %v1662 = vpop.f32.mrb[0].mxu0
    %v1663 = vadd.f32 %v1446, %v1662
    %v1664 = vpop.f32.mrb[0].mxu0
    %v1665 = vadd.f32 %v1442, %v1664
    %v1666 = vpop.f32.mrb[0].mxu0
    %v1667 = vadd.f32 %v1446, %v1666
    %1668 = vmatprep.mubr.bf16.mxu0 0
    %1669 = vmatmul.mubr.bf16.gmra.mrb[0].mxu0 %v1473
    %v1670 = vpop.f32.mrb[0].mxu0
    %v1671 = vadd.f32 %v1442, %v1670
    %v1672 = vpop.f32.mrb[0].mxu0
    %v1673 = vadd.f32 %v1446, %v1672
    %v1674 = vpop.f32.mrb[0].mxu0
    %v1675 = vadd.f32 %v1442, %v1674
    %v1676 = vpop.f32.mrb[0].mxu0
    %v1677 = vadd.f32 %v1446, %v1676
    %1678 = vdwg.mxu0
    %1679 = vmatprep.subr.bf16.mxu0 0
    %1680 = vmatpush1.bf16.msra.mxu0 %v1560
    %1681 = vmatprep.subr.bf16.mxu0 0
    %1682 = vmatpush1.bf16.msra.mxu0 %v1563
    %1683 = vmatprep.subr.bf16.mxu0 0
    %1684 = vmatpush1.bf16.msra.mxu0 %v1566
    %1685 = vmatprep.subr.bf16.mxu0 0
    %1686 = vmatpush1.bf16.msra.mxu0 %v1569
    %1687 = vmatprep.subr.bf16.mxu0 0
    %1688 = vmatpush1.bf16.msra.mxu0 %v1572
    %1689 = vmatprep.subr.bf16.mxu0 0
    %1690 = vmatpush1.bf16.msra.mxu0 %v1575
    %1691 = vmatprep.subr.bf16.mxu0 0
    %1692 = vmatpush1.bf16.msra.mxu0 %v1578
    %1693 = vmatprep.subr.bf16.mxu0 0
    %1694 = vmatpush1.bf16.msra.mxu0 %v1581
    %1695 = vmatprep.subr.bf16.mxu0 0
    %1696 = vmatpush1.bf16.msra.mxu0 0
    %1697 = vmatprep.subr.bf16.mxu0 0
    %1698 = vmatpush1.bf16.msra.mxu0 0
    %1699 = vmatprep.subr.bf16.mxu0 0
    %1700 = vmatpush1.bf16.msra.mxu0 0
    %1701 = vmatprep.subr.bf16.mxu0 0
    %1702 = vmatpush1.bf16.msra.mxu0 0
    %1703 = vmatprep.subr.bf16.mxu0 0
    %1704 = vmatpush1.bf16.msra.mxu0 0
    %1705 = vmatprep.subr.bf16.mxu0 0
    %1706 = vmatpush1.bf16.msra.mxu0 0
    %1707 = vmatprep.subr.bf16.mxu0 0
    %1708 = vmatpush1.bf16.msra.mxu0 0
    %1709 = vmatprep.subr.bf16.mxu0 0
    %1710 = vmatpush1.bf16.msra.mxu0 0
    %1711 = vmatprep.mubr.bf16.mxu0 0
    %1712 = vmatmul.mubr.bf16.gmra.mrb[0].mxu0 %v1470
    %v1713 = vpop.f32.mrb[0].mxu0
    %v1714 = vadd.f32 %v1450, %v1713
    %v1715 = vpop.f32.mrb[0].mxu0
    %v1716 = vpop.f32.mrb[0].mxu0
    %v1717 = vadd.f32 %v1450, %v1716
    %v1718 = vpop.f32.mrb[0].mxu0
    %1719 = vmatprep.mubr.bf16.mxu0 0
    %1720 = vmatmul.mubr.bf16.gmra.mrb[0].mxu0 %v1471
    %v1721 = vpop.f32.mrb[0].mxu0
    %v1722 = vadd.f32 %v1450, %v1721
    %v1723 = vpop.f32.mrb[0].mxu0
    %v1724 = vpop.f32.mrb[0].mxu0
    %v1725 = vadd.f32 %v1450, %v1724
    %v1726 = vpop.f32.mrb[0].mxu0
    %1727 = vmatprep.mubr.bf16.mxu0 0
    %1728 = vmatmul.mubr.bf16.gmra.mrb[0].mxu0 %v1472
    %v1729 = vpop.f32.mrb[0].mxu0
    %v1730 = vadd.f32 %v1450, %v1729
    %v1731 = vpop.f32.mrb[0].mxu0
    %v1732 = vpop.f32.mrb[0].mxu0
    %v1733 = vadd.f32 %v1450, %v1732
    %v1734 = vpop.f32.mrb[0].mxu0
    %1735 = vmatprep.mubr.bf16.mxu0 0
    %1736 = vmatmul.mubr.bf16.gmra.mrb[0].mxu0 %v1473
    %v1737 = vpop.f32.mrb[0].mxu0
    %v1738 = vadd.f32 %v1450, %v1737
    %v1739 = vpop.f32.mrb[0].mxu0
    %v1740 = vpop.f32.mrb[0].mxu0
    %v1741 = vadd.f32 %v1450, %v1740
    %v1742 = vpop.f32.mrb[0].mxu0
    %1743 = vdwg.mxu0
    %1744 = vst [vmem:[#allocation4] sm:$0xff] %v1641
    %1745 = vst [vmem:[#allocation4 + $0x8] sm:$0xff] %v1643
    %1746 = vst [vmem:[#allocation4 + $0x10] sm:$0xff] %v1714
    %1747 = vst [vmem:[#allocation4 + $0x18] sm:$0xff] %v1645
    %1748 = vst [vmem:[#allocation4 + $0x20] sm:$0xff] %v1647
    %1749 = vst [vmem:[#allocation4 + $0x28] sm:$0xff] %v1717
    %1750 = vst [vmem:[#allocation4 + $0x30] sm:$0xff] %v1651
    %1751 = vst [vmem:[#allocation4 + $0x38] sm:$0xff] %v1653
    %1752 = vst [vmem:[#allocation4 + $0x40] sm:$0xff] %v1722
    %1753 = vst [vmem:[#allocation4 + $0x48] sm:$0xff] %v1655
    %1754 = vst [vmem:[#allocation4 + $0x50] sm:$0xff] %v1657
    %1755 = vst [vmem:[#allocation4 + $0x58] sm:$0xff] %v1725
    %1756 = vst [vmem:[#allocation4 + $0x60] sm:$0xff] %v1661
    %1757 = vst [vmem:[#allocation4 + $0x68] sm:$0xff] %v1663
    %1758 = vst [vmem:[#allocation4 + $0x70] sm:$0xff] %v1730
    %1759 = vst [vmem:[#allocation4 + $0x78] sm:$0xff] %v1665
    %1760 = vst [vmem:[#allocation4 + $0x80] sm:$0xff] %v1667
    %1761 = vst [vmem:[#allocation4 + $0x88] sm:$0xff] %v1733
    %1762 = vst [vmem:[#allocation4 + $0x90] sm:$0xff] %v1671
    %1763 = vst [vmem:[#allocation4 + $0x98] sm:$0xff] %v1673
    %1764 = vst [vmem:[#allocation4 + $0xa0] sm:$0xff] %v1738
    %1765 = vst [vmem:[#allocation4 + $0xa8] sm:$0xff] %v1675
    %1766 = vst [vmem:[#allocation4 + $0xb0] sm:$0xff] %v1677
    %1767 = vst [vmem:[#allocation4 + $0xb8] sm:$0xff] %v1741
    %v1769 = vlaneseq
    %v1770 = vshrl.u32 %v1769, 7
    %v1771 = vsub.s32 0, %v1770
    %v1772 = vrot.slane %v1429, %v1771
    %s1774 = scalar_lea.vmem [#allocation2], 8
    %v1775 = vld [vmem:[%s1774] sm:$0xff]
    %v1776 = vpack.c.bf16 %v1775, %v1775
    %v1809 = vunpack.c.l.b16 %v1396
    %v1810 = vunpack.c.h.b16 %v1396
    %v1811 = vunpack.c.l.b16 %v1397
    %v1812 = vunpack.c.l.b16 %v1398
    %v1813 = vunpack.c.h.b16 %v1398
    %v1814 = vunpack.c.l.b16 %v1399
    %v1815 = vunpack.c.l.b16 %v1400
    %v1816 = vunpack.c.h.b16 %v1400
    %v1817 = vunpack.c.l.b16 %v1401
    %v1818 = vunpack.c.l.b16 %v1402
    %v1819 = vunpack.c.h.b16 %v1402
    %v1820 = vunpack.c.l.b16 %v1403
    %v1821 = vunpack.c.l.b16 %v1404
    %v1822 = vunpack.c.h.b16 %v1404
    %v1823 = vunpack.c.l.b16 %v1405
    %v1824 = vunpack.c.l.b16 %v1406
    %v1825 = vunpack.c.h.b16 %v1406
    %v1826 = vunpack.c.l.b16 %v1407
    %v1827 = vunpack.c.l.b16 %v1408
    %v1828 = vunpack.c.h.b16 %v1408
    %v1829 = vunpack.c.l.b16 %v1409
    %v1830 = vunpack.c.l.b16 %v1410
    %v1831 = vunpack.c.h.b16 %v1410
    %v1832 = vunpack.c.l.b16 %v1411
    %v1833 = vunpack.c.l.b16 %v1412
    %v1834 = vunpack.c.h.b16 %v1412
    %v1835 = vunpack.c.l.b16 %v1413
    %v1836 = vunpack.c.l.b16 %v1414
    %v1837 = vunpack.c.h.b16 %v1414
    %v1838 = vunpack.c.l.b16 %v1415
    %v1839 = vunpack.c.l.b16 %v1416
    %v1840 = vunpack.c.h.b16 %v1416
    %v1841 = vunpack.c.l.b16 %v1417
    %v1842 = vunpack.c.l.b16 %v1418
    %v1843 = vunpack.c.h.b16 %v1418
    %v1844 = vunpack.c.l.b16 %v1419
    %v1845 = vunpack.c.l.b16 %v1420
    %v1846 = vunpack.c.h.b16 %v1420
    %v1847 = vunpack.c.l.b16 %v1421
    %v1848 = vunpack.c.l.b16 %v1422
    %v1849 = vunpack.c.h.b16 %v1422
    %v1850 = vunpack.c.l.b16 %v1423
    %v1851 = vunpack.c.l.b16 %v1424
    %v1852 = vunpack.c.h.b16 %v1424
    %v1853 = vunpack.c.l.b16 %v1425
    %v1854 = vunpack.c.l.b16 %v1426
    %v1855 = vunpack.c.h.b16 %v1426
    %v1856 = vunpack.c.l.b16 %v1427
    %v1857 = vpack.c.b16 %v1812, %v1809
    %v1858 = vpack.c.b16 %v1813, %v1810
    %v1859 = vpack.c.b16 %v1814, %v1811
    %v1860 = vpack.c.b16 %v1818, %v1815
    %v1861 = vpack.c.b16 %v1819, %v1816
    %v1862 = vpack.c.b16 %v1820, %v1817
    %v1863 = vpack.c.b16 %v1824, %v1821
    %v1864 = vpack.c.b16 %v1825, %v1822
    %v1865 = vpack.c.b16 %v1826, %v1823
    %v1866 = vpack.c.b16 %v1830, %v1827
    %v1867 = vpack.c.b16 %v1831, %v1828
    %v1868 = vpack.c.b16 %v1832, %v1829
    %v1869 = vpack.c.b16 %v1836, %v1833
    %v1870 = vpack.c.b16 %v1837, %v1834
    %v1871 = vpack.c.b16 %v1838, %v1835
    %v1872 = vpack.c.b16 %v1842, %v1839
    %v1873 = vpack.c.b16 %v1843, %v1840
    %v1874 = vpack.c.b16 %v1844, %v1841
    %v1875 = vpack.c.b16 %v1848, %v1845
    %v1876 = vpack.c.b16 %v1849, %v1846
    %v1877 = vpack.c.b16 %v1850, %v1847
    %v1878 = vpack.c.b16 %v1854, %v1851
    %v1879 = vpack.c.b16 %v1855, %v1852
    %v1880 = vpack.c.b16 %v1856, %v1853
    %1905 = vmatprep.subr.bf16.mxu0 %v1858
    %1906 = vmatpush1.bf16.msra.mxu0 %v1857
    %1907 = vmatprep.subr.bf16.mxu0 %v1861
    %1908 = vmatpush1.bf16.msra.mxu0 %v1860
    %1909 = vmatprep.subr.bf16.mxu0 %v1864
    %1910 = vmatpush1.bf16.msra.mxu0 %v1863
    %1911 = vmatprep.subr.bf16.mxu0 %v1867
    %1912 = vmatpush1.bf16.msra.mxu0 %v1866
    %1913 = vmatprep.subr.bf16.mxu0 %v1870
    %1914 = vmatpush1.bf16.msra.mxu0 %v1869
    %1915 = vmatprep.subr.bf16.mxu0 %v1873
    %1916 = vmatpush1.bf16.msra.mxu0 %v1872
    %1917 = vmatprep.subr.bf16.mxu0 %v1876
    %1918 = vmatpush1.bf16.msra.mxu0 %v1875
    %1919 = vmatprep.subr.bf16.mxu0 %v1879
    %1920 = vmatpush1.bf16.msra.mxu0 %v1878
    %1921 = vmatprep.subr.bf16.mxu0 0
    %1922 = vmatpush1.bf16.msra.mxu0 0
    %1923 = vmatprep.subr.bf16.mxu0 0
    %1924 = vmatpush1.bf16.msra.mxu0 0
    %1925 = vmatprep.subr.bf16.mxu0 0
    %1926 = vmatpush1.bf16.msra.mxu0 0
    %1927 = vmatprep.subr.bf16.mxu0 0
    %1928 = vmatpush1.bf16.msra.mxu0 0
    %1929 = vmatprep.subr.bf16.mxu0 0
    %1930 = vmatpush1.bf16.msra.mxu0 0
    %1931 = vmatprep.subr.bf16.mxu0 0
    %1932 = vmatpush1.bf16.msra.mxu0 0
    %1933 = vmatprep.subr.bf16.mxu0 0
    %1934 = vmatpush1.bf16.msra.mxu0 0
    %1935 = vmatprep.subr.bf16.mxu0 0
    %1936 = vmatpush1.bf16.msra.mxu0 0
    %1937 = vmatprep.mubr.bf16.mxu0 0
    %1938 = vmatmul.mubr.bf16.gmra.mrb[0].mxu0 %v1776
    %v1939 = vpop.f32.mrb[0].mxu0
    %v1940 = vadd.f32 0.0, %v1939
    %v1941 = vpop.f32.mrb[0].mxu0
    %v1942 = vadd.f32 0.0, %v1941
    %v1943 = vpop.f32.mrb[0].mxu0
    %v1944 = vpop.f32.mrb[0].mxu0
    %1945 = vdwg.mxu0
    %1946 = vmatprep.subr.bf16.mxu0 0
    %1947 = vmatpush1.bf16.msra.mxu0 %v1859
    %1948 = vmatprep.subr.bf16.mxu0 0
    %1949 = vmatpush1.bf16.msra.mxu0 %v1862
    %1950 = vmatprep.subr.bf16.mxu0 0
    %1951 = vmatpush1.bf16.msra.mxu0 %v1865
    %1952 = vmatprep.subr.bf16.mxu0 0
    %1953 = vmatpush1.bf16.msra.mxu0 %v1868
    %1954 = vmatprep.subr.bf16.mxu0 0
    %1955 = vmatpush1.bf16.msra.mxu0 %v1871
    %1956 = vmatprep.subr.bf16.mxu0 0
    %1957 = vmatpush1.bf16.msra.mxu0 %v1874
    %1958 = vmatprep.subr.bf16.mxu0 0
    %1959 = vmatpush1.bf16.msra.mxu0 %v1877
    %1960 = vmatprep.subr.bf16.mxu0 0
    %1961 = vmatpush1.bf16.msra.mxu0 %v1880
    %1962 = vmatprep.subr.bf16.mxu0 0
    %1963 = vmatpush1.bf16.msra.mxu0 0
    %1964 = vmatprep.subr.bf16.mxu0 0
    %1965 = vmatpush1.bf16.msra.mxu0 0
    %1966 = vmatprep.subr.bf16.mxu0 0
    %1967 = vmatpush1.bf16.msra.mxu0 0
    %1968 = vmatprep.subr.bf16.mxu0 0
    %1969 = vmatpush1.bf16.msra.mxu0 0
    %1970 = vmatprep.subr.bf16.mxu0 0
    %1971 = vmatpush1.bf16.msra.mxu0 0
    %1972 = vmatprep.subr.bf16.mxu0 0
    %1973 = vmatpush1.bf16.msra.mxu0 0
    %1974 = vmatprep.subr.bf16.mxu0 0
    %1975 = vmatpush1.bf16.msra.mxu0 0
    %1976 = vmatprep.subr.bf16.mxu0 0
    %1977 = vmatpush1.bf16.msra.mxu0 0
    %1978 = vmatprep.mubr.bf16.mxu0 0
    %1979 = vmatmul.mubr.bf16.gmra.mrb[0].mxu0 %v1776
    %v1980 = vpop.f32.mrb[0].mxu0
    %v1981 = vadd.f32 0.0, %v1980
    %v1982 = vpop.f32.mrb[0].mxu0
    %v1983 = vpop.f32.mrb[0].mxu0
    %v1984 = vpop.f32.mrb[0].mxu0
    %1985 = vdwg.mxu0
    %v1986 = vld [vmem:[#allocation4] sm:$0xff]
    %v1987 = vld [vmem:[#allocation4 + $0x8] sm:$0xff]
    %v1988 = vld [vmem:[#allocation4 + $0x10] sm:$0xff]
    %v1989 = vadd.f32 %v1986, %v1940
    %v1990 = vxor.u32 %v1989, 2147483648
    %v1991 = vmul.f32 %v1990, 1.442695
    %v1992 = vpow.pop %v1991
    %v1993 = vadd.f32 %v1992, 1.0
    %v1994 = vrcp.pop %v1993
    %v1995 = vmul.f32 1.0, %v1994
    %v1996 = vadd.f32 %v1987, %v1942
    %v1997 = vxor.u32 %v1996, 2147483648
    %v1998 = vmul.f32 %v1997, 1.442695
    %v1999 = vpow.pop %v1998
    %v2000 = vadd.f32 %v1999, 1.0
    %v2001 = vrcp.pop %v2000
    %v2002 = vmul.f32 1.0, %v2001
    %v2003 = vadd.f32 %v1981, %v1772
    %v2004 = vmul.f32 %v1995, %v2003
    %v2005 = vadd.f32 %v1988, %v2004
    %v2006 = vtanh.pop %v2005
    %v2007 = vsub.f32 %v1775, %v2006
    %v2008 = vmul.f32 %v2002, %v2007
    %v2009 = vadd.f32 %v2006, %v2008
    %v2010 = vpack.c.bf16 %v2009, %v2009
    %2011 = vmatprep.subr.bf16.mxu0 %v1858
    %2012 = vmatpush1.bf16.msra.mxu0 %v1857
    %2013 = vmatprep.subr.bf16.mxu0 %v1861
    %2014 = vmatpush1.bf16.msra.mxu0 %v1860
    %2015 = vmatprep.subr.bf16.mxu0 %v1864
    %2016 = vmatpush1.bf16.msra.mxu0 %v1863
    %2017 = vmatprep.subr.bf16.mxu0 %v1867
    %2018 = vmatpush1.bf16.msra.mxu0 %v1866
    %2019 = vmatprep.subr.bf16.mxu0 %v1870
    %2020 = vmatpush1.bf16.msra.mxu0 %v1869
    %2021 = vmatprep.subr.bf16.mxu0 %v1873
    %2022 = vmatpush1.bf16.msra.mxu0 %v1872
    %2023 = vmatprep.subr.bf16.mxu0 %v1876
    %2024 = vmatpush1.bf16.msra.mxu0 %v1875
    %2025 = vmatprep.subr.bf16.mxu0 %v1879
    %2026 = vmatpush1.bf16.msra.mxu0 %v1878
    %2027 = vmatprep.subr.bf16.mxu0 0
    %2028 = vmatpush1.bf16.msra.mxu0 0
    %2029 = vmatprep.subr.bf16.mxu0 0
    %2030 = vmatpush1.bf16.msra.mxu0 0
    %2031 = vmatprep.subr.bf16.mxu0 0
    %2032 = vmatpush1.bf16.msra.mxu0 0
    %2033 = vmatprep.subr.bf16.mxu0 0
    %2034 = vmatpush1.bf16.msra.mxu0 0
    %2035 = vmatprep.subr.bf16.mxu0 0
    %2036 = vmatpush1.bf16.msra.mxu0 0
    %2037 = vmatprep.subr.bf16.mxu0 0
    %2038 = vmatpush1.bf16.msra.mxu0 0
    %2039 = vmatprep.subr.bf16.mxu0 0
    %2040 = vmatpush1.bf16.msra.mxu0 0
    %2041 = vmatprep.subr.bf16.mxu0 0
    %2042 = vmatpush1.bf16.msra.mxu0 0
    %2043 = vmatprep.mubr.bf16.mxu0 0
    %2044 = vmatmul.mubr.bf16.gmra.mrb[0].mxu0 %v2010
    %v2045 = vpop.f32.mrb[0].mxu0
    %v2046 = vadd.f32 0.0, %v2045
    %v2047 = vpop.f32.mrb[0].mxu0
    %v2048 = vadd.f32 0.0, %v2047
    %v2049 = vpop.f32.mrb[0].mxu0
    %v2050 = vpop.f32.mrb[0].mxu0
    %2051 = vdwg.mxu0
    %2052 = vmatprep.subr.bf16.mxu0 0
    %2053 = vmatpush1.bf16.msra.mxu0 %v1859
    %2054 = vmatprep.subr.bf16.mxu0 0
    %2055 = vmatpush1.bf16.msra.mxu0 %v1862
    %2056 = vmatprep.subr.bf16.mxu0 0
    %2057 = vmatpush1.bf16.msra.mxu0 %v1865
    %2058 = vmatprep.subr.bf16.mxu0 0
    %2059 = vmatpush1.bf16.msra.mxu0 %v1868
    %2060 = vmatprep.subr.bf16.mxu0 0
    %2061 = vmatpush1.bf16.msra.mxu0 %v1871
    %2062 = vmatprep.subr.bf16.mxu0 0
    %2063 = vmatpush1.bf16.msra.mxu0 %v1874
    %2064 = vmatprep.subr.bf16.mxu0 0
    %2065 = vmatpush1.bf16.msra.mxu0 %v1877
    %2066 = vmatprep.subr.bf16.mxu0 0
    %2067 = vmatpush1.bf16.msra.mxu0 %v1880
    %2068 = vmatprep.subr.bf16.mxu0 0
    %2069 = vmatpush1.bf16.msra.mxu0 0
    %2070 = vmatprep.subr.bf16.mxu0 0
    %2071 = vmatpush1.bf16.msra.mxu0 0
    %2072 = vmatprep.subr.bf16.mxu0 0
    %2073 = vmatpush1.bf16.msra.mxu0 0
    %2074 = vmatprep.subr.bf16.mxu0 0
    %2075 = vmatpush1.bf16.msra.mxu0 0
    %2076 = vmatprep.subr.bf16.mxu0 0
    %2077 = vmatpush1.bf16.msra.mxu0 0
    %2078 = vmatprep.subr.bf16.mxu0 0
    %2079 = vmatpush1.bf16.msra.mxu0 0
    %2080 = vmatprep.subr.bf16.mxu0 0
    %2081 = vmatpush1.bf16.msra.mxu0 0
    %2082 = vmatprep.subr.bf16.mxu0 0
    %2083 = vmatpush1.bf16.msra.mxu0 0
    %2084 = vmatprep.mubr.bf16.mxu0 0
    %2085 = vmatmul.mubr.bf16.gmra.mrb[0].mxu0 %v2010
    %v2086 = vpop.f32.mrb[0].mxu0
    %v2087 = vadd.f32 0.0, %v2086
    %v2088 = vpop.f32.mrb[0].mxu0
    %v2089 = vpop.f32.mrb[0].mxu0
    %v2090 = vpop.f32.mrb[0].mxu0
    %2091 = vdwg.mxu0
    %v2092 = vld [vmem:[%s681] sm:$0xff]
    %v2093 = vld [vmem:[%s681 + $0x8] sm:$0xff]
    %v2094 = vld [vmem:[%s681 + $0x10] sm:$0xff]
    %v2095 = vadd.f32 %v2092, %v2046
    %v2096 = vxor.u32 %v2095, 2147483648
    %v2097 = vmul.f32 %v2096, 1.442695
    %v2098 = vpow.pop %v2097
    %v2099 = vadd.f32 %v2098, 1.0
    %v2100 = vrcp.pop %v2099
    %v2101 = vmul.f32 1.0, %v2100
    %v2102 = vadd.f32 %v2093, %v2048
    %v2103 = vxor.u32 %v2102, 2147483648
    %v2104 = vmul.f32 %v2103, 1.442695
    %v2105 = vpow.pop %v2104
    %v2106 = vadd.f32 %v2105, 1.0
    %v2107 = vrcp.pop %v2106
    %v2108 = vmul.f32 1.0, %v2107
    %v2109 = vadd.f32 %v2087, %v1772
    %v2110 = vmul.f32 %v2101, %v2109
    %v2111 = vadd.f32 %v2094, %v2110
    %v2112 = vtanh.pop %v2111
    %v2113 = vsub.f32 %v2009, %v2112
    %v2114 = vmul.f32 %v2108, %v2113
    %v2115 = vadd.f32 %v2112, %v2114
    %v2116 = vpack.c.bf16 %v2115, %v2115
    %2117 = vmatprep.subr.bf16.mxu0 %v1858
    %2118 = vmatpush1.bf16.msra.mxu0 %v1857
    %2119 = vmatprep.subr.bf16.mxu0 %v1861
    %2120 = vmatpush1.bf16.msra.mxu0 %v1860
    %2121 = vmatprep.subr.bf16.mxu0 %v1864
    %2122 = vmatpush1.bf16.msra.mxu0 %v1863
    %2123 = vmatprep.subr.bf16.mxu0 %v1867
    %2124 = vmatpush1.bf16.msra.mxu0 %v1866
    %2125 = vmatprep.subr.bf16.mxu0 %v1870
    %2126 = vmatpush1.bf16.msra.mxu0 %v1869
    %2127 = vmatprep.subr.bf16.mxu0 %v1873
    %2128 = vmatpush1.bf16.msra.mxu0 %v1872
    %2129 = vmatprep.subr.bf16.mxu0 %v1876
    %2130 = vmatpush1.bf16.msra.mxu0 %v1875
    %2131 = vmatprep.subr.bf16.mxu0 %v1879
    %2132 = vmatpush1.bf16.msra.mxu0 %v1878
    %2133 = vmatprep.subr.bf16.mxu0 0
    %2134 = vmatpush1.bf16.msra.mxu0 0
    %2135 = vmatprep.subr.bf16.mxu0 0
    %2136 = vmatpush1.bf16.msra.mxu0 0
    %2137 = vmatprep.subr.bf16.mxu0 0
    %2138 = vmatpush1.bf16.msra.mxu0 0
    %2139 = vmatprep.subr.bf16.mxu0 0
    %2140 = vmatpush1.bf16.msra.mxu0 0
    %2141 = vmatprep.subr.bf16.mxu0 0
    %2142 = vmatpush1.bf16.msra.mxu0 0
    %2143 = vmatprep.subr.bf16.mxu0 0
    %2144 = vmatpush1.bf16.msra.mxu0 0
    %2145 = vmatprep.subr.bf16.mxu0 0
    %2146 = vmatpush1.bf16.msra.mxu0 0
    %2147 = vmatprep.subr.bf16.mxu0 0
    %2148 = vmatpush1.bf16.msra.mxu0 0
    %2149 = vmatprep.mubr.bf16.mxu0 0
    %2150 = vmatmul.mubr.bf16.gmra.mrb[0].mxu0 %v2116
    %v2151 = vpop.f32.mrb[0].mxu0
    %v2152 = vadd.f32 0.0, %v2151
    %v2153 = vpop.f32.mrb[0].mxu0
    %v2154 = vadd.f32 0.0, %v2153
    %v2155 = vpop.f32.mrb[0].mxu0
    %v2156 = vpop.f32.mrb[0].mxu0
    %2157 = vdwg.mxu0
    %2158 = vmatprep.subr.bf16.mxu0 0
    %2159 = vmatpush1.bf16.msra.mxu0 %v1859
    %2160 = vmatprep.subr.bf16.mxu0 0
    %2161 = vmatpush1.bf16.msra.mxu0 %v1862
    %2162 = vmatprep.subr.bf16.mxu0 0
    %2163 = vmatpush1.bf16.msra.mxu0 %v1865
    %2164 = vmatprep.subr.bf16.mxu0 0
    %2165 = vmatpush1.bf16.msra.mxu0 %v1868
    %2166 = vmatprep.subr.bf16.mxu0 0
    %2167 = vmatpush1.bf16.msra.mxu0 %v1871
    %2168 = vmatprep.subr.bf16.mxu0 0
    %2169 = vmatpush1.bf16.msra.mxu0 %v1874
    %2170 = vmatprep.subr.bf16.mxu0 0
    %2171 = vmatpush1.bf16.msra.mxu0 %v1877
    %2172 = vmatprep.subr.bf16.mxu0 0
    %2173 = vmatpush1.bf16.msra.mxu0 %v1880
    %2174 = vmatprep.subr.bf16.mxu0 0
    %2175 = vmatpush1.bf16.msra.mxu0 0
    %2176 = vmatprep.subr.bf16.mxu0 0
    %2177 = vmatpush1.bf16.msra.mxu0 0
    %2178 = vmatprep.subr.bf16.mxu0 0
    %2179 = vmatpush1.bf16.msra.mxu0 0
    %2180 = vmatprep.subr.bf16.mxu0 0
    %2181 = vmatpush1.bf16.msra.mxu0 0
    %2182 = vmatprep.subr.bf16.mxu0 0
    %2183 = vmatpush1.bf16.msra.mxu0 0
    %2184 = vmatprep.subr.bf16.mxu0 0
    %2185 = vmatpush1.bf16.msra.mxu0 0
    %2186 = vmatprep.subr.bf16.mxu0 0
    %2187 = vmatpush1.bf16.msra.mxu0 0
    %2188 = vmatprep.subr.bf16.mxu0 0
    %2189 = vmatpush1.bf16.msra.mxu0 0
    %2190 = vmatprep.mubr.bf16.mxu0 0
    %2191 = vmatmul.mubr.bf16.gmra.mrb[0].mxu0 %v2116
    %v2192 = vpop.f32.mrb[0].mxu0
    %v2193 = vadd.f32 0.0, %v2192
    %v2194 = vpop.f32.mrb[0].mxu0
    %v2195 = vpop.f32.mrb[0].mxu0
    %v2196 = vpop.f32.mrb[0].mxu0
    %2197 = vdwg.mxu0
    %v2198 = vld [vmem:[%s790] sm:$0xff]
    %v2199 = vld [vmem:[%s790 + $0x8] sm:$0xff]
    %v2200 = vld [vmem:[%s790 + $0x10] sm:$0xff]
    %v2201 = vadd.f32 %v2198, %v2152
    %v2202 = vxor.u32 %v2201, 2147483648
    %v2203 = vmul.f32 %v2202, 1.442695
    %v2204 = vpow.pop %v2203
    %v2205 = vadd.f32 %v2204, 1.0
    %v2206 = vrcp.pop %v2205
    %v2207 = vmul.f32 1.0, %v2206
    %v2208 = vadd.f32 %v2199, %v2154
    %v2209 = vxor.u32 %v2208, 2147483648
    %v2210 = vmul.f32 %v2209, 1.442695
    %v2211 = vpow.pop %v2210
    %v2212 = vadd.f32 %v2211, 1.0
    %v2213 = vrcp.pop %v2212
    %v2214 = vmul.f32 1.0, %v2213
    %v2215 = vadd.f32 %v2193, %v1772
    %v2216 = vmul.f32 %v2207, %v2215
    %v2217 = vadd.f32 %v2200, %v2216
    %v2218 = vtanh.pop %v2217
    %v2219 = vsub.f32 %v2115, %v2218
    %v2220 = vmul.f32 %v2214, %v2219
    %v2221 = vadd.f32 %v2218, %v2220
    %v2222 = vpack.c.bf16 %v2221, %v2221
    %2223 = vmatprep.subr.bf16.mxu0 %v1858
    %2224 = vmatpush1.bf16.msra.mxu0 %v1857
    %2225 = vmatprep.subr.bf16.mxu0 %v1861
    %2226 = vmatpush1.bf16.msra.mxu0 %v1860
    %2227 = vmatprep.subr.bf16.mxu0 %v1864
    %2228 = vmatpush1.bf16.msra.mxu0 %v1863
    %2229 = vmatprep.subr.bf16.mxu0 %v1867
    %2230 = vmatpush1.bf16.msra.mxu0 %v1866
    %2231 = vmatprep.subr.bf16.mxu0 %v1870
    %2232 = vmatpush1.bf16.msra.mxu0 %v1869
    %2233 = vmatprep.subr.bf16.mxu0 %v1873
    %2234 = vmatpush1.bf16.msra.mxu0 %v1872
    %2235 = vmatprep.subr.bf16.mxu0 %v1876
    %2236 = vmatpush1.bf16.msra.mxu0 %v1875
    %2237 = vmatprep.subr.bf16.mxu0 %v1879
    %2238 = vmatpush1.bf16.msra.mxu0 %v1878
    %2239 = vmatprep.subr.bf16.mxu0 0
    %2240 = vmatpush1.bf16.msra.mxu0 0
    %2241 = vmatprep.subr.bf16.mxu0 0
    %2242 = vmatpush1.bf16.msra.mxu0 0
    %2243 = vmatprep.subr.bf16.mxu0 0
    %2244 = vmatpush1.bf16.msra.mxu0 0
    %2245 = vmatprep.subr.bf16.mxu0 0
    %2246 = vmatpush1.bf16.msra.mxu0 0
    %2247 = vmatprep.subr.bf16.mxu0 0
    %2248 = vmatpush1.bf16.msra.mxu0 0
    %2249 = vmatprep.subr.bf16.mxu0 0
    %2250 = vmatpush1.bf16.msra.mxu0 0
    %2251 = vmatprep.subr.bf16.mxu0 0
    %2252 = vmatpush1.bf16.msra.mxu0 0
    %2253 = vmatprep.subr.bf16.mxu0 0
    %2254 = vmatpush1.bf16.msra.mxu0 0
    %2255 = vmatprep.mubr.bf16.mxu0 0
    %2256 = vmatmul.mubr.bf16.gmra.mrb[0].mxu0 %v2222
    %v2257 = vpop.f32.mrb[0].mxu0
    %v2258 = vadd.f32 0.0, %v2257
    %v2259 = vpop.f32.mrb[0].mxu0
    %v2260 = vadd.f32 0.0, %v2259
    %v2261 = vpop.f32.mrb[0].mxu0
    %v2262 = vpop.f32.mrb[0].mxu0
    %2263 = vdwg.mxu0
    %2264 = vmatprep.subr.bf16.mxu0 0
    %2265 = vmatpush1.bf16.msra.mxu0 %v1859
    %2266 = vmatprep.subr.bf16.mxu0 0
    %2267 = vmatpush1.bf16.msra.mxu0 %v1862
    %2268 = vmatprep.subr.bf16.mxu0 0
    %2269 = vmatpush1.bf16.msra.mxu0 %v1865
    %2270 = vmatprep.subr.bf16.mxu0 0
    %2271 = vmatpush1.bf16.msra.mxu0 %v1868
    %2272 = vmatprep.subr.bf16.mxu0 0
    %2273 = vmatpush1.bf16.msra.mxu0 %v1871
    %2274 = vmatprep.subr.bf16.mxu0 0
    %2275 = vmatpush1.bf16.msra.mxu0 %v1874
    %2276 = vmatprep.subr.bf16.mxu0 0
    %2277 = vmatpush1.bf16.msra.mxu0 %v1877
    %2278 = vmatprep.subr.bf16.mxu0 0
    %2279 = vmatpush1.bf16.msra.mxu0 %v1880
    %2280 = vmatprep.subr.bf16.mxu0 0
    %2281 = vmatpush1.bf16.msra.mxu0 0
    %2282 = vmatprep.subr.bf16.mxu0 0
    %2283 = vmatpush1.bf16.msra.mxu0 0
    %2284 = vmatprep.subr.bf16.mxu0 0
    %2285 = vmatpush1.bf16.msra.mxu0 0
    %2286 = vmatprep.subr.bf16.mxu0 0
    %2287 = vmatpush1.bf16.msra.mxu0 0
    %2288 = vmatprep.subr.bf16.mxu0 0
    %2289 = vmatpush1.bf16.msra.mxu0 0
    %2290 = vmatprep.subr.bf16.mxu0 0
    %2291 = vmatpush1.bf16.msra.mxu0 0
    %2292 = vmatprep.subr.bf16.mxu0 0
    %2293 = vmatpush1.bf16.msra.mxu0 0
    %2294 = vmatprep.subr.bf16.mxu0 0
    %2295 = vmatpush1.bf16.msra.mxu0 0
    %2296 = vmatprep.mubr.bf16.mxu0 0
    %2297 = vmatmul.mubr.bf16.gmra.mrb[0].mxu0 %v2222
    %v2298 = vpop.f32.mrb[0].mxu0
    %v2299 = vadd.f32 0.0, %v2298
    %v2300 = vpop.f32.mrb[0].mxu0
    %v2301 = vpop.f32.mrb[0].mxu0
    %v2302 = vpop.f32.mrb[0].mxu0
    %2303 = vdwg.mxu0
    %v2304 = vld [vmem:[%s899] sm:$0xff]
    %v2305 = vld [vmem:[%s899 + $0x8] sm:$0xff]
    %v2306 = vld [vmem:[%s899 + $0x10] sm:$0xff]
    %v2307 = vadd.f32 %v2304, %v2258
    %v2308 = vxor.u32 %v2307, 2147483648
    %v2309 = vmul.f32 %v2308, 1.442695
    %v2310 = vpow.pop %v2309
    %v2311 = vadd.f32 %v2310, 1.0
    %v2312 = vrcp.pop %v2311
    %v2313 = vmul.f32 1.0, %v2312
    %v2314 = vadd.f32 %v2305, %v2260
    %v2315 = vxor.u32 %v2314, 2147483648
    %v2316 = vmul.f32 %v2315, 1.442695
    %v2317 = vpow.pop %v2316
    %v2318 = vadd.f32 %v2317, 1.0
    %v2319 = vrcp.pop %v2318
    %v2320 = vmul.f32 1.0, %v2319
    %v2321 = vadd.f32 %v2299, %v1772
    %v2322 = vmul.f32 %v2313, %v2321
    %v2323 = vadd.f32 %v2306, %v2322
    %v2324 = vtanh.pop %v2323
    %v2325 = vsub.f32 %v2221, %v2324
    %v2326 = vmul.f32 %v2320, %v2325
    %v2327 = vadd.f32 %v2324, %v2326
    %v2328 = vpack.c.bf16 %v2327, %v2327
    %2329 = vmatprep.subr.bf16.mxu0 %v1858
    %2330 = vmatpush1.bf16.msra.mxu0 %v1857
    %2331 = vmatprep.subr.bf16.mxu0 %v1861
    %2332 = vmatpush1.bf16.msra.mxu0 %v1860
    %2333 = vmatprep.subr.bf16.mxu0 %v1864
    %2334 = vmatpush1.bf16.msra.mxu0 %v1863
    %2335 = vmatprep.subr.bf16.mxu0 %v1867
    %2336 = vmatpush1.bf16.msra.mxu0 %v1866
    %2337 = vmatprep.subr.bf16.mxu0 %v1870
    %2338 = vmatpush1.bf16.msra.mxu0 %v1869
    %2339 = vmatprep.subr.bf16.mxu0 %v1873
    %2340 = vmatpush1.bf16.msra.mxu0 %v1872
    %2341 = vmatprep.subr.bf16.mxu0 %v1876
    %2342 = vmatpush1.bf16.msra.mxu0 %v1875
    %2343 = vmatprep.subr.bf16.mxu0 %v1879
    %2344 = vmatpush1.bf16.msra.mxu0 %v1878
    %2345 = vmatprep.subr.bf16.mxu0 0
    %2346 = vmatpush1.bf16.msra.mxu0 0
    %2347 = vmatprep.subr.bf16.mxu0 0
    %2348 = vmatpush1.bf16.msra.mxu0 0
    %2349 = vmatprep.subr.bf16.mxu0 0
    %2350 = vmatpush1.bf16.msra.mxu0 0
    %2351 = vmatprep.subr.bf16.mxu0 0
    %2352 = vmatpush1.bf16.msra.mxu0 0
    %2353 = vmatprep.subr.bf16.mxu0 0
    %2354 = vmatpush1.bf16.msra.mxu0 0
    %2355 = vmatprep.subr.bf16.mxu0 0
    %2356 = vmatpush1.bf16.msra.mxu0 0
    %2357 = vmatprep.subr.bf16.mxu0 0
    %2358 = vmatpush1.bf16.msra.mxu0 0
    %2359 = vmatprep.subr.bf16.mxu0 0
    %2360 = vmatpush1.bf16.msra.mxu0 0
    %2361 = vmatprep.mubr.bf16.mxu0 0
    %2362 = vmatmul.mubr.bf16.gmra.mrb[0].mxu0 %v2328
    %v2363 = vpop.f32.mrb[0].mxu0
    %v2364 = vadd.f32 0.0, %v2363
    %v2365 = vpop.f32.mrb[0].mxu0
    %v2366 = vadd.f32 0.0, %v2365
    %v2367 = vpop.f32.mrb[0].mxu0
    %v2368 = vpop.f32.mrb[0].mxu0
    %2369 = vdwg.mxu0
    %2370 = vmatprep.subr.bf16.mxu0 0
    %2371 = vmatpush1.bf16.msra.mxu0 %v1859
    %2372 = vmatprep.subr.bf16.mxu0 0
    %2373 = vmatpush1.bf16.msra.mxu0 %v1862
    %2374 = vmatprep.subr.bf16.mxu0 0
    %2375 = vmatpush1.bf16.msra.mxu0 %v1865
    %2376 = vmatprep.subr.bf16.mxu0 0
    %2377 = vmatpush1.bf16.msra.mxu0 %v1868
    %2378 = vmatprep.subr.bf16.mxu0 0
    %2379 = vmatpush1.bf16.msra.mxu0 %v1871
    %2380 = vmatprep.subr.bf16.mxu0 0
    %2381 = vmatpush1.bf16.msra.mxu0 %v1874
    %2382 = vmatprep.subr.bf16.mxu0 0
    %2383 = vmatpush1.bf16.msra.mxu0 %v1877
    %2384 = vmatprep.subr.bf16.mxu0 0
    %2385 = vmatpush1.bf16.msra.mxu0 %v1880
    %2386 = vmatprep.subr.bf16.mxu0 0
    %2387 = vmatpush1.bf16.msra.mxu0 0
    %2388 = vmatprep.subr.bf16.mxu0 0
    %2389 = vmatpush1.bf16.msra.mxu0 0
    %2390 = vmatprep.subr.bf16.mxu0 0
    %2391 = vmatpush1.bf16.msra.mxu0 0
    %2392 = vmatprep.subr.bf16.mxu0 0
    %2393 = vmatpush1.bf16.msra.mxu0 0
    %2394 = vmatprep.subr.bf16.mxu0 0
    %2395 = vmatpush1.bf16.msra.mxu0 0
    %2396 = vmatprep.subr.bf16.mxu0 0
    %2397 = vmatpush1.bf16.msra.mxu0 0
    %2398 = vmatprep.subr.bf16.mxu0 0
    %2399 = vmatpush1.bf16.msra.mxu0 0
    %2400 = vmatprep.subr.bf16.mxu0 0
    %2401 = vmatpush1.bf16.msra.mxu0 0
    %2402 = vmatprep.mubr.bf16.mxu0 0
    %2403 = vmatmul.mubr.bf16.gmra.mrb[0].mxu0 %v2328
    %v2404 = vpop.f32.mrb[0].mxu0
    %v2405 = vadd.f32 0.0, %v2404
    %v2406 = vpop.f32.mrb[0].mxu0
    %v2407 = vpop.f32.mrb[0].mxu0
    %v2408 = vpop.f32.mrb[0].mxu0
    %2409 = vdwg.mxu0
    %v2410 = vld [vmem:[%s1008] sm:$0xff]
    %v2411 = vld [vmem:[%s1008 + $0x8] sm:$0xff]
    %v2412 = vld [vmem:[%s1008 + $0x10] sm:$0xff]
    %v2413 = vadd.f32 %v2410, %v2364
    %v2414 = vxor.u32 %v2413, 2147483648
    %v2415 = vmul.f32 %v2414, 1.442695
    %v2416 = vpow.pop %v2415
    %v2417 = vadd.f32 %v2416, 1.0
    %v2418 = vrcp.pop %v2417
    %v2419 = vmul.f32 1.0, %v2418
    %v2420 = vadd.f32 %v2411, %v2366
    %v2421 = vxor.u32 %v2420, 2147483648
    %v2422 = vmul.f32 %v2421, 1.442695
    %v2423 = vpow.pop %v2422
    %v2424 = vadd.f32 %v2423, 1.0
    %v2425 = vrcp.pop %v2424
    %v2426 = vmul.f32 1.0, %v2425
    %v2427 = vadd.f32 %v2405, %v1772
    %v2428 = vmul.f32 %v2419, %v2427
    %v2429 = vadd.f32 %v2412, %v2428
    %v2430 = vtanh.pop %v2429
    %v2431 = vsub.f32 %v2327, %v2430
    %v2432 = vmul.f32 %v2426, %v2431
    %v2433 = vadd.f32 %v2430, %v2432
    %v2434 = vpack.c.bf16 %v2433, %v2433
    %2435 = vmatprep.subr.bf16.mxu0 %v1858
    %2436 = vmatpush1.bf16.msra.mxu0 %v1857
    %2437 = vmatprep.subr.bf16.mxu0 %v1861
    %2438 = vmatpush1.bf16.msra.mxu0 %v1860
    %2439 = vmatprep.subr.bf16.mxu0 %v1864
    %2440 = vmatpush1.bf16.msra.mxu0 %v1863
    %2441 = vmatprep.subr.bf16.mxu0 %v1867
    %2442 = vmatpush1.bf16.msra.mxu0 %v1866
    %2443 = vmatprep.subr.bf16.mxu0 %v1870
    %2444 = vmatpush1.bf16.msra.mxu0 %v1869
    %2445 = vmatprep.subr.bf16.mxu0 %v1873
    %2446 = vmatpush1.bf16.msra.mxu0 %v1872
    %2447 = vmatprep.subr.bf16.mxu0 %v1876
    %2448 = vmatpush1.bf16.msra.mxu0 %v1875
    %2449 = vmatprep.subr.bf16.mxu0 %v1879
    %2450 = vmatpush1.bf16.msra.mxu0 %v1878
    %2451 = vmatprep.subr.bf16.mxu0 0
    %2452 = vmatpush1.bf16.msra.mxu0 0
    %2453 = vmatprep.subr.bf16.mxu0 0
    %2454 = vmatpush1.bf16.msra.mxu0 0
    %2455 = vmatprep.subr.bf16.mxu0 0
    %2456 = vmatpush1.bf16.msra.mxu0 0
    %2457 = vmatprep.subr.bf16.mxu0 0
    %2458 = vmatpush1.bf16.msra.mxu0 0
    %2459 = vmatprep.subr.bf16.mxu0 0
    %2460 = vmatpush1.bf16.msra.mxu0 0
    %2461 = vmatprep.subr.bf16.mxu0 0
    %2462 = vmatpush1.bf16.msra.mxu0 0
    %2463 = vmatprep.subr.bf16.mxu0 0
    %2464 = vmatpush1.bf16.msra.mxu0 0
    %2465 = vmatprep.subr.bf16.mxu0 0
    %2466 = vmatpush1.bf16.msra.mxu0 0
    %2467 = vmatprep.mubr.bf16.mxu0 0
    %2468 = vmatmul.mubr.bf16.gmra.mrb[0].mxu0 %v2434
    %v2469 = vpop.f32.mrb[0].mxu0
    %v2470 = vadd.f32 0.0, %v2469
    %v2471 = vpop.f32.mrb[0].mxu0
    %v2472 = vadd.f32 0.0, %v2471
    %v2473 = vpop.f32.mrb[0].mxu0
    %v2474 = vpop.f32.mrb[0].mxu0
    %2475 = vdwg.mxu0
    %2476 = vmatprep.subr.bf16.mxu0 0
    %2477 = vmatpush1.bf16.msra.mxu0 %v1859
    %2478 = vmatprep.subr.bf16.mxu0 0
    %2479 = vmatpush1.bf16.msra.mxu0 %v1862
    %2480 = vmatprep.subr.bf16.mxu0 0
    %2481 = vmatpush1.bf16.msra.mxu0 %v1865
    %2482 = vmatprep.subr.bf16.mxu0 0
    %2483 = vmatpush1.bf16.msra.mxu0 %v1868
    %2484 = vmatprep.subr.bf16.mxu0 0
    %2485 = vmatpush1.bf16.msra.mxu0 %v1871
    %2486 = vmatprep.subr.bf16.mxu0 0
    %2487 = vmatpush1.bf16.msra.mxu0 %v1874
    %2488 = vmatprep.subr.bf16.mxu0 0
    %2489 = vmatpush1.bf16.msra.mxu0 %v1877
    %2490 = vmatprep.subr.bf16.mxu0 0
    %2491 = vmatpush1.bf16.msra.mxu0 %v1880
    %2492 = vmatprep.subr.bf16.mxu0 0
    %2493 = vmatpush1.bf16.msra.mxu0 0
    %2494 = vmatprep.subr.bf16.mxu0 0
    %2495 = vmatpush1.bf16.msra.mxu0 0
    %2496 = vmatprep.subr.bf16.mxu0 0
    %2497 = vmatpush1.bf16.msra.mxu0 0
    %2498 = vmatprep.subr.bf16.mxu0 0
    %2499 = vmatpush1.bf16.msra.mxu0 0
    %2500 = vmatprep.subr.bf16.mxu0 0
    %2501 = vmatpush1.bf16.msra.mxu0 0
    %2502 = vmatprep.subr.bf16.mxu0 0
    %2503 = vmatpush1.bf16.msra.mxu0 0
    %2504 = vmatprep.subr.bf16.mxu0 0
    %2505 = vmatpush1.bf16.msra.mxu0 0
    %2506 = vmatprep.subr.bf16.mxu0 0
    %2507 = vmatpush1.bf16.msra.mxu0 0
    %2508 = vmatprep.mubr.bf16.mxu0 0
    %2509 = vmatmul.mubr.bf16.gmra.mrb[0].mxu0 %v2434
    %v2510 = vpop.f32.mrb[0].mxu0
    %v2511 = vadd.f32 0.0, %v2510
    %v2512 = vpop.f32.mrb[0].mxu0
    %v2513 = vpop.f32.mrb[0].mxu0
    %v2514 = vpop.f32.mrb[0].mxu0
    %2515 = vdwg.mxu0
    %v2516 = vld [vmem:[%s1117] sm:$0xff]
    %v2517 = vld [vmem:[%s1117 + $0x8] sm:$0xff]
    %v2518 = vld [vmem:[%s1117 + $0x10] sm:$0xff]
    %v2519 = vadd.f32 %v2516, %v2470
    %v2520 = vxor.u32 %v2519, 2147483648
    %v2521 = vmul.f32 %v2520, 1.442695
    %v2522 = vpow.pop %v2521
    %v2523 = vadd.f32 %v2522, 1.0
    %v2524 = vrcp.pop %v2523
    %v2525 = vmul.f32 1.0, %v2524
    %v2526 = vadd.f32 %v2517, %v2472
    %v2527 = vxor.u32 %v2526, 2147483648
    %v2528 = vmul.f32 %v2527, 1.442695
    %v2529 = vpow.pop %v2528
    %v2530 = vadd.f32 %v2529, 1.0
    %v2531 = vrcp.pop %v2530
    %v2532 = vmul.f32 1.0, %v2531
    %v2533 = vadd.f32 %v2511, %v1772
    %v2534 = vmul.f32 %v2525, %v2533
    %v2535 = vadd.f32 %v2518, %v2534
    %v2536 = vtanh.pop %v2535
    %v2537 = vsub.f32 %v2433, %v2536
    %v2538 = vmul.f32 %v2532, %v2537
    %v2539 = vadd.f32 %v2536, %v2538
    %v2540 = vpack.c.bf16 %v2539, %v2539
    %2541 = vmatprep.subr.bf16.mxu0 %v1858
    %2542 = vmatpush1.bf16.msra.mxu0 %v1857
    %2543 = vmatprep.subr.bf16.mxu0 %v1861
    %2544 = vmatpush1.bf16.msra.mxu0 %v1860
    %2545 = vmatprep.subr.bf16.mxu0 %v1864
    %2546 = vmatpush1.bf16.msra.mxu0 %v1863
    %2547 = vmatprep.subr.bf16.mxu0 %v1867
    %2548 = vmatpush1.bf16.msra.mxu0 %v1866
    %2549 = vmatprep.subr.bf16.mxu0 %v1870
    %2550 = vmatpush1.bf16.msra.mxu0 %v1869
    %2551 = vmatprep.subr.bf16.mxu0 %v1873
    %2552 = vmatpush1.bf16.msra.mxu0 %v1872
    %2553 = vmatprep.subr.bf16.mxu0 %v1876
    %2554 = vmatpush1.bf16.msra.mxu0 %v1875
    %2555 = vmatprep.subr.bf16.mxu0 %v1879
    %2556 = vmatpush1.bf16.msra.mxu0 %v1878
    %2557 = vmatprep.subr.bf16.mxu0 0
    %2558 = vmatpush1.bf16.msra.mxu0 0
    %2559 = vmatprep.subr.bf16.mxu0 0
    %2560 = vmatpush1.bf16.msra.mxu0 0
    %2561 = vmatprep.subr.bf16.mxu0 0
    %2562 = vmatpush1.bf16.msra.mxu0 0
    %2563 = vmatprep.subr.bf16.mxu0 0
    %2564 = vmatpush1.bf16.msra.mxu0 0
    %2565 = vmatprep.subr.bf16.mxu0 0
    %2566 = vmatpush1.bf16.msra.mxu0 0
    %2567 = vmatprep.subr.bf16.mxu0 0
    %2568 = vmatpush1.bf16.msra.mxu0 0
    %2569 = vmatprep.subr.bf16.mxu0 0
    %2570 = vmatpush1.bf16.msra.mxu0 0
    %2571 = vmatprep.subr.bf16.mxu0 0
    %2572 = vmatpush1.bf16.msra.mxu0 0
    %2573 = vmatprep.mubr.bf16.mxu0 0
    %2574 = vmatmul.mubr.bf16.gmra.mrb[0].mxu0 %v2540
    %v2575 = vpop.f32.mrb[0].mxu0
    %v2576 = vadd.f32 0.0, %v2575
    %v2577 = vpop.f32.mrb[0].mxu0
    %v2578 = vadd.f32 0.0, %v2577
    %v2579 = vpop.f32.mrb[0].mxu0
    %v2580 = vpop.f32.mrb[0].mxu0
    %2581 = vdwg.mxu0
    %2582 = vmatprep.subr.bf16.mxu0 0
    %2583 = vmatpush1.bf16.msra.mxu0 %v1859
    %2584 = vmatprep.subr.bf16.mxu0 0
    %2585 = vmatpush1.bf16.msra.mxu0 %v1862
    %2586 = vmatprep.subr.bf16.mxu0 0
    %2587 = vmatpush1.bf16.msra.mxu0 %v1865
    %2588 = vmatprep.subr.bf16.mxu0 0
    %2589 = vmatpush1.bf16.msra.mxu0 %v1868
    %2590 = vmatprep.subr.bf16.mxu0 0
    %2591 = vmatpush1.bf16.msra.mxu0 %v1871
    %2592 = vmatprep.subr.bf16.mxu0 0
    %2593 = vmatpush1.bf16.msra.mxu0 %v1874
    %2594 = vmatprep.subr.bf16.mxu0 0
    %2595 = vmatpush1.bf16.msra.mxu0 %v1877
    %2596 = vmatprep.subr.bf16.mxu0 0
    %2597 = vmatpush1.bf16.msra.mxu0 %v1880
    %2598 = vmatprep.subr.bf16.mxu0 0
    %2599 = vmatpush1.bf16.msra.mxu0 0
    %2600 = vmatprep.subr.bf16.mxu0 0
    %2601 = vmatpush1.bf16.msra.mxu0 0
    %2602 = vmatprep.subr.bf16.mxu0 0
    %2603 = vmatpush1.bf16.msra.mxu0 0
    %2604 = vmatprep.subr.bf16.mxu0 0
    %2605 = vmatpush1.bf16.msra.mxu0 0
    %2606 = vmatprep.subr.bf16.mxu0 0
    %2607 = vmatpush1.bf16.msra.mxu0 0
    %2608 = vmatprep.subr.bf16.mxu0 0
    %2609 = vmatpush1.bf16.msra.mxu0 0
    %2610 = vmatprep.subr.bf16.mxu0 0
    %2611 = vmatpush1.bf16.msra.mxu0 0
    %2612 = vmatprep.subr.bf16.mxu0 0
    %2613 = vmatpush1.bf16.msra.mxu0 0
    %2614 = vmatprep.mubr.bf16.mxu0 0
    %2615 = vmatmul.mubr.bf16.gmra.mrb[0].mxu0 %v2540
    %v2616 = vpop.f32.mrb[0].mxu0
    %v2617 = vadd.f32 0.0, %v2616
    %v2618 = vpop.f32.mrb[0].mxu0
    %v2619 = vpop.f32.mrb[0].mxu0
    %v2620 = vpop.f32.mrb[0].mxu0
    %2621 = vdwg.mxu0
    %v2622 = vld [vmem:[%s1226] sm:$0xff]
    %v2623 = vld [vmem:[%s1226 + $0x8] sm:$0xff]
    %v2624 = vld [vmem:[%s1226 + $0x10] sm:$0xff]
    %v2625 = vadd.f32 %v2622, %v2576
    %v2626 = vxor.u32 %v2625, 2147483648
    %v2627 = vmul.f32 %v2626, 1.442695
    %v2628 = vpow.pop %v2627
    %v2629 = vadd.f32 %v2628, 1.0
    %v2630 = vrcp.pop %v2629
    %v2631 = vmul.f32 1.0, %v2630
    %v2632 = vadd.f32 %v2623, %v2578
    %v2633 = vxor.u32 %v2632, 2147483648
    %v2634 = vmul.f32 %v2633, 1.442695
    %v2635 = vpow.pop %v2634
    %v2636 = vadd.f32 %v2635, 1.0
    %v2637 = vrcp.pop %v2636
    %v2638 = vmul.f32 1.0, %v2637
    %v2639 = vadd.f32 %v2617, %v1772
    %v2640 = vmul.f32 %v2631, %v2639
    %v2641 = vadd.f32 %v2624, %v2640
    %v2642 = vtanh.pop %v2641
    %v2643 = vsub.f32 %v2539, %v2642
    %v2644 = vmul.f32 %v2638, %v2643
    %v2645 = vadd.f32 %v2642, %v2644
    %v2646 = vpack.c.bf16 %v2645, %v2645
    %2647 = vmatprep.subr.bf16.mxu0 %v1858
    %2648 = vmatpush1.bf16.msra.mxu0 %v1857
    %2649 = vmatprep.subr.bf16.mxu0 %v1861
    %2650 = vmatpush1.bf16.msra.mxu0 %v1860
    %2651 = vmatprep.subr.bf16.mxu0 %v1864
    %2652 = vmatpush1.bf16.msra.mxu0 %v1863
    %2653 = vmatprep.subr.bf16.mxu0 %v1867
    %2654 = vmatpush1.bf16.msra.mxu0 %v1866
    %2655 = vmatprep.subr.bf16.mxu0 %v1870
    %2656 = vmatpush1.bf16.msra.mxu0 %v1869
    %2657 = vmatprep.subr.bf16.mxu0 %v1873
    %2658 = vmatpush1.bf16.msra.mxu0 %v1872
    %2659 = vmatprep.subr.bf16.mxu0 %v1876
    %2660 = vmatpush1.bf16.msra.mxu0 %v1875
    %2661 = vmatprep.subr.bf16.mxu0 %v1879
    %2662 = vmatpush1.bf16.msra.mxu0 %v1878
    %2663 = vmatprep.subr.bf16.mxu0 0
    %2664 = vmatpush1.bf16.msra.mxu0 0
    %2665 = vmatprep.subr.bf16.mxu0 0
    %2666 = vmatpush1.bf16.msra.mxu0 0
    %2667 = vmatprep.subr.bf16.mxu0 0
    %2668 = vmatpush1.bf16.msra.mxu0 0
    %2669 = vmatprep.subr.bf16.mxu0 0
    %2670 = vmatpush1.bf16.msra.mxu0 0
    %2671 = vmatprep.subr.bf16.mxu0 0
    %2672 = vmatpush1.bf16.msra.mxu0 0
    %2673 = vmatprep.subr.bf16.mxu0 0
    %2674 = vmatpush1.bf16.msra.mxu0 0
    %2675 = vmatprep.subr.bf16.mxu0 0
    %2676 = vmatpush1.bf16.msra.mxu0 0
    %2677 = vmatprep.subr.bf16.mxu0 0
    %2678 = vmatpush1.bf16.msra.mxu0 0
    %2679 = vmatprep.mubr.bf16.mxu0 0
    %2680 = vmatmul.mubr.bf16.gmra.mrb[0].mxu0 %v2646
    %v2681 = vpop.f32.mrb[0].mxu0
    %v2682 = vadd.f32 0.0, %v2681
    %v2683 = vpop.f32.mrb[0].mxu0
    %v2684 = vadd.f32 0.0, %v2683
    %v2685 = vpop.f32.mrb[0].mxu0
    %v2686 = vpop.f32.mrb[0].mxu0
    %2687 = vdwg.mxu0
    %2688 = vmatprep.subr.bf16.mxu0 0
    %2689 = vmatpush1.bf16.msra.mxu0 %v1859
    %2690 = vmatprep.subr.bf16.mxu0 0
    %2691 = vmatpush1.bf16.msra.mxu0 %v1862
    %2692 = vmatprep.subr.bf16.mxu0 0
    %2693 = vmatpush1.bf16.msra.mxu0 %v1865
    %2694 = vmatprep.subr.bf16.mxu0 0
    %2695 = vmatpush1.bf16.msra.mxu0 %v1868
    %2696 = vmatprep.subr.bf16.mxu0 0
    %2697 = vmatpush1.bf16.msra.mxu0 %v1871
    %2698 = vmatprep.subr.bf16.mxu0 0
    %2699 = vmatpush1.bf16.msra.mxu0 %v1874
    %2700 = vmatprep.subr.bf16.mxu0 0
    %2701 = vmatpush1.bf16.msra.mxu0 %v1877
    %2702 = vmatprep.subr.bf16.mxu0 0
    %2703 = vmatpush1.bf16.msra.mxu0 %v1880
    %2704 = vmatprep.subr.bf16.mxu0 0
    %2705 = vmatpush1.bf16.msra.mxu0 0
    %2706 = vmatprep.subr.bf16.mxu0 0
    %2707 = vmatpush1.bf16.msra.mxu0 0
    %2708 = vmatprep.subr.bf16.mxu0 0
    %2709 = vmatpush1.bf16.msra.mxu0 0
    %2710 = vmatprep.subr.bf16.mxu0 0
    %2711 = vmatpush1.bf16.msra.mxu0 0
    %2712 = vmatprep.subr.bf16.mxu0 0
    %2713 = vmatpush1.bf16.msra.mxu0 0
    %2714 = vmatprep.subr.bf16.mxu0 0
    %2715 = vmatpush1.bf16.msra.mxu0 0
    %2716 = vmatprep.subr.bf16.mxu0 0
    %2717 = vmatpush1.bf16.msra.mxu0 0
    %2718 = vmatprep.subr.bf16.mxu0 0
    %2719 = vmatpush1.bf16.msra.mxu0 0
    %2720 = vmatprep.mubr.bf16.mxu0 0
    %2721 = vmatmul.mubr.bf16.gmra.mrb[0].mxu0 %v2646
    %v2722 = vpop.f32.mrb[0].mxu0
    %v2723 = vadd.f32 0.0, %v2722
    %v2724 = vpop.f32.mrb[0].mxu0
    %v2725 = vpop.f32.mrb[0].mxu0
    %v2726 = vpop.f32.mrb[0].mxu0
    %2727 = vdwg.mxu0
    %v2728 = vld [vmem:[%s1335] sm:$0xff]
    %v2729 = vld [vmem:[%s1335 + $0x8] sm:$0xff]
    %v2730 = vld [vmem:[%s1335 + $0x10] sm:$0xff]
    %v2731 = vadd.f32 %v2728, %v2682
    %v2732 = vxor.u32 %v2731, 2147483648
    %v2733 = vmul.f32 %v2732, 1.442695
    %v2734 = vpow.pop %v2733
    %v2735 = vadd.f32 %v2734, 1.0
    %v2736 = vrcp.pop %v2735
    %v2737 = vmul.f32 1.0, %v2736
    %v2738 = vadd.f32 %v2729, %v2684
    %v2739 = vxor.u32 %v2738, 2147483648
    %v2740 = vmul.f32 %v2739, 1.442695
    %v2741 = vpow.pop %v2740
    %v2742 = vadd.f32 %v2741, 1.0
    %v2743 = vrcp.pop %v2742
    %v2744 = vmul.f32 1.0, %v2743
    %v2745 = vadd.f32 %v2723, %v1772
    %v2746 = vmul.f32 %v2737, %v2745
    %v2747 = vadd.f32 %v2730, %v2746
    %v2748 = vtanh.pop %v2747
    %v2749 = vsub.f32 %v2645, %v2748
    %v2750 = vmul.f32 %v2744, %v2749
    %v2751 = vadd.f32 %v2748, %v2750
    %2752 = vst [vmem:[%s1774] sm:$0xff] %v2751
    // Predicated region
    $region66: #{tpu_custom_call.1} parent=1 // pred_check
      %p2753 = pneg %p84
    $region67: #{tpu_custom_call.1} parent=1 // pred_check_branch
      %2755 = sbr.rel (%p2753) target = $region69
    $region68: #{tpu_custom_call.1} parent=1 // pred_region
      %v2756 = vld [vmem:[%s1774] sm:$0xff]
      %v2757 = vpack.c.bf16 %v2756, %v2756
      %v2758 = vld [vmem:[%s10] sm:$0xf]
      %v2759 = vld [vmem:[%s10 + $0x4] sm:$0xf]
      %v2760 = vld [vmem:[%s10 + $0x8] sm:$0xf]
      %v2761 = vld [vmem:[%s10 + $0xc] sm:$0xf]
      %v2762 = vld [vmem:[%s10 + $0x10] sm:$0xf]
      %v2763 = vld [vmem:[%s10 + $0x14] sm:$0xf]
      %v2764 = vld [vmem:[%s10 + $0x18] sm:$0xf]
      %v2765 = vld [vmem:[%s10 + $0x1c] sm:$0xf]
      %v2766 = vld [vmem:[%s10 + $0x20] sm:$0xf]
      %v2767 = vld [vmem:[%s10 + $0x24] sm:$0xf]
      %v2768 = vld [vmem:[%s10 + $0x28] sm:$0xf]
      %v2769 = vld [vmem:[%s10 + $0x2c] sm:$0xf]
      %v2770 = vld [vmem:[%s10 + $0x30] sm:$0xf]
      %v2771 = vld [vmem:[%s10 + $0x34] sm:$0xf]
      %v2772 = vld [vmem:[%s10 + $0x38] sm:$0xf]
      %v2773 = vld [vmem:[%s10 + $0x3c] sm:$0xf]
      %v2774 = vld [vmem:[%s11] sm:$0x1]
      %v2776 = vlaneseq
      %v2777 = vshrl.u32 %v2776, 7
      %v2778 = vsub.s32 0, %v2777
      %v2779 = vrot.slane %v2774, %v2778
      %v2797 = vunpack.c.l.b16 %v2758
      %v2798 = vunpack.c.l.b16 %v2759
      %v2799 = vunpack.c.l.b16 %v2760
      %v2800 = vunpack.c.l.b16 %v2761
      %v2801 = vunpack.c.l.b16 %v2762
      %v2802 = vunpack.c.l.b16 %v2763
      %v2803 = vunpack.c.l.b16 %v2764
      %v2804 = vunpack.c.l.b16 %v2765
      %v2805 = vunpack.c.l.b16 %v2766
      %v2806 = vunpack.c.l.b16 %v2767
      %v2807 = vunpack.c.l.b16 %v2768
      %v2808 = vunpack.c.l.b16 %v2769
      %v2809 = vunpack.c.l.b16 %v2770
      %v2810 = vunpack.c.l.b16 %v2771
      %v2811 = vunpack.c.l.b16 %v2772
      %v2812 = vunpack.c.l.b16 %v2773
      %v2813 = vpack.c.b16 %v2798, %v2797
      %v2814 = vpack.c.b16 %v2800, %v2799
      %v2815 = vpack.c.b16 %v2802, %v2801
      %v2816 = vpack.c.b16 %v2804, %v2803
      %v2817 = vpack.c.b16 %v2806, %v2805
      %v2818 = vpack.c.b16 %v2808, %v2807
      %v2819 = vpack.c.b16 %v2810, %v2809
      %v2820 = vpack.c.b16 %v2812, %v2811
      %2829 = vmatprep.subr.bf16.mxu0 0
      %2830 = vmatpush1.bf16.msra.mxu0 %v2813
      %2831 = vmatprep.subr.bf16.mxu0 0
      %2832 = vmatpush1.bf16.msra.mxu0 %v2814
      %2833 = vmatprep.subr.bf16.mxu0 0
      %2834 = vmatpush1.bf16.msra.mxu0 %v2815
      %2835 = vmatprep.subr.bf16.mxu0 0
      %2836 = vmatpush1.bf16.msra.mxu0 %v2816
      %2837 = vmatprep.subr.bf16.mxu0 0
      %2838 = vmatpush1.bf16.msra.mxu0 %v2817
      %2839 = vmatprep.subr.bf16.mxu0 0
      %2840 = vmatpush1.bf16.msra.mxu0 %v2818
      %2841 = vmatprep.subr.bf16.mxu0 0
      %2842 = vmatpush1.bf16.msra.mxu0 %v2819
      %2843 = vmatprep.subr.bf16.mxu0 0
      %2844 = vmatpush1.bf16.msra.mxu0 %v2820
      %2845 = vmatprep.subr.bf16.mxu0 0
      %2846 = vmatpush1.bf16.msra.mxu0 0
      %2847 = vmatprep.subr.bf16.mxu0 0
      %2848 = vmatpush1.bf16.msra.mxu0 0
      %2849 = vmatprep.subr.bf16.mxu0 0
      %2850 = vmatpush1.bf16.msra.mxu0 0
      %2851 = vmatprep.subr.bf16.mxu0 0
      %2852 = vmatpush1.bf16.msra.mxu0 0
      %2853 = vmatprep.subr.bf16.mxu0 0
      %2854 = vmatpush1.bf16.msra.mxu0 0
      %2855 = vmatprep.subr.bf16.mxu0 0
      %2856 = vmatpush1.bf16.msra.mxu0 0
      %2857 = vmatprep.subr.bf16.mxu0 0
      %2858 = vmatpush1.bf16.msra.mxu0 0
      %2859 = vmatprep.subr.bf16.mxu0 0
      %2860 = vmatpush1.bf16.msra.mxu0 0
      %2861 = vmatprep.mubr.bf16.mxu0 0
      %2862 = vmatmul.mubr.bf16.gmra.mrb[0].mxu0 %v2757
      %v2863 = vpop.f32.mrb[0].mxu0
      %v2864 = vadd.f32 %v2779, %v2863
      %v2865 = vpop.f32.mrb[0].mxu0
      %v2866 = vpop.f32.mrb[0].mxu0
      %v2867 = vpop.f32.mrb[0].mxu0
      %2868 = vdwg.mxu0
      %2869 = vst [vmem:[#allocation11] sm:$0xff] %v2864
    $region69: #{tpu_custom_call.1} parent=1 // pred_fallthru
      _
    // Predicated region
    $region70: #{tpu_custom_call.1} parent=1 // pred_check
      _
    $region71: #{tpu_custom_call.1} parent=1 // pred_check_branch
      %2871 = sbr.rel (0) target = $region73
    $region72: #{tpu_custom_call.1} parent=1 // pred_region
      %s2873 = ssub.s32 128, 128
      %2874 = vsyncadd [#allocation7], %s2873
      %s2876 = sshll.u32 [#allocation11], 4
      %s2877 = int_to_ptr.vmem [resolvable:$true] %s2876
      %2879 = dma.vmem_to_hbm [thread:$0]  %s2877, 128, %s12, [#allocation7]
    $region73: #{tpu_custom_call.1} parent=1 // pred_fallthru
      _
    // Predicated region
    $region74: #{tpu_custom_call.1} parent=1 // pred_check
      _
    $region75: #{tpu_custom_call.1} parent=1 // pred_check_branch
      %2881 = sbr.rel (0) target = $region77
    $region76: #{tpu_custom_call.1} parent=1 // pred_region
      %2882 = dma.done [#allocation7], 128
    $region77: #{tpu_custom_call.1} parent=1 // pred_fallthru
      _
    %2883 = vsyncpa [#allocation6], 1
    %2884 = vsyncpa [#allocation9], 1
    %2885 = vsyncpa [#allocation7], 1

</llo_original>
